<compile_context>
chip_gen: v5e
topology: v5e:2x2
jax: 0.10.0
libtpu: 0.0.40
codegen_flags: <defaults>
</compile_context>

<pallas_src>
import functools
import math

import jax
import jax.numpy as jnp
from jax.experimental import pallas as pl
from jax.experimental.pallas import tpu as pltpu

NEG_INF = -1e9  # additive mask bias == masked_fill(mask == 0, -1e9) semantics


# ----------------------------------------------------------------------------- in-kernel helpers

def _layernorm(x, g, b, eps=1e-5):
    mu = jnp.mean(x, axis=-1, keepdims=True)
    xc = x - mu
    var = jnp.mean(xc * xc, axis=-1, keepdims=True)
    return xc * jax.lax.rsqrt(var + eps) * g + b


def _bmm(lhs, rhs, dims):
    """Heads-leading batched matmul on the MXU with f32 accumulation."""
    return jax.lax.dot_general(lhs, rhs, dims, preferred_element_type=jnp.float32)


# dimension_numbers for the heads-leading batched einsums
_PROJ  = (((2,), (1,)), ((0,), (0,)))   # (H,S,D)   x (H,D,dk)  -> (H,S,dk)
_QKT   = (((2,), (2,)), ((0,), (0,)))   # (H,Sq,dk) x (H,Sk,dk) -> (H,Sq,Sk)
_PV    = (((2,), (1,)), ((0,), (0,)))   # (H,Sq,Sk) x (H,Sk,dk) -> (H,Sq,dk)
_OPROJ = (((2,), (1,)), ((0,), (0,)))   # (H,Sq,dk) x (H,dk,D)  -> (H,Sq,D)


def _mha(q_in, kv_in, bias, wq, bq, wkv, bkv, wo, bo):
    """Multi-head attention with heads as a leading batch axis (no per-head loop).

    q_in (Sq, D) f32, kv_in (Sk, D) f32.
    wq (H, D, dk) bf16 (1/sqrt(dk) pre-folded), wkv (2H, D, dk) bf16 (K heads
    then V heads), wo (H, dk, D) bf16; biases f32.
    bias: additive score bias broadcastable to (H, Sq, Sk): 0 keep / -1e9 drop.
    """
    H = wq.shape[0]
    q_b = jnp.broadcast_to(q_in.astype(jnp.bfloat16)[None], (H,) + q_in.shape)
    kv_b = jnp.broadcast_to(kv_in.astype(jnp.bfloat16)[None], (2 * H,) + kv_in.shape)
    qh = _bmm(q_b, wq, _PROJ) + bq                                     # (H, Sq, dk) f32
    kvh = _bmm(kv_b, wkv, _PROJ) + bkv                                 # (2H, Sk, dk) f32
    kh, vh = kvh[:H], kvh[H:]                                          # leading-dim slices
    s = _bmm(qh.astype(jnp.bfloat16), kh.astype(jnp.bfloat16), _QKT) + bias
    s = s - jnp.max(s, axis=-1, keepdims=True)
    p = jnp.exp(s)
    p = p / jnp.sum(p, axis=-1, keepdims=True)     # exact normalization (scoring-safe)
    ctx = _bmm(p.astype(jnp.bfloat16), vh.astype(jnp.bfloat16), _PV)   # (H, Sq, dk)
    y = _bmm(ctx.astype(jnp.bfloat16), wo, _OPROJ)                     # (H, Sq, D)
    return jnp.sum(y, axis=0) + bo                                     # (Sq, D)  (tree-reduced)


def _ffn(x, w1, b1, w2, b2):
    h = jnp.dot(x.astype(jnp.bfloat16), w1, preferred_element_type=jnp.float32) + b1
    h = jnp.maximum(h, 0.0)
    return jnp.dot(h.astype(jnp.bfloat16), w2, preferred_element_type=jnp.float32) + b2


# ----------------------------------------------------------------------------- fused forward kernel

def _transformer_kernel(x_src_ref, x_trg_ref, src_bias_ref, trg_pad_ref,
                        *rest, treedef, n_layers):
    # rest = (weight refs in tree_flatten order ..., output ref)
    *w_refs, o_ref = rest
    p = jax.tree_util.tree_unflatten(treedef, list(w_refs))

    x_src = x_src_ref[0]            # (Ss, D) f32
    x_trg = x_trg_ref[0]            # (St, D) f32
    src_bias = src_bias_ref[0]      # (1, Ss) additive
    St = x_trg.shape[0]

    # causal (subsequent) part of C_mask rebuilt in-kernel from iota; only the
    # (1, St) padding row was DMA'd.
    rows = jax.lax.broadcasted_iota(jnp.int32, (St, St), 0)
    cols = jax.lax.broadcasted_iota(jnp.int32, (St, St), 1)
    trg_bias = jnp.where(rows >= cols, 0.0, NEG_INF).astype(jnp.float32) + trg_pad_ref[0]

    # ---- encoder (pre-norm residual sublayers) -----------------------------
    enc = p["enc"]
    mem = x_src
    for l in range(n_layers):
        xn = _layernorm(mem, enc["ln1_g"][l], enc["ln1_b"][l])
        mem = mem + _mha(xn, xn, src_bias, enc["wq"][l], enc["bq"][l],
                         enc["wkv"][l], enc["bkv"][l], enc["wo"][l], enc["bo"][l])
        xn = _layernorm(mem, enc["ln2_g"][l], enc["ln2_b"][l])
        mem = mem + _ffn(xn, enc["w1"][l], enc["b1"][l], enc["w2"][l], enc["b2"][l])

    # ---- decoder ------------------------------------------------------------
    dec = p["dec"]
    out = x_trg
    for l in range(n_layers):
        xn = _layernorm(out, dec["ln1_g"][l], dec["ln1_b"][l])
        out = out + _mha(xn, xn, trg_bias,
                         dec["self_wq"][l], dec["self_bq"][l],
                         dec["self_wkv"][l], dec["self_bkv"][l],
                         dec["self_wo"][l], dec["self_bo"][l])
        xn = _layernorm(out, dec["ln2_g"][l], dec["ln2_b"][l])
        out = out + _mha(xn, mem, src_bias,
                         dec["cross_wq"][l], dec["cross_bq"][l],
                         dec["cross_wkv"][l], dec["cross_bkv"][l],
                         dec["cross_wo"][l], dec["cross_bo"][l])
        xn = _layernorm(out, dec["ln3_g"][l], dec["ln3_b"][l])
        out = out + _ffn(xn, dec["w1"][l], dec["b1"][l], dec["w2"][l], dec["b2"][l])

    # ---- generator: Linear + log_softmax over 128-padded vocab -------------
    # padded weight columns are exactly 0, padded bias is -1e9 -> exp underflows to 0.
    logits = jnp.dot(out.astype(jnp.bfloat16), p["gen_w"][...],
                     preferred_element_type=jnp.float32) + p["gen_b"][...]
    m = jnp.max(logits, axis=-1, keepdims=True)
    s = logits - m
    lse = jnp.log(jnp.sum(jnp.exp(s), axis=-1, keepdims=True))
    o_ref[0] = (s - lse).astype(o_ref.dtype)


# ----------------------------------------------------------------------------- pallas_call wrapper

def _batch_spec(a):
    """One batch element per grid step; trailing dims are full (== array dims)."""
    nd = a.ndim

    def im(b):
        return (b,) + (0,) * (nd - 1)

    return pl.BlockSpec((1,) + tuple(a.shape[1:]), im)


def _const_spec(a):
    """Grid-invariant whole-array block (weights: fetched once, reused over B)."""
    nd = a.ndim

    def im(b):
        return (0,) * nd

    return pl.BlockSpec(tuple(a.shape), im)


def transformer_forward(prep, src, trg, masks, *, voc_size):
    # modality == 'video': src = rgb + flow, src_emb = Identity (d_feat == d_model)
    x_src = src["rgb"] + src["flow"]
    B, Ss, D = x_src.shape
    St = trg.shape[1]

    # trg_emb (sqrt(d_model) pre-folded) + positional encoding (precomputed table)
    pe = prep["pos_enc"]
    x_trg = jnp.take(prep["trg_emb"], trg, axis=0) + pe[None, :St, :]
    x_src = x_src + pe[None, :Ss, :]

    # masks -> additive score biases (0 keep / -1e9 drop).
    # C_mask = pad_mask & subsequent_mask (as built by the original pipeline); its
    # last row is the padding row, the causal part is regenerated in-kernel.
    src_bias = (masks["V_mask"].astype(jnp.float32) - 1.0) * 1e9           # (B, 1, Ss)
    trg_pad = (masks["C_mask"][:, -1:, :].astype(jnp.float32) - 1.0) * 1e9  # (B, 1, St)

    weights = prep["weights"]
    leaves, treedef = jax.tree_util.tree_flatten(weights)
    n_layers = weights["enc"]["wq"].shape[0]
    Vp = weights["gen_w"].shape[1]

    args = (x_src, x_trg, src_bias, trg_pad, *leaves)
    in_specs = [_batch_spec(x_src), _batch_spec(x_trg), _batch_spec(src_bias),
                _batch_spec(trg_pad)] + [_const_spec(a) for a in leaves]

    out = pl.pallas_call(
        functools.partial(_transformer_kernel, treedef=treedef, n_layers=n_layers),
        out_shape=jax.ShapeDtypeStruct((B, St, Vp), jnp.float32),
        grid=(B,),
        in_specs=in_specs,
        out_specs=pl.BlockSpec((1, St, Vp), lambda b: (b, 0, 0)),
        compiler_params=pltpu.CompilerParams(
            dimension_semantics=("parallel",),
            vmem_limit_bytes=32 * 1024 * 1024),
    )(*args)
    return out[:, :, :voc_size]


# ----------------------------------------------------------------------------- model glue / params

def positional_encoding_table(max_len, d_model):
    pos = jnp.arange(max_len, dtype=jnp.float32)[:, None]
    i = jnp.arange(0, d_model, 2, dtype=jnp.float32)
    div = jnp.exp(-math.log(10000.0) * i / d_model)
    pe = jnp.zeros((max_len, d_model), jnp.float32)
    pe = pe.at[:, 0::2].set(jnp.sin(pos * div))
    pe = pe.at[:, 1::2].set(jnp.cos(pos * div))
    return pe


def init_params(key, voc_size, d_model, d_ff, H, N):
    keys = iter(jax.random.split(key, 256))

    def xavier(shape):  # nn.init.xavier_uniform_
        bound = math.sqrt(6.0 / (shape[0] + shape[1]))
        return jax.random.uniform(next(keys), shape, jnp.float32, -bound, bound)

    def mha_p():
        return {"wq": xavier((d_model, d_model)), "bq": jnp.zeros((d_model,), jnp.float32),
                "wk": xavier((d_model, d_model)), "bk": jnp.zeros((d_model,), jnp.float32),
                "wv": xavier((d_model, d_model)), "bv": jnp.zeros((d_model,), jnp.float32),
                "wo": xavier((d_model, d_model)), "bo": jnp.zeros((d_model,), jnp.float32)}

    def ln_p():
        return (jnp.ones((d_model,), jnp.float32), jnp.zeros((d_model,), jnp.float32))

    def ff_p():
        return {"w1": xavier((d_model, d_ff)), "b1": jnp.zeros((d_ff,), jnp.float32),
                "w2": xavier((d_ff, d_model)), "b2": jnp.zeros((d_model,), jnp.float32)}

    encoder = [{"att": mha_p(), "ff": ff_p(), "ln1": ln_p(), "ln2": ln_p()} for _ in range(N)]
    decoder = [{"self_att": mha_p(), "enc_att": mha_p(), "ff": ff_p(),
                "ln1": ln_p(), "ln2": ln_p(), "ln3": ln_p()} for _ in range(N)]

    # TODO(synk): trg_emb.init_word_embeddings(GloVe vectors) and the optional
    # pretrained prop-encoder checkpoint load have no in-script equivalent;
    # xavier-initialized weights are used instead.
    return {
        "d_model": d_model,
        "trg_emb": xavier((voc_size, d_model)),
        "encoder": encoder,
        "decoder": decoder,
        "gen_w": xavier((d_model, voc_size)),
        "gen_b": jnp.zeros((voc_size,), jnp.float32),
    }


def prepare_params(params, H, max_len):
    """One-time rewrite of PyTorch-layout weights into the fused-kernel layout:
       - per-head stacked projections (H, D, dk) / (2H, D, dk) / (H, dk, D) for
         heads-leading batched dot_generals; weights cast to bf16 (biases f32),
       - 1/sqrt(d_k) folded into Wq/bq, sqrt(d_model) into the embedding table,
       - generator weight zero-padded / bias (-1e9)-padded to a 128-lane multiple,
       - all per-layer tensors stacked along a leading layer axis (single call)."""
    d_model = params["d_model"]
    dk = d_model // H
    scale = 1.0 / math.sqrt(dk)

    def heads_in(w):      # (D, D) -> (H, D, dk); head h == output cols [h*dk:(h+1)*dk]
        return jnp.transpose(w.reshape(d_model, H, dk), (1, 0, 2))

    def heads_bias(b):    # (D,) -> (H, 1, dk)
        return b.reshape(H, 1, dk)

    def prep_mha(p):
        return {"wq": (heads_in(p["wq"]) * scale).astype(jnp.bfloat16),
                "bq": heads_bias(p["bq"]) * scale,
                "wkv": jnp.concatenate([heads_in(p["wk"]), heads_in(p["wv"])], 0).astype(jnp.bfloat16),
                "bkv": jnp.concatenate([heads_bias(p["bk"]), heads_bias(p["bv"])], 0),
                "wo": p["wo"].reshape(H, dk, d_model).astype(jnp.bfloat16),
                "bo": p["bo"].reshape(1, d_model)}

    def prep_ln(ln):
        g, b = ln
        return g.reshape(1, d_model), b.reshape(1, d_model)

    def prep_ff(p):
        return {"w1": p["w1"].astype(jnp.bfloat16), "b1": p["b1"].reshape(1, -1),
                "w2": p["w2"].astype(jnp.bfloat16), "b2": p["b2"].reshape(1, -1)}

    def stack(dicts):
        return {k: jnp.stack([d[k] for d in dicts]) for k in dicts[0]}

    enc_layers = []
    for lp in params["encoder"]:
        g1, b1 = prep_ln(lp["ln1"])
        g2, b2 = prep_ln(lp["ln2"])
        enc_layers.append({**prep_mha(lp["att"]), **prep_ff(lp["ff"]),
                           "ln1_g": g1, "ln1_b": b1, "ln2_g": g2, "ln2_b": b2})

    dec_layers = []
    for lp in params["decoder"]:
        sa = {f"self_{k}": v for k, v in prep_mha(lp["self_att"]).items()}
        ca = {f"cross_{k}": v for k, v in prep_mha(lp["enc_att"]).items()}
        g1, b1 = prep_ln(lp["ln1"])
        g2, b2 = prep_ln(lp["ln2"])
        g3, b3 = prep_ln(lp["ln3"])
        dec_layers.append({**sa, **ca, **prep_ff(lp["ff"]),
                           "ln1_g": g1, "ln1_b": b1, "ln2_g": g2, "ln2_b": b2,
                           "ln3_g": g3, "ln3_b": b3})

    voc = params["gen_w"].shape[1]
    vp = ((voc + 127) // 128) * 128
    gen_w = jnp.zeros((d_model, vp), jnp.float32).at[:, :voc].set(params["gen_w"])
    gen_b = jnp.full((1, vp), NEG_INF, jnp.float32).at[0, :voc].set(params["gen_b"])

    weights = {"enc": stack(enc_layers), "dec": stack(dec_layers),
               "gen_w": gen_w.astype(jnp.bfloat16), "gen_b": gen_b}

    return {"trg_emb": params["trg_emb"] * math.sqrt(d_model),
            "pos_enc": positional_encoding_table(max_len, d_model),
            "weights": weights}


# ----------------------------------------------------------------------------- pure-JAX reference

def reference_forward(params, src, trg, masks, H):
    d_model = params["d_model"]

    def ln(x, g, b):
        mu = x.mean(-1, keepdims=True)
        var = ((x - mu) ** 2).mean(-1, keepdims=True)
        return (x - mu) / jnp.sqrt(var + 1e-5) * g + b

    def mha(p, q_in, k_in, v_in, mask):
        B, Sq, D = q_in.shape
        Sk = k_in.shape[1]
        dk = D // H
        q = (q_in @ p["wq"] + p["bq"]).reshape(B, Sq, H, dk).transpose(0, 2, 1, 3)
        k = (k_in @ p["wk"] + p["bk"]).reshape(B, Sk, H, dk).transpose(0, 2, 1, 3)
        v = (v_in @ p["wv"] + p["bv"]).reshape(B, Sk, H, dk).transpose(0, 2, 1, 3)
        s = q @ k.transpose(0, 1, 3, 2) / math.sqrt(dk)
        s = jnp.where(mask[:, None] == 0, -1e9, s)
        a = jax.nn.softmax(s, axis=-1)
        o = (a @ v).transpose(0, 2, 1, 3).reshape(B, Sq, D)
        return o @ p["wo"] + p["bo"]

    def ff(p, x):
        return jnp.maximum(x @ p["w1"] + p["b1"], 0.0) @ p["w2"] + p["b2"]

    x_src = src["rgb"] + src["flow"]
    src_mask, trg_mask = masks["V_mask"], masks["C_mask"]
    pe = positional_encoding_table(max(x_src.shape[1], trg.shape[1]), d_model)
    x_trg = jnp.take(params["trg_emb"], trg, axis=0) * math.sqrt(d_model)
    x_src = x_src + pe[None, : x_src.shape[1]]
    x_trg = x_trg + pe[None, : x_trg.shape[1]]

    mem = x_src
    for lp in params["encoder"]:
        x1 = ln(mem, *lp["ln1"])
        mem = mem + mha(lp["att"], x1, x1, x1, src_mask)
        mem = mem + ff(lp["ff"], ln(mem, *lp["ln2"]))

    out = x_trg
    for lp in params["decoder"]:
        x1 = ln(out, *lp["ln1"])
        out = out + mha(lp["self_att"], x1, x1, x1, trg_mask)
        x2 = ln(out, *lp["ln2"])
        out = out + mha(lp["enc_att"], x2, mem, mem, src_mask)
        out = out + ff(lp["ff"], ln(out, *lp["ln3"]))

    logits = out @ params["gen_w"] + params["gen_b"]
    return jax.nn.log_softmax(logits, axis=-1)


# ----------------------------------------------------------------------------- main

if __name__ == "__main__":
    B, Ss, St = 2, 8, 8
    d_model = 32          # == d_feat (use_linear_embedder=False requires d_feat == d_model)
    d_ff = 64
    H = 4
    N = 2
    voc = 50

    key = jax.random.PRNGKey(0)
    k_rgb, k_flow, k_trg, k_par = jax.random.split(key, 4)

    rgb = jax.random.normal(k_rgb, (B, Ss, d_model), jnp.float32)
    flow = jax.random.normal(k_flow, (B, Ss, d_model), jnp.float32)
    trg = jax.random.randint(k_trg, (B, St), 0, voc, dtype=jnp.int32)

    src_mask = jnp.ones((B, 1, Ss), jnp.float32)                                          # V_mask
    trg_mask = jnp.broadcast_to(jnp.tril(jnp.ones((St, St), jnp.float32)), (B, St, St))   # C_mask

    params = init_params(k_par, voc, d_model, d_ff, H, N)
    prep = prepare_params(params, H, max_len=max(Ss, St))

    src = {"rgb": rgb, "flow": flow}
    masks = {"V_mask": src_mask, "C_mask": trg_mask}

    fwd = jax.jit(functools.partial(transformer_forward, voc_size=voc))
    out = jax.block_until_ready(fwd(prep, src, trg, masks))

    assert out.shape == (B, St, voc)
    assert bool(jnp.all(jnp.isfinite(out)))
    # rows of exp(log_softmax) must sum to ~1
    assert bool(jnp.allclose(jnp.exp(out).sum(-1), 1.0, atol=1e-4))

    # pure-JAX f32 reference check (loose tolerance: matmul operands are cast to
    # bf16 in-kernel for the MXU fast path while the reference is full f32)
    ref = reference_forward(params, src, trg, masks, H)
    max_diff = float(jnp.max(jnp.abs(out - ref)))
    assert bool(jnp.allclose(out, ref, atol=0.2, rtol=0.0)), \
        f"max abs diff vs reference = {max_diff}"

    print("KERNEL_OK")
</pallas_src>

<mosaic_0001>
module attributes {stable_mosaic.version = 11 : i64} {
  func.func @_transformer_kernel(%arg0: i32, %arg1: memref<1x8x32xf32, #tpu.memory_space<vmem>>, %arg2: memref<1x8x32xf32, #tpu.memory_space<vmem>>, %arg3: memref<1x1x8xf32, #tpu.memory_space<vmem>>, %arg4: memref<1x1x8xf32, #tpu.memory_space<vmem>>, %arg5: memref<2x1x64xf32, #tpu.memory_space<vmem>>, %arg6: memref<2x1x32xf32, #tpu.memory_space<vmem>>, %arg7: memref<2x8x1x8xf32, #tpu.memory_space<vmem>>, %arg8: memref<2x1x32xf32, #tpu.memory_space<vmem>>, %arg9: memref<2x4x1x8xf32, #tpu.memory_space<vmem>>, %arg10: memref<2x8x32x8xbf16, #tpu.memory_space<vmem>>, %arg11: memref<2x4x8x32xbf16, #tpu.memory_space<vmem>>, %arg12: memref<2x4x32x8xbf16, #tpu.memory_space<vmem>>, %arg13: memref<2x1x32xf32, #tpu.memory_space<vmem>>, %arg14: memref<2x1x32xf32, #tpu.memory_space<vmem>>, %arg15: memref<2x1x32xf32, #tpu.memory_space<vmem>>, %arg16: memref<2x1x32xf32, #tpu.memory_space<vmem>>, %arg17: memref<2x1x32xf32, #tpu.memory_space<vmem>>, %arg18: memref<2x1x32xf32, #tpu.memory_space<vmem>>, %arg19: memref<2x8x1x8xf32, #tpu.memory_space<vmem>>, %arg20: memref<2x1x32xf32, #tpu.memory_space<vmem>>, %arg21: memref<2x4x1x8xf32, #tpu.memory_space<vmem>>, %arg22: memref<2x8x32x8xbf16, #tpu.memory_space<vmem>>, %arg23: memref<2x4x8x32xbf16, #tpu.memory_space<vmem>>, %arg24: memref<2x4x32x8xbf16, #tpu.memory_space<vmem>>, %arg25: memref<2x32x64xbf16, #tpu.memory_space<vmem>>, %arg26: memref<2x64x32xbf16, #tpu.memory_space<vmem>>, %arg27: memref<2x1x64xf32, #tpu.memory_space<vmem>>, %arg28: memref<2x1x32xf32, #tpu.memory_space<vmem>>, %arg29: memref<2x8x1x8xf32, #tpu.memory_space<vmem>>, %arg30: memref<2x1x32xf32, #tpu.memory_space<vmem>>, %arg31: memref<2x4x1x8xf32, #tpu.memory_space<vmem>>, %arg32: memref<2x1x32xf32, #tpu.memory_space<vmem>>, %arg33: memref<2x1x32xf32, #tpu.memory_space<vmem>>, %arg34: memref<2x1x32xf32, #tpu.memory_space<vmem>>, %arg35: memref<2x1x32xf32, #tpu.memory_space<vmem>>, %arg36: memref<2x32x64xbf16, #tpu.memory_space<vmem>>, %arg37: memref<2x64x32xbf16, #tpu.memory_space<vmem>>, %arg38: memref<2x8x32x8xbf16, #tpu.memory_space<vmem>>, %arg39: memref<2x4x8x32xbf16, #tpu.memory_space<vmem>>, %arg40: memref<2x4x32x8xbf16, #tpu.memory_space<vmem>>, %arg41: memref<1x128xf32, #tpu.memory_space<vmem>>, %arg42: memref<32x128xbf16, #tpu.memory_space<vmem>>, %arg43: memref<1x8x128xf32, #tpu.memory_space<vmem>>) attributes {dimension_semantics = [#tpu.dimension_semantics<parallel>], iteration_bounds = array<i64: 2>, scalar_prefetch = 0 : i64, scratch_operands = 0 : i64, tpu.core_type = #tpu.core_type<tc>, window_params = [{transform_indices = @transform_0, window_bounds = array<i64: 1, 8, 32>}, {transform_indices = @transform_1, window_bounds = array<i64: 1, 8, 32>}, {transform_indices = @transform_2, window_bounds = array<i64: 1, 1, 8>}, {transform_indices = @transform_3, window_bounds = array<i64: 1, 1, 8>}, {pipeline_mode = #tpu.pipeline_mode<synchronous>, transform_indices = @transform_4, window_bounds = array<i64: 2, 1, 64>}, {pipeline_mode = #tpu.pipeline_mode<synchronous>, transform_indices = @transform_5, window_bounds = array<i64: 2, 1, 32>}, {pipeline_mode = #tpu.pipeline_mode<synchronous>, transform_indices = @transform_6, window_bounds = array<i64: 2, 8, 1, 8>}, {pipeline_mode = #tpu.pipeline_mode<synchronous>, transform_indices = @transform_7, window_bounds = array<i64: 2, 1, 32>}, {pipeline_mode = #tpu.pipeline_mode<synchronous>, transform_indices = @transform_8, window_bounds = array<i64: 2, 4, 1, 8>}, {pipeline_mode = #tpu.pipeline_mode<synchronous>, transform_indices = @transform_9, window_bounds = array<i64: 2, 8, 32, 8>}, {pipeline_mode = #tpu.pipeline_mode<synchronous>, transform_indices = @transform_10, window_bounds = array<i64: 2, 4, 8, 32>}, {pipeline_mode = #tpu.pipeline_mode<synchronous>, transform_indices = @transform_11, window_bounds = array<i64: 2, 4, 32, 8>}, {pipeline_mode = #tpu.pipeline_mode<synchronous>, transform_indices = @transform_12, window_bounds = array<i64: 2, 1, 32>}, {pipeline_mode = #tpu.pipeline_mode<synchronous>, transform_indices = @transform_13, window_bounds = array<i64: 2, 1, 32>}, {pipeline_mode = #tpu.pipeline_mode<synchronous>, transform_indices = @transform_14, window_bounds = array<i64: 2, 1, 32>}, {pipeline_mode = #tpu.pipeline_mode<synchronous>, transform_indices = @transform_15, window_bounds = array<i64: 2, 1, 32>}, {pipeline_mode = #tpu.pipeline_mode<synchronous>, transform_indices = @transform_16, window_bounds = array<i64: 2, 1, 32>}, {pipeline_mode = #tpu.pipeline_mode<synchronous>, transform_indices = @transform_17, window_bounds = array<i64: 2, 1, 32>}, {pipeline_mode = #tpu.pipeline_mode<synchronous>, transform_indices = @transform_18, window_bounds = array<i64: 2, 8, 1, 8>}, {pipeline_mode = #tpu.pipeline_mode<synchronous>, transform_indices = @transform_19, window_bounds = array<i64: 2, 1, 32>}, {pipeline_mode = #tpu.pipeline_mode<synchronous>, transform_indices = @transform_20, window_bounds = array<i64: 2, 4, 1, 8>}, {pipeline_mode = #tpu.pipeline_mode<synchronous>, transform_indices = @transform_21, window_bounds = array<i64: 2, 8, 32, 8>}, {pipeline_mode = #tpu.pipeline_mode<synchronous>, transform_indices = @transform_22, window_bounds = array<i64: 2, 4, 8, 32>}, {pipeline_mode = #tpu.pipeline_mode<synchronous>, transform_indices = @transform_23, window_bounds = array<i64: 2, 4, 32, 8>}, {pipeline_mode = #tpu.pipeline_mode<synchronous>, transform_indices = @transform_24, window_bounds = array<i64: 2, 32, 64>}, {pipeline_mode = #tpu.pipeline_mode<synchronous>, transform_indices = @transform_25, window_bounds = array<i64: 2, 64, 32>}, {pipeline_mode = #tpu.pipeline_mode<synchronous>, transform_indices = @transform_26, window_bounds = array<i64: 2, 1, 64>}, {pipeline_mode = #tpu.pipeline_mode<synchronous>, transform_indices = @transform_27, window_bounds = array<i64: 2, 1, 32>}, {pipeline_mode = #tpu.pipeline_mode<synchronous>, transform_indices = @transform_28, window_bounds = array<i64: 2, 8, 1, 8>}, {pipeline_mode = #tpu.pipeline_mode<synchronous>, transform_indices = @transform_29, window_bounds = array<i64: 2, 1, 32>}, {pipeline_mode = #tpu.pipeline_mode<synchronous>, transform_indices = @transform_30, window_bounds = array<i64: 2, 4, 1, 8>}, {pipeline_mode = #tpu.pipeline_mode<synchronous>, transform_indices = @transform_31, window_bounds = array<i64: 2, 1, 32>}, {pipeline_mode = #tpu.pipeline_mode<synchronous>, transform_indices = @transform_32, window_bounds = array<i64: 2, 1, 32>}, {pipeline_mode = #tpu.pipeline_mode<synchronous>, transform_indices = @transform_33, window_bounds = array<i64: 2, 1, 32>}, {pipeline_mode = #tpu.pipeline_mode<synchronous>, transform_indices = @transform_34, window_bounds = array<i64: 2, 1, 32>}, {pipeline_mode = #tpu.pipeline_mode<synchronous>, transform_indices = @transform_35, window_bounds = array<i64: 2, 32, 64>}, {pipeline_mode = #tpu.pipeline_mode<synchronous>, transform_indices = @transform_36, window_bounds = array<i64: 2, 64, 32>}, {pipeline_mode = #tpu.pipeline_mode<synchronous>, transform_indices = @transform_37, window_bounds = array<i64: 2, 8, 32, 8>}, {pipeline_mode = #tpu.pipeline_mode<synchronous>, transform_indices = @transform_38, window_bounds = array<i64: 2, 4, 8, 32>}, {pipeline_mode = #tpu.pipeline_mode<synchronous>, transform_indices = @transform_39, window_bounds = array<i64: 2, 4, 32, 8>}, {pipeline_mode = #tpu.pipeline_mode<synchronous>, transform_indices = @transform_40, window_bounds = array<i64: 1, 128>}, {pipeline_mode = #tpu.pipeline_mode<synchronous>, transform_indices = @transform_41, window_bounds = array<i64: 32, 128>}, {transform_indices = @transform_42, window_bounds = array<i64: 1, 8, 128>}]} {
    %c0 = arith.constant 0 : index
    %c0_0 = arith.constant 0 : index
    %c0_1 = arith.constant 0 : index
    %0 = vector.load %arg1[%c0, %c0_0, %c0_1] : memref<1x8x32xf32, #tpu.memory_space<vmem>>, vector<1x8x32xf32>
    %1 = vector.shape_cast %0 : vector<1x8x32xf32> to vector<8x32xf32>
    %c0_2 = arith.constant 0 : index
    %c0_3 = arith.constant 0 : index
    %c0_4 = arith.constant 0 : index
    %2 = vector.load %arg2[%c0_2, %c0_3, %c0_4] : memref<1x8x32xf32, #tpu.memory_space<vmem>>, vector<1x8x32xf32>
    %3 = vector.shape_cast %2 : vector<1x8x32xf32> to vector<8x32xf32>
    %c0_5 = arith.constant 0 : index
    %c0_6 = arith.constant 0 : index
    %c0_7 = arith.constant 0 : index
    %4 = vector.load %arg3[%c0_5, %c0_6, %c0_7] : memref<1x1x8xf32, #tpu.memory_space<vmem>>, vector<1x1x8xf32>
    %5 = vector.shape_cast %4 : vector<1x1x8xf32> to vector<1x8xf32>
    %6 = tpu.iota {dimensions = array<i32: 0>} : vector<8x8xi32>
    %7 = tpu.iota {dimensions = array<i32: 1>} : vector<8x8xi32>
    %8 = arith.cmpi sge, %6, %7 : vector<8x8xi32>
    %cst = arith.constant 0.000000e+00 : f32
    %cst_8 = arith.constant -1.000000e+09 : f32
    %9 = vector.broadcast %cst : f32 to vector<8x8xf32>
    %10 = vector.broadcast %cst_8 : f32 to vector<8x8xf32>
    %11 = arith.select %8, %9, %10 : vector<8x8xi1>, vector<8x8xf32>
    %c0_9 = arith.constant 0 : index
    %c0_10 = arith.constant 0 : index
    %c0_11 = arith.constant 0 : index
    %12 = vector.load %arg4[%c0_9, %c0_10, %c0_11] : memref<1x1x8xf32, #tpu.memory_space<vmem>>, vector<1x1x8xf32>
    %13 = vector.shape_cast %12 : vector<1x1x8xf32> to vector<1x8xf32>
    %14 = vector.broadcast %13 : vector<1x8xf32> to vector<8x8xf32>
    %15 = arith.addf %11, %14 : vector<8x8xf32>
    %c0_12 = arith.constant 0 : index
    %c0_13 = arith.constant 0 : index
    %c0_14 = arith.constant 0 : index
    %16 = vector.load %arg33[%c0_12, %c0_13, %c0_14] : memref<2x1x32xf32, #tpu.memory_space<vmem>>, vector<1x1x32xf32>
    %17 = vector.shape_cast %16 : vector<1x1x32xf32> to vector<1x32xf32>
    %c0_15 = arith.constant 0 : index
    %c0_16 = arith.constant 0 : index
    %c0_17 = arith.constant 0 : index
    %18 = vector.load %arg32[%c0_15, %c0_16, %c0_17] : memref<2x1x32xf32, #tpu.memory_space<vmem>>, vector<1x1x32xf32>
    %19 = vector.shape_cast %18 : vector<1x1x32xf32> to vector<1x32xf32>
    %cst_18 = arith.constant dense<0.000000e+00> : vector<8xf32>
    %20 = vector.multi_reduction <add>, %1, %cst_18 [1] : vector<8x32xf32> to vector<8xf32>
    %21 = vector.shape_cast %20 : vector<8xf32> to vector<8x1xf32>
    %cst_19 = arith.constant 3.200000e+01 : f32
    %22 = vector.broadcast %cst_19 : f32 to vector<8x1xf32>
    %23 = arith.divf %21, %22 : vector<8x1xf32>
    %24 = vector.broadcast %23 : vector<8x1xf32> to vector<8x32xf32>
    %25 = arith.subf %1, %24 : vector<8x32xf32>
    %26 = arith.mulf %25, %25 : vector<8x32xf32>
    %cst_20 = arith.constant dense<0.000000e+00> : vector<8xf32>
    %27 = vector.multi_reduction <add>, %26, %cst_20 [1] : vector<8x32xf32> to vector<8xf32>
    %28 = vector.shape_cast %27 : vector<8xf32> to vector<8x1xf32>
    %cst_21 = arith.constant 3.200000e+01 : f32
    %29 = vector.broadcast %cst_21 : f32 to vector<8x1xf32>
    %30 = arith.divf %28, %29 : vector<8x1xf32>
    %cst_22 = arith.constant 9.99999974E-6 : f32
    %31 = vector.broadcast %cst_22 : f32 to vector<8x1xf32>
    %32 = arith.addf %30, %31 : vector<8x1xf32>
    %33 = math.rsqrt %32 : vector<8x1xf32>
    %34 = vector.broadcast %33 : vector<8x1xf32> to vector<8x32xf32>
    %35 = arith.mulf %25, %34 : vector<8x32xf32>
    %36 = vector.broadcast %17 : vector<1x32xf32> to vector<8x32xf32>
    %37 = arith.mulf %35, %36 : vector<8x32xf32>
    %38 = vector.broadcast %19 : vector<1x32xf32> to vector<8x32xf32>
    %39 = arith.addf %37, %38 : vector<8x32xf32>
    %c0_23 = arith.constant 0 : index
    %c0_24 = arith.constant 0 : index
    %c0_25 = arith.constant 0 : index
    %c0_26 = arith.constant 0 : index
    %40 = vector.load %arg40[%c0_23, %c0_24, %c0_25, %c0_26] : memref<2x4x32x8xbf16, #tpu.memory_space<vmem>>, vector<1x4x32x8xbf16>
    %41 = vector.shape_cast %40 : vector<1x4x32x8xbf16> to vector<4x32x8xbf16>
    %c0_27 = arith.constant 0 : index
    %c0_28 = arith.constant 0 : index
    %c0_29 = arith.constant 0 : index
    %c0_30 = arith.constant 0 : index
    %42 = vector.load %arg31[%c0_27, %c0_28, %c0_29, %c0_30] : memref<2x4x1x8xf32, #tpu.memory_space<vmem>>, vector<1x4x1x8xf32>
    %43 = vector.shape_cast %42 : vector<1x4x1x8xf32> to vector<4x1x8xf32>
    %c0_31 = arith.constant 0 : index
    %c0_32 = arith.constant 0 : index
    %c0_33 = arith.constant 0 : index
    %c0_34 = arith.constant 0 : index
    %44 = vector.load %arg38[%c0_31, %c0_32, %c0_33, %c0_34] : memref<2x8x32x8xbf16, #tpu.memory_space<vmem>>, vector<1x8x32x8xbf16>
    %45 = vector.shape_cast %44 : vector<1x8x32x8xbf16> to vector<8x32x8xbf16>
    %c0_35 = arith.constant 0 : index
    %c0_36 = arith.constant 0 : index
    %c0_37 = arith.constant 0 : index
    %c0_38 = arith.constant 0 : index
    %46 = vector.load %arg29[%c0_35, %c0_36, %c0_37, %c0_38] : memref<2x8x1x8xf32, #tpu.memory_space<vmem>>, vector<1x8x1x8xf32>
    %47 = vector.shape_cast %46 : vector<1x8x1x8xf32> to vector<8x1x8xf32>
    %c0_39 = arith.constant 0 : index
    %c0_40 = arith.constant 0 : index
    %c0_41 = arith.constant 0 : index
    %c0_42 = arith.constant 0 : index
    %48 = vector.load %arg39[%c0_39, %c0_40, %c0_41, %c0_42] : memref<2x4x8x32xbf16, #tpu.memory_space<vmem>>, vector<1x4x8x32xbf16>
    %49 = vector.shape_cast %48 : vector<1x4x8x32xbf16> to vector<4x8x32xbf16>
    %c0_43 = arith.constant 0 : index
    %c0_44 = arith.constant 0 : index
    %c0_45 = arith.constant 0 : index
    %50 = vector.load %arg30[%c0_43, %c0_44, %c0_45] : memref<2x1x32xf32, #tpu.memory_space<vmem>>, vector<1x1x32xf32>
    %51 = vector.shape_cast %50 : vector<1x1x32xf32> to vector<1x32xf32>
    %52 = arith.truncf %39 : vector<8x32xf32> to vector<8x32xbf16>
    %53 = vector.shape_cast %52 : vector<8x32xbf16> to vector<1x8x32xbf16>
    %54 = vector.shape_cast %53 : vector<1x8x32xbf16> to vector<1x8x32xbf16>
    %55 = vector.broadcast %54 : vector<1x8x32xbf16> to vector<4x8x32xbf16>
    %56 = arith.truncf %39 : vector<8x32xf32> to vector<8x32xbf16>
    %57 = vector.shape_cast %56 : vector<8x32xbf16> to vector<1x8x32xbf16>
    %58 = vector.shape_cast %57 : vector<1x8x32xbf16> to vector<1x8x32xbf16>
    %59 = vector.broadcast %58 : vector<1x8x32xbf16> to vector<8x8x32xbf16>
    %cst_46 = arith.constant dense<0.000000e+00> : vector<4x8x8xf32>
    %60 = tpu.matmul %55, %41, %cst_46 {dimension_numbers = #tpu.dot_dimension_numbers<[2], [1], [1], [2], [0, 0, 0, 1, 1, 2], [0], [0]>} : vector<4x8x32xbf16>, vector<4x32x8xbf16>, vector<4x8x8xf32> -> vector<4x8x8xf32>
    %61 = vector.broadcast %43 : vector<4x1x8xf32> to vector<4x8x8xf32>
    %62 = arith.addf %60, %61 : vector<4x8x8xf32>
    %cst_47 = arith.constant dense<0.000000e+00> : vector<8x8x8xf32>
    %63 = tpu.matmul %59, %45, %cst_47 {dimension_numbers = #tpu.dot_dimension_numbers<[2], [1], [1], [2], [0, 0, 0, 1, 1, 2], [0], [0]>} : vector<8x8x32xbf16>, vector<8x32x8xbf16>, vector<8x8x8xf32> -> vector<8x8x8xf32>
    %64 = vector.broadcast %47 : vector<8x1x8xf32> to vector<8x8x8xf32>
    %65 = arith.addf %63, %64 : vector<8x8x8xf32>
    %66 = vector.extract_strided_slice %65 {offsets = [0, 0, 0], sizes = [4, 8, 8], strides = [1, 1, 1]} : vector<8x8x8xf32> to vector<4x8x8xf32>
    %67 = vector.extract_strided_slice %65 {offsets = [4, 0, 0], sizes = [4, 8, 8], strides = [1, 1, 1]} : vector<8x8x8xf32> to vector<4x8x8xf32>
    %68 = arith.truncf %62 : vector<4x8x8xf32> to vector<4x8x8xbf16>
    %69 = arith.truncf %66 : vector<4x8x8xf32> to vector<4x8x8xbf16>
    %cst_48 = arith.constant dense<0.000000e+00> : vector<4x8x8xf32>
    %70 = tpu.matmul %68, %69, %cst_48 {dimension_numbers = #tpu.dot_dimension_numbers<[2], [2], [1], [1], [0, 0, 0, 1, 1, 1], [0], [0]>} : vector<4x8x8xbf16>, vector<4x8x8xbf16>, vector<4x8x8xf32> -> vector<4x8x8xf32>
    %71 = vector.shape_cast %5 : vector<1x8xf32> to vector<1x1x8xf32>
    %72 = vector.broadcast %71 : vector<1x1x8xf32> to vector<4x8x8xf32>
    %73 = arith.addf %70, %72 : vector<4x8x8xf32>
    %cst_49 = arith.constant dense<0xFF800000> : vector<4x8xf32>
    %74 = vector.multi_reduction <maximumf>, %73, %cst_49 [2] : vector<4x8x8xf32> to vector<4x8xf32>
    %75 = vector.shape_cast %74 : vector<4x8xf32> to vector<4x8x1xf32>
    %76 = vector.broadcast %75 : vector<4x8x1xf32> to vector<4x8x8xf32>
    %77 = arith.subf %73, %76 : vector<4x8x8xf32>
    %78 = math.exp %77 : vector<4x8x8xf32>
    %cst_50 = arith.constant dense<0.000000e+00> : vector<4x8xf32>
    %79 = vector.multi_reduction <add>, %78, %cst_50 [2] : vector<4x8x8xf32> to vector<4x8xf32>
    %80 = vector.shape_cast %79 : vector<4x8xf32> to vector<4x8x1xf32>
    %81 = vector.broadcast %80 : vector<4x8x1xf32> to vector<4x8x8xf32>
    %82 = arith.divf %78, %81 : vector<4x8x8xf32>
    %83 = arith.truncf %82 : vector<4x8x8xf32> to vector<4x8x8xbf16>
    %84 = arith.truncf %67 : vector<4x8x8xf32> to vector<4x8x8xbf16>
    %cst_51 = arith.constant dense<0.000000e+00> : vector<4x8x8xf32>
    %85 = tpu.matmul %83, %84, %cst_51 {dimension_numbers = #tpu.dot_dimension_numbers<[2], [1], [1], [2], [0, 0, 0, 1, 1, 2], [0], [0]>} : vector<4x8x8xbf16>, vector<4x8x8xbf16>, vector<4x8x8xf32> -> vector<4x8x8xf32>
    %86 = arith.truncf %85 : vector<4x8x8xf32> to vector<4x8x8xbf16>
    %cst_52 = arith.constant dense<0.000000e+00> : vector<4x8x32xf32>
    %87 = tpu.matmul %86, %49, %cst_52 {dimension_numbers = #tpu.dot_dimension_numbers<[2], [1], [1], [2], [0, 0, 0, 1, 1, 2], [0], [0]>} : vector<4x8x8xbf16>, vector<4x8x32xbf16>, vector<4x8x32xf32> -> vector<4x8x32xf32>
    %cst_53 = arith.constant dense<0.000000e+00> : vector<8x32xf32>
    %88 = vector.multi_reduction <add>, %87, %cst_53 [0] : vector<4x8x32xf32> to vector<8x32xf32>
    %89 = vector.broadcast %51 : vector<1x32xf32> to vector<8x32xf32>
    %90 = arith.addf %88, %89 : vector<8x32xf32>
    %91 = arith.addf %1, %90 : vector<8x32xf32>
    %c0_54 = arith.constant 0 : index
    %c0_55 = arith.constant 0 : index
    %c0_56 = arith.constant 0 : index
    %92 = vector.load %arg35[%c0_54, %c0_55, %c0_56] : memref<2x1x32xf32, #tpu.memory_space<vmem>>, vector<1x1x32xf32>
    %93 = vector.shape_cast %92 : vector<1x1x32xf32> to vector<1x32xf32>
    %c0_57 = arith.constant 0 : index
    %c0_58 = arith.constant 0 : index
    %c0_59 = arith.constant 0 : index
    %94 = vector.load %arg34[%c0_57, %c0_58, %c0_59] : memref<2x1x32xf32, #tpu.memory_space<vmem>>, vector<1x1x32xf32>
    %95 = vector.shape_cast %94 : vector<1x1x32xf32> to vector<1x32xf32>
    %cst_60 = arith.constant dense<0.000000e+00> : vector<8xf32>
    %96 = vector.multi_reduction <add>, %91, %cst_60 [1] : vector<8x32xf32> to vector<8xf32>
    %97 = vector.shape_cast %96 : vector<8xf32> to vector<8x1xf32>
    %cst_61 = arith.constant 3.200000e+01 : f32
    %98 = vector.broadcast %cst_61 : f32 to vector<8x1xf32>
    %99 = arith.divf %97, %98 : vector<8x1xf32>
    %100 = vector.broadcast %99 : vector<8x1xf32> to vector<8x32xf32>
    %101 = arith.subf %91, %100 : vector<8x32xf32>
    %102 = arith.mulf %101, %101 : vector<8x32xf32>
    %cst_62 = arith.constant dense<0.000000e+00> : vector<8xf32>
    %103 = vector.multi_reduction <add>, %102, %cst_62 [1] : vector<8x32xf32> to vector<8xf32>
    %104 = vector.shape_cast %103 : vector<8xf32> to vector<8x1xf32>
    %cst_63 = arith.constant 3.200000e+01 : f32
    %105 = vector.broadcast %cst_63 : f32 to vector<8x1xf32>
    %106 = arith.divf %104, %105 : vector<8x1xf32>
    %cst_64 = arith.constant 9.99999974E-6 : f32
    %107 = vector.broadcast %cst_64 : f32 to vector<8x1xf32>
    %108 = arith.addf %106, %107 : vector<8x1xf32>
    %109 = math.rsqrt %108 : vector<8x1xf32>
    %110 = vector.broadcast %109 : vector<8x1xf32> to vector<8x32xf32>
    %111 = arith.mulf %101, %110 : vector<8x32xf32>
    %112 = vector.broadcast %93 : vector<1x32xf32> to vector<8x32xf32>
    %113 = arith.mulf %111, %112 : vector<8x32xf32>
    %114 = vector.broadcast %95 : vector<1x32xf32> to vector<8x32xf32>
    %115 = arith.addf %113, %114 : vector<8x32xf32>
    %c0_65 = arith.constant 0 : index
    %c0_66 = arith.constant 0 : index
    %c0_67 = arith.constant 0 : index
    %116 = vector.load %arg36[%c0_65, %c0_66, %c0_67] : memref<2x32x64xbf16, #tpu.memory_space<vmem>>, vector<1x32x64xbf16>
    %117 = vector.shape_cast %116 : vector<1x32x64xbf16> to vector<32x64xbf16>
    %c0_68 = arith.constant 0 : index
    %c0_69 = arith.constant 0 : index
    %c0_70 = arith.constant 0 : index
    %118 = vector.load %arg27[%c0_68, %c0_69, %c0_70] : memref<2x1x64xf32, #tpu.memory_space<vmem>>, vector<1x1x64xf32>
    %119 = vector.shape_cast %118 : vector<1x1x64xf32> to vector<1x64xf32>
    %c0_71 = arith.constant 0 : index
    %c0_72 = arith.constant 0 : index
    %c0_73 = arith.constant 0 : index
    %120 = vector.load %arg37[%c0_71, %c0_72, %c0_73] : memref<2x64x32xbf16, #tpu.memory_space<vmem>>, vector<1x64x32xbf16>
    %121 = vector.shape_cast %120 : vector<1x64x32xbf16> to vector<64x32xbf16>
    %c0_74 = arith.constant 0 : index
    %c0_75 = arith.constant 0 : index
    %c0_76 = arith.constant 0 : index
    %122 = vector.load %arg28[%c0_74, %c0_75, %c0_76] : memref<2x1x32xf32, #tpu.memory_space<vmem>>, vector<1x1x32xf32>
    %123 = vector.shape_cast %122 : vector<1x1x32xf32> to vector<1x32xf32>
    %124 = arith.truncf %115 : vector<8x32xf32> to vector<8x32xbf16>
    %cst_77 = arith.constant dense<0.000000e+00> : vector<8x64xf32>
    %125 = tpu.matmul %124, %117, %cst_77 {dimension_numbers = #tpu.dot_dimension_numbers<[1], [0], [0], [1], [0, 0, 1, 1], [], []>} : vector<8x32xbf16>, vector<32x64xbf16>, vector<8x64xf32> -> vector<8x64xf32>
    %126 = vector.broadcast %119 : vector<1x64xf32> to vector<8x64xf32>
    %127 = arith.addf %125, %126 : vector<8x64xf32>
    %cst_78 = arith.constant 0.000000e+00 : f32
    %128 = vector.broadcast %cst_78 : f32 to vector<8x64xf32>
    %129 = arith.maximumf %127, %128 : vector<8x64xf32>
    %130 = arith.truncf %129 : vector<8x64xf32> to vector<8x64xbf16>
    %cst_79 = arith.constant dense<0.000000e+00> : vector<8x32xf32>
    %131 = tpu.matmul %130, %121, %cst_79 {dimension_numbers = #tpu.dot_dimension_numbers<[1], [0], [0], [1], [0, 0, 1, 1], [], []>} : vector<8x64xbf16>, vector<64x32xbf16>, vector<8x32xf32> -> vector<8x32xf32>
    %132 = vector.broadcast %123 : vector<1x32xf32> to vector<8x32xf32>
    %133 = arith.addf %131, %132 : vector<8x32xf32>
    %134 = arith.addf %91, %133 : vector<8x32xf32>
    %c1 = arith.constant 1 : index
    %c0_80 = arith.constant 0 : index
    %c0_81 = arith.constant 0 : index
    %135 = vector.load %arg33[%c1, %c0_80, %c0_81] : memref<2x1x32xf32, #tpu.memory_space<vmem>>, vector<1x1x32xf32>
    %136 = vector.shape_cast %135 : vector<1x1x32xf32> to vector<1x32xf32>
    %c1_82 = arith.constant 1 : index
    %c0_83 = arith.constant 0 : index
    %c0_84 = arith.constant 0 : index
    %137 = vector.load %arg32[%c1_82, %c0_83, %c0_84] : memref<2x1x32xf32, #tpu.memory_space<vmem>>, vector<1x1x32xf32>
    %138 = vector.shape_cast %137 : vector<1x1x32xf32> to vector<1x32xf32>
    %cst_85 = arith.constant dense<0.000000e+00> : vector<8xf32>
    %139 = vector.multi_reduction <add>, %134, %cst_85 [1] : vector<8x32xf32> to vector<8xf32>
    %140 = vector.shape_cast %139 : vector<8xf32> to vector<8x1xf32>
    %cst_86 = arith.constant 3.200000e+01 : f32
    %141 = vector.broadcast %cst_86 : f32 to vector<8x1xf32>
    %142 = arith.divf %140, %141 : vector<8x1xf32>
    %143 = vector.broadcast %142 : vector<8x1xf32> to vector<8x32xf32>
    %144 = arith.subf %134, %143 : vector<8x32xf32>
    %145 = arith.mulf %144, %144 : vector<8x32xf32>
    %cst_87 = arith.constant dense<0.000000e+00> : vector<8xf32>
    %146 = vector.multi_reduction <add>, %145, %cst_87 [1] : vector<8x32xf32> to vector<8xf32>
    %147 = vector.shape_cast %146 : vector<8xf32> to vector<8x1xf32>
    %cst_88 = arith.constant 3.200000e+01 : f32
    %148 = vector.broadcast %cst_88 : f32 to vector<8x1xf32>
    %149 = arith.divf %147, %148 : vector<8x1xf32>
    %cst_89 = arith.constant 9.99999974E-6 : f32
    %150 = vector.broadcast %cst_89 : f32 to vector<8x1xf32>
    %151 = arith.addf %149, %150 : vector<8x1xf32>
    %152 = math.rsqrt %151 : vector<8x1xf32>
    %153 = vector.broadcast %152 : vector<8x1xf32> to vector<8x32xf32>
    %154 = arith.mulf %144, %153 : vector<8x32xf32>
    %155 = vector.broadcast %136 : vector<1x32xf32> to vector<8x32xf32>
    %156 = arith.mulf %154, %155 : vector<8x32xf32>
    %157 = vector.broadcast %138 : vector<1x32xf32> to vector<8x32xf32>
    %158 = arith.addf %156, %157 : vector<8x32xf32>
    %c1_90 = arith.constant 1 : index
    %c0_91 = arith.constant 0 : index
    %c0_92 = arith.constant 0 : index
    %c0_93 = arith.constant 0 : index
    %159 = vector.load %arg40[%c1_90, %c0_91, %c0_92, %c0_93] : memref<2x4x32x8xbf16, #tpu.memory_space<vmem>>, vector<1x4x32x8xbf16>
    %160 = vector.shape_cast %159 : vector<1x4x32x8xbf16> to vector<4x32x8xbf16>
    %c1_94 = arith.constant 1 : index
    %c0_95 = arith.constant 0 : index
    %c0_96 = arith.constant 0 : index
    %c0_97 = arith.constant 0 : index
    %161 = vector.load %arg31[%c1_94, %c0_95, %c0_96, %c0_97] : memref<2x4x1x8xf32, #tpu.memory_space<vmem>>, vector<1x4x1x8xf32>
    %162 = vector.shape_cast %161 : vector<1x4x1x8xf32> to vector<4x1x8xf32>
    %c1_98 = arith.constant 1 : index
    %c0_99 = arith.constant 0 : index
    %c0_100 = arith.constant 0 : index
    %c0_101 = arith.constant 0 : index
    %163 = vector.load %arg38[%c1_98, %c0_99, %c0_100, %c0_101] : memref<2x8x32x8xbf16, #tpu.memory_space<vmem>>, vector<1x8x32x8xbf16>
    %164 = vector.shape_cast %163 : vector<1x8x32x8xbf16> to vector<8x32x8xbf16>
    %c1_102 = arith.constant 1 : index
    %c0_103 = arith.constant 0 : index
    %c0_104 = arith.constant 0 : index
    %c0_105 = arith.constant 0 : index
    %165 = vector.load %arg29[%c1_102, %c0_103, %c0_104, %c0_105] : memref<2x8x1x8xf32, #tpu.memory_space<vmem>>, vector<1x8x1x8xf32>
    %166 = vector.shape_cast %165 : vector<1x8x1x8xf32> to vector<8x1x8xf32>
    %c1_106 = arith.constant 1 : index
    %c0_107 = arith.constant 0 : index
    %c0_108 = arith.constant 0 : index
    %c0_109 = arith.constant 0 : index
    %167 = vector.load %arg39[%c1_106, %c0_107, %c0_108, %c0_109] : memref<2x4x8x32xbf16, #tpu.memory_space<vmem>>, vector<1x4x8x32xbf16>
    %168 = vector.shape_cast %167 : vector<1x4x8x32xbf16> to vector<4x8x32xbf16>
    %c1_110 = arith.constant 1 : index
    %c0_111 = arith.constant 0 : index
    %c0_112 = arith.constant 0 : index
    %169 = vector.load %arg30[%c1_110, %c0_111, %c0_112] : memref<2x1x32xf32, #tpu.memory_space<vmem>>, vector<1x1x32xf32>
    %170 = vector.shape_cast %169 : vector<1x1x32xf32> to vector<1x32xf32>
    %171 = arith.truncf %158 : vector<8x32xf32> to vector<8x32xbf16>
    %172 = vector.shape_cast %171 : vector<8x32xbf16> to vector<1x8x32xbf16>
    %173 = vector.shape_cast %172 : vector<1x8x32xbf16> to vector<1x8x32xbf16>
    %174 = vector.broadcast %173 : vector<1x8x32xbf16> to vector<4x8x32xbf16>
    %175 = arith.truncf %158 : vector<8x32xf32> to vector<8x32xbf16>
    %176 = vector.shape_cast %175 : vector<8x32xbf16> to vector<1x8x32xbf16>
    %177 = vector.shape_cast %176 : vector<1x8x32xbf16> to vector<1x8x32xbf16>
    %178 = vector.broadcast %177 : vector<1x8x32xbf16> to vector<8x8x32xbf16>
    %cst_113 = arith.constant dense<0.000000e+00> : vector<4x8x8xf32>
    %179 = tpu.matmul %174, %160, %cst_113 {dimension_numbers = #tpu.dot_dimension_numbers<[2], [1], [1], [2], [0, 0, 0, 1, 1, 2], [0], [0]>} : vector<4x8x32xbf16>, vector<4x32x8xbf16>, vector<4x8x8xf32> -> vector<4x8x8xf32>
    %180 = vector.broadcast %162 : vector<4x1x8xf32> to vector<4x8x8xf32>
    %181 = arith.addf %179, %180 : vector<4x8x8xf32>
    %cst_114 = arith.constant dense<0.000000e+00> : vector<8x8x8xf32>
    %182 = tpu.matmul %178, %164, %cst_114 {dimension_numbers = #tpu.dot_dimension_numbers<[2], [1], [1], [2], [0, 0, 0, 1, 1, 2], [0], [0]>} : vector<8x8x32xbf16>, vector<8x32x8xbf16>, vector<8x8x8xf32> -> vector<8x8x8xf32>
    %183 = vector.broadcast %166 : vector<8x1x8xf32> to vector<8x8x8xf32>
    %184 = arith.addf %182, %183 : vector<8x8x8xf32>
    %185 = vector.extract_strided_slice %184 {offsets = [0, 0, 0], sizes = [4, 8, 8], strides = [1, 1, 1]} : vector<8x8x8xf32> to vector<4x8x8xf32>
    %186 = vector.extract_strided_slice %184 {offsets = [4, 0, 0], sizes = [4, 8, 8], strides = [1, 1, 1]} : vector<8x8x8xf32> to vector<4x8x8xf32>
    %187 = arith.truncf %181 : vector<4x8x8xf32> to vector<4x8x8xbf16>
    %188 = arith.truncf %185 : vector<4x8x8xf32> to vector<4x8x8xbf16>
    %cst_115 = arith.constant dense<0.000000e+00> : vector<4x8x8xf32>
    %189 = tpu.matmul %187, %188, %cst_115 {dimension_numbers = #tpu.dot_dimension_numbers<[2], [2], [1], [1], [0, 0, 0, 1, 1, 1], [0], [0]>} : vector<4x8x8xbf16>, vector<4x8x8xbf16>, vector<4x8x8xf32> -> vector<4x8x8xf32>
    %190 = vector.shape_cast %5 : vector<1x8xf32> to vector<1x1x8xf32>
    %191 = vector.broadcast %190 : vector<1x1x8xf32> to vector<4x8x8xf32>
    %192 = arith.addf %189, %191 : vector<4x8x8xf32>
    %cst_116 = arith.constant dense<0xFF800000> : vector<4x8xf32>
    %193 = vector.multi_reduction <maximumf>, %192, %cst_116 [2] : vector<4x8x8xf32> to vector<4x8xf32>
    %194 = vector.shape_cast %193 : vector<4x8xf32> to vector<4x8x1xf32>
    %195 = vector.broadcast %194 : vector<4x8x1xf32> to vector<4x8x8xf32>
    %196 = arith.subf %192, %195 : vector<4x8x8xf32>
    %197 = math.exp %196 : vector<4x8x8xf32>
    %cst_117 = arith.constant dense<0.000000e+00> : vector<4x8xf32>
    %198 = vector.multi_reduction <add>, %197, %cst_117 [2] : vector<4x8x8xf32> to vector<4x8xf32>
    %199 = vector.shape_cast %198 : vector<4x8xf32> to vector<4x8x1xf32>
    %200 = vector.broadcast %199 : vector<4x8x1xf32> to vector<4x8x8xf32>
    %201 = arith.divf %197, %200 : vector<4x8x8xf32>
    %202 = arith.truncf %201 : vector<4x8x8xf32> to vector<4x8x8xbf16>
    %203 = arith.truncf %186 : vector<4x8x8xf32> to vector<4x8x8xbf16>
    %cst_118 = arith.constant dense<0.000000e+00> : vector<4x8x8xf32>
    %204 = tpu.matmul %202, %203, %cst_118 {dimension_numbers = #tpu.dot_dimension_numbers<[2], [1], [1], [2], [0, 0, 0, 1, 1, 2], [0], [0]>} : vector<4x8x8xbf16>, vector<4x8x8xbf16>, vector<4x8x8xf32> -> vector<4x8x8xf32>
    %205 = arith.truncf %204 : vector<4x8x8xf32> to vector<4x8x8xbf16>
    %cst_119 = arith.constant dense<0.000000e+00> : vector<4x8x32xf32>
    %206 = tpu.matmul %205, %168, %cst_119 {dimension_numbers = #tpu.dot_dimension_numbers<[2], [1], [1], [2], [0, 0, 0, 1, 1, 2], [0], [0]>} : vector<4x8x8xbf16>, vector<4x8x32xbf16>, vector<4x8x32xf32> -> vector<4x8x32xf32>
    %cst_120 = arith.constant dense<0.000000e+00> : vector<8x32xf32>
    %207 = vector.multi_reduction <add>, %206, %cst_120 [0] : vector<4x8x32xf32> to vector<8x32xf32>
    %208 = vector.broadcast %170 : vector<1x32xf32> to vector<8x32xf32>
    %209 = arith.addf %207, %208 : vector<8x32xf32>
    %210 = arith.addf %134, %209 : vector<8x32xf32>
    %c1_121 = arith.constant 1 : index
    %c0_122 = arith.constant 0 : index
    %c0_123 = arith.constant 0 : index
    %211 = vector.load %arg35[%c1_121, %c0_122, %c0_123] : memref<2x1x32xf32, #tpu.memory_space<vmem>>, vector<1x1x32xf32>
    %212 = vector.shape_cast %211 : vector<1x1x32xf32> to vector<1x32xf32>
    %c1_124 = arith.constant 1 : index
    %c0_125 = arith.constant 0 : index
    %c0_126 = arith.constant 0 : index
    %213 = vector.load %arg34[%c1_124, %c0_125, %c0_126] : memref<2x1x32xf32, #tpu.memory_space<vmem>>, vector<1x1x32xf32>
    %214 = vector.shape_cast %213 : vector<1x1x32xf32> to vector<1x32xf32>
    %cst_127 = arith.constant dense<0.000000e+00> : vector<8xf32>
    %215 = vector.multi_reduction <add>, %210, %cst_127 [1] : vector<8x32xf32> to vector<8xf32>
    %216 = vector.shape_cast %215 : vector<8xf32> to vector<8x1xf32>
    %cst_128 = arith.constant 3.200000e+01 : f32
    %217 = vector.broadcast %cst_128 : f32 to vector<8x1xf32>
    %218 = arith.divf %216, %217 : vector<8x1xf32>
    %219 = vector.broadcast %218 : vector<8x1xf32> to vector<8x32xf32>
    %220 = arith.subf %210, %219 : vector<8x32xf32>
    %221 = arith.mulf %220, %220 : vector<8x32xf32>
    %cst_129 = arith.constant dense<0.000000e+00> : vector<8xf32>
    %222 = vector.multi_reduction <add>, %221, %cst_129 [1] : vector<8x32xf32> to vector<8xf32>
    %223 = vector.shape_cast %222 : vector<8xf32> to vector<8x1xf32>
    %cst_130 = arith.constant 3.200000e+01 : f32
    %224 = vector.broadcast %cst_130 : f32 to vector<8x1xf32>
    %225 = arith.divf %223, %224 : vector<8x1xf32>
    %cst_131 = arith.constant 9.99999974E-6 : f32
    %226 = vector.broadcast %cst_131 : f32 to vector<8x1xf32>
    %227 = arith.addf %225, %226 : vector<8x1xf32>
    %228 = math.rsqrt %227 : vector<8x1xf32>
    %229 = vector.broadcast %228 : vector<8x1xf32> to vector<8x32xf32>
    %230 = arith.mulf %220, %229 : vector<8x32xf32>
    %231 = vector.broadcast %212 : vector<1x32xf32> to vector<8x32xf32>
    %232 = arith.mulf %230, %231 : vector<8x32xf32>
    %233 = vector.broadcast %214 : vector<1x32xf32> to vector<8x32xf32>
    %234 = arith.addf %232, %233 : vector<8x32xf32>
    %c1_132 = arith.constant 1 : index
    %c0_133 = arith.constant 0 : index
    %c0_134 = arith.constant 0 : index
    %235 = vector.load %arg36[%c1_132, %c0_133, %c0_134] : memref<2x32x64xbf16, #tpu.memory_space<vmem>>, vector<1x32x64xbf16>
    %236 = vector.shape_cast %235 : vector<1x32x64xbf16> to vector<32x64xbf16>
    %c1_135 = arith.constant 1 : index
    %c0_136 = arith.constant 0 : index
    %c0_137 = arith.constant 0 : index
    %237 = vector.load %arg27[%c1_135, %c0_136, %c0_137] : memref<2x1x64xf32, #tpu.memory_space<vmem>>, vector<1x1x64xf32>
    %238 = vector.shape_cast %237 : vector<1x1x64xf32> to vector<1x64xf32>
    %c1_138 = arith.constant 1 : index
    %c0_139 = arith.constant 0 : index
    %c0_140 = arith.constant 0 : index
    %239 = vector.load %arg37[%c1_138, %c0_139, %c0_140] : memref<2x64x32xbf16, #tpu.memory_space<vmem>>, vector<1x64x32xbf16>
    %240 = vector.shape_cast %239 : vector<1x64x32xbf16> to vector<64x32xbf16>
    %c1_141 = arith.constant 1 : index
    %c0_142 = arith.constant 0 : index
    %c0_143 = arith.constant 0 : index
    %241 = vector.load %arg28[%c1_141, %c0_142, %c0_143] : memref<2x1x32xf32, #tpu.memory_space<vmem>>, vector<1x1x32xf32>
    %242 = vector.shape_cast %241 : vector<1x1x32xf32> to vector<1x32xf32>
    %243 = arith.truncf %234 : vector<8x32xf32> to vector<8x32xbf16>
    %cst_144 = arith.constant dense<0.000000e+00> : vector<8x64xf32>
    %244 = tpu.matmul %243, %236, %cst_144 {dimension_numbers = #tpu.dot_dimension_numbers<[1], [0], [0], [1], [0, 0, 1, 1], [], []>} : vector<8x32xbf16>, vector<32x64xbf16>, vector<8x64xf32> -> vector<8x64xf32>
    %245 = vector.broadcast %238 : vector<1x64xf32> to vector<8x64xf32>
    %246 = arith.addf %244, %245 : vector<8x64xf32>
    %cst_145 = arith.constant 0.000000e+00 : f32
    %247 = vector.broadcast %cst_145 : f32 to vector<8x64xf32>
    %248 = arith.maximumf %246, %247 : vector<8x64xf32>
    %249 = arith.truncf %248 : vector<8x64xf32> to vector<8x64xbf16>
    %cst_146 = arith.constant dense<0.000000e+00> : vector<8x32xf32>
    %250 = tpu.matmul %249, %240, %cst_146 {dimension_numbers = #tpu.dot_dimension_numbers<[1], [0], [0], [1], [0, 0, 1, 1], [], []>} : vector<8x64xbf16>, vector<64x32xbf16>, vector<8x32xf32> -> vector<8x32xf32>
    %251 = vector.broadcast %242 : vector<1x32xf32> to vector<8x32xf32>
    %252 = arith.addf %250, %251 : vector<8x32xf32>
    %253 = arith.addf %210, %252 : vector<8x32xf32>
    %c0_147 = arith.constant 0 : index
    %c0_148 = arith.constant 0 : index
    %c0_149 = arith.constant 0 : index
    %254 = vector.load %arg14[%c0_147, %c0_148, %c0_149] : memref<2x1x32xf32, #tpu.memory_space<vmem>>, vector<1x1x32xf32>
    %255 = vector.shape_cast %254 : vector<1x1x32xf32> to vector<1x32xf32>
    %c0_150 = arith.constant 0 : index
    %c0_151 = arith.constant 0 : index
    %c0_152 = arith.constant 0 : index
    %256 = vector.load %arg13[%c0_150, %c0_151, %c0_152] : memref<2x1x32xf32, #tpu.memory_space<vmem>>, vector<1x1x32xf32>
    %257 = vector.shape_cast %256 : vector<1x1x32xf32> to vector<1x32xf32>
    %cst_153 = arith.constant dense<0.000000e+00> : vector<8xf32>
    %258 = vector.multi_reduction <add>, %3, %cst_153 [1] : vector<8x32xf32> to vector<8xf32>
    %259 = vector.shape_cast %258 : vector<8xf32> to vector<8x1xf32>
    %cst_154 = arith.constant 3.200000e+01 : f32
    %260 = vector.broadcast %cst_154 : f32 to vector<8x1xf32>
    %261 = arith.divf %259, %260 : vector<8x1xf32>
    %262 = vector.broadcast %261 : vector<8x1xf32> to vector<8x32xf32>
    %263 = arith.subf %3, %262 : vector<8x32xf32>
    %264 = arith.mulf %263, %263 : vector<8x32xf32>
    %cst_155 = arith.constant dense<0.000000e+00> : vector<8xf32>
    %265 = vector.multi_reduction <add>, %264, %cst_155 [1] : vector<8x32xf32> to vector<8xf32>
    %266 = vector.shape_cast %265 : vector<8xf32> to vector<8x1xf32>
    %cst_156 = arith.constant 3.200000e+01 : f32
    %267 = vector.broadcast %cst_156 : f32 to vector<8x1xf32>
    %268 = arith.divf %266, %267 : vector<8x1xf32>
    %cst_157 = arith.constant 9.99999974E-6 : f32
    %269 = vector.broadcast %cst_157 : f32 to vector<8x1xf32>
    %270 = arith.addf %268, %269 : vector<8x1xf32>
    %271 = math.rsqrt %270 : vector<8x1xf32>
    %272 = vector.broadcast %271 : vector<8x1xf32> to vector<8x32xf32>
    %273 = arith.mulf %263, %272 : vector<8x32xf32>
    %274 = vector.broadcast %255 : vector<1x32xf32> to vector<8x32xf32>
    %275 = arith.mulf %273, %274 : vector<8x32xf32>
    %276 = vector.broadcast %257 : vector<1x32xf32> to vector<8x32xf32>
    %277 = arith.addf %275, %276 : vector<8x32xf32>
    %c0_158 = arith.constant 0 : index
    %c0_159 = arith.constant 0 : index
    %c0_160 = arith.constant 0 : index
    %c0_161 = arith.constant 0 : index
    %278 = vector.load %arg24[%c0_158, %c0_159, %c0_160, %c0_161] : memref<2x4x32x8xbf16, #tpu.memory_space<vmem>>, vector<1x4x32x8xbf16>
    %279 = vector.shape_cast %278 : vector<1x4x32x8xbf16> to vector<4x32x8xbf16>
    %c0_162 = arith.constant 0 : index
    %c0_163 = arith.constant 0 : index
    %c0_164 = arith.constant 0 : index
    %c0_165 = arith.constant 0 : index
    %280 = vector.load %arg21[%c0_162, %c0_163, %c0_164, %c0_165] : memref<2x4x1x8xf32, #tpu.memory_space<vmem>>, vector<1x4x1x8xf32>
    %281 = vector.shape_cast %280 : vector<1x4x1x8xf32> to vector<4x1x8xf32>
    %c0_166 = arith.constant 0 : index
    %c0_167 = arith.constant 0 : index
    %c0_168 = arith.constant 0 : index
    %c0_169 = arith.constant 0 : index
    %282 = vector.load %arg22[%c0_166, %c0_167, %c0_168, %c0_169] : memref<2x8x32x8xbf16, #tpu.memory_space<vmem>>, vector<1x8x32x8xbf16>
    %283 = vector.shape_cast %282 : vector<1x8x32x8xbf16> to vector<8x32x8xbf16>
    %c0_170 = arith.constant 0 : index
    %c0_171 = arith.constant 0 : index
    %c0_172 = arith.constant 0 : index
    %c0_173 = arith.constant 0 : index
    %284 = vector.load %arg19[%c0_170, %c0_171, %c0_172, %c0_173] : memref<2x8x1x8xf32, #tpu.memory_space<vmem>>, vector<1x8x1x8xf32>
    %285 = vector.shape_cast %284 : vector<1x8x1x8xf32> to vector<8x1x8xf32>
    %c0_174 = arith.constant 0 : index
    %c0_175 = arith.constant 0 : index
    %c0_176 = arith.constant 0 : index
    %c0_177 = arith.constant 0 : index
    %286 = vector.load %arg23[%c0_174, %c0_175, %c0_176, %c0_177] : memref<2x4x8x32xbf16, #tpu.memory_space<vmem>>, vector<1x4x8x32xbf16>
    %287 = vector.shape_cast %286 : vector<1x4x8x32xbf16> to vector<4x8x32xbf16>
    %c0_178 = arith.constant 0 : index
    %c0_179 = arith.constant 0 : index
    %c0_180 = arith.constant 0 : index
    %288 = vector.load %arg20[%c0_178, %c0_179, %c0_180] : memref<2x1x32xf32, #tpu.memory_space<vmem>>, vector<1x1x32xf32>
    %289 = vector.shape_cast %288 : vector<1x1x32xf32> to vector<1x32xf32>
    %290 = arith.truncf %277 : vector<8x32xf32> to vector<8x32xbf16>
    %291 = vector.shape_cast %290 : vector<8x32xbf16> to vector<1x8x32xbf16>
    %292 = vector.shape_cast %291 : vector<1x8x32xbf16> to vector<1x8x32xbf16>
    %293 = vector.broadcast %292 : vector<1x8x32xbf16> to vector<4x8x32xbf16>
    %294 = arith.truncf %277 : vector<8x32xf32> to vector<8x32xbf16>
    %295 = vector.shape_cast %294 : vector<8x32xbf16> to vector<1x8x32xbf16>
    %296 = vector.shape_cast %295 : vector<1x8x32xbf16> to vector<1x8x32xbf16>
    %297 = vector.broadcast %296 : vector<1x8x32xbf16> to vector<8x8x32xbf16>
    %cst_181 = arith.constant dense<0.000000e+00> : vector<4x8x8xf32>
    %298 = tpu.matmul %293, %279, %cst_181 {dimension_numbers = #tpu.dot_dimension_numbers<[2], [1], [1], [2], [0, 0, 0, 1, 1, 2], [0], [0]>} : vector<4x8x32xbf16>, vector<4x32x8xbf16>, vector<4x8x8xf32> -> vector<4x8x8xf32>
    %299 = vector.broadcast %281 : vector<4x1x8xf32> to vector<4x8x8xf32>
    %300 = arith.addf %298, %299 : vector<4x8x8xf32>
    %cst_182 = arith.constant dense<0.000000e+00> : vector<8x8x8xf32>
    %301 = tpu.matmul %297, %283, %cst_182 {dimension_numbers = #tpu.dot_dimension_numbers<[2], [1], [1], [2], [0, 0, 0, 1, 1, 2], [0], [0]>} : vector<8x8x32xbf16>, vector<8x32x8xbf16>, vector<8x8x8xf32> -> vector<8x8x8xf32>
    %302 = vector.broadcast %285 : vector<8x1x8xf32> to vector<8x8x8xf32>
    %303 = arith.addf %301, %302 : vector<8x8x8xf32>
    %304 = vector.extract_strided_slice %303 {offsets = [0, 0, 0], sizes = [4, 8, 8], strides = [1, 1, 1]} : vector<8x8x8xf32> to vector<4x8x8xf32>
    %305 = vector.extract_strided_slice %303 {offsets = [4, 0, 0], sizes = [4, 8, 8], strides = [1, 1, 1]} : vector<8x8x8xf32> to vector<4x8x8xf32>
    %306 = arith.truncf %300 : vector<4x8x8xf32> to vector<4x8x8xbf16>
    %307 = arith.truncf %304 : vector<4x8x8xf32> to vector<4x8x8xbf16>
    %cst_183 = arith.constant dense<0.000000e+00> : vector<4x8x8xf32>
    %308 = tpu.matmul %306, %307, %cst_183 {dimension_numbers = #tpu.dot_dimension_numbers<[2], [2], [1], [1], [0, 0, 0, 1, 1, 1], [0], [0]>} : vector<4x8x8xbf16>, vector<4x8x8xbf16>, vector<4x8x8xf32> -> vector<4x8x8xf32>
    %309 = vector.shape_cast %15 : vector<8x8xf32> to vector<1x8x8xf32>
    %310 = vector.broadcast %309 : vector<1x8x8xf32> to vector<4x8x8xf32>
    %311 = arith.addf %308, %310 : vector<4x8x8xf32>
    %cst_184 = arith.constant dense<0xFF800000> : vector<4x8xf32>
    %312 = vector.multi_reduction <maximumf>, %311, %cst_184 [2] : vector<4x8x8xf32> to vector<4x8xf32>
    %313 = vector.shape_cast %312 : vector<4x8xf32> to vector<4x8x1xf32>
    %314 = vector.broadcast %313 : vector<4x8x1xf32> to vector<4x8x8xf32>
    %315 = arith.subf %311, %314 : vector<4x8x8xf32>
    %316 = math.exp %315 : vector<4x8x8xf32>
    %cst_185 = arith.constant dense<0.000000e+00> : vector<4x8xf32>
    %317 = vector.multi_reduction <add>, %316, %cst_185 [2] : vector<4x8x8xf32> to vector<4x8xf32>
    %318 = vector.shape_cast %317 : vector<4x8xf32> to vector<4x8x1xf32>
    %319 = vector.broadcast %318 : vector<4x8x1xf32> to vector<4x8x8xf32>
    %320 = arith.divf %316, %319 : vector<4x8x8xf32>
    %321 = arith.truncf %320 : vector<4x8x8xf32> to vector<4x8x8xbf16>
    %322 = arith.truncf %305 : vector<4x8x8xf32> to vector<4x8x8xbf16>
    %cst_186 = arith.constant dense<0.000000e+00> : vector<4x8x8xf32>
    %323 = tpu.matmul %321, %322, %cst_186 {dimension_numbers = #tpu.dot_dimension_numbers<[2], [1], [1], [2], [0, 0, 0, 1, 1, 2], [0], [0]>} : vector<4x8x8xbf16>, vector<4x8x8xbf16>, vector<4x8x8xf32> -> vector<4x8x8xf32>
    %324 = arith.truncf %323 : vector<4x8x8xf32> to vector<4x8x8xbf16>
    %cst_187 = arith.constant dense<0.000000e+00> : vector<4x8x32xf32>
    %325 = tpu.matmul %324, %287, %cst_187 {dimension_numbers = #tpu.dot_dimension_numbers<[2], [1], [1], [2], [0, 0, 0, 1, 1, 2], [0], [0]>} : vector<4x8x8xbf16>, vector<4x8x32xbf16>, vector<4x8x32xf32> -> vector<4x8x32xf32>
    %cst_188 = arith.constant dense<0.000000e+00> : vector<8x32xf32>
    %326 = vector.multi_reduction <add>, %325, %cst_188 [0] : vector<4x8x32xf32> to vector<8x32xf32>
    %327 = vector.broadcast %289 : vector<1x32xf32> to vector<8x32xf32>
    %328 = arith.addf %326, %327 : vector<8x32xf32>
    %329 = arith.addf %3, %328 : vector<8x32xf32>
    %c0_189 = arith.constant 0 : index
    %c0_190 = arith.constant 0 : index
    %c0_191 = arith.constant 0 : index
    %330 = vector.load %arg16[%c0_189, %c0_190, %c0_191] : memref<2x1x32xf32, #tpu.memory_space<vmem>>, vector<1x1x32xf32>
    %331 = vector.shape_cast %330 : vector<1x1x32xf32> to vector<1x32xf32>
    %c0_192 = arith.constant 0 : index
    %c0_193 = arith.constant 0 : index
    %c0_194 = arith.constant 0 : index
    %332 = vector.load %arg15[%c0_192, %c0_193, %c0_194] : memref<2x1x32xf32, #tpu.memory_space<vmem>>, vector<1x1x32xf32>
    %333 = vector.shape_cast %332 : vector<1x1x32xf32> to vector<1x32xf32>
    %cst_195 = arith.constant dense<0.000000e+00> : vector<8xf32>
    %334 = vector.multi_reduction <add>, %329, %cst_195 [1] : vector<8x32xf32> to vector<8xf32>
    %335 = vector.shape_cast %334 : vector<8xf32> to vector<8x1xf32>
    %cst_196 = arith.constant 3.200000e+01 : f32
    %336 = vector.broadcast %cst_196 : f32 to vector<8x1xf32>
    %337 = arith.divf %335, %336 : vector<8x1xf32>
    %338 = vector.broadcast %337 : vector<8x1xf32> to vector<8x32xf32>
    %339 = arith.subf %329, %338 : vector<8x32xf32>
    %340 = arith.mulf %339, %339 : vector<8x32xf32>
    %cst_197 = arith.constant dense<0.000000e+00> : vector<8xf32>
    %341 = vector.multi_reduction <add>, %340, %cst_197 [1] : vector<8x32xf32> to vector<8xf32>
    %342 = vector.shape_cast %341 : vector<8xf32> to vector<8x1xf32>
    %cst_198 = arith.constant 3.200000e+01 : f32
    %343 = vector.broadcast %cst_198 : f32 to vector<8x1xf32>
    %344 = arith.divf %342, %343 : vector<8x1xf32>
    %cst_199 = arith.constant 9.99999974E-6 : f32
    %345 = vector.broadcast %cst_199 : f32 to vector<8x1xf32>
    %346 = arith.addf %344, %345 : vector<8x1xf32>
    %347 = math.rsqrt %346 : vector<8x1xf32>
    %348 = vector.broadcast %347 : vector<8x1xf32> to vector<8x32xf32>
    %349 = arith.mulf %339, %348 : vector<8x32xf32>
    %350 = vector.broadcast %331 : vector<1x32xf32> to vector<8x32xf32>
    %351 = arith.mulf %349, %350 : vector<8x32xf32>
    %352 = vector.broadcast %333 : vector<1x32xf32> to vector<8x32xf32>
    %353 = arith.addf %351, %352 : vector<8x32xf32>
    %c0_200 = arith.constant 0 : index
    %c0_201 = arith.constant 0 : index
    %c0_202 = arith.constant 0 : index
    %c0_203 = arith.constant 0 : index
    %354 = vector.load %arg12[%c0_200, %c0_201, %c0_202, %c0_203] : memref<2x4x32x8xbf16, #tpu.memory_space<vmem>>, vector<1x4x32x8xbf16>
    %355 = vector.shape_cast %354 : vector<1x4x32x8xbf16> to vector<4x32x8xbf16>
    %c0_204 = arith.constant 0 : index
    %c0_205 = arith.constant 0 : index
    %c0_206 = arith.constant 0 : index
    %c0_207 = arith.constant 0 : index
    %356 = vector.load %arg9[%c0_204, %c0_205, %c0_206, %c0_207] : memref<2x4x1x8xf32, #tpu.memory_space<vmem>>, vector<1x4x1x8xf32>
    %357 = vector.shape_cast %356 : vector<1x4x1x8xf32> to vector<4x1x8xf32>
    %c0_208 = arith.constant 0 : index
    %c0_209 = arith.constant 0 : index
    %c0_210 = arith.constant 0 : index
    %c0_211 = arith.constant 0 : index
    %358 = vector.load %arg10[%c0_208, %c0_209, %c0_210, %c0_211] : memref<2x8x32x8xbf16, #tpu.memory_space<vmem>>, vector<1x8x32x8xbf16>
    %359 = vector.shape_cast %358 : vector<1x8x32x8xbf16> to vector<8x32x8xbf16>
    %c0_212 = arith.constant 0 : index
    %c0_213 = arith.constant 0 : index
    %c0_214 = arith.constant 0 : index
    %c0_215 = arith.constant 0 : index
    %360 = vector.load %arg7[%c0_212, %c0_213, %c0_214, %c0_215] : memref<2x8x1x8xf32, #tpu.memory_space<vmem>>, vector<1x8x1x8xf32>
    %361 = vector.shape_cast %360 : vector<1x8x1x8xf32> to vector<8x1x8xf32>
    %c0_216 = arith.constant 0 : index
    %c0_217 = arith.constant 0 : index
    %c0_218 = arith.constant 0 : index
    %c0_219 = arith.constant 0 : index
    %362 = vector.load %arg11[%c0_216, %c0_217, %c0_218, %c0_219] : memref<2x4x8x32xbf16, #tpu.memory_space<vmem>>, vector<1x4x8x32xbf16>
    %363 = vector.shape_cast %362 : vector<1x4x8x32xbf16> to vector<4x8x32xbf16>
    %c0_220 = arith.constant 0 : index
    %c0_221 = arith.constant 0 : index
    %c0_222 = arith.constant 0 : index
    %364 = vector.load %arg8[%c0_220, %c0_221, %c0_222] : memref<2x1x32xf32, #tpu.memory_space<vmem>>, vector<1x1x32xf32>
    %365 = vector.shape_cast %364 : vector<1x1x32xf32> to vector<1x32xf32>
    %366 = arith.truncf %353 : vector<8x32xf32> to vector<8x32xbf16>
    %367 = vector.shape_cast %366 : vector<8x32xbf16> to vector<1x8x32xbf16>
    %368 = vector.shape_cast %367 : vector<1x8x32xbf16> to vector<1x8x32xbf16>
    %369 = vector.broadcast %368 : vector<1x8x32xbf16> to vector<4x8x32xbf16>
    %370 = arith.truncf %253 : vector<8x32xf32> to vector<8x32xbf16>
    %371 = vector.shape_cast %370 : vector<8x32xbf16> to vector<1x8x32xbf16>
    %372 = vector.shape_cast %371 : vector<1x8x32xbf16> to vector<1x8x32xbf16>
    %373 = vector.broadcast %372 : vector<1x8x32xbf16> to vector<8x8x32xbf16>
    %cst_223 = arith.constant dense<0.000000e+00> : vector<4x8x8xf32>
    %374 = tpu.matmul %369, %355, %cst_223 {dimension_numbers = #tpu.dot_dimension_numbers<[2], [1], [1], [2], [0, 0, 0, 1, 1, 2], [0], [0]>} : vector<4x8x32xbf16>, vector<4x32x8xbf16>, vector<4x8x8xf32> -> vector<4x8x8xf32>
    %375 = vector.broadcast %357 : vector<4x1x8xf32> to vector<4x8x8xf32>
    %376 = arith.addf %374, %375 : vector<4x8x8xf32>
    %cst_224 = arith.constant dense<0.000000e+00> : vector<8x8x8xf32>
    %377 = tpu.matmul %373, %359, %cst_224 {dimension_numbers = #tpu.dot_dimension_numbers<[2], [1], [1], [2], [0, 0, 0, 1, 1, 2], [0], [0]>} : vector<8x8x32xbf16>, vector<8x32x8xbf16>, vector<8x8x8xf32> -> vector<8x8x8xf32>
    %378 = vector.broadcast %361 : vector<8x1x8xf32> to vector<8x8x8xf32>
    %379 = arith.addf %377, %378 : vector<8x8x8xf32>
    %380 = vector.extract_strided_slice %379 {offsets = [0, 0, 0], sizes = [4, 8, 8], strides = [1, 1, 1]} : vector<8x8x8xf32> to vector<4x8x8xf32>
    %381 = vector.extract_strided_slice %379 {offsets = [4, 0, 0], sizes = [4, 8, 8], strides = [1, 1, 1]} : vector<8x8x8xf32> to vector<4x8x8xf32>
    %382 = arith.truncf %376 : vector<4x8x8xf32> to vector<4x8x8xbf16>
    %383 = arith.truncf %380 : vector<4x8x8xf32> to vector<4x8x8xbf16>
    %cst_225 = arith.constant dense<0.000000e+00> : vector<4x8x8xf32>
    %384 = tpu.matmul %382, %383, %cst_225 {dimension_numbers = #tpu.dot_dimension_numbers<[2], [2], [1], [1], [0, 0, 0, 1, 1, 1], [0], [0]>} : vector<4x8x8xbf16>, vector<4x8x8xbf16>, vector<4x8x8xf32> -> vector<4x8x8xf32>
    %385 = vector.shape_cast %5 : vector<1x8xf32> to vector<1x1x8xf32>
    %386 = vector.broadcast %385 : vector<1x1x8xf32> to vector<4x8x8xf32>
    %387 = arith.addf %384, %386 : vector<4x8x8xf32>
    %cst_226 = arith.constant dense<0xFF800000> : vector<4x8xf32>
    %388 = vector.multi_reduction <maximumf>, %387, %cst_226 [2] : vector<4x8x8xf32> to vector<4x8xf32>
    %389 = vector.shape_cast %388 : vector<4x8xf32> to vector<4x8x1xf32>
    %390 = vector.broadcast %389 : vector<4x8x1xf32> to vector<4x8x8xf32>
    %391 = arith.subf %387, %390 : vector<4x8x8xf32>
    %392 = math.exp %391 : vector<4x8x8xf32>
    %cst_227 = arith.constant dense<0.000000e+00> : vector<4x8xf32>
    %393 = vector.multi_reduction <add>, %392, %cst_227 [2] : vector<4x8x8xf32> to vector<4x8xf32>
    %394 = vector.shape_cast %393 : vector<4x8xf32> to vector<4x8x1xf32>
    %395 = vector.broadcast %394 : vector<4x8x1xf32> to vector<4x8x8xf32>
    %396 = arith.divf %392, %395 : vector<4x8x8xf32>
    %397 = arith.truncf %396 : vector<4x8x8xf32> to vector<4x8x8xbf16>
    %398 = arith.truncf %381 : vector<4x8x8xf32> to vector<4x8x8xbf16>
    %cst_228 = arith.constant dense<0.000000e+00> : vector<4x8x8xf32>
    %399 = tpu.matmul %397, %398, %cst_228 {dimension_numbers = #tpu.dot_dimension_numbers<[2], [1], [1], [2], [0, 0, 0, 1, 1, 2], [0], [0]>} : vector<4x8x8xbf16>, vector<4x8x8xbf16>, vector<4x8x8xf32> -> vector<4x8x8xf32>
    %400 = arith.truncf %399 : vector<4x8x8xf32> to vector<4x8x8xbf16>
    %cst_229 = arith.constant dense<0.000000e+00> : vector<4x8x32xf32>
    %401 = tpu.matmul %400, %363, %cst_229 {dimension_numbers = #tpu.dot_dimension_numbers<[2], [1], [1], [2], [0, 0, 0, 1, 1, 2], [0], [0]>} : vector<4x8x8xbf16>, vector<4x8x32xbf16>, vector<4x8x32xf32> -> vector<4x8x32xf32>
    %cst_230 = arith.constant dense<0.000000e+00> : vector<8x32xf32>
    %402 = vector.multi_reduction <add>, %401, %cst_230 [0] : vector<4x8x32xf32> to vector<8x32xf32>
    %403 = vector.broadcast %365 : vector<1x32xf32> to vector<8x32xf32>
    %404 = arith.addf %402, %403 : vector<8x32xf32>
    %405 = arith.addf %329, %404 : vector<8x32xf32>
    %c0_231 = arith.constant 0 : index
    %c0_232 = arith.constant 0 : index
    %c0_233 = arith.constant 0 : index
    %406 = vector.load %arg18[%c0_231, %c0_232, %c0_233] : memref<2x1x32xf32, #tpu.memory_space<vmem>>, vector<1x1x32xf32>
    %407 = vector.shape_cast %406 : vector<1x1x32xf32> to vector<1x32xf32>
    %c0_234 = arith.constant 0 : index
    %c0_235 = arith.constant 0 : index
    %c0_236 = arith.constant 0 : index
    %408 = vector.load %arg17[%c0_234, %c0_235, %c0_236] : memref<2x1x32xf32, #tpu.memory_space<vmem>>, vector<1x1x32xf32>
    %409 = vector.shape_cast %408 : vector<1x1x32xf32> to vector<1x32xf32>
    %cst_237 = arith.constant dense<0.000000e+00> : vector<8xf32>
    %410 = vector.multi_reduction <add>, %405, %cst_237 [1] : vector<8x32xf32> to vector<8xf32>
    %411 = vector.shape_cast %410 : vector<8xf32> to vector<8x1xf32>
    %cst_238 = arith.constant 3.200000e+01 : f32
    %412 = vector.broadcast %cst_238 : f32 to vector<8x1xf32>
    %413 = arith.divf %411, %412 : vector<8x1xf32>
    %414 = vector.broadcast %413 : vector<8x1xf32> to vector<8x32xf32>
    %415 = arith.subf %405, %414 : vector<8x32xf32>
    %416 = arith.mulf %415, %415 : vector<8x32xf32>
    %cst_239 = arith.constant dense<0.000000e+00> : vector<8xf32>
    %417 = vector.multi_reduction <add>, %416, %cst_239 [1] : vector<8x32xf32> to vector<8xf32>
    %418 = vector.shape_cast %417 : vector<8xf32> to vector<8x1xf32>
    %cst_240 = arith.constant 3.200000e+01 : f32
    %419 = vector.broadcast %cst_240 : f32 to vector<8x1xf32>
    %420 = arith.divf %418, %419 : vector<8x1xf32>
    %cst_241 = arith.constant 9.99999974E-6 : f32
    %421 = vector.broadcast %cst_241 : f32 to vector<8x1xf32>
    %422 = arith.addf %420, %421 : vector<8x1xf32>
    %423 = math.rsqrt %422 : vector<8x1xf32>
    %424 = vector.broadcast %423 : vector<8x1xf32> to vector<8x32xf32>
    %425 = arith.mulf %415, %424 : vector<8x32xf32>
    %426 = vector.broadcast %407 : vector<1x32xf32> to vector<8x32xf32>
    %427 = arith.mulf %425, %426 : vector<8x32xf32>
    %428 = vector.broadcast %409 : vector<1x32xf32> to vector<8x32xf32>
    %429 = arith.addf %427, %428 : vector<8x32xf32>
    %c0_242 = arith.constant 0 : index
    %c0_243 = arith.constant 0 : index
    %c0_244 = arith.constant 0 : index
    %430 = vector.load %arg25[%c0_242, %c0_243, %c0_244] : memref<2x32x64xbf16, #tpu.memory_space<vmem>>, vector<1x32x64xbf16>
    %431 = vector.shape_cast %430 : vector<1x32x64xbf16> to vector<32x64xbf16>
    %c0_245 = arith.constant 0 : index
    %c0_246 = arith.constant 0 : index
    %c0_247 = arith.constant 0 : index
    %432 = vector.load %arg5[%c0_245, %c0_246, %c0_247] : memref<2x1x64xf32, #tpu.memory_space<vmem>>, vector<1x1x64xf32>
    %433 = vector.shape_cast %432 : vector<1x1x64xf32> to vector<1x64xf32>
    %c0_248 = arith.constant 0 : index
    %c0_249 = arith.constant 0 : index
    %c0_250 = arith.constant 0 : index
    %434 = vector.load %arg26[%c0_248, %c0_249, %c0_250] : memref<2x64x32xbf16, #tpu.memory_space<vmem>>, vector<1x64x32xbf16>
    %435 = vector.shape_cast %434 : vector<1x64x32xbf16> to vector<64x32xbf16>
    %c0_251 = arith.constant 0 : index
    %c0_252 = arith.constant 0 : index
    %c0_253 = arith.constant 0 : index
    %436 = vector.load %arg6[%c0_251, %c0_252, %c0_253] : memref<2x1x32xf32, #tpu.memory_space<vmem>>, vector<1x1x32xf32>
    %437 = vector.shape_cast %436 : vector<1x1x32xf32> to vector<1x32xf32>
    %438 = arith.truncf %429 : vector<8x32xf32> to vector<8x32xbf16>
    %cst_254 = arith.constant dense<0.000000e+00> : vector<8x64xf32>
    %439 = tpu.matmul %438, %431, %cst_254 {dimension_numbers = #tpu.dot_dimension_numbers<[1], [0], [0], [1], [0, 0, 1, 1], [], []>} : vector<8x32xbf16>, vector<32x64xbf16>, vector<8x64xf32> -> vector<8x64xf32>
    %440 = vector.broadcast %433 : vector<1x64xf32> to vector<8x64xf32>
    %441 = arith.addf %439, %440 : vector<8x64xf32>
    %cst_255 = arith.constant 0.000000e+00 : f32
    %442 = vector.broadcast %cst_255 : f32 to vector<8x64xf32>
    %443 = arith.maximumf %441, %442 : vector<8x64xf32>
    %444 = arith.truncf %443 : vector<8x64xf32> to vector<8x64xbf16>
    %cst_256 = arith.constant dense<0.000000e+00> : vector<8x32xf32>
    %445 = tpu.matmul %444, %435, %cst_256 {dimension_numbers = #tpu.dot_dimension_numbers<[1], [0], [0], [1], [0, 0, 1, 1], [], []>} : vector<8x64xbf16>, vector<64x32xbf16>, vector<8x32xf32> -> vector<8x32xf32>
    %446 = vector.broadcast %437 : vector<1x32xf32> to vector<8x32xf32>
    %447 = arith.addf %445, %446 : vector<8x32xf32>
    %448 = arith.addf %405, %447 : vector<8x32xf32>
    %c1_257 = arith.constant 1 : index
    %c0_258 = arith.constant 0 : index
    %c0_259 = arith.constant 0 : index
    %449 = vector.load %arg14[%c1_257, %c0_258, %c0_259] : memref<2x1x32xf32, #tpu.memory_space<vmem>>, vector<1x1x32xf32>
    %450 = vector.shape_cast %449 : vector<1x1x32xf32> to vector<1x32xf32>
    %c1_260 = arith.constant 1 : index
    %c0_261 = arith.constant 0 : index
    %c0_262 = arith.constant 0 : index
    %451 = vector.load %arg13[%c1_260, %c0_261, %c0_262] : memref<2x1x32xf32, #tpu.memory_space<vmem>>, vector<1x1x32xf32>
    %452 = vector.shape_cast %451 : vector<1x1x32xf32> to vector<1x32xf32>
    %cst_263 = arith.constant dense<0.000000e+00> : vector<8xf32>
    %453 = vector.multi_reduction <add>, %448, %cst_263 [1] : vector<8x32xf32> to vector<8xf32>
    %454 = vector.shape_cast %453 : vector<8xf32> to vector<8x1xf32>
    %cst_264 = arith.constant 3.200000e+01 : f32
    %455 = vector.broadcast %cst_264 : f32 to vector<8x1xf32>
    %456 = arith.divf %454, %455 : vector<8x1xf32>
    %457 = vector.broadcast %456 : vector<8x1xf32> to vector<8x32xf32>
    %458 = arith.subf %448, %457 : vector<8x32xf32>
    %459 = arith.mulf %458, %458 : vector<8x32xf32>
    %cst_265 = arith.constant dense<0.000000e+00> : vector<8xf32>
    %460 = vector.multi_reduction <add>, %459, %cst_265 [1] : vector<8x32xf32> to vector<8xf32>
    %461 = vector.shape_cast %460 : vector<8xf32> to vector<8x1xf32>
    %cst_266 = arith.constant 3.200000e+01 : f32
    %462 = vector.broadcast %cst_266 : f32 to vector<8x1xf32>
    %463 = arith.divf %461, %462 : vector<8x1xf32>
    %cst_267 = arith.constant 9.99999974E-6 : f32
    %464 = vector.broadcast %cst_267 : f32 to vector<8x1xf32>
    %465 = arith.addf %463, %464 : vector<8x1xf32>
    %466 = math.rsqrt %465 : vector<8x1xf32>
    %467 = vector.broadcast %466 : vector<8x1xf32> to vector<8x32xf32>
    %468 = arith.mulf %458, %467 : vector<8x32xf32>
    %469 = vector.broadcast %450 : vector<1x32xf32> to vector<8x32xf32>
    %470 = arith.mulf %468, %469 : vector<8x32xf32>
    %471 = vector.broadcast %452 : vector<1x32xf32> to vector<8x32xf32>
    %472 = arith.addf %470, %471 : vector<8x32xf32>
    %c1_268 = arith.constant 1 : index
    %c0_269 = arith.constant 0 : index
    %c0_270 = arith.constant 0 : index
    %c0_271 = arith.constant 0 : index
    %473 = vector.load %arg24[%c1_268, %c0_269, %c0_270, %c0_271] : memref<2x4x32x8xbf16, #tpu.memory_space<vmem>>, vector<1x4x32x8xbf16>
    %474 = vector.shape_cast %473 : vector<1x4x32x8xbf16> to vector<4x32x8xbf16>
    %c1_272 = arith.constant 1 : index
    %c0_273 = arith.constant 0 : index
    %c0_274 = arith.constant 0 : index
    %c0_275 = arith.constant 0 : index
    %475 = vector.load %arg21[%c1_272, %c0_273, %c0_274, %c0_275] : memref<2x4x1x8xf32, #tpu.memory_space<vmem>>, vector<1x4x1x8xf32>
    %476 = vector.shape_cast %475 : vector<1x4x1x8xf32> to vector<4x1x8xf32>
    %c1_276 = arith.constant 1 : index
    %c0_277 = arith.constant 0 : index
    %c0_278 = arith.constant 0 : index
    %c0_279 = arith.constant 0 : index
    %477 = vector.load %arg22[%c1_276, %c0_277, %c0_278, %c0_279] : memref<2x8x32x8xbf16, #tpu.memory_space<vmem>>, vector<1x8x32x8xbf16>
    %478 = vector.shape_cast %477 : vector<1x8x32x8xbf16> to vector<8x32x8xbf16>
    %c1_280 = arith.constant 1 : index
    %c0_281 = arith.constant 0 : index
    %c0_282 = arith.constant 0 : index
    %c0_283 = arith.constant 0 : index
    %479 = vector.load %arg19[%c1_280, %c0_281, %c0_282, %c0_283] : memref<2x8x1x8xf32, #tpu.memory_space<vmem>>, vector<1x8x1x8xf32>
    %480 = vector.shape_cast %479 : vector<1x8x1x8xf32> to vector<8x1x8xf32>
    %c1_284 = arith.constant 1 : index
    %c0_285 = arith.constant 0 : index
    %c0_286 = arith.constant 0 : index
    %c0_287 = arith.constant 0 : index
    %481 = vector.load %arg23[%c1_284, %c0_285, %c0_286, %c0_287] : memref<2x4x8x32xbf16, #tpu.memory_space<vmem>>, vector<1x4x8x32xbf16>
    %482 = vector.shape_cast %481 : vector<1x4x8x32xbf16> to vector<4x8x32xbf16>
    %c1_288 = arith.constant 1 : index
    %c0_289 = arith.constant 0 : index
    %c0_290 = arith.constant 0 : index
    %483 = vector.load %arg20[%c1_288, %c0_289, %c0_290] : memref<2x1x32xf32, #tpu.memory_space<vmem>>, vector<1x1x32xf32>
    %484 = vector.shape_cast %483 : vector<1x1x32xf32> to vector<1x32xf32>
    %485 = arith.truncf %472 : vector<8x32xf32> to vector<8x32xbf16>
    %486 = vector.shape_cast %485 : vector<8x32xbf16> to vector<1x8x32xbf16>
    %487 = vector.shape_cast %486 : vector<1x8x32xbf16> to vector<1x8x32xbf16>
    %488 = vector.broadcast %487 : vector<1x8x32xbf16> to vector<4x8x32xbf16>
    %489 = arith.truncf %472 : vector<8x32xf32> to vector<8x32xbf16>
    %490 = vector.shape_cast %489 : vector<8x32xbf16> to vector<1x8x32xbf16>
    %491 = vector.shape_cast %490 : vector<1x8x32xbf16> to vector<1x8x32xbf16>
    %492 = vector.broadcast %491 : vector<1x8x32xbf16> to vector<8x8x32xbf16>
    %cst_291 = arith.constant dense<0.000000e+00> : vector<4x8x8xf32>
    %493 = tpu.matmul %488, %474, %cst_291 {dimension_numbers = #tpu.dot_dimension_numbers<[2], [1], [1], [2], [0, 0, 0, 1, 1, 2], [0], [0]>} : vector<4x8x32xbf16>, vector<4x32x8xbf16>, vector<4x8x8xf32> -> vector<4x8x8xf32>
    %494 = vector.broadcast %476 : vector<4x1x8xf32> to vector<4x8x8xf32>
    %495 = arith.addf %493, %494 : vector<4x8x8xf32>
    %cst_292 = arith.constant dense<0.000000e+00> : vector<8x8x8xf32>
    %496 = tpu.matmul %492, %478, %cst_292 {dimension_numbers = #tpu.dot_dimension_numbers<[2], [1], [1], [2], [0, 0, 0, 1, 1, 2], [0], [0]>} : vector<8x8x32xbf16>, vector<8x32x8xbf16>, vector<8x8x8xf32> -> vector<8x8x8xf32>
    %497 = vector.broadcast %480 : vector<8x1x8xf32> to vector<8x8x8xf32>
    %498 = arith.addf %496, %497 : vector<8x8x8xf32>
    %499 = vector.extract_strided_slice %498 {offsets = [0, 0, 0], sizes = [4, 8, 8], strides = [1, 1, 1]} : vector<8x8x8xf32> to vector<4x8x8xf32>
    %500 = vector.extract_strided_slice %498 {offsets = [4, 0, 0], sizes = [4, 8, 8], strides = [1, 1, 1]} : vector<8x8x8xf32> to vector<4x8x8xf32>
    %501 = arith.truncf %495 : vector<4x8x8xf32> to vector<4x8x8xbf16>
    %502 = arith.truncf %499 : vector<4x8x8xf32> to vector<4x8x8xbf16>
    %cst_293 = arith.constant dense<0.000000e+00> : vector<4x8x8xf32>
    %503 = tpu.matmul %501, %502, %cst_293 {dimension_numbers = #tpu.dot_dimension_numbers<[2], [2], [1], [1], [0, 0, 0, 1, 1, 1], [0], [0]>} : vector<4x8x8xbf16>, vector<4x8x8xbf16>, vector<4x8x8xf32> -> vector<4x8x8xf32>
    %504 = vector.shape_cast %15 : vector<8x8xf32> to vector<1x8x8xf32>
    %505 = vector.broadcast %504 : vector<1x8x8xf32> to vector<4x8x8xf32>
    %506 = arith.addf %503, %505 : vector<4x8x8xf32>
    %cst_294 = arith.constant dense<0xFF800000> : vector<4x8xf32>
    %507 = vector.multi_reduction <maximumf>, %506, %cst_294 [2] : vector<4x8x8xf32> to vector<4x8xf32>
    %508 = vector.shape_cast %507 : vector<4x8xf32> to vector<4x8x1xf32>
    %509 = vector.broadcast %508 : vector<4x8x1xf32> to vector<4x8x8xf32>
    %510 = arith.subf %506, %509 : vector<4x8x8xf32>
    %511 = math.exp %510 : vector<4x8x8xf32>
    %cst_295 = arith.constant dense<0.000000e+00> : vector<4x8xf32>
    %512 = vector.multi_reduction <add>, %511, %cst_295 [2] : vector<4x8x8xf32> to vector<4x8xf32>
    %513 = vector.shape_cast %512 : vector<4x8xf32> to vector<4x8x1xf32>
    %514 = vector.broadcast %513 : vector<4x8x1xf32> to vector<4x8x8xf32>
    %515 = arith.divf %511, %514 : vector<4x8x8xf32>
    %516 = arith.truncf %515 : vector<4x8x8xf32> to vector<4x8x8xbf16>
    %517 = arith.truncf %500 : vector<4x8x8xf32> to vector<4x8x8xbf16>
    %cst_296 = arith.constant dense<0.000000e+00> : vector<4x8x8xf32>
    %518 = tpu.matmul %516, %517, %cst_296 {dimension_numbers = #tpu.dot_dimension_numbers<[2], [1], [1], [2], [0, 0, 0, 1, 1, 2], [0], [0]>} : vector<4x8x8xbf16>, vector<4x8x8xbf16>, vector<4x8x8xf32> -> vector<4x8x8xf32>
    %519 = arith.truncf %518 : vector<4x8x8xf32> to vector<4x8x8xbf16>
    %cst_297 = arith.constant dense<0.000000e+00> : vector<4x8x32xf32>
    %520 = tpu.matmul %519, %482, %cst_297 {dimension_numbers = #tpu.dot_dimension_numbers<[2], [1], [1], [2], [0, 0, 0, 1, 1, 2], [0], [0]>} : vector<4x8x8xbf16>, vector<4x8x32xbf16>, vector<4x8x32xf32> -> vector<4x8x32xf32>
    %cst_298 = arith.constant dense<0.000000e+00> : vector<8x32xf32>
    %521 = vector.multi_reduction <add>, %520, %cst_298 [0] : vector<4x8x32xf32> to vector<8x32xf32>
    %522 = vector.broadcast %484 : vector<1x32xf32> to vector<8x32xf32>
    %523 = arith.addf %521, %522 : vector<8x32xf32>
    %524 = arith.addf %448, %523 : vector<8x32xf32>
    %c1_299 = arith.constant 1 : index
    %c0_300 = arith.constant 0 : index
    %c0_301 = arith.constant 0 : index
    %525 = vector.load %arg16[%c1_299, %c0_300, %c0_301] : memref<2x1x32xf32, #tpu.memory_space<vmem>>, vector<1x1x32xf32>
    %526 = vector.shape_cast %525 : vector<1x1x32xf32> to vector<1x32xf32>
    %c1_302 = arith.constant 1 : index
    %c0_303 = arith.constant 0 : index
    %c0_304 = arith.constant 0 : index
    %527 = vector.load %arg15[%c1_302, %c0_303, %c0_304] : memref<2x1x32xf32, #tpu.memory_space<vmem>>, vector<1x1x32xf32>
    %528 = vector.shape_cast %527 : vector<1x1x32xf32> to vector<1x32xf32>
    %cst_305 = arith.constant dense<0.000000e+00> : vector<8xf32>
    %529 = vector.multi_reduction <add>, %524, %cst_305 [1] : vector<8x32xf32> to vector<8xf32>
    %530 = vector.shape_cast %529 : vector<8xf32> to vector<8x1xf32>
    %cst_306 = arith.constant 3.200000e+01 : f32
    %531 = vector.broadcast %cst_306 : f32 to vector<8x1xf32>
    %532 = arith.divf %530, %531 : vector<8x1xf32>
    %533 = vector.broadcast %532 : vector<8x1xf32> to vector<8x32xf32>
    %534 = arith.subf %524, %533 : vector<8x32xf32>
    %535 = arith.mulf %534, %534 : vector<8x32xf32>
    %cst_307 = arith.constant dense<0.000000e+00> : vector<8xf32>
    %536 = vector.multi_reduction <add>, %535, %cst_307 [1] : vector<8x32xf32> to vector<8xf32>
    %537 = vector.shape_cast %536 : vector<8xf32> to vector<8x1xf32>
    %cst_308 = arith.constant 3.200000e+01 : f32
    %538 = vector.broadcast %cst_308 : f32 to vector<8x1xf32>
    %539 = arith.divf %537, %538 : vector<8x1xf32>
    %cst_309 = arith.constant 9.99999974E-6 : f32
    %540 = vector.broadcast %cst_309 : f32 to vector<8x1xf32>
    %541 = arith.addf %539, %540 : vector<8x1xf32>
    %542 = math.rsqrt %541 : vector<8x1xf32>
    %543 = vector.broadcast %542 : vector<8x1xf32> to vector<8x32xf32>
    %544 = arith.mulf %534, %543 : vector<8x32xf32>
    %545 = vector.broadcast %526 : vector<1x32xf32> to vector<8x32xf32>
    %546 = arith.mulf %544, %545 : vector<8x32xf32>
    %547 = vector.broadcast %528 : vector<1x32xf32> to vector<8x32xf32>
    %548 = arith.addf %546, %547 : vector<8x32xf32>
    %c1_310 = arith.constant 1 : index
    %c0_311 = arith.constant 0 : index
    %c0_312 = arith.constant 0 : index
    %c0_313 = arith.constant 0 : index
    %549 = vector.load %arg12[%c1_310, %c0_311, %c0_312, %c0_313] : memref<2x4x32x8xbf16, #tpu.memory_space<vmem>>, vector<1x4x32x8xbf16>
    %550 = vector.shape_cast %549 : vector<1x4x32x8xbf16> to vector<4x32x8xbf16>
    %c1_314 = arith.constant 1 : index
    %c0_315 = arith.constant 0 : index
    %c0_316 = arith.constant 0 : index
    %c0_317 = arith.constant 0 : index
    %551 = vector.load %arg9[%c1_314, %c0_315, %c0_316, %c0_317] : memref<2x4x1x8xf32, #tpu.memory_space<vmem>>, vector<1x4x1x8xf32>
    %552 = vector.shape_cast %551 : vector<1x4x1x8xf32> to vector<4x1x8xf32>
    %c1_318 = arith.constant 1 : index
    %c0_319 = arith.constant 0 : index
    %c0_320 = arith.constant 0 : index
    %c0_321 = arith.constant 0 : index
    %553 = vector.load %arg10[%c1_318, %c0_319, %c0_320, %c0_321] : memref<2x8x32x8xbf16, #tpu.memory_space<vmem>>, vector<1x8x32x8xbf16>
    %554 = vector.shape_cast %553 : vector<1x8x32x8xbf16> to vector<8x32x8xbf16>
    %c1_322 = arith.constant 1 : index
    %c0_323 = arith.constant 0 : index
    %c0_324 = arith.constant 0 : index
    %c0_325 = arith.constant 0 : index
    %555 = vector.load %arg7[%c1_322, %c0_323, %c0_324, %c0_325] : memref<2x8x1x8xf32, #tpu.memory_space<vmem>>, vector<1x8x1x8xf32>
    %556 = vector.shape_cast %555 : vector<1x8x1x8xf32> to vector<8x1x8xf32>
    %c1_326 = arith.constant 1 : index
    %c0_327 = arith.constant 0 : index
    %c0_328 = arith.constant 0 : index
    %c0_329 = arith.constant 0 : index
    %557 = vector.load %arg11[%c1_326, %c0_327, %c0_328, %c0_329] : memref<2x4x8x32xbf16, #tpu.memory_space<vmem>>, vector<1x4x8x32xbf16>
    %558 = vector.shape_cast %557 : vector<1x4x8x32xbf16> to vector<4x8x32xbf16>
    %c1_330 = arith.constant 1 : index
    %c0_331 = arith.constant 0 : index
    %c0_332 = arith.constant 0 : index
    %559 = vector.load %arg8[%c1_330, %c0_331, %c0_332] : memref<2x1x32xf32, #tpu.memory_space<vmem>>, vector<1x1x32xf32>
    %560 = vector.shape_cast %559 : vector<1x1x32xf32> to vector<1x32xf32>
    %561 = arith.truncf %548 : vector<8x32xf32> to vector<8x32xbf16>
    %562 = vector.shape_cast %561 : vector<8x32xbf16> to vector<1x8x32xbf16>
    %563 = vector.shape_cast %562 : vector<1x8x32xbf16> to vector<1x8x32xbf16>
    %564 = vector.broadcast %563 : vector<1x8x32xbf16> to vector<4x8x32xbf16>
    %565 = arith.truncf %253 : vector<8x32xf32> to vector<8x32xbf16>
    %566 = vector.shape_cast %565 : vector<8x32xbf16> to vector<1x8x32xbf16>
    %567 = vector.shape_cast %566 : vector<1x8x32xbf16> to vector<1x8x32xbf16>
    %568 = vector.broadcast %567 : vector<1x8x32xbf16> to vector<8x8x32xbf16>
    %cst_333 = arith.constant dense<0.000000e+00> : vector<4x8x8xf32>
    %569 = tpu.matmul %564, %550, %cst_333 {dimension_numbers = #tpu.dot_dimension_numbers<[2], [1], [1], [2], [0, 0, 0, 1, 1, 2], [0], [0]>} : vector<4x8x32xbf16>, vector<4x32x8xbf16>, vector<4x8x8xf32> -> vector<4x8x8xf32>
    %570 = vector.broadcast %552 : vector<4x1x8xf32> to vector<4x8x8xf32>
    %571 = arith.addf %569, %570 : vector<4x8x8xf32>
    %cst_334 = arith.constant dense<0.000000e+00> : vector<8x8x8xf32>
    %572 = tpu.matmul %568, %554, %cst_334 {dimension_numbers = #tpu.dot_dimension_numbers<[2], [1], [1], [2], [0, 0, 0, 1, 1, 2], [0], [0]>} : vector<8x8x32xbf16>, vector<8x32x8xbf16>, vector<8x8x8xf32> -> vector<8x8x8xf32>
    %573 = vector.broadcast %556 : vector<8x1x8xf32> to vector<8x8x8xf32>
    %574 = arith.addf %572, %573 : vector<8x8x8xf32>
    %575 = vector.extract_strided_slice %574 {offsets = [0, 0, 0], sizes = [4, 8, 8], strides = [1, 1, 1]} : vector<8x8x8xf32> to vector<4x8x8xf32>
    %576 = vector.extract_strided_slice %574 {offsets = [4, 0, 0], sizes = [4, 8, 8], strides = [1, 1, 1]} : vector<8x8x8xf32> to vector<4x8x8xf32>
    %577 = arith.truncf %571 : vector<4x8x8xf32> to vector<4x8x8xbf16>
    %578 = arith.truncf %575 : vector<4x8x8xf32> to vector<4x8x8xbf16>
    %cst_335 = arith.constant dense<0.000000e+00> : vector<4x8x8xf32>
    %579 = tpu.matmul %577, %578, %cst_335 {dimension_numbers = #tpu.dot_dimension_numbers<[2], [2], [1], [1], [0, 0, 0, 1, 1, 1], [0], [0]>} : vector<4x8x8xbf16>, vector<4x8x8xbf16>, vector<4x8x8xf32> -> vector<4x8x8xf32>
    %580 = vector.shape_cast %5 : vector<1x8xf32> to vector<1x1x8xf32>
    %581 = vector.broadcast %580 : vector<1x1x8xf32> to vector<4x8x8xf32>
    %582 = arith.addf %579, %581 : vector<4x8x8xf32>
    %cst_336 = arith.constant dense<0xFF800000> : vector<4x8xf32>
    %583 = vector.multi_reduction <maximumf>, %582, %cst_336 [2] : vector<4x8x8xf32> to vector<4x8xf32>
    %584 = vector.shape_cast %583 : vector<4x8xf32> to vector<4x8x1xf32>
    %585 = vector.broadcast %584 : vector<4x8x1xf32> to vector<4x8x8xf32>
    %586 = arith.subf %582, %585 : vector<4x8x8xf32>
    %587 = math.exp %586 : vector<4x8x8xf32>
    %cst_337 = arith.constant dense<0.000000e+00> : vector<4x8xf32>
    %588 = vector.multi_reduction <add>, %587, %cst_337 [2] : vector<4x8x8xf32> to vector<4x8xf32>
    %589 = vector.shape_cast %588 : vector<4x8xf32> to vector<4x8x1xf32>
    %590 = vector.broadcast %589 : vector<4x8x1xf32> to vector<4x8x8xf32>
    %591 = arith.divf %587, %590 : vector<4x8x8xf32>
    %592 = arith.truncf %591 : vector<4x8x8xf32> to vector<4x8x8xbf16>
    %593 = arith.truncf %576 : vector<4x8x8xf32> to vector<4x8x8xbf16>
    %cst_338 = arith.constant dense<0.000000e+00> : vector<4x8x8xf32>
    %594 = tpu.matmul %592, %593, %cst_338 {dimension_numbers = #tpu.dot_dimension_numbers<[2], [1], [1], [2], [0, 0, 0, 1, 1, 2], [0], [0]>} : vector<4x8x8xbf16>, vector<4x8x8xbf16>, vector<4x8x8xf32> -> vector<4x8x8xf32>
    %595 = arith.truncf %594 : vector<4x8x8xf32> to vector<4x8x8xbf16>
    %cst_339 = arith.constant dense<0.000000e+00> : vector<4x8x32xf32>
    %596 = tpu.matmul %595, %558, %cst_339 {dimension_numbers = #tpu.dot_dimension_numbers<[2], [1], [1], [2], [0, 0, 0, 1, 1, 2], [0], [0]>} : vector<4x8x8xbf16>, vector<4x8x32xbf16>, vector<4x8x32xf32> -> vector<4x8x32xf32>
    %cst_340 = arith.constant dense<0.000000e+00> : vector<8x32xf32>
    %597 = vector.multi_reduction <add>, %596, %cst_340 [0] : vector<4x8x32xf32> to vector<8x32xf32>
    %598 = vector.broadcast %560 : vector<1x32xf32> to vector<8x32xf32>
    %599 = arith.addf %597, %598 : vector<8x32xf32>
    %600 = arith.addf %524, %599 : vector<8x32xf32>
    %c1_341 = arith.constant 1 : index
    %c0_342 = arith.constant 0 : index
    %c0_343 = arith.constant 0 : index
    %601 = vector.load %arg18[%c1_341, %c0_342, %c0_343] : memref<2x1x32xf32, #tpu.memory_space<vmem>>, vector<1x1x32xf32>
    %602 = vector.shape_cast %601 : vector<1x1x32xf32> to vector<1x32xf32>
    %c1_344 = arith.constant 1 : index
    %c0_345 = arith.constant 0 : index
    %c0_346 = arith.constant 0 : index
    %603 = vector.load %arg17[%c1_344, %c0_345, %c0_346] : memref<2x1x32xf32, #tpu.memory_space<vmem>>, vector<1x1x32xf32>
    %604 = vector.shape_cast %603 : vector<1x1x32xf32> to vector<1x32xf32>
    %cst_347 = arith.constant dense<0.000000e+00> : vector<8xf32>
    %605 = vector.multi_reduction <add>, %600, %cst_347 [1] : vector<8x32xf32> to vector<8xf32>
    %606 = vector.shape_cast %605 : vector<8xf32> to vector<8x1xf32>
    %cst_348 = arith.constant 3.200000e+01 : f32
    %607 = vector.broadcast %cst_348 : f32 to vector<8x1xf32>
    %608 = arith.divf %606, %607 : vector<8x1xf32>
    %609 = vector.broadcast %608 : vector<8x1xf32> to vector<8x32xf32>
    %610 = arith.subf %600, %609 : vector<8x32xf32>
    %611 = arith.mulf %610, %610 : vector<8x32xf32>
    %cst_349 = arith.constant dense<0.000000e+00> : vector<8xf32>
    %612 = vector.multi_reduction <add>, %611, %cst_349 [1] : vector<8x32xf32> to vector<8xf32>
    %613 = vector.shape_cast %612 : vector<8xf32> to vector<8x1xf32>
    %cst_350 = arith.constant 3.200000e+01 : f32
    %614 = vector.broadcast %cst_350 : f32 to vector<8x1xf32>
    %615 = arith.divf %613, %614 : vector<8x1xf32>
    %cst_351 = arith.constant 9.99999974E-6 : f32
    %616 = vector.broadcast %cst_351 : f32 to vector<8x1xf32>
    %617 = arith.addf %615, %616 : vector<8x1xf32>
    %618 = math.rsqrt %617 : vector<8x1xf32>
    %619 = vector.broadcast %618 : vector<8x1xf32> to vector<8x32xf32>
    %620 = arith.mulf %610, %619 : vector<8x32xf32>
    %621 = vector.broadcast %602 : vector<1x32xf32> to vector<8x32xf32>
    %622 = arith.mulf %620, %621 : vector<8x32xf32>
    %623 = vector.broadcast %604 : vector<1x32xf32> to vector<8x32xf32>
    %624 = arith.addf %622, %623 : vector<8x32xf32>
    %c1_352 = arith.constant 1 : index
    %c0_353 = arith.constant 0 : index
    %c0_354 = arith.constant 0 : index
    %625 = vector.load %arg25[%c1_352, %c0_353, %c0_354] : memref<2x32x64xbf16, #tpu.memory_space<vmem>>, vector<1x32x64xbf16>
    %626 = vector.shape_cast %625 : vector<1x32x64xbf16> to vector<32x64xbf16>
    %c1_355 = arith.constant 1 : index
    %c0_356 = arith.constant 0 : index
    %c0_357 = arith.constant 0 : index
    %627 = vector.load %arg5[%c1_355, %c0_356, %c0_357] : memref<2x1x64xf32, #tpu.memory_space<vmem>>, vector<1x1x64xf32>
    %628 = vector.shape_cast %627 : vector<1x1x64xf32> to vector<1x64xf32>
    %c1_358 = arith.constant 1 : index
    %c0_359 = arith.constant 0 : index
    %c0_360 = arith.constant 0 : index
    %629 = vector.load %arg26[%c1_358, %c0_359, %c0_360] : memref<2x64x32xbf16, #tpu.memory_space<vmem>>, vector<1x64x32xbf16>
    %630 = vector.shape_cast %629 : vector<1x64x32xbf16> to vector<64x32xbf16>
    %c1_361 = arith.constant 1 : index
    %c0_362 = arith.constant 0 : index
    %c0_363 = arith.constant 0 : index
    %631 = vector.load %arg6[%c1_361, %c0_362, %c0_363] : memref<2x1x32xf32, #tpu.memory_space<vmem>>, vector<1x1x32xf32>
    %632 = vector.shape_cast %631 : vector<1x1x32xf32> to vector<1x32xf32>
    %633 = arith.truncf %624 : vector<8x32xf32> to vector<8x32xbf16>
    %cst_364 = arith.constant dense<0.000000e+00> : vector<8x64xf32>
    %634 = tpu.matmul %633, %626, %cst_364 {dimension_numbers = #tpu.dot_dimension_numbers<[1], [0], [0], [1], [0, 0, 1, 1], [], []>} : vector<8x32xbf16>, vector<32x64xbf16>, vector<8x64xf32> -> vector<8x64xf32>
    %635 = vector.broadcast %628 : vector<1x64xf32> to vector<8x64xf32>
    %636 = arith.addf %634, %635 : vector<8x64xf32>
    %cst_365 = arith.constant 0.000000e+00 : f32
    %637 = vector.broadcast %cst_365 : f32 to vector<8x64xf32>
    %638 = arith.maximumf %636, %637 : vector<8x64xf32>
    %639 = arith.truncf %638 : vector<8x64xf32> to vector<8x64xbf16>
    %cst_366 = arith.constant dense<0.000000e+00> : vector<8x32xf32>
    %640 = tpu.matmul %639, %630, %cst_366 {dimension_numbers = #tpu.dot_dimension_numbers<[1], [0], [0], [1], [0, 0, 1, 1], [], []>} : vector<8x64xbf16>, vector<64x32xbf16>, vector<8x32xf32> -> vector<8x32xf32>
    %641 = vector.broadcast %632 : vector<1x32xf32> to vector<8x32xf32>
    %642 = arith.addf %640, %641 : vector<8x32xf32>
    %643 = arith.addf %600, %642 : vector<8x32xf32>
    %644 = arith.truncf %643 : vector<8x32xf32> to vector<8x32xbf16>
    %c0_367 = arith.constant 0 : index
    %c0_368 = arith.constant 0 : index
    %645 = vector.load %arg42[%c0_367, %c0_368] : memref<32x128xbf16, #tpu.memory_space<vmem>>, vector<32x128xbf16>
    %cst_369 = arith.constant dense<0.000000e+00> : vector<8x128xf32>
    %646 = tpu.matmul %644, %645, %cst_369 {dimension_numbers = #tpu.dot_dimension_numbers<[1], [0], [0], [1], [0, 0, 1, 1], [], []>} : vector<8x32xbf16>, vector<32x128xbf16>, vector<8x128xf32> -> vector<8x128xf32>
    %c0_370 = arith.constant 0 : index
    %c0_371 = arith.constant 0 : index
    %647 = vector.load %arg41[%c0_370, %c0_371] : memref<1x128xf32, #tpu.memory_space<vmem>>, vector<1x128xf32>
    %648 = vector.broadcast %647 : vector<1x128xf32> to vector<8x128xf32>
    %649 = arith.addf %646, %648 : vector<8x128xf32>
    %cst_372 = arith.constant dense<0xFF800000> : vector<8xf32>
    %650 = vector.multi_reduction <maximumf>, %649, %cst_372 [1] : vector<8x128xf32> to vector<8xf32>
    %651 = vector.shape_cast %650 : vector<8xf32> to vector<8x1xf32>
    %652 = vector.broadcast %651 : vector<8x1xf32> to vector<8x128xf32>
    %653 = arith.subf %649, %652 : vector<8x128xf32>
    %654 = math.exp %653 : vector<8x128xf32>
    %cst_373 = arith.constant dense<0.000000e+00> : vector<8xf32>
    %655 = vector.multi_reduction <add>, %654, %cst_373 [1] : vector<8x128xf32> to vector<8xf32>
    %656 = vector.shape_cast %655 : vector<8xf32> to vector<8x1xf32>
    %657 = math.log %656 : vector<8x1xf32>
    %658 = vector.broadcast %657 : vector<8x1xf32> to vector<8x128xf32>
    %659 = arith.subf %653, %658 : vector<8x128xf32>
    %c0_374 = arith.constant 0 : index
    %c0_375 = arith.constant 0 : index
    %c0_376 = arith.constant 0 : index
    %660 = vector.load %arg43[%c0_374, %c0_375, %c0_376] : memref<1x8x128xf32, #tpu.memory_space<vmem>>, vector<1x8x128xf32>
    %661 = vector.shape_cast %660 : vector<1x8x128xf32> to vector<8x128xf32>
    %662 = vector.shape_cast %659 : vector<8x128xf32> to vector<1x8x128xf32>
    tpu.vector_store %arg43[%c0_374, %c0_375, %c0_376], %662 {strides = array<i32>} : memref<1x8x128xf32, #tpu.memory_space<vmem>>, vector<1x8x128xf32>,
    return
  }
  func.func @transform_0(%arg0: i32) -> (i32, i32, i32) {
    %c0_i32 = arith.constant 0 : i32
    %c0_i32_0 = arith.constant 0 : i32
    %c0_i32_1 = arith.constant 0 : i32
    return %arg0, %c0_i32, %c0_i32_0 : i32, i32, i32
  }
  func.func @transform_1(%arg0: i32) -> (i32, i32, i32) {
    %c0_i32 = arith.constant 0 : i32
    %c0_i32_0 = arith.constant 0 : i32
    %c0_i32_1 = arith.constant 0 : i32
    return %arg0, %c0_i32, %c0_i32_0 : i32, i32, i32
  }
  func.func @transform_2(%arg0: i32) -> (i32, i32, i32) {
    %c0_i32 = arith.constant 0 : i32
    %c0_i32_0 = arith.constant 0 : i32
    %c0_i32_1 = arith.constant 0 : i32
    return %arg0, %c0_i32, %c0_i32_0 : i32, i32, i32
  }
  func.func @transform_3(%arg0: i32) -> (i32, i32, i32) {
    %c0_i32 = arith.constant 0 : i32
    %c0_i32_0 = arith.constant 0 : i32
    %c0_i32_1 = arith.constant 0 : i32
    return %arg0, %c0_i32, %c0_i32_0 : i32, i32, i32
  }
  func.func @transform_4(%arg0: i32) -> (i32, i32, i32) {
    %c0_i32 = arith.constant 0 : i32
    %c0_i32_0 = arith.constant 0 : i32
    %c0_i32_1 = arith.constant 0 : i32
    %c0_i32_2 = arith.constant 0 : i32
    return %c0_i32, %c0_i32_0, %c0_i32_1 : i32, i32, i32
  }
  func.func @transform_5(%arg0: i32) -> (i32, i32, i32) {
    %c0_i32 = arith.constant 0 : i32
    %c0_i32_0 = arith.constant 0 : i32
    %c0_i32_1 = arith.constant 0 : i32
    %c0_i32_2 = arith.constant 0 : i32
    return %c0_i32, %c0_i32_0, %c0_i32_1 : i32, i32, i32
  }
  func.func @transform_6(%arg0: i32) -> (i32, i32, i32, i32) {
    %c0_i32 = arith.constant 0 : i32
    %c0_i32_0 = arith.constant 0 : i32
    %c0_i32_1 = arith.constant 0 : i32
    %c0_i32_2 = arith.constant 0 : i32
    %c0_i32_3 = arith.constant 0 : i32
    return %c0_i32, %c0_i32_0, %c0_i32_1, %c0_i32_2 : i32, i32, i32, i32
  }
  func.func @transform_7(%arg0: i32) -> (i32, i32, i32) {
    %c0_i32 = arith.constant 0 : i32
    %c0_i32_0 = arith.constant 0 : i32
    %c0_i32_1 = arith.constant 0 : i32
    %c0_i32_2 = arith.constant 0 : i32
    return %c0_i32, %c0_i32_0, %c0_i32_1 : i32, i32, i32
  }
  func.func @transform_8(%arg0: i32) -> (i32, i32, i32, i32) {
    %c0_i32 = arith.constant 0 : i32
    %c0_i32_0 = arith.constant 0 : i32
    %c0_i32_1 = arith.constant 0 : i32
    %c0_i32_2 = arith.constant 0 : i32
    %c0_i32_3 = arith.constant 0 : i32
    return %c0_i32, %c0_i32_0, %c0_i32_1, %c0_i32_2 : i32, i32, i32, i32
  }
  func.func @transform_9(%arg0: i32) -> (i32, i32, i32, i32) {
    %c0_i32 = arith.constant 0 : i32
    %c0_i32_0 = arith.constant 0 : i32
    %c0_i32_1 = arith.constant 0 : i32
    %c0_i32_2 = arith.constant 0 : i32
    %c0_i32_3 = arith.constant 0 : i32
    return %c0_i32, %c0_i32_0, %c0_i32_1, %c0_i32_2 : i32, i32, i32, i32
  }
  func.func @transform_10(%arg0: i32) -> (i32, i32, i32, i32) {
    %c0_i32 = arith.constant 0 : i32
    %c0_i32_0 = arith.constant 0 : i32
    %c0_i32_1 = arith.constant 0 : i32
    %c0_i32_2 = arith.constant 0 : i32
    %c0_i32_3 = arith.constant 0 : i32
    return %c0_i32, %c0_i32_0, %c0_i32_1, %c0_i32_2 : i32, i32, i32, i32
  }
  func.func @transform_11(%arg0: i32) -> (i32, i32, i32, i32) {
    %c0_i32 = arith.constant 0 : i32
    %c0_i32_0 = arith.constant 0 : i32
    %c0_i32_1 = arith.constant 0 : i32
    %c0_i32_2 = arith.constant 0 : i32
    %c0_i32_3 = arith.constant 0 : i32
    return %c0_i32, %c0_i32_0, %c0_i32_1, %c0_i32_2 : i32, i32, i32, i32
  }
  func.func @transform_12(%arg0: i32) -> (i32, i32, i32) {
    %c0_i32 = arith.constant 0 : i32
    %c0_i32_0 = arith.constant 0 : i32
    %c0_i32_1 = arith.constant 0 : i32
    %c0_i32_2 = arith.constant 0 : i32
    return %c0_i32, %c0_i32_0, %c0_i32_1 : i32, i32, i32
  }
  func.func @transform_13(%arg0: i32) -> (i32, i32, i32) {
    %c0_i32 = arith.constant 0 : i32
    %c0_i32_0 = arith.constant 0 : i32
    %c0_i32_1 = arith.constant 0 : i32
    %c0_i32_2 = arith.constant 0 : i32
    return %c0_i32, %c0_i32_0, %c0_i32_1 : i32, i32, i32
  }
  func.func @transform_14(%arg0: i32) -> (i32, i32, i32) {
    %c0_i32 = arith.constant 0 : i32
    %c0_i32_0 = arith.constant 0 : i32
    %c0_i32_1 = arith.constant 0 : i32
    %c0_i32_2 = arith.constant 0 : i32
    return %c0_i32, %c0_i32_0, %c0_i32_1 : i32, i32, i32
  }
  func.func @transform_15(%arg0: i32) -> (i32, i32, i32) {
    %c0_i32 = arith.constant 0 : i32
    %c0_i32_0 = arith.constant 0 : i32
    %c0_i32_1 = arith.constant 0 : i32
    %c0_i32_2 = arith.constant 0 : i32
    return %c0_i32, %c0_i32_0, %c0_i32_1 : i32, i32, i32
  }
  func.func @transform_16(%arg0: i32) -> (i32, i32, i32) {
    %c0_i32 = arith.constant 0 : i32
    %c0_i32_0 = arith.constant 0 : i32
    %c0_i32_1 = arith.constant 0 : i32
    %c0_i32_2 = arith.constant 0 : i32
    return %c0_i32, %c0_i32_0, %c0_i32_1 : i32, i32, i32
  }
  func.func @transform_17(%arg0: i32) -> (i32, i32, i32) {
    %c0_i32 = arith.constant 0 : i32
    %c0_i32_0 = arith.constant 0 : i32
    %c0_i32_1 = arith.constant 0 : i32
    %c0_i32_2 = arith.constant 0 : i32
    return %c0_i32, %c0_i32_0, %c0_i32_1 : i32, i32, i32
  }
  func.func @transform_18(%arg0: i32) -> (i32, i32, i32, i32) {
    %c0_i32 = arith.constant 0 : i32
    %c0_i32_0 = arith.constant 0 : i32
    %c0_i32_1 = arith.constant 0 : i32
    %c0_i32_2 = arith.constant 0 : i32
    %c0_i32_3 = arith.constant 0 : i32
    return %c0_i32, %c0_i32_0, %c0_i32_1, %c0_i32_2 : i32, i32, i32, i32
  }
  func.func @transform_19(%arg0: i32) -> (i32, i32, i32) {
    %c0_i32 = arith.constant 0 : i32
    %c0_i32_0 = arith.constant 0 : i32
    %c0_i32_1 = arith.constant 0 : i32
    %c0_i32_2 = arith.constant 0 : i32
    return %c0_i32, %c0_i32_0, %c0_i32_1 : i32, i32, i32
  }
  func.func @transform_20(%arg0: i32) -> (i32, i32, i32, i32) {
    %c0_i32 = arith.constant 0 : i32
    %c0_i32_0 = arith.constant 0 : i32
    %c0_i32_1 = arith.constant 0 : i32
    %c0_i32_2 = arith.constant 0 : i32
    %c0_i32_3 = arith.constant 0 : i32
    return %c0_i32, %c0_i32_0, %c0_i32_1, %c0_i32_2 : i32, i32, i32, i32
  }
  func.func @transform_21(%arg0: i32) -> (i32, i32, i32, i32) {
    %c0_i32 = arith.constant 0 : i32
    %c0_i32_0 = arith.constant 0 : i32
    %c0_i32_1 = arith.constant 0 : i32
    %c0_i32_2 = arith.constant 0 : i32
    %c0_i32_3 = arith.constant 0 : i32
    return %c0_i32, %c0_i32_0, %c0_i32_1, %c0_i32_2 : i32, i32, i32, i32
  }
  func.func @transform_22(%arg0: i32) -> (i32, i32, i32, i32) {
    %c0_i32 = arith.constant 0 : i32
    %c0_i32_0 = arith.constant 0 : i32
    %c0_i32_1 = arith.constant 0 : i32
    %c0_i32_2 = arith.constant 0 : i32
    %c0_i32_3 = arith.constant 0 : i32
    return %c0_i32, %c0_i32_0, %c0_i32_1, %c0_i32_2 : i32, i32, i32, i32
  }
  func.func @transform_23(%arg0: i32) -> (i32, i32, i32, i32) {
    %c0_i32 = arith.constant 0 : i32
    %c0_i32_0 = arith.constant 0 : i32
    %c0_i32_1 = arith.constant 0 : i32
    %c0_i32_2 = arith.constant 0 : i32
    %c0_i32_3 = arith.constant 0 : i32
    return %c0_i32, %c0_i32_0, %c0_i32_1, %c0_i32_2 : i32, i32, i32, i32
  }
  func.func @transform_24(%arg0: i32) -> (i32, i32, i32) {
    %c0_i32 = arith.constant 0 : i32
    %c0_i32_0 = arith.constant 0 : i32
    %c0_i32_1 = arith.constant 0 : i32
    %c0_i32_2 = arith.constant 0 : i32
    return %c0_i32, %c0_i32_0, %c0_i32_1 : i32, i32, i32
  }
  func.func @transform_25(%arg0: i32) -> (i32, i32, i32) {
    %c0_i32 = arith.constant 0 : i32
    %c0_i32_0 = arith.constant 0 : i32
    %c0_i32_1 = arith.constant 0 : i32
    %c0_i32_2 = arith.constant 0 : i32
    return %c0_i32, %c0_i32_0, %c0_i32_1 : i32, i32, i32
  }
  func.func @transform_26(%arg0: i32) -> (i32, i32, i32) {
    %c0_i32 = arith.constant 0 : i32
    %c0_i32_0 = arith.constant 0 : i32
    %c0_i32_1 = arith.constant 0 : i32
    %c0_i32_2 = arith.constant 0 : i32
    return %c0_i32, %c0_i32_0, %c0_i32_1 : i32, i32, i32
  }
  func.func @transform_27(%arg0: i32) -> (i32, i32, i32) {
    %c0_i32 = arith.constant 0 : i32
    %c0_i32_0 = arith.constant 0 : i32
    %c0_i32_1 = arith.constant 0 : i32
    %c0_i32_2 = arith.constant 0 : i32
    return %c0_i32, %c0_i32_0, %c0_i32_1 : i32, i32, i32
  }
  func.func @transform_28(%arg0: i32) -> (i32, i32, i32, i32) {
    %c0_i32 = arith.constant 0 : i32
    %c0_i32_0 = arith.constant 0 : i32
    %c0_i32_1 = arith.constant 0 : i32
    %c0_i32_2 = arith.constant 0 : i32
    %c0_i32_3 = arith.constant 0 : i32
    return %c0_i32, %c0_i32_0, %c0_i32_1, %c0_i32_2 : i32, i32, i32, i32
  }
  func.func @transform_29(%arg0: i32) -> (i32, i32, i32) {
    %c0_i32 = arith.constant 0 : i32
    %c0_i32_0 = arith.constant 0 : i32
    %c0_i32_1 = arith.constant 0 : i32
    %c0_i32_2 = arith.constant 0 : i32
    return %c0_i32, %c0_i32_0, %c0_i32_1 : i32, i32, i32
  }
  func.func @transform_30(%arg0: i32) -> (i32, i32, i32, i32) {
    %c0_i32 = arith.constant 0 : i32
    %c0_i32_0 = arith.constant 0 : i32
    %c0_i32_1 = arith.constant 0 : i32
    %c0_i32_2 = arith.constant 0 : i32
    %c0_i32_3 = arith.constant 0 : i32
    return %c0_i32, %c0_i32_0, %c0_i32_1, %c0_i32_2 : i32, i32, i32, i32
  }
  func.func @transform_31(%arg0: i32) -> (i32, i32, i32) {
    %c0_i32 = arith.constant 0 : i32
    %c0_i32_0 = arith.constant 0 : i32
    %c0_i32_1 = arith.constant 0 : i32
    %c0_i32_2 = arith.constant 0 : i32
    return %c0_i32, %c0_i32_0, %c0_i32_1 : i32, i32, i32
  }
  func.func @transform_32(%arg0: i32) -> (i32, i32, i32) {
    %c0_i32 = arith.constant 0 : i32
    %c0_i32_0 = arith.constant 0 : i32
    %c0_i32_1 = arith.constant 0 : i32
    %c0_i32_2 = arith.constant 0 : i32
    return %c0_i32, %c0_i32_0, %c0_i32_1 : i32, i32, i32
  }
  func.func @transform_33(%arg0: i32) -> (i32, i32, i32) {
    %c0_i32 = arith.constant 0 : i32
    %c0_i32_0 = arith.constant 0 : i32
    %c0_i32_1 = arith.constant 0 : i32
    %c0_i32_2 = arith.constant 0 : i32
    return %c0_i32, %c0_i32_0, %c0_i32_1 : i32, i32, i32
  }
  func.func @transform_34(%arg0: i32) -> (i32, i32, i32) {
    %c0_i32 = arith.constant 0 : i32
    %c0_i32_0 = arith.constant 0 : i32
    %c0_i32_1 = arith.constant 0 : i32
    %c0_i32_2 = arith.constant 0 : i32
    return %c0_i32, %c0_i32_0, %c0_i32_1 : i32, i32, i32
  }
  func.func @transform_35(%arg0: i32) -> (i32, i32, i32) {
    %c0_i32 = arith.constant 0 : i32
    %c0_i32_0 = arith.constant 0 : i32
    %c0_i32_1 = arith.constant 0 : i32
    %c0_i32_2 = arith.constant 0 : i32
    return %c0_i32, %c0_i32_0, %c0_i32_1 : i32, i32, i32
  }
  func.func @transform_36(%arg0: i32) -> (i32, i32, i32) {
    %c0_i32 = arith.constant 0 : i32
    %c0_i32_0 = arith.constant 0 : i32
    %c0_i32_1 = arith.constant 0 : i32
    %c0_i32_2 = arith.constant 0 : i32
    return %c0_i32, %c0_i32_0, %c0_i32_1 : i32, i32, i32
  }
  func.func @transform_37(%arg0: i32) -> (i32, i32, i32, i32) {
    %c0_i32 = arith.constant 0 : i32
    %c0_i32_0 = arith.constant 0 : i32
    %c0_i32_1 = arith.constant 0 : i32
    %c0_i32_2 = arith.constant 0 : i32
    %c0_i32_3 = arith.constant 0 : i32
    return %c0_i32, %c0_i32_0, %c0_i32_1, %c0_i32_2 : i32, i32, i32, i32
  }
  func.func @transform_38(%arg0: i32) -> (i32, i32, i32, i32) {
    %c0_i32 = arith.constant 0 : i32
    %c0_i32_0 = arith.constant 0 : i32
    %c0_i32_1 = arith.constant 0 : i32
    %c0_i32_2 = arith.constant 0 : i32
    %c0_i32_3 = arith.constant 0 : i32
    return %c0_i32, %c0_i32_0, %c0_i32_1, %c0_i32_2 : i32, i32, i32, i32
  }
  func.func @transform_39(%arg0: i32) -> (i32, i32, i32, i32) {
    %c0_i32 = arith.constant 0 : i32
    %c0_i32_0 = arith.constant 0 : i32
    %c0_i32_1 = arith.constant 0 : i32
    %c0_i32_2 = arith.constant 0 : i32
    %c0_i32_3 = arith.constant 0 : i32
    return %c0_i32, %c0_i32_0, %c0_i32_1, %c0_i32_2 : i32, i32, i32, i32
  }
  func.func @transform_40(%arg0: i32) -> (i32, i32) {
    %c0_i32 = arith.constant 0 : i32
    %c0_i32_0 = arith.constant 0 : i32
    %c0_i32_1 = arith.constant 0 : i32
    return %c0_i32, %c0_i32_0 : i32, i32
  }
  func.func @transform_41(%arg0: i32) -> (i32, i32) {
    %c0_i32 = arith.constant 0 : i32
    %c0_i32_0 = arith.constant 0 : i32
    %c0_i32_1 = arith.constant 0 : i32
    return %c0_i32, %c0_i32_0 : i32, i32
  }
  func.func @transform_42(%arg0: i32) -> (i32, i32, i32) {
    %c0_i32 = arith.constant 0 : i32
    %c0_i32_0 = arith.constant 0 : i32
    %c0_i32_1 = arith.constant 0 : i32
    return %arg0, %c0_i32, %c0_i32_0 : i32, i32, i32
  }
}

</mosaic_0001>

<llo_original>
// kernel: transformer_forward.1
$region0: #{transformer_forward.1}
  #allocation0 [shape = 'u32[]', space=smem, size = 0x4, offset = 0x4, fixed_abs, tag = 'smem constant byte address 0x4 - core index']
  #allocation1 [shape = 'u32[72,128]{1,0:T(1,128)}', space=vmem, size = 0x9000, scoped, tag = 'internal scratch']
  %s0 = inlined_call_operand.smem [shape: u32[43], index: -1, kind: input, shape index: {}]
  %s1 = sld [smem:[%s0]]
  %s2 = scalar_lea.smem %s0, 1
  %s3 = sld [smem:[%s2]]
  %s4 = scalar_lea.smem %s0, 2
  %s5 = sld [smem:[%s4]]
  %s6 = scalar_lea.smem %s0, 3
  %s7 = sld [smem:[%s6]]
  %s8 = scalar_lea.smem %s0, 4
  %s9 = sld [smem:[%s8]]
  %s10 = scalar_lea.smem %s0, 5
  %s11 = sld [smem:[%s10]]
  %s12 = scalar_lea.smem %s0, 6
  %s13 = sld [smem:[%s12]]
  %s14 = scalar_lea.smem %s0, 7
  %s15 = sld [smem:[%s14]]
  %s16 = scalar_lea.smem %s0, 8
  %s17 = sld [smem:[%s16]]
  %s18 = scalar_lea.smem %s0, 9
  %s19 = sld [smem:[%s18]]
  %s20 = scalar_lea.smem %s0, 10
  %s21 = sld [smem:[%s20]]
  %s22 = scalar_lea.smem %s0, 11
  %s23 = sld [smem:[%s22]]
  %s24 = scalar_lea.smem %s0, 12
  %s25 = sld [smem:[%s24]]
  %s26 = scalar_lea.smem %s0, 13
  %s27 = sld [smem:[%s26]]
  %s28 = scalar_lea.smem %s0, 14
  %s29 = sld [smem:[%s28]]
  %s30 = scalar_lea.smem %s0, 15
  %s31 = sld [smem:[%s30]]
  %s32 = scalar_lea.smem %s0, 16
  %s33 = sld [smem:[%s32]]
  %s34 = scalar_lea.smem %s0, 17
  %s35 = sld [smem:[%s34]]
  %s36 = scalar_lea.smem %s0, 18
  %s37 = sld [smem:[%s36]]
  %s38 = scalar_lea.smem %s0, 19
  %s39 = sld [smem:[%s38]]
  %s40 = scalar_lea.smem %s0, 20
  %s41 = sld [smem:[%s40]]
  %s42 = scalar_lea.smem %s0, 21
  %s43 = sld [smem:[%s42]]
  %s44 = scalar_lea.smem %s0, 22
  %s45 = sld [smem:[%s44]]
  %s46 = scalar_lea.smem %s0, 23
  %s47 = sld [smem:[%s46]]
  %s48 = scalar_lea.smem %s0, 24
  %s49 = sld [smem:[%s48]]
  %s50 = scalar_lea.smem %s0, 25
  %s51 = sld [smem:[%s50]]
  %s52 = scalar_lea.smem %s0, 26
  %s53 = sld [smem:[%s52]]
  %s54 = scalar_lea.smem %s0, 27
  %s55 = sld [smem:[%s54]]
  %s56 = scalar_lea.smem %s0, 28
  %s57 = sld [smem:[%s56]]
  %s58 = scalar_lea.smem %s0, 29
  %s59 = sld [smem:[%s58]]
  %s60 = scalar_lea.smem %s0, 30
  %s61 = sld [smem:[%s60]]
  %s62 = scalar_lea.smem %s0, 31
  %s63 = sld [smem:[%s62]]
  %s64 = scalar_lea.smem %s0, 32
  %s65 = sld [smem:[%s64]]
  %s66 = scalar_lea.smem %s0, 33
  %s67 = sld [smem:[%s66]]
  %s68 = scalar_lea.smem %s0, 34
  %s69 = sld [smem:[%s68]]
  %s70 = scalar_lea.smem %s0, 35
  %s71 = sld [smem:[%s70]]
  %s72 = scalar_lea.smem %s0, 36
  %s73 = sld [smem:[%s72]]
  %s74 = scalar_lea.smem %s0, 37
  %s75 = sld [smem:[%s74]]
  %s76 = scalar_lea.smem %s0, 38
  %s77 = sld [smem:[%s76]]
  %s78 = scalar_lea.smem %s0, 39
  %s79 = sld [smem:[%s78]]
  %s80 = scalar_lea.smem %s0, 40
  %s81 = sld [smem:[%s80]]
  %s82 = scalar_lea.smem %s0, 41
  %s83 = sld [smem:[%s82]]
  %s84 = scalar_lea.smem %s0, 42
  %s85 = sld [smem:[%s84]]
  %s86 = sld [smem:[#allocation0]]
  $region201: #{transformer_forward.1} parent=0
    _
  %s88 = ssub.s32 1, %s86
  %s89 = scalar_select 0, %s88, %s86
  $region1: #{transformer_forward.1} parent=0
    #allocation2 [shape = 'u8[8192]{0}', space=vmem, size = 0x2000, scoped, tag = 'output window, operand 0']
    #allocation3 [shape = 's32[2]{0}', space=sflag, size = 0x8, scoped, tag = 'scoped memory for transformer_forward.1']
    %90 = vsyncpa [#allocation3], 0
    %s91 = scalar_lea.sflag [#allocation3], 1
    %92 = vsyncpa %s91, 0
    loop: start=0, step=1, limit=4
    $region2: #{transformer_forward.1} parent=1 // loop_pre_header
      _
    $region3: #{transformer_forward.1} parent=1 // loop_header
      %s94 = sphi 0, %s98
      %p95 = scmp.ge.s32.totalorder %s94, 4
      %s104 = sphi 0, %s106
      %s107 = sphi 0, %s104
      %s108 = sphi 0, %s107
      %s124 = sphi 0, %s108
      %s130 = sphi 0, %s132
      %s133 = sphi 0, %s130
      %s134 = sphi 0, %s133
      %s150 = sphi 0, %s134
      %s156 = sphi 0, %s158
      %s159 = sphi 0, %s156
      %s160 = sphi 0, %s159
      %s176 = sphi 0, %s160
      %s182 = sphi 0, %s184
      %s185 = sphi 0, %s182
      %s186 = sphi 0, %s185
      %s202 = sphi 0, %s186
      %s206 = sphi 0, %s206
      %s208 = sphi 0, %s206
      %s209 = sphi 0, %s208
      %s223 = sphi 0, %s209
      %s227 = sphi 0, %s227
      %s229 = sphi 0, %s227
      %s230 = sphi 0, %s229
      %s244 = sphi 0, %s230
      %s248 = sphi 0, %s248
      %s250 = sphi 0, %s248
      %s251 = sphi 0, %s250
      %s265 = sphi 0, %s251
      %s269 = sphi 0, %s269
      %s271 = sphi 0, %s269
      %s272 = sphi 0, %s271
      %s286 = sphi 0, %s272
      %s290 = sphi 0, %s290
      %s292 = sphi 0, %s290
      %s293 = sphi 0, %s292
      %s307 = sphi 0, %s293
      %s311 = sphi 0, %s311
      %s313 = sphi 0, %s311
      %s314 = sphi 0, %s313
      %s328 = sphi 0, %s314
      %s332 = sphi 0, %s332
      %s334 = sphi 0, %s332
      %s335 = sphi 0, %s334
      %s349 = sphi 0, %s335
      %s353 = sphi 0, %s353
      %s355 = sphi 0, %s353
      %s356 = sphi 0, %s355
      %s370 = sphi 0, %s356
      %s374 = sphi 0, %s374
      %s376 = sphi 0, %s374
      %s377 = sphi 0, %s376
      %s391 = sphi 0, %s377
      %s395 = sphi 0, %s395
      %s397 = sphi 0, %s395
      %s398 = sphi 0, %s397
      %s412 = sphi 0, %s398
      %s416 = sphi 0, %s416
      %s418 = sphi 0, %s416
      %s419 = sphi 0, %s418
      %s433 = sphi 0, %s419
      %s437 = sphi 0, %s437
      %s439 = sphi 0, %s437
      %s440 = sphi 0, %s439
      %s454 = sphi 0, %s440
      %s458 = sphi 0, %s458
      %s460 = sphi 0, %s458
      %s461 = sphi 0, %s460
      %s475 = sphi 0, %s461
      %s479 = sphi 0, %s479
      %s481 = sphi 0, %s479
      %s482 = sphi 0, %s481
      %s496 = sphi 0, %s482
      %s500 = sphi 0, %s500
      %s502 = sphi 0, %s500
      %s503 = sphi 0, %s502
      %s517 = sphi 0, %s503
      %s521 = sphi 0, %s521
      %s523 = sphi 0, %s521
      %s524 = sphi 0, %s523
      %s538 = sphi 0, %s524
      %s542 = sphi 0, %s542
      %s544 = sphi 0, %s542
      %s545 = sphi 0, %s544
      %s559 = sphi 0, %s545
      %s563 = sphi 0, %s563
      %s565 = sphi 0, %s563
      %s566 = sphi 0, %s565
      %s580 = sphi 0, %s566
      %s584 = sphi 0, %s584
      %s586 = sphi 0, %s584
      %s587 = sphi 0, %s586
      %s601 = sphi 0, %s587
      %s605 = sphi 0, %s605
      %s607 = sphi 0, %s605
      %s608 = sphi 0, %s607
      %s622 = sphi 0, %s608
      %s626 = sphi 0, %s626
      %s628 = sphi 0, %s626
      %s629 = sphi 0, %s628
      %s643 = sphi 0, %s629
      %s647 = sphi 0, %s647
      %s649 = sphi 0, %s647
      %s650 = sphi 0, %s649
      %s664 = sphi 0, %s650
      %s668 = sphi 0, %s668
      %s670 = sphi 0, %s668
      %s671 = sphi 0, %s670
      %s685 = sphi 0, %s671
      %s689 = sphi 0, %s689
      %s691 = sphi 0, %s689
      %s692 = sphi 0, %s691
      %s706 = sphi 0, %s692
      %s710 = sphi 0, %s710
      %s712 = sphi 0, %s710
      %s713 = sphi 0, %s712
      %s727 = sphi 0, %s713
      %s731 = sphi 0, %s731
      %s733 = sphi 0, %s731
      %s734 = sphi 0, %s733
      %s748 = sphi 0, %s734
      %s752 = sphi 0, %s752
      %s754 = sphi 0, %s752
      %s755 = sphi 0, %s754
      %s769 = sphi 0, %s755
      %s773 = sphi 0, %s773
      %s775 = sphi 0, %s773
      %s776 = sphi 0, %s775
      %s790 = sphi 0, %s776
      %s794 = sphi 0, %s794
      %s796 = sphi 0, %s794
      %s797 = sphi 0, %s796
      %s811 = sphi 0, %s797
      %s815 = sphi 0, %s815
      %s817 = sphi 0, %s815
      %s818 = sphi 0, %s817
      %s832 = sphi 0, %s818
      %s836 = sphi 0, %s836
      %s838 = sphi 0, %s836
      %s839 = sphi 0, %s838
      %s853 = sphi 0, %s839
      %s857 = sphi 0, %s857
      %s859 = sphi 0, %s857
      %s860 = sphi 0, %s859
      %s874 = sphi 0, %s860
      %s878 = sphi 0, %s878
      %s880 = sphi 0, %s878
      %s881 = sphi 0, %s880
      %s895 = sphi 0, %s881
      %s899 = sphi 0, %s899
      %s901 = sphi 0, %s899
      %s902 = sphi 0, %s901
      %s916 = sphi 0, %s902
      %s920 = sphi 0, %s920
      %s922 = sphi 0, %s920
      %s923 = sphi 0, %s922
      %s937 = sphi 0, %s923
      %s941 = sphi 0, %s941
      %s943 = sphi 0, %s941
      %s944 = sphi 0, %s943
      %s958 = sphi 0, %s944
      %s962 = sphi 0, %s962
      %s964 = sphi 0, %s962
      %s965 = sphi 0, %s964
      %s979 = sphi 0, %s965
      %s983 = sphi 0, %s983
      %s985 = sphi 0, %s983
      %s986 = sphi 0, %s985
      %s1000 = sphi 0, %s986
      %s1006 = sphi 0, %s1008
      %s1009 = sphi 0, %s1006
      %s1010 = sphi 0, %s1009
      %s1026 = sphi 0, %s1010
    $region4: #{transformer_forward.1} parent=1 // loop_header_branch
      %97 = sbr.rel (%p95) target = $region8
    $region5: #{transformer_forward.1} parent=1 // loop_body
      %s99 = ssub.s32 %s94, 1
      %s100 = ssub.s32 %s94, 2
      %s101 = sadd.s32 %s94, 1
      %s102 = ssub.s32 %s94, %s101
      %p103 = scmp.eq.s32.totalorder %s102, 0
      %s105 = sadd.s32 %s104, 1
      %s106 = scalar_select %p103, %s104, %s105
      %p109 = pneg %p103
      %p110 = scmp.eq.s32.totalorder %s94, 1
      %p111 = por %p109, %p110
      %p112 = scmp.ne.s32.totalorder %s104, %s107
      %p113 = scmp.eq.s32.totalorder %s94, 0
      %p114 = por %p112, %p113
      %p115 = scmp.ne.s32.totalorder %s104, %s107
      %p116 = scmp.eq.s32.totalorder %s99, 1
      %p117 = por %p115, %p116
      %p118 = scmp.ne.s32.totalorder %s107, %s108
      %p119 = scmp.eq.s32.totalorder %s99, 0
      %p120 = por %p118, %p119
      %p121 = scmp.ne.s32.totalorder %s107, %s108
      %p122 = scmp.eq.s32.totalorder %s100, 1
      %p123 = por %p121, %p122
      %p125 = scmp.ne.s32.totalorder %s108, %s124
      %p126 = scmp.eq.s32.totalorder %s100, 0
      %p127 = por %p125, %p126
      %s128 = ssub.s32 %s94, %s101
      %p129 = scmp.eq.s32.totalorder %s128, 0
      %s131 = sadd.s32 %s130, 1
      %s132 = scalar_select %p129, %s130, %s131
      %p135 = pneg %p129
      %p136 = scmp.eq.s32.totalorder %s94, 1
      %p137 = por %p135, %p136
      %p138 = scmp.ne.s32.totalorder %s130, %s133
      %p139 = scmp.eq.s32.totalorder %s94, 0
      %p140 = por %p138, %p139
      %p141 = scmp.ne.s32.totalorder %s130, %s133
      %p142 = scmp.eq.s32.totalorder %s99, 1
      %p143 = por %p141, %p142
      %p144 = scmp.ne.s32.totalorder %s133, %s134
      %p145 = scmp.eq.s32.totalorder %s99, 0
      %p146 = por %p144, %p145
      %p147 = scmp.ne.s32.totalorder %s133, %s134
      %p148 = scmp.eq.s32.totalorder %s100, 1
      %p149 = por %p147, %p148
      %p151 = scmp.ne.s32.totalorder %s134, %s150
      %p152 = scmp.eq.s32.totalorder %s100, 0
      %p153 = por %p151, %p152
      %s154 = ssub.s32 %s94, %s101
      %p155 = scmp.eq.s32.totalorder %s154, 0
      %s157 = sadd.s32 %s156, 1
      %s158 = scalar_select %p155, %s156, %s157
      %p161 = pneg %p155
      %p162 = scmp.eq.s32.totalorder %s94, 1
      %p163 = por %p161, %p162
      %p164 = scmp.ne.s32.totalorder %s156, %s159
      %p165 = scmp.eq.s32.totalorder %s94, 0
      %p166 = por %p164, %p165
      %p167 = scmp.ne.s32.totalorder %s156, %s159
      %p168 = scmp.eq.s32.totalorder %s99, 1
      %p169 = por %p167, %p168
      %p170 = scmp.ne.s32.totalorder %s159, %s160
      %p171 = scmp.eq.s32.totalorder %s99, 0
      %p172 = por %p170, %p171
      %p173 = scmp.ne.s32.totalorder %s159, %s160
      %p174 = scmp.eq.s32.totalorder %s100, 1
      %p175 = por %p173, %p174
      %p177 = scmp.ne.s32.totalorder %s160, %s176
      %p178 = scmp.eq.s32.totalorder %s100, 0
      %p179 = por %p177, %p178
      %s180 = ssub.s32 %s94, %s101
      %p181 = scmp.eq.s32.totalorder %s180, 0
      %s183 = sadd.s32 %s182, 1
      %s184 = scalar_select %p181, %s182, %s183
      %p187 = pneg %p181
      %p188 = scmp.eq.s32.totalorder %s94, 1
      %p189 = por %p187, %p188
      %p190 = scmp.ne.s32.totalorder %s182, %s185
      %p191 = scmp.eq.s32.totalorder %s94, 0
      %p192 = por %p190, %p191
      %p193 = scmp.ne.s32.totalorder %s182, %s185
      %p194 = scmp.eq.s32.totalorder %s99, 1
      %p195 = por %p193, %p194
      %p196 = scmp.ne.s32.totalorder %s185, %s186
      %p197 = scmp.eq.s32.totalorder %s99, 0
      %p198 = por %p196, %p197
      %p199 = scmp.ne.s32.totalorder %s185, %s186
      %p200 = scmp.eq.s32.totalorder %s100, 1
      %p201 = por %p199, %p200
      %p203 = scmp.ne.s32.totalorder %s186, %s202
      %p204 = scmp.eq.s32.totalorder %s100, 0
      %p205 = por %p203, %p204
      %s207 = sadd.s32 %s206, 1
      %p210 = scmp.eq.s32.totalorder %s94, 1
      %p211 = scmp.ne.s32.totalorder %s206, %s208
      %p212 = scmp.eq.s32.totalorder %s94, 0
      %p213 = por %p211, %p212
      %p214 = scmp.ne.s32.totalorder %s206, %s208
      %p215 = scmp.eq.s32.totalorder %s99, 1
      %p216 = por %p214, %p215
      %p217 = scmp.ne.s32.totalorder %s208, %s209
      %p218 = scmp.eq.s32.totalorder %s99, 0
      %p219 = por %p217, %p218
      %p220 = scmp.ne.s32.totalorder %s208, %s209
      %p221 = scmp.eq.s32.totalorder %s100, 1
      %p222 = por %p220, %p221
      %p224 = scmp.ne.s32.totalorder %s209, %s223
      %p225 = scmp.eq.s32.totalorder %s100, 0
      %p226 = por %p224, %p225
      %s228 = sadd.s32 %s227, 1
      %p231 = scmp.eq.s32.totalorder %s94, 1
      %p232 = scmp.ne.s32.totalorder %s227, %s229
      %p233 = scmp.eq.s32.totalorder %s94, 0
      %p234 = por %p232, %p233
      %p235 = scmp.ne.s32.totalorder %s227, %s229
      %p236 = scmp.eq.s32.totalorder %s99, 1
      %p237 = por %p235, %p236
      %p238 = scmp.ne.s32.totalorder %s229, %s230
      %p239 = scmp.eq.s32.totalorder %s99, 0
      %p240 = por %p238, %p239
      %p241 = scmp.ne.s32.totalorder %s229, %s230
      %p242 = scmp.eq.s32.totalorder %s100, 1
      %p243 = por %p241, %p242
      %p245 = scmp.ne.s32.totalorder %s230, %s244
      %p246 = scmp.eq.s32.totalorder %s100, 0
      %p247 = por %p245, %p246
      %s249 = sadd.s32 %s248, 1
      %p252 = scmp.eq.s32.totalorder %s94, 1
      %p253 = scmp.ne.s32.totalorder %s248, %s250
      %p254 = scmp.eq.s32.totalorder %s94, 0
      %p255 = por %p253, %p254
      %p256 = scmp.ne.s32.totalorder %s248, %s250
      %p257 = scmp.eq.s32.totalorder %s99, 1
      %p258 = por %p256, %p257
      %p259 = scmp.ne.s32.totalorder %s250, %s251
      %p260 = scmp.eq.s32.totalorder %s99, 0
      %p261 = por %p259, %p260
      %p262 = scmp.ne.s32.totalorder %s250, %s251
      %p263 = scmp.eq.s32.totalorder %s100, 1
      %p264 = por %p262, %p263
      %p266 = scmp.ne.s32.totalorder %s251, %s265
      %p267 = scmp.eq.s32.totalorder %s100, 0
      %p268 = por %p266, %p267
      %s270 = sadd.s32 %s269, 1
      %p273 = scmp.eq.s32.totalorder %s94, 1
      %p274 = scmp.ne.s32.totalorder %s269, %s271
      %p275 = scmp.eq.s32.totalorder %s94, 0
      %p276 = por %p274, %p275
      %p277 = scmp.ne.s32.totalorder %s269, %s271
      %p278 = scmp.eq.s32.totalorder %s99, 1
      %p279 = por %p277, %p278
      %p280 = scmp.ne.s32.totalorder %s271, %s272
      %p281 = scmp.eq.s32.totalorder %s99, 0
      %p282 = por %p280, %p281
      %p283 = scmp.ne.s32.totalorder %s271, %s272
      %p284 = scmp.eq.s32.totalorder %s100, 1
      %p285 = por %p283, %p284
      %p287 = scmp.ne.s32.totalorder %s272, %s286
      %p288 = scmp.eq.s32.totalorder %s100, 0
      %p289 = por %p287, %p288
      %s291 = sadd.s32 %s290, 1
      %p294 = scmp.eq.s32.totalorder %s94, 1
      %p295 = scmp.ne.s32.totalorder %s290, %s292
      %p296 = scmp.eq.s32.totalorder %s94, 0
      %p297 = por %p295, %p296
      %p298 = scmp.ne.s32.totalorder %s290, %s292
      %p299 = scmp.eq.s32.totalorder %s99, 1
      %p300 = por %p298, %p299
      %p301 = scmp.ne.s32.totalorder %s292, %s293
      %p302 = scmp.eq.s32.totalorder %s99, 0
      %p303 = por %p301, %p302
      %p304 = scmp.ne.s32.totalorder %s292, %s293
      %p305 = scmp.eq.s32.totalorder %s100, 1
      %p306 = por %p304, %p305
      %p308 = scmp.ne.s32.totalorder %s293, %s307
      %p309 = scmp.eq.s32.totalorder %s100, 0
      %p310 = por %p308, %p309
      %s312 = sadd.s32 %s311, 1
      %p315 = scmp.eq.s32.totalorder %s94, 1
      %p316 = scmp.ne.s32.totalorder %s311, %s313
      %p317 = scmp.eq.s32.totalorder %s94, 0
      %p318 = por %p316, %p317
      %p319 = scmp.ne.s32.totalorder %s311, %s313
      %p320 = scmp.eq.s32.totalorder %s99, 1
      %p321 = por %p319, %p320
      %p322 = scmp.ne.s32.totalorder %s313, %s314
      %p323 = scmp.eq.s32.totalorder %s99, 0
      %p324 = por %p322, %p323
      %p325 = scmp.ne.s32.totalorder %s313, %s314
      %p326 = scmp.eq.s32.totalorder %s100, 1
      %p327 = por %p325, %p326
      %p329 = scmp.ne.s32.totalorder %s314, %s328
      %p330 = scmp.eq.s32.totalorder %s100, 0
      %p331 = por %p329, %p330
      %s333 = sadd.s32 %s332, 1
      %p336 = scmp.eq.s32.totalorder %s94, 1
      %p337 = scmp.ne.s32.totalorder %s332, %s334
      %p338 = scmp.eq.s32.totalorder %s94, 0
      %p339 = por %p337, %p338
      %p340 = scmp.ne.s32.totalorder %s332, %s334
      %p341 = scmp.eq.s32.totalorder %s99, 1
      %p342 = por %p340, %p341
      %p343 = scmp.ne.s32.totalorder %s334, %s335
      %p344 = scmp.eq.s32.totalorder %s99, 0
      %p345 = por %p343, %p344
      %p346 = scmp.ne.s32.totalorder %s334, %s335
      %p347 = scmp.eq.s32.totalorder %s100, 1
      %p348 = por %p346, %p347
      %p350 = scmp.ne.s32.totalorder %s335, %s349
      %p351 = scmp.eq.s32.totalorder %s100, 0
      %p352 = por %p350, %p351
      %s354 = sadd.s32 %s353, 1
      %p357 = scmp.eq.s32.totalorder %s94, 1
      %p358 = scmp.ne.s32.totalorder %s353, %s355
      %p359 = scmp.eq.s32.totalorder %s94, 0
      %p360 = por %p358, %p359
      %p361 = scmp.ne.s32.totalorder %s353, %s355
      %p362 = scmp.eq.s32.totalorder %s99, 1
      %p363 = por %p361, %p362
      %p364 = scmp.ne.s32.totalorder %s355, %s356
      %p365 = scmp.eq.s32.totalorder %s99, 0
      %p366 = por %p364, %p365
      %p367 = scmp.ne.s32.totalorder %s355, %s356
      %p368 = scmp.eq.s32.totalorder %s100, 1
      %p369 = por %p367, %p368
      %p371 = scmp.ne.s32.totalorder %s356, %s370
      %p372 = scmp.eq.s32.totalorder %s100, 0
      %p373 = por %p371, %p372
      %s375 = sadd.s32 %s374, 1
      %p378 = scmp.eq.s32.totalorder %s94, 1
      %p379 = scmp.ne.s32.totalorder %s374, %s376
      %p380 = scmp.eq.s32.totalorder %s94, 0
      %p381 = por %p379, %p380
      %p382 = scmp.ne.s32.totalorder %s374, %s376
      %p383 = scmp.eq.s32.totalorder %s99, 1
      %p384 = por %p382, %p383
      %p385 = scmp.ne.s32.totalorder %s376, %s377
      %p386 = scmp.eq.s32.totalorder %s99, 0
      %p387 = por %p385, %p386
      %p388 = scmp.ne.s32.totalorder %s376, %s377
      %p389 = scmp.eq.s32.totalorder %s100, 1
      %p390 = por %p388, %p389
      %p392 = scmp.ne.s32.totalorder %s377, %s391
      %p393 = scmp.eq.s32.totalorder %s100, 0
      %p394 = por %p392, %p393
      %s396 = sadd.s32 %s395, 1
      %p399 = scmp.eq.s32.totalorder %s94, 1
      %p400 = scmp.ne.s32.totalorder %s395, %s397
      %p401 = scmp.eq.s32.totalorder %s94, 0
      %p402 = por %p400, %p401
      %p403 = scmp.ne.s32.totalorder %s395, %s397
      %p404 = scmp.eq.s32.totalorder %s99, 1
      %p405 = por %p403, %p404
      %p406 = scmp.ne.s32.totalorder %s397, %s398
      %p407 = scmp.eq.s32.totalorder %s99, 0
      %p408 = por %p406, %p407
      %p409 = scmp.ne.s32.totalorder %s397, %s398
      %p410 = scmp.eq.s32.totalorder %s100, 1
      %p411 = por %p409, %p410
      %p413 = scmp.ne.s32.totalorder %s398, %s412
      %p414 = scmp.eq.s32.totalorder %s100, 0
      %p415 = por %p413, %p414
      %s417 = sadd.s32 %s416, 1
      %p420 = scmp.eq.s32.totalorder %s94, 1
      %p421 = scmp.ne.s32.totalorder %s416, %s418
      %p422 = scmp.eq.s32.totalorder %s94, 0
      %p423 = por %p421, %p422
      %p424 = scmp.ne.s32.totalorder %s416, %s418
      %p425 = scmp.eq.s32.totalorder %s99, 1
      %p426 = por %p424, %p425
      %p427 = scmp.ne.s32.totalorder %s418, %s419
      %p428 = scmp.eq.s32.totalorder %s99, 0
      %p429 = por %p427, %p428
      %p430 = scmp.ne.s32.totalorder %s418, %s419
      %p431 = scmp.eq.s32.totalorder %s100, 1
      %p432 = por %p430, %p431
      %p434 = scmp.ne.s32.totalorder %s419, %s433
      %p435 = scmp.eq.s32.totalorder %s100, 0
      %p436 = por %p434, %p435
      %s438 = sadd.s32 %s437, 1
      %p441 = scmp.eq.s32.totalorder %s94, 1
      %p442 = scmp.ne.s32.totalorder %s437, %s439
      %p443 = scmp.eq.s32.totalorder %s94, 0
      %p444 = por %p442, %p443
      %p445 = scmp.ne.s32.totalorder %s437, %s439
      %p446 = scmp.eq.s32.totalorder %s99, 1
      %p447 = por %p445, %p446
      %p448 = scmp.ne.s32.totalorder %s439, %s440
      %p449 = scmp.eq.s32.totalorder %s99, 0
      %p450 = por %p448, %p449
      %p451 = scmp.ne.s32.totalorder %s439, %s440
      %p452 = scmp.eq.s32.totalorder %s100, 1
      %p453 = por %p451, %p452
      %p455 = scmp.ne.s32.totalorder %s440, %s454
      %p456 = scmp.eq.s32.totalorder %s100, 0
      %p457 = por %p455, %p456
      %s459 = sadd.s32 %s458, 1
      %p462 = scmp.eq.s32.totalorder %s94, 1
      %p463 = scmp.ne.s32.totalorder %s458, %s460
      %p464 = scmp.eq.s32.totalorder %s94, 0
      %p465 = por %p463, %p464
      %p466 = scmp.ne.s32.totalorder %s458, %s460
      %p467 = scmp.eq.s32.totalorder %s99, 1
      %p468 = por %p466, %p467
      %p469 = scmp.ne.s32.totalorder %s460, %s461
      %p470 = scmp.eq.s32.totalorder %s99, 0
      %p471 = por %p469, %p470
      %p472 = scmp.ne.s32.totalorder %s460, %s461
      %p473 = scmp.eq.s32.totalorder %s100, 1
      %p474 = por %p472, %p473
      %p476 = scmp.ne.s32.totalorder %s461, %s475
      %p477 = scmp.eq.s32.totalorder %s100, 0
      %p478 = por %p476, %p477
      %s480 = sadd.s32 %s479, 1
      %p483 = scmp.eq.s32.totalorder %s94, 1
      %p484 = scmp.ne.s32.totalorder %s479, %s481
      %p485 = scmp.eq.s32.totalorder %s94, 0
      %p486 = por %p484, %p485
      %p487 = scmp.ne.s32.totalorder %s479, %s481
      %p488 = scmp.eq.s32.totalorder %s99, 1
      %p489 = por %p487, %p488
      %p490 = scmp.ne.s32.totalorder %s481, %s482
      %p491 = scmp.eq.s32.totalorder %s99, 0
      %p492 = por %p490, %p491
      %p493 = scmp.ne.s32.totalorder %s481, %s482
      %p494 = scmp.eq.s32.totalorder %s100, 1
      %p495 = por %p493, %p494
      %p497 = scmp.ne.s32.totalorder %s482, %s496
      %p498 = scmp.eq.s32.totalorder %s100, 0
      %p499 = por %p497, %p498
      %s501 = sadd.s32 %s500, 1
      %p504 = scmp.eq.s32.totalorder %s94, 1
      %p505 = scmp.ne.s32.totalorder %s500, %s502
      %p506 = scmp.eq.s32.totalorder %s94, 0
      %p507 = por %p505, %p506
      %p508 = scmp.ne.s32.totalorder %s500, %s502
      %p509 = scmp.eq.s32.totalorder %s99, 1
      %p510 = por %p508, %p509
      %p511 = scmp.ne.s32.totalorder %s502, %s503
      %p512 = scmp.eq.s32.totalorder %s99, 0
      %p513 = por %p511, %p512
      %p514 = scmp.ne.s32.totalorder %s502, %s503
      %p515 = scmp.eq.s32.totalorder %s100, 1
      %p516 = por %p514, %p515
      %p518 = scmp.ne.s32.totalorder %s503, %s517
      %p519 = scmp.eq.s32.totalorder %s100, 0
      %p520 = por %p518, %p519
      %s522 = sadd.s32 %s521, 1
      %p525 = scmp.eq.s32.totalorder %s94, 1
      %p526 = scmp.ne.s32.totalorder %s521, %s523
      %p527 = scmp.eq.s32.totalorder %s94, 0
      %p528 = por %p526, %p527
      %p529 = scmp.ne.s32.totalorder %s521, %s523
      %p530 = scmp.eq.s32.totalorder %s99, 1
      %p531 = por %p529, %p530
      %p532 = scmp.ne.s32.totalorder %s523, %s524
      %p533 = scmp.eq.s32.totalorder %s99, 0
      %p534 = por %p532, %p533
      %p535 = scmp.ne.s32.totalorder %s523, %s524
      %p536 = scmp.eq.s32.totalorder %s100, 1
      %p537 = por %p535, %p536
      %p539 = scmp.ne.s32.totalorder %s524, %s538
      %p540 = scmp.eq.s32.totalorder %s100, 0
      %p541 = por %p539, %p540
      %s543 = sadd.s32 %s542, 1
      %p546 = scmp.eq.s32.totalorder %s94, 1
      %p547 = scmp.ne.s32.totalorder %s542, %s544
      %p548 = scmp.eq.s32.totalorder %s94, 0
      %p549 = por %p547, %p548
      %p550 = scmp.ne.s32.totalorder %s542, %s544
      %p551 = scmp.eq.s32.totalorder %s99, 1
      %p552 = por %p550, %p551
      %p553 = scmp.ne.s32.totalorder %s544, %s545
      %p554 = scmp.eq.s32.totalorder %s99, 0
      %p555 = por %p553, %p554
      %p556 = scmp.ne.s32.totalorder %s544, %s545
      %p557 = scmp.eq.s32.totalorder %s100, 1
      %p558 = por %p556, %p557
      %p560 = scmp.ne.s32.totalorder %s545, %s559
      %p561 = scmp.eq.s32.totalorder %s100, 0
      %p562 = por %p560, %p561
      %s564 = sadd.s32 %s563, 1
      %p567 = scmp.eq.s32.totalorder %s94, 1
      %p568 = scmp.ne.s32.totalorder %s563, %s565
      %p569 = scmp.eq.s32.totalorder %s94, 0
      %p570 = por %p568, %p569
      %p571 = scmp.ne.s32.totalorder %s563, %s565
      %p572 = scmp.eq.s32.totalorder %s99, 1
      %p573 = por %p571, %p572
      %p574 = scmp.ne.s32.totalorder %s565, %s566
      %p575 = scmp.eq.s32.totalorder %s99, 0
      %p576 = por %p574, %p575
      %p577 = scmp.ne.s32.totalorder %s565, %s566
      %p578 = scmp.eq.s32.totalorder %s100, 1
      %p579 = por %p577, %p578
      %p581 = scmp.ne.s32.totalorder %s566, %s580
      %p582 = scmp.eq.s32.totalorder %s100, 0
      %p583 = por %p581, %p582
      %s585 = sadd.s32 %s584, 1
      %p588 = scmp.eq.s32.totalorder %s94, 1
      %p589 = scmp.ne.s32.totalorder %s584, %s586
      %p590 = scmp.eq.s32.totalorder %s94, 0
      %p591 = por %p589, %p590
      %p592 = scmp.ne.s32.totalorder %s584, %s586
      %p593 = scmp.eq.s32.totalorder %s99, 1
      %p594 = por %p592, %p593
      %p595 = scmp.ne.s32.totalorder %s586, %s587
      %p596 = scmp.eq.s32.totalorder %s99, 0
      %p597 = por %p595, %p596
      %p598 = scmp.ne.s32.totalorder %s586, %s587
      %p599 = scmp.eq.s32.totalorder %s100, 1
      %p600 = por %p598, %p599
      %p602 = scmp.ne.s32.totalorder %s587, %s601
      %p603 = scmp.eq.s32.totalorder %s100, 0
      %p604 = por %p602, %p603
      %s606 = sadd.s32 %s605, 1
      %p609 = scmp.eq.s32.totalorder %s94, 1
      %p610 = scmp.ne.s32.totalorder %s605, %s607
      %p611 = scmp.eq.s32.totalorder %s94, 0
      %p612 = por %p610, %p611
      %p613 = scmp.ne.s32.totalorder %s605, %s607
      %p614 = scmp.eq.s32.totalorder %s99, 1
      %p615 = por %p613, %p614
      %p616 = scmp.ne.s32.totalorder %s607, %s608
      %p617 = scmp.eq.s32.totalorder %s99, 0
      %p618 = por %p616, %p617
      %p619 = scmp.ne.s32.totalorder %s607, %s608
      %p620 = scmp.eq.s32.totalorder %s100, 1
      %p621 = por %p619, %p620
      %p623 = scmp.ne.s32.totalorder %s608, %s622
      %p624 = scmp.eq.s32.totalorder %s100, 0
      %p625 = por %p623, %p624
      %s627 = sadd.s32 %s626, 1
      %p630 = scmp.eq.s32.totalorder %s94, 1
      %p631 = scmp.ne.s32.totalorder %s626, %s628
      %p632 = scmp.eq.s32.totalorder %s94, 0
      %p633 = por %p631, %p632
      %p634 = scmp.ne.s32.totalorder %s626, %s628
      %p635 = scmp.eq.s32.totalorder %s99, 1
      %p636 = por %p634, %p635
      %p637 = scmp.ne.s32.totalorder %s628, %s629
      %p638 = scmp.eq.s32.totalorder %s99, 0
      %p639 = por %p637, %p638
      %p640 = scmp.ne.s32.totalorder %s628, %s629
      %p641 = scmp.eq.s32.totalorder %s100, 1
      %p642 = por %p640, %p641
      %p644 = scmp.ne.s32.totalorder %s629, %s643
      %p645 = scmp.eq.s32.totalorder %s100, 0
      %p646 = por %p644, %p645
      %s648 = sadd.s32 %s647, 1
      %p651 = scmp.eq.s32.totalorder %s94, 1
      %p652 = scmp.ne.s32.totalorder %s647, %s649
      %p653 = scmp.eq.s32.totalorder %s94, 0
      %p654 = por %p652, %p653
      %p655 = scmp.ne.s32.totalorder %s647, %s649
      %p656 = scmp.eq.s32.totalorder %s99, 1
      %p657 = por %p655, %p656
      %p658 = scmp.ne.s32.totalorder %s649, %s650
      %p659 = scmp.eq.s32.totalorder %s99, 0
      %p660 = por %p658, %p659
      %p661 = scmp.ne.s32.totalorder %s649, %s650
      %p662 = scmp.eq.s32.totalorder %s100, 1
      %p663 = por %p661, %p662
      %p665 = scmp.ne.s32.totalorder %s650, %s664
      %p666 = scmp.eq.s32.totalorder %s100, 0
      %p667 = por %p665, %p666
      %s669 = sadd.s32 %s668, 1
      %p672 = scmp.eq.s32.totalorder %s94, 1
      %p673 = scmp.ne.s32.totalorder %s668, %s670
      %p674 = scmp.eq.s32.totalorder %s94, 0
      %p675 = por %p673, %p674
      %p676 = scmp.ne.s32.totalorder %s668, %s670
      %p677 = scmp.eq.s32.totalorder %s99, 1
      %p678 = por %p676, %p677
      %p679 = scmp.ne.s32.totalorder %s670, %s671
      %p680 = scmp.eq.s32.totalorder %s99, 0
      %p681 = por %p679, %p680
      %p682 = scmp.ne.s32.totalorder %s670, %s671
      %p683 = scmp.eq.s32.totalorder %s100, 1
      %p684 = por %p682, %p683
      %p686 = scmp.ne.s32.totalorder %s671, %s685
      %p687 = scmp.eq.s32.totalorder %s100, 0
      %p688 = por %p686, %p687
      %s690 = sadd.s32 %s689, 1
      %p693 = scmp.eq.s32.totalorder %s94, 1
      %p694 = scmp.ne.s32.totalorder %s689, %s691
      %p695 = scmp.eq.s32.totalorder %s94, 0
      %p696 = por %p694, %p695
      %p697 = scmp.ne.s32.totalorder %s689, %s691
      %p698 = scmp.eq.s32.totalorder %s99, 1
      %p699 = por %p697, %p698
      %p700 = scmp.ne.s32.totalorder %s691, %s692
      %p701 = scmp.eq.s32.totalorder %s99, 0
      %p702 = por %p700, %p701
      %p703 = scmp.ne.s32.totalorder %s691, %s692
      %p704 = scmp.eq.s32.totalorder %s100, 1
      %p705 = por %p703, %p704
      %p707 = scmp.ne.s32.totalorder %s692, %s706
      %p708 = scmp.eq.s32.totalorder %s100, 0
      %p709 = por %p707, %p708
      %s711 = sadd.s32 %s710, 1
      %p714 = scmp.eq.s32.totalorder %s94, 1
      %p715 = scmp.ne.s32.totalorder %s710, %s712
      %p716 = scmp.eq.s32.totalorder %s94, 0
      %p717 = por %p715, %p716
      %p718 = scmp.ne.s32.totalorder %s710, %s712
      %p719 = scmp.eq.s32.totalorder %s99, 1
      %p720 = por %p718, %p719
      %p721 = scmp.ne.s32.totalorder %s712, %s713
      %p722 = scmp.eq.s32.totalorder %s99, 0
      %p723 = por %p721, %p722
      %p724 = scmp.ne.s32.totalorder %s712, %s713
      %p725 = scmp.eq.s32.totalorder %s100, 1
      %p726 = por %p724, %p725
      %p728 = scmp.ne.s32.totalorder %s713, %s727
      %p729 = scmp.eq.s32.totalorder %s100, 0
      %p730 = por %p728, %p729
      %s732 = sadd.s32 %s731, 1
      %p735 = scmp.eq.s32.totalorder %s94, 1
      %p736 = scmp.ne.s32.totalorder %s731, %s733
      %p737 = scmp.eq.s32.totalorder %s94, 0
      %p738 = por %p736, %p737
      %p739 = scmp.ne.s32.totalorder %s731, %s733
      %p740 = scmp.eq.s32.totalorder %s99, 1
      %p741 = por %p739, %p740
      %p742 = scmp.ne.s32.totalorder %s733, %s734
      %p743 = scmp.eq.s32.totalorder %s99, 0
      %p744 = por %p742, %p743
      %p745 = scmp.ne.s32.totalorder %s733, %s734
      %p746 = scmp.eq.s32.totalorder %s100, 1
      %p747 = por %p745, %p746
      %p749 = scmp.ne.s32.totalorder %s734, %s748
      %p750 = scmp.eq.s32.totalorder %s100, 0
      %p751 = por %p749, %p750
      %s753 = sadd.s32 %s752, 1
      %p756 = scmp.eq.s32.totalorder %s94, 1
      %p757 = scmp.ne.s32.totalorder %s752, %s754
      %p758 = scmp.eq.s32.totalorder %s94, 0
      %p759 = por %p757, %p758
      %p760 = scmp.ne.s32.totalorder %s752, %s754
      %p761 = scmp.eq.s32.totalorder %s99, 1
      %p762 = por %p760, %p761
      %p763 = scmp.ne.s32.totalorder %s754, %s755
      %p764 = scmp.eq.s32.totalorder %s99, 0
      %p765 = por %p763, %p764
      %p766 = scmp.ne.s32.totalorder %s754, %s755
      %p767 = scmp.eq.s32.totalorder %s100, 1
      %p768 = por %p766, %p767
      %p770 = scmp.ne.s32.totalorder %s755, %s769
      %p771 = scmp.eq.s32.totalorder %s100, 0
      %p772 = por %p770, %p771
      %s774 = sadd.s32 %s773, 1
      %p777 = scmp.eq.s32.totalorder %s94, 1
      %p778 = scmp.ne.s32.totalorder %s773, %s775
      %p779 = scmp.eq.s32.totalorder %s94, 0
      %p780 = por %p778, %p779
      %p781 = scmp.ne.s32.totalorder %s773, %s775
      %p782 = scmp.eq.s32.totalorder %s99, 1
      %p783 = por %p781, %p782
      %p784 = scmp.ne.s32.totalorder %s775, %s776
      %p785 = scmp.eq.s32.totalorder %s99, 0
      %p786 = por %p784, %p785
      %p787 = scmp.ne.s32.totalorder %s775, %s776
      %p788 = scmp.eq.s32.totalorder %s100, 1
      %p789 = por %p787, %p788
      %p791 = scmp.ne.s32.totalorder %s776, %s790
      %p792 = scmp.eq.s32.totalorder %s100, 0
      %p793 = por %p791, %p792
      %s795 = sadd.s32 %s794, 1
      %p798 = scmp.eq.s32.totalorder %s94, 1
      %p799 = scmp.ne.s32.totalorder %s794, %s796
      %p800 = scmp.eq.s32.totalorder %s94, 0
      %p801 = por %p799, %p800
      %p802 = scmp.ne.s32.totalorder %s794, %s796
      %p803 = scmp.eq.s32.totalorder %s99, 1
      %p804 = por %p802, %p803
      %p805 = scmp.ne.s32.totalorder %s796, %s797
      %p806 = scmp.eq.s32.totalorder %s99, 0
      %p807 = por %p805, %p806
      %p808 = scmp.ne.s32.totalorder %s796, %s797
      %p809 = scmp.eq.s32.totalorder %s100, 1
      %p810 = por %p808, %p809
      %p812 = scmp.ne.s32.totalorder %s797, %s811
      %p813 = scmp.eq.s32.totalorder %s100, 0
      %p814 = por %p812, %p813
      %s816 = sadd.s32 %s815, 1
      %p819 = scmp.eq.s32.totalorder %s94, 1
      %p820 = scmp.ne.s32.totalorder %s815, %s817
      %p821 = scmp.eq.s32.totalorder %s94, 0
      %p822 = por %p820, %p821
      %p823 = scmp.ne.s32.totalorder %s815, %s817
      %p824 = scmp.eq.s32.totalorder %s99, 1
      %p825 = por %p823, %p824
      %p826 = scmp.ne.s32.totalorder %s817, %s818
      %p827 = scmp.eq.s32.totalorder %s99, 0
      %p828 = por %p826, %p827
      %p829 = scmp.ne.s32.totalorder %s817, %s818
      %p830 = scmp.eq.s32.totalorder %s100, 1
      %p831 = por %p829, %p830
      %p833 = scmp.ne.s32.totalorder %s818, %s832
      %p834 = scmp.eq.s32.totalorder %s100, 0
      %p835 = por %p833, %p834
      %s837 = sadd.s32 %s836, 1
      %p840 = scmp.eq.s32.totalorder %s94, 1
      %p841 = scmp.ne.s32.totalorder %s836, %s838
      %p842 = scmp.eq.s32.totalorder %s94, 0
      %p843 = por %p841, %p842
      %p844 = scmp.ne.s32.totalorder %s836, %s838
      %p845 = scmp.eq.s32.totalorder %s99, 1
      %p846 = por %p844, %p845
      %p847 = scmp.ne.s32.totalorder %s838, %s839
      %p848 = scmp.eq.s32.totalorder %s99, 0
      %p849 = por %p847, %p848
      %p850 = scmp.ne.s32.totalorder %s838, %s839
      %p851 = scmp.eq.s32.totalorder %s100, 1
      %p852 = por %p850, %p851
      %p854 = scmp.ne.s32.totalorder %s839, %s853
      %p855 = scmp.eq.s32.totalorder %s100, 0
      %p856 = por %p854, %p855
      %s858 = sadd.s32 %s857, 1
      %p861 = scmp.eq.s32.totalorder %s94, 1
      %p862 = scmp.ne.s32.totalorder %s857, %s859
      %p863 = scmp.eq.s32.totalorder %s94, 0
      %p864 = por %p862, %p863
      %p865 = scmp.ne.s32.totalorder %s857, %s859
      %p866 = scmp.eq.s32.totalorder %s99, 1
      %p867 = por %p865, %p866
      %p868 = scmp.ne.s32.totalorder %s859, %s860
      %p869 = scmp.eq.s32.totalorder %s99, 0
      %p870 = por %p868, %p869
      %p871 = scmp.ne.s32.totalorder %s859, %s860
      %p872 = scmp.eq.s32.totalorder %s100, 1
      %p873 = por %p871, %p872
      %p875 = scmp.ne.s32.totalorder %s860, %s874
      %p876 = scmp.eq.s32.totalorder %s100, 0
      %p877 = por %p875, %p876
      %s879 = sadd.s32 %s878, 1
      %p882 = scmp.eq.s32.totalorder %s94, 1
      %p883 = scmp.ne.s32.totalorder %s878, %s880
      %p884 = scmp.eq.s32.totalorder %s94, 0
      %p885 = por %p883, %p884
      %p886 = scmp.ne.s32.totalorder %s878, %s880
      %p887 = scmp.eq.s32.totalorder %s99, 1
      %p888 = por %p886, %p887
      %p889 = scmp.ne.s32.totalorder %s880, %s881
      %p890 = scmp.eq.s32.totalorder %s99, 0
      %p891 = por %p889, %p890
      %p892 = scmp.ne.s32.totalorder %s880, %s881
      %p893 = scmp.eq.s32.totalorder %s100, 1
      %p894 = por %p892, %p893
      %p896 = scmp.ne.s32.totalorder %s881, %s895
      %p897 = scmp.eq.s32.totalorder %s100, 0
      %p898 = por %p896, %p897
      %s900 = sadd.s32 %s899, 1
      %p903 = scmp.eq.s32.totalorder %s94, 1
      %p904 = scmp.ne.s32.totalorder %s899, %s901
      %p905 = scmp.eq.s32.totalorder %s94, 0
      %p906 = por %p904, %p905
      %p907 = scmp.ne.s32.totalorder %s899, %s901
      %p908 = scmp.eq.s32.totalorder %s99, 1
      %p909 = por %p907, %p908
      %p910 = scmp.ne.s32.totalorder %s901, %s902
      %p911 = scmp.eq.s32.totalorder %s99, 0
      %p912 = por %p910, %p911
      %p913 = scmp.ne.s32.totalorder %s901, %s902
      %p914 = scmp.eq.s32.totalorder %s100, 1
      %p915 = por %p913, %p914
      %p917 = scmp.ne.s32.totalorder %s902, %s916
      %p918 = scmp.eq.s32.totalorder %s100, 0
      %p919 = por %p917, %p918
      %s921 = sadd.s32 %s920, 1
      %p924 = scmp.eq.s32.totalorder %s94, 1
      %p925 = scmp.ne.s32.totalorder %s920, %s922
      %p926 = scmp.eq.s32.totalorder %s94, 0
      %p927 = por %p925, %p926
      %p928 = scmp.ne.s32.totalorder %s920, %s922
      %p929 = scmp.eq.s32.totalorder %s99, 1
      %p930 = por %p928, %p929
      %p931 = scmp.ne.s32.totalorder %s922, %s923
      %p932 = scmp.eq.s32.totalorder %s99, 0
      %p933 = por %p931, %p932
      %p934 = scmp.ne.s32.totalorder %s922, %s923
      %p935 = scmp.eq.s32.totalorder %s100, 1
      %p936 = por %p934, %p935
      %p938 = scmp.ne.s32.totalorder %s923, %s937
      %p939 = scmp.eq.s32.totalorder %s100, 0
      %p940 = por %p938, %p939
      %s942 = sadd.s32 %s941, 1
      %p945 = scmp.eq.s32.totalorder %s94, 1
      %p946 = scmp.ne.s32.totalorder %s941, %s943
      %p947 = scmp.eq.s32.totalorder %s94, 0
      %p948 = por %p946, %p947
      %p949 = scmp.ne.s32.totalorder %s941, %s943
      %p950 = scmp.eq.s32.totalorder %s99, 1
      %p951 = por %p949, %p950
      %p952 = scmp.ne.s32.totalorder %s943, %s944
      %p953 = scmp.eq.s32.totalorder %s99, 0
      %p954 = por %p952, %p953
      %p955 = scmp.ne.s32.totalorder %s943, %s944
      %p956 = scmp.eq.s32.totalorder %s100, 1
      %p957 = por %p955, %p956
      %p959 = scmp.ne.s32.totalorder %s944, %s958
      %p960 = scmp.eq.s32.totalorder %s100, 0
      %p961 = por %p959, %p960
      %s963 = sadd.s32 %s962, 1
      %p966 = scmp.eq.s32.totalorder %s94, 1
      %p967 = scmp.ne.s32.totalorder %s962, %s964
      %p968 = scmp.eq.s32.totalorder %s94, 0
      %p969 = por %p967, %p968
      %p970 = scmp.ne.s32.totalorder %s962, %s964
      %p971 = scmp.eq.s32.totalorder %s99, 1
      %p972 = por %p970, %p971
      %p973 = scmp.ne.s32.totalorder %s964, %s965
      %p974 = scmp.eq.s32.totalorder %s99, 0
      %p975 = por %p973, %p974
      %p976 = scmp.ne.s32.totalorder %s964, %s965
      %p977 = scmp.eq.s32.totalorder %s100, 1
      %p978 = por %p976, %p977
      %p980 = scmp.ne.s32.totalorder %s965, %s979
      %p981 = scmp.eq.s32.totalorder %s100, 0
      %p982 = por %p980, %p981
      %s984 = sadd.s32 %s983, 1
      %p987 = scmp.eq.s32.totalorder %s94, 1
      %p988 = scmp.ne.s32.totalorder %s983, %s985
      %p989 = scmp.eq.s32.totalorder %s94, 0
      %p990 = por %p988, %p989
      %p991 = scmp.ne.s32.totalorder %s983, %s985
      %p992 = scmp.eq.s32.totalorder %s99, 1
      %p993 = por %p991, %p992
      %p994 = scmp.ne.s32.totalorder %s985, %s986
      %p995 = scmp.eq.s32.totalorder %s99, 0
      %p996 = por %p994, %p995
      %p997 = scmp.ne.s32.totalorder %s985, %s986
      %p998 = scmp.eq.s32.totalorder %s100, 1
      %p999 = por %p997, %p998
      %p1001 = scmp.ne.s32.totalorder %s986, %s1000
      %p1002 = scmp.eq.s32.totalorder %s100, 0
      %p1003 = por %p1001, %p1002
      %s1004 = ssub.s32 %s94, %s101
      %p1005 = scmp.eq.s32.totalorder %s1004, 0
      %s1007 = sadd.s32 %s1006, 1
      %s1008 = scalar_select %p1005, %s1006, %s1007
      %p1011 = pneg %p1005
      %p1012 = scmp.eq.s32.totalorder %s94, 1
      %p1013 = por %p1011, %p1012
      %p1014 = scmp.ne.s32.totalorder %s1006, %s1009
      %p1015 = scmp.eq.s32.totalorder %s94, 0
      %p1016 = por %p1014, %p1015
      %p1017 = scmp.ne.s32.totalorder %s1006, %s1009
      %p1018 = scmp.eq.s32.totalorder %s99, 1
      %p1019 = por %p1017, %p1018
      %p1020 = scmp.ne.s32.totalorder %s1009, %s1010
      %p1021 = scmp.eq.s32.totalorder %s99, 0
      %p1022 = por %p1020, %p1021
      %p1023 = scmp.ne.s32.totalorder %s1009, %s1010
      %p1024 = scmp.eq.s32.totalorder %s100, 1
      %p1025 = por %p1023, %p1024
      %p1027 = scmp.ne.s32.totalorder %s1010, %s1026
      %p1028 = scmp.eq.s32.totalorder %s100, 0
      %p1029 = por %p1027, %p1028
      %p1030 = scmp.le.s32.totalorder 1, %s94
      %p1031 = scmp.lt.s32.totalorder %s94, 3
      %p1032 = pnand %p1030, %p1031
      %p1033 = pneg %p1032
      // Predicated region
      $region9: #{transformer_forward.1} parent=5 // pred_check
        _
      $region10: #{transformer_forward.1} parent=5 // pred_check_branch
        %1035 = sbr.rel (%p1032) target = $region12
      $region11: #{transformer_forward.1} parent=5 // pred_region
        %s1036 = ssub.s32 %s94, 1
        // Predicated region
        $region13: #{transformer_forward.1} parent=11 // pred_check
          %p1037 = pneg %p219
        $region14: #{transformer_forward.1} parent=11 // pred_check_branch
          %1039 = sbr.rel (%p1037) target = $region16
        $region15: #{transformer_forward.1} parent=11 // pred_region
          _
        $region16: #{transformer_forward.1} parent=11 // pred_fallthru
          _
        // Predicated region
        $region17: #{transformer_forward.1} parent=11 // pred_check
          %p1040 = pneg %p240
        $region18: #{transformer_forward.1} parent=11 // pred_check_branch
          %1042 = sbr.rel (%p1040) target = $region20
        $region19: #{transformer_forward.1} parent=11 // pred_region
          _
        $region20: #{transformer_forward.1} parent=11 // pred_fallthru
          _
        // Predicated region
        $region21: #{transformer_forward.1} parent=11 // pred_check
          %p1043 = pneg %p261
        $region22: #{transformer_forward.1} parent=11 // pred_check_branch
          %1045 = sbr.rel (%p1043) target = $region24
        $region23: #{transformer_forward.1} parent=11 // pred_region
          _
        $region24: #{transformer_forward.1} parent=11 // pred_fallthru
          _
        // Predicated region
        $region25: #{transformer_forward.1} parent=11 // pred_check
          %p1046 = pneg %p282
        $region26: #{transformer_forward.1} parent=11 // pred_check_branch
          %1048 = sbr.rel (%p1046) target = $region28
        $region27: #{transformer_forward.1} parent=11 // pred_region
          _
        $region28: #{transformer_forward.1} parent=11 // pred_fallthru
          _
        // Predicated region
        $region29: #{transformer_forward.1} parent=11 // pred_check
          %p1049 = pneg %p303
        $region30: #{transformer_forward.1} parent=11 // pred_check_branch
          %1051 = sbr.rel (%p1049) target = $region32
        $region31: #{transformer_forward.1} parent=11 // pred_region
          _
        $region32: #{transformer_forward.1} parent=11 // pred_fallthru
          _
        // Predicated region
        $region33: #{transformer_forward.1} parent=11 // pred_check
          %p1052 = pneg %p324
        $region34: #{transformer_forward.1} parent=11 // pred_check_branch
          %1054 = sbr.rel (%p1052) target = $region36
        $region35: #{transformer_forward.1} parent=11 // pred_region
          _
        $region36: #{transformer_forward.1} parent=11 // pred_fallthru
          _
        // Predicated region
        $region37: #{transformer_forward.1} parent=11 // pred_check
          %p1055 = pneg %p345
        $region38: #{transformer_forward.1} parent=11 // pred_check_branch
          %1057 = sbr.rel (%p1055) target = $region40
        $region39: #{transformer_forward.1} parent=11 // pred_region
          _
        $region40: #{transformer_forward.1} parent=11 // pred_fallthru
          _
        // Predicated region
        $region41: #{transformer_forward.1} parent=11 // pred_check
          %p1058 = pneg %p366
        $region42: #{transformer_forward.1} parent=11 // pred_check_branch
          %1060 = sbr.rel (%p1058) target = $region44
        $region43: #{transformer_forward.1} parent=11 // pred_region
          _
        $region44: #{transformer_forward.1} parent=11 // pred_fallthru
          _
        // Predicated region
        $region45: #{transformer_forward.1} parent=11 // pred_check
          %p1061 = pneg %p387
        $region46: #{transformer_forward.1} parent=11 // pred_check_branch
          %1063 = sbr.rel (%p1061) target = $region48
        $region47: #{transformer_forward.1} parent=11 // pred_region
          _
        $region48: #{transformer_forward.1} parent=11 // pred_fallthru
          _
        // Predicated region
        $region49: #{transformer_forward.1} parent=11 // pred_check
          %p1064 = pneg %p408
        $region50: #{transformer_forward.1} parent=11 // pred_check_branch
          %1066 = sbr.rel (%p1064) target = $region52
        $region51: #{transformer_forward.1} parent=11 // pred_region
          _
        $region52: #{transformer_forward.1} parent=11 // pred_fallthru
          _
        // Predicated region
        $region53: #{transformer_forward.1} parent=11 // pred_check
          %p1067 = pneg %p429
        $region54: #{transformer_forward.1} parent=11 // pred_check_branch
          %1069 = sbr.rel (%p1067) target = $region56
        $region55: #{transformer_forward.1} parent=11 // pred_region
          _
        $region56: #{transformer_forward.1} parent=11 // pred_fallthru
          _
        // Predicated region
        $region57: #{transformer_forward.1} parent=11 // pred_check
          %p1070 = pneg %p450
        $region58: #{transformer_forward.1} parent=11 // pred_check_branch
          %1072 = sbr.rel (%p1070) target = $region60
        $region59: #{transformer_forward.1} parent=11 // pred_region
          _
        $region60: #{transformer_forward.1} parent=11 // pred_fallthru
          _
        // Predicated region
        $region61: #{transformer_forward.1} parent=11 // pred_check
          %p1073 = pneg %p471
        $region62: #{transformer_forward.1} parent=11 // pred_check_branch
          %1075 = sbr.rel (%p1073) target = $region64
        $region63: #{transformer_forward.1} parent=11 // pred_region
          _
        $region64: #{transformer_forward.1} parent=11 // pred_fallthru
          _
        // Predicated region
        $region65: #{transformer_forward.1} parent=11 // pred_check
          %p1076 = pneg %p492
        $region66: #{transformer_forward.1} parent=11 // pred_check_branch
          %1078 = sbr.rel (%p1076) target = $region68
        $region67: #{transformer_forward.1} parent=11 // pred_region
          _
        $region68: #{transformer_forward.1} parent=11 // pred_fallthru
          _
        // Predicated region
        $region69: #{transformer_forward.1} parent=11 // pred_check
          %p1079 = pneg %p513
        $region70: #{transformer_forward.1} parent=11 // pred_check_branch
          %1081 = sbr.rel (%p1079) target = $region72
        $region71: #{transformer_forward.1} parent=11 // pred_region
          _
        $region72: #{transformer_forward.1} parent=11 // pred_fallthru
          _
        // Predicated region
        $region73: #{transformer_forward.1} parent=11 // pred_check
          %p1082 = pneg %p534
        $region74: #{transformer_forward.1} parent=11 // pred_check_branch
          %1084 = sbr.rel (%p1082) target = $region76
        $region75: #{transformer_forward.1} parent=11 // pred_region
          _
        $region76: #{transformer_forward.1} parent=11 // pred_fallthru
          _
        // Predicated region
        $region77: #{transformer_forward.1} parent=11 // pred_check
          %p1085 = pneg %p555
        $region78: #{transformer_forward.1} parent=11 // pred_check_branch
          %1087 = sbr.rel (%p1085) target = $region80
        $region79: #{transformer_forward.1} parent=11 // pred_region
          _
        $region80: #{transformer_forward.1} parent=11 // pred_fallthru
          _
        // Predicated region
        $region81: #{transformer_forward.1} parent=11 // pred_check
          %p1088 = pneg %p576
        $region82: #{transformer_forward.1} parent=11 // pred_check_branch
          %1090 = sbr.rel (%p1088) target = $region84
        $region83: #{transformer_forward.1} parent=11 // pred_region
          _
        $region84: #{transformer_forward.1} parent=11 // pred_fallthru
          _
        // Predicated region
        $region85: #{transformer_forward.1} parent=11 // pred_check
          %p1091 = pneg %p597
        $region86: #{transformer_forward.1} parent=11 // pred_check_branch
          %1093 = sbr.rel (%p1091) target = $region88
        $region87: #{transformer_forward.1} parent=11 // pred_region
          _
        $region88: #{transformer_forward.1} parent=11 // pred_fallthru
          _
        // Predicated region
        $region89: #{transformer_forward.1} parent=11 // pred_check
          %p1094 = pneg %p618
        $region90: #{transformer_forward.1} parent=11 // pred_check_branch
          %1096 = sbr.rel (%p1094) target = $region92
        $region91: #{transformer_forward.1} parent=11 // pred_region
          _
        $region92: #{transformer_forward.1} parent=11 // pred_fallthru
          _
        // Predicated region
        $region93: #{transformer_forward.1} parent=11 // pred_check
          %p1097 = pneg %p639
        $region94: #{transformer_forward.1} parent=11 // pred_check_branch
          %1099 = sbr.rel (%p1097) target = $region96
        $region95: #{transformer_forward.1} parent=11 // pred_region
          _
        $region96: #{transformer_forward.1} parent=11 // pred_fallthru
          _
        // Predicated region
        $region97: #{transformer_forward.1} parent=11 // pred_check
          %p1100 = pneg %p660
        $region98: #{transformer_forward.1} parent=11 // pred_check_branch
          %1102 = sbr.rel (%p1100) target = $region100
        $region99: #{transformer_forward.1} parent=11 // pred_region
          _
        $region100: #{transformer_forward.1} parent=11 // pred_fallthru
          _
        // Predicated region
        $region101: #{transformer_forward.1} parent=11 // pred_check
          %p1103 = pneg %p681
        $region102: #{transformer_forward.1} parent=11 // pred_check_branch
          %1105 = sbr.rel (%p1103) target = $region104
        $region103: #{transformer_forward.1} parent=11 // pred_region
          _
        $region104: #{transformer_forward.1} parent=11 // pred_fallthru
          _
        // Predicated region
        $region105: #{transformer_forward.1} parent=11 // pred_check
          %p1106 = pneg %p702
        $region106: #{transformer_forward.1} parent=11 // pred_check_branch
          %1108 = sbr.rel (%p1106) target = $region108
        $region107: #{transformer_forward.1} parent=11 // pred_region
          _
        $region108: #{transformer_forward.1} parent=11 // pred_fallthru
          _
        // Predicated region
        $region109: #{transformer_forward.1} parent=11 // pred_check
          %p1109 = pneg %p723
        $region110: #{transformer_forward.1} parent=11 // pred_check_branch
          %1111 = sbr.rel (%p1109) target = $region112
        $region111: #{transformer_forward.1} parent=11 // pred_region
          _
        $region112: #{transformer_forward.1} parent=11 // pred_fallthru
          _
        // Predicated region
        $region113: #{transformer_forward.1} parent=11 // pred_check
          %p1112 = pneg %p744
        $region114: #{transformer_forward.1} parent=11 // pred_check_branch
          %1114 = sbr.rel (%p1112) target = $region116
        $region115: #{transformer_forward.1} parent=11 // pred_region
          _
        $region116: #{transformer_forward.1} parent=11 // pred_fallthru
          _
        // Predicated region
        $region117: #{transformer_forward.1} parent=11 // pred_check
          %p1115 = pneg %p765
        $region118: #{transformer_forward.1} parent=11 // pred_check_branch
          %1117 = sbr.rel (%p1115) target = $region120
        $region119: #{transformer_forward.1} parent=11 // pred_region
          _
        $region120: #{transformer_forward.1} parent=11 // pred_fallthru
          _
        // Predicated region
        $region121: #{transformer_forward.1} parent=11 // pred_check
          %p1118 = pneg %p786
        $region122: #{transformer_forward.1} parent=11 // pred_check_branch
          %1120 = sbr.rel (%p1118) target = $region124
        $region123: #{transformer_forward.1} parent=11 // pred_region
          _
        $region124: #{transformer_forward.1} parent=11 // pred_fallthru
          _
        // Predicated region
        $region125: #{transformer_forward.1} parent=11 // pred_check
          %p1121 = pneg %p807
        $region126: #{transformer_forward.1} parent=11 // pred_check_branch
          %1123 = sbr.rel (%p1121) target = $region128
        $region127: #{transformer_forward.1} parent=11 // pred_region
          _
        $region128: #{transformer_forward.1} parent=11 // pred_fallthru
          _
        // Predicated region
        $region129: #{transformer_forward.1} parent=11 // pred_check
          %p1124 = pneg %p828
        $region130: #{transformer_forward.1} parent=11 // pred_check_branch
          %1126 = sbr.rel (%p1124) target = $region132
        $region131: #{transformer_forward.1} parent=11 // pred_region
          _
        $region132: #{transformer_forward.1} parent=11 // pred_fallthru
          _
        // Predicated region
        $region133: #{transformer_forward.1} parent=11 // pred_check
          %p1127 = pneg %p849
        $region134: #{transformer_forward.1} parent=11 // pred_check_branch
          %1129 = sbr.rel (%p1127) target = $region136
        $region135: #{transformer_forward.1} parent=11 // pred_region
          _
        $region136: #{transformer_forward.1} parent=11 // pred_fallthru
          _
        // Predicated region
        $region137: #{transformer_forward.1} parent=11 // pred_check
          %p1130 = pneg %p870
        $region138: #{transformer_forward.1} parent=11 // pred_check_branch
          %1132 = sbr.rel (%p1130) target = $region140
        $region139: #{transformer_forward.1} parent=11 // pred_region
          _
        $region140: #{transformer_forward.1} parent=11 // pred_fallthru
          _
        // Predicated region
        $region141: #{transformer_forward.1} parent=11 // pred_check
          %p1133 = pneg %p891
        $region142: #{transformer_forward.1} parent=11 // pred_check_branch
          %1135 = sbr.rel (%p1133) target = $region144
        $region143: #{transformer_forward.1} parent=11 // pred_region
          _
        $region144: #{transformer_forward.1} parent=11 // pred_fallthru
          _
        // Predicated region
        $region145: #{transformer_forward.1} parent=11 // pred_check
          %p1136 = pneg %p912
        $region146: #{transformer_forward.1} parent=11 // pred_check_branch
          %1138 = sbr.rel (%p1136) target = $region148
        $region147: #{transformer_forward.1} parent=11 // pred_region
          _
        $region148: #{transformer_forward.1} parent=11 // pred_fallthru
          _
        // Predicated region
        $region149: #{transformer_forward.1} parent=11 // pred_check
          %p1139 = pneg %p933
        $region150: #{transformer_forward.1} parent=11 // pred_check_branch
          %1141 = sbr.rel (%p1139) target = $region152
        $region151: #{transformer_forward.1} parent=11 // pred_region
          _
        $region152: #{transformer_forward.1} parent=11 // pred_fallthru
          _
        // Predicated region
        $region153: #{transformer_forward.1} parent=11 // pred_check
          %p1142 = pneg %p954
        $region154: #{transformer_forward.1} parent=11 // pred_check_branch
          %1144 = sbr.rel (%p1142) target = $region156
        $region155: #{transformer_forward.1} parent=11 // pred_region
          _
        $region156: #{transformer_forward.1} parent=11 // pred_fallthru
          _
        // Predicated region
        $region157: #{transformer_forward.1} parent=11 // pred_check
          %p1145 = pneg %p975
        $region158: #{transformer_forward.1} parent=11 // pred_check_branch
          %1147 = sbr.rel (%p1145) target = $region160
        $region159: #{transformer_forward.1} parent=11 // pred_region
          _
        $region160: #{transformer_forward.1} parent=11 // pred_fallthru
          _
        // Predicated region
        $region161: #{transformer_forward.1} parent=11 // pred_check
          %p1148 = pneg %p996
        $region162: #{transformer_forward.1} parent=11 // pred_check_branch
          %1150 = sbr.rel (%p1148) target = $region164
        $region163: #{transformer_forward.1} parent=11 // pred_region
          _
        $region164: #{transformer_forward.1} parent=11 // pred_fallthru
          _
      $region12: #{transformer_forward.1} parent=5 // pred_fallthru
        _
      %p1151 = scmp.lt.s32.totalorder %s94, 2
      // Predicated region
      $region165: #{transformer_forward.1} parent=5 // pred_check
        %p1152 = pneg %p1151
      $region166: #{transformer_forward.1} parent=5 // pred_check_branch
        %1154 = sbr.rel (%p1152) target = $region168
      $region167: #{transformer_forward.1} parent=5 // pred_region
        // Predicated region
        $region169: #{transformer_forward.1} parent=167 // pred_check
          %p1155 = pneg %p114
        $region170: #{transformer_forward.1} parent=167 // pred_check_branch
          %1157 = sbr.rel (%p1155) target = $region172
        $region171: #{transformer_forward.1} parent=167 // pred_region
          %p1158 = scmp.lt.s32.totalorder %s94, 1
          %s1159 = scalar_select %p1158, %s94, 1
          %s1160 = smul.addr %s1159, 8
          %s1161 = scalar_lea.vmem %s1, %s1160
        $region172: #{transformer_forward.1} parent=167 // pred_fallthru
          _
        // Predicated region
        $region173: #{transformer_forward.1} parent=167 // pred_check
          %p1162 = pneg %p140
        $region174: #{transformer_forward.1} parent=167 // pred_check_branch
          %1164 = sbr.rel (%p1162) target = $region176
        $region175: #{transformer_forward.1} parent=167 // pred_region
          %p1165 = scmp.lt.s32.totalorder %s94, 1
          %s1166 = scalar_select %p1165, %s94, 1
          %s1167 = smul.addr %s1166, 8
          %s1168 = scalar_lea.vmem %s3, %s1167
        $region176: #{transformer_forward.1} parent=167 // pred_fallthru
          _
        // Predicated region
        $region177: #{transformer_forward.1} parent=167 // pred_check
          %p1169 = pneg %p166
        $region178: #{transformer_forward.1} parent=167 // pred_check_branch
          %1171 = sbr.rel (%p1169) target = $region180
        $region179: #{transformer_forward.1} parent=167 // pred_region
          %p1172 = scmp.lt.s32.totalorder %s94, 1
          %s1173 = scalar_select %p1172, %s94, 1
          %s1174 = scalar_lea.vmem %s5, %s1173
        $region180: #{transformer_forward.1} parent=167 // pred_fallthru
          _
        // Predicated region
        $region181: #{transformer_forward.1} parent=167 // pred_check
          %p1175 = pneg %p192
        $region182: #{transformer_forward.1} parent=167 // pred_check_branch
          %1177 = sbr.rel (%p1175) target = $region184
        $region183: #{transformer_forward.1} parent=167 // pred_region
          %p1178 = scmp.lt.s32.totalorder %s94, 1
          %s1179 = scalar_select %p1178, %s94, 1
          %s1180 = scalar_lea.vmem %s7, %s1179
        $region184: #{transformer_forward.1} parent=167 // pred_fallthru
          _
      $region168: #{transformer_forward.1} parent=5 // pred_fallthru
        _
      %p1181 = scmp.le.s32.totalorder 1, %s94
      %p1182 = scmp.lt.s32.totalorder %s94, 3
      %p1183 = pnand %p1181, %p1182
      %p1184 = pneg %p1183
      // Predicated region
      $region185: #{transformer_forward.1} parent=5 // pred_check
        _
      $region186: #{transformer_forward.1} parent=5 // pred_check_branch
        %1186 = sbr.rel (%p1183) target = $region188
      $region187: #{transformer_forward.1} parent=5 // pred_region
        %s1187 = ssub.s32 %s94, 1
        %p1188 = scmp.lt.s32.totalorder %s99, 1
        %s1189 = scalar_select %p1188, %s99, 1
        %s1190 = smul.addr %s1189, 8
        %s1191 = scalar_lea.vmem %s1, %s1190
        %p1192 = pneg %p120
        %p1193 = pneg %p117
        %p1194 = scmp.lt.s32.totalorder %s99, 1
        %s1195 = scalar_select %p1194, %s99, 1
        %s1196 = smul.addr %s1195, 8
        %s1197 = scalar_lea.vmem %s3, %s1196
        %p1198 = pneg %p146
        %p1199 = pneg %p143
        %p1200 = scmp.lt.s32.totalorder %s99, 1
        %s1201 = scalar_select %p1200, %s99, 1
        %s1202 = scalar_lea.vmem %s5, %s1201
        %p1203 = pneg %p172
        %p1204 = pneg %p169
        %p1205 = scmp.lt.s32.totalorder %s99, 1
        %s1206 = scalar_select %p1205, %s99, 1
        %s1207 = scalar_lea.vmem %s7, %s1206
        %p1208 = pneg %p198
        %p1209 = pneg %p195
        %p1210 = pneg %p219
        %p1211 = pneg %p216
        %p1212 = pneg %p240
        %p1213 = pneg %p237
        %p1214 = pneg %p261
        %p1215 = pneg %p258
        %p1216 = pneg %p282
        %p1217 = pneg %p279
        %p1218 = pneg %p303
        %p1219 = pneg %p300
        %p1220 = pneg %p324
        %p1221 = pneg %p321
        %p1222 = pneg %p345
        %p1223 = pneg %p342
        %p1224 = pneg %p366
        %p1225 = pneg %p363
        %p1226 = pneg %p387
        %p1227 = pneg %p384
        %p1228 = pneg %p408
        %p1229 = pneg %p405
        %p1230 = pneg %p429
        %p1231 = pneg %p426
        %p1232 = pneg %p450
        %p1233 = pneg %p447
        %p1234 = pneg %p471
        %p1235 = pneg %p468
        %p1236 = pneg %p492
        %p1237 = pneg %p489
        %p1238 = pneg %p513
        %p1239 = pneg %p510
        %p1240 = pneg %p534
        %p1241 = pneg %p531
        %p1242 = pneg %p555
        %p1243 = pneg %p552
        %p1244 = pneg %p576
        %p1245 = pneg %p573
        %p1246 = pneg %p597
        %p1247 = pneg %p594
        %p1248 = pneg %p618
        %p1249 = pneg %p615
        %p1250 = pneg %p639
        %p1251 = pneg %p636
        %p1252 = pneg %p660
        %p1253 = pneg %p657
        %p1254 = pneg %p681
        %p1255 = pneg %p678
        %p1256 = pneg %p702
        %p1257 = pneg %p699
        %p1258 = pneg %p723
        %p1259 = pneg %p720
        %p1260 = pneg %p744
        %p1261 = pneg %p741
        %p1262 = pneg %p765
        %p1263 = pneg %p762
        %p1264 = pneg %p786
        %p1265 = pneg %p783
        %p1266 = pneg %p807
        %p1267 = pneg %p804
        %p1268 = pneg %p828
        %p1269 = pneg %p825
        %p1270 = pneg %p849
        %p1271 = pneg %p846
        %p1272 = pneg %p870
        %p1273 = pneg %p867
        %p1274 = pneg %p891
        %p1275 = pneg %p888
        %p1276 = pneg %p912
        %p1277 = pneg %p909
        %p1278 = pneg %p933
        %p1279 = pneg %p930
        %p1280 = pneg %p954
        %p1281 = pneg %p951
        %p1282 = pneg %p975
        %p1283 = pneg %p972
        %p1284 = pneg %p996
        %p1285 = pneg %p993
        %p1286 = pneg %p1022
        %p1287 = pneg %p1019
        %s1288 = sand.u32 %s1009, 1
        %s1289 = scalar_lea.sflag [#allocation3], %s1288
        %s1290 = sand.u32 %s1009, 1
        %s1291 = smul.addr %s1290, 8
        %s1292 = scalar_lea.vmem [#allocation2], %s1291
        %p1293 = scmp.lt.s32.totalorder %s99, 1
        %s1294 = scalar_select %p1293, %s99, 1
        %s1295 = smul.addr %s1294, 8
        %s1296 = scalar_lea.vmem %s1, %s1295
        %p1297 = scmp.lt.s32.totalorder %s99, 1
        %s1298 = scalar_select %p1297, %s99, 1
        %s1299 = smul.addr %s1298, 8
        %s1300 = scalar_lea.vmem %s3, %s1299
        %p1301 = scmp.lt.s32.totalorder %s99, 1
        %s1302 = scalar_select %p1301, %s99, 1
        %s1303 = scalar_lea.vmem %s5, %s1302
        %p1304 = scmp.lt.s32.totalorder %s99, 1
        %s1305 = scalar_select %p1304, %s99, 1
        %s1306 = scalar_lea.vmem %s7, %s1305
        %v1308 = vld [vmem:[%s1296] sm:$0xff]
        %v1309 = vld [vmem:[%s1300] sm:$0xff]
        %v1310 = vld [vmem:[%s1303] sm:$0x1]
        %v1311 = vlaneseq
        %v1312 = vshrl.u32 %v1311, 7
        %v1313 = vlaneseq
        %v1314 = vand.u32 %v1313, 127
        %vm1315 = vcmp.ge.s32.totalorder %v1312, %v1314
        %v1316 = vsel %vm1315, 0.0, -1e+09
        %v1317 = vld [vmem:[%s1306] sm:$0x1]
        %v1319 = vperm.slane %v1317, 0
        %v1321 = vadd.f32 %v1316, %v1319
        %v1322 = vld [vmem:[%s65] sm:$0x1]
        %v1323 = vld [vmem:[%s63] sm:$0x1]
        %vm1324 = vcmask 261120
        %v1325 = vsel %vm1324, %v1308, 0.0
        %1326 = vadd.xlane.f32.xlu0 %v1325
        %v1327 = vpop.xlane.xlu0 %1326
        %v1328 = vrcp.pop 32.0
        %v1329 = vmul.f32 32.0, %v1328
        %v1330 = vsub.f32 1.0, %v1329
        %v1331 = vmul.f32 %v1328, %v1330
        %v1332 = vadd.f32 %v1328, %v1331
        %vm1333 = vweird.f32 %v1328
        %v1334 = vsel %vm1333, %v1328, %v1332
        %v1335 = vmul.f32 %v1327, %v1334
        %v1336 = vsub.f32 %v1308, %v1335
        %v1337 = vmul.f32 %v1336, %v1336
        %v1338 = vsel %vm1324, %v1337, 0.0
        %1339 = vadd.xlane.f32.xlu0 %v1338
        %v1340 = vpop.xlane.xlu0 %1339
        %v1341 = vmul.f32 %v1340, %v1334
        %v1342 = vadd.f32 %v1341, 1e-05
        %v1343 = vrsqrt.pop %v1342
        %v1344 = vmul.f32 %v1343, %v1342
        %v1345 = vmul.f32 %v1344, %v1343
        %v1346 = vmul.f32 0.5, %v1345
        %v1347 = vsub.f32 1.5, %v1346
        %v1348 = vmul.f32 %v1343, %v1347
        %vm1349 = vweird.f32 %v1342
        %vm1350 = vweird.f32 %v1343
        %vm1351 = vmor %vm1349, %vm1350
        %v1352 = vsel %vm1351, %v1343, %v1348
        %v1353 = vmul.f32 %v1336, %v1352
        %v1355 = vperm.slane %v1322, 0
        %v1357 = vmul.f32 %v1353, %v1355
        %v1359 = vperm.slane %v1323, 0
        %v1361 = vadd.f32 %v1357, %v1359
        %v1362 = vld [vmem:[%s79] sm:$0xf]
        %v1363 = vld [vmem:[%s79 + $0x4] sm:$0xf]
        %v1364 = vld [vmem:[%s79 + $0x8] sm:$0xf]
        %v1365 = vld [vmem:[%s79 + $0xc] sm:$0xf]
        %v1366 = vld [vmem:[%s79 + $0x10] sm:$0xf]
        %v1367 = vld [vmem:[%s79 + $0x14] sm:$0xf]
        %v1368 = vld [vmem:[%s79 + $0x18] sm:$0xf]
        %v1369 = vld [vmem:[%s79 + $0x1c] sm:$0xf]
        %v1370 = vld [vmem:[%s79 + $0x20] sm:$0xf]
        %v1371 = vld [vmem:[%s79 + $0x24] sm:$0xf]
        %v1372 = vld [vmem:[%s79 + $0x28] sm:$0xf]
        %v1373 = vld [vmem:[%s79 + $0x2c] sm:$0xf]
        %v1374 = vld [vmem:[%s79 + $0x30] sm:$0xf]
        %v1375 = vld [vmem:[%s79 + $0x34] sm:$0xf]
        %v1376 = vld [vmem:[%s79 + $0x38] sm:$0xf]
        %v1377 = vld [vmem:[%s79 + $0x3c] sm:$0xf]
        %v1378 = vld [vmem:[%s61] sm:$0x1]
        %v1379 = vld [vmem:[%s61 + $0x1] sm:$0x1]
        %v1380 = vld [vmem:[%s61 + $0x2] sm:$0x1]
        %v1381 = vld [vmem:[%s61 + $0x3] sm:$0x1]
        %v1382 = vld [vmem:[%s75] sm:$0xf]
        %v1383 = vld [vmem:[%s75 + $0x4] sm:$0xf]
        %v1384 = vld [vmem:[%s75 + $0x8] sm:$0xf]
        %v1385 = vld [vmem:[%s75 + $0xc] sm:$0xf]
        %v1386 = vld [vmem:[%s75 + $0x10] sm:$0xf]
        %v1387 = vld [vmem:[%s75 + $0x14] sm:$0xf]
        %v1388 = vld [vmem:[%s75 + $0x18] sm:$0xf]
        %v1389 = vld [vmem:[%s75 + $0x1c] sm:$0xf]
        %v1390 = vld [vmem:[%s75 + $0x20] sm:$0xf]
        %v1391 = vld [vmem:[%s75 + $0x24] sm:$0xf]
        %v1392 = vld [vmem:[%s75 + $0x28] sm:$0xf]
        %v1393 = vld [vmem:[%s75 + $0x2c] sm:$0xf]
        %v1394 = vld [vmem:[%s75 + $0x30] sm:$0xf]
        %v1395 = vld [vmem:[%s75 + $0x34] sm:$0xf]
        %v1396 = vld [vmem:[%s75 + $0x38] sm:$0xf]
        %v1397 = vld [vmem:[%s75 + $0x3c] sm:$0xf]
        %v1398 = vld [vmem:[%s75 + $0x40] sm:$0xf]
        %v1399 = vld [vmem:[%s75 + $0x44] sm:$0xf]
        %v1400 = vld [vmem:[%s75 + $0x48] sm:$0xf]
        %v1401 = vld [vmem:[%s75 + $0x4c] sm:$0xf]
        %v1402 = vld [vmem:[%s75 + $0x50] sm:$0xf]
        %v1403 = vld [vmem:[%s75 + $0x54] sm:$0xf]
        %v1404 = vld [vmem:[%s75 + $0x58] sm:$0xf]
        %v1405 = vld [vmem:[%s75 + $0x5c] sm:$0xf]
        %v1406 = vld [vmem:[%s75 + $0x60] sm:$0xf]
        %v1407 = vld [vmem:[%s75 + $0x64] sm:$0xf]
        %v1408 = vld [vmem:[%s75 + $0x68] sm:$0xf]
        %v1409 = vld [vmem:[%s75 + $0x6c] sm:$0xf]
        %v1410 = vld [vmem:[%s75 + $0x70] sm:$0xf]
        %v1411 = vld [vmem:[%s75 + $0x74] sm:$0xf]
        %v1412 = vld [vmem:[%s75 + $0x78] sm:$0xf]
        %v1413 = vld [vmem:[%s75 + $0x7c] sm:$0xf]
        %v1414 = vld [vmem:[%s57] sm:$0x1]
        %v1415 = vld [vmem:[%s57 + $0x1] sm:$0x1]
        %v1416 = vld [vmem:[%s57 + $0x2] sm:$0x1]
        %v1417 = vld [vmem:[%s57 + $0x3] sm:$0x1]
        %v1418 = vld [vmem:[%s57 + $0x4] sm:$0x1]
        %v1419 = vld [vmem:[%s57 + $0x5] sm:$0x1]
        %v1420 = vld [vmem:[%s57 + $0x6] sm:$0x1]
        %v1421 = vld [vmem:[%s57 + $0x7] sm:$0x1]
        %v1422 = vld [vmem:[%s77] sm:$0xf]
        %v1423 = vld [vmem:[%s77 + $0x4] sm:$0xf]
        %v1424 = vld [vmem:[%s77 + $0x8] sm:$0xf]
        %v1425 = vld [vmem:[%s77 + $0xc] sm:$0xf]
        %v1426 = vld [vmem:[%s59] sm:$0x1]
        %v1427 = vpack.c.bf16 %v1361, %v1361
        %v1432 = vperm.slane %v1378, 0
        %v1433 = vperm.slane %v1379, 0
        %v1434 = vperm.slane %v1380, 0
        %v1435 = vperm.slane %v1381, 0
        %v1444 = vunpack.c.l.b16 %v1362
        %v1445 = vunpack.c.l.b16 %v1363
        %v1446 = vunpack.c.l.b16 %v1364
        %v1447 = vunpack.c.l.b16 %v1365
        %v1448 = vpack.c.b16 %v1445, %v1444
        %v1449 = vpack.c.b16 %v1447, %v1446
        %v1453 = vsel %vm1324, %v1427, 0
        %1455 = vmatpush.bf16.msra.mxu0 0
        %1456 = vmatpush.bf16.msra.mxu0 0
        %1457 = vmatpush.bf16.msra.mxu0 0
        %1458 = vmatpush.bf16.msra.mxu0 0
        %1459 = vmatpush.bf16.msra.mxu0 0
        %1460 = vmatpush.bf16.msra.mxu0 0
        %1461 = vmatpush.bf16.msra.mxu0 %v1449
        %1462 = vmatpush.bf16.msra.mxu0 %v1448
        %1463 = vmatmul.bf16.gmra.mxu0 %v1453
        %v1464 = vpop.f32.mrf.mxu0
        %v1465 = vadd.f32 %v1432, %v1464
        %v1466 = vpop.f32.mrf.mxu0
        %1467 = vdwg.mxu0
        %v1472 = vunpack.c.l.b16 %v1366
        %v1473 = vunpack.c.l.b16 %v1367
        %v1474 = vunpack.c.l.b16 %v1368
        %v1475 = vunpack.c.l.b16 %v1369
        %v1476 = vpack.c.b16 %v1473, %v1472
        %v1477 = vpack.c.b16 %v1475, %v1474
        %1480 = vmatpush.bf16.msra.mxu0 0
        %1481 = vmatpush.bf16.msra.mxu0 0
        %1482 = vmatpush.bf16.msra.mxu0 0
        %1483 = vmatpush.bf16.msra.mxu0 0
        %1484 = vmatpush.bf16.msra.mxu0 0
        %1485 = vmatpush.bf16.msra.mxu0 0
        %1486 = vmatpush.bf16.msra.mxu0 %v1477
        %1487 = vmatpush.bf16.msra.mxu0 %v1476
        %1488 = vmatmul.bf16.gmra.mxu0 %v1453
        %v1489 = vpop.f32.mrf.mxu0
        %v1490 = vadd.f32 %v1433, %v1489
        %v1491 = vpop.f32.mrf.mxu0
        %1492 = vdwg.mxu0
        %v1497 = vunpack.c.l.b16 %v1370
        %v1498 = vunpack.c.l.b16 %v1371
        %v1499 = vunpack.c.l.b16 %v1372
        %v1500 = vunpack.c.l.b16 %v1373
        %v1501 = vpack.c.b16 %v1498, %v1497
        %v1502 = vpack.c.b16 %v1500, %v1499
        %1505 = vmatpush.bf16.msra.mxu0 0
        %1506 = vmatpush.bf16.msra.mxu0 0
        %1507 = vmatpush.bf16.msra.mxu0 0
        %1508 = vmatpush.bf16.msra.mxu0 0
        %1509 = vmatpush.bf16.msra.mxu0 0
        %1510 = vmatpush.bf16.msra.mxu0 0
        %1511 = vmatpush.bf16.msra.mxu0 %v1502
        %1512 = vmatpush.bf16.msra.mxu0 %v1501
        %1513 = vmatmul.bf16.gmra.mxu0 %v1453
        %v1514 = vpop.f32.mrf.mxu0
        %v1515 = vadd.f32 %v1434, %v1514
        %v1516 = vpop.f32.mrf.mxu0
        %1517 = vdwg.mxu0
        %v1522 = vunpack.c.l.b16 %v1374
        %v1523 = vunpack.c.l.b16 %v1375
        %v1524 = vunpack.c.l.b16 %v1376
        %v1525 = vunpack.c.l.b16 %v1377
        %v1526 = vpack.c.b16 %v1523, %v1522
        %v1527 = vpack.c.b16 %v1525, %v1524
        %1530 = vmatpush.bf16.msra.mxu0 0
        %1531 = vmatpush.bf16.msra.mxu0 0
        %1532 = vmatpush.bf16.msra.mxu0 0
        %1533 = vmatpush.bf16.msra.mxu0 0
        %1534 = vmatpush.bf16.msra.mxu0 0
        %1535 = vmatpush.bf16.msra.mxu0 0
        %1536 = vmatpush.bf16.msra.mxu0 %v1527
        %1537 = vmatpush.bf16.msra.mxu0 %v1526
        %1538 = vmatmul.bf16.gmra.mxu0 %v1453
        %v1539 = vpop.f32.mrf.mxu0
        %v1540 = vadd.f32 %v1435, %v1539
        %v1541 = vpop.f32.mrf.mxu0
        %1542 = vdwg.mxu0
        %v1551 = vperm.slane %v1414, 0
        %v1552 = vperm.slane %v1415, 0
        %v1553 = vperm.slane %v1416, 0
        %v1554 = vperm.slane %v1417, 0
        %v1555 = vperm.slane %v1418, 0
        %v1556 = vperm.slane %v1419, 0
        %v1557 = vperm.slane %v1420, 0
        %v1558 = vperm.slane %v1421, 0
        %v1571 = vunpack.c.l.b16 %v1382
        %v1572 = vunpack.c.l.b16 %v1383
        %v1573 = vunpack.c.l.b16 %v1384
        %v1574 = vunpack.c.l.b16 %v1385
        %v1575 = vpack.c.b16 %v1572, %v1571
        %v1576 = vpack.c.b16 %v1574, %v1573
        %1579 = vmatpush.bf16.msra.mxu0 0
        %1580 = vmatpush.bf16.msra.mxu0 0
        %1581 = vmatpush.bf16.msra.mxu0 0
        %1582 = vmatpush.bf16.msra.mxu0 0
        %1583 = vmatpush.bf16.msra.mxu0 0
        %1584 = vmatpush.bf16.msra.mxu0 0
        %1585 = vmatpush.bf16.msra.mxu0 %v1576
        %1586 = vmatpush.bf16.msra.mxu0 %v1575
        %1587 = vmatmul.bf16.gmra.mxu0 %v1453
        %v1588 = vpop.f32.mrf.mxu0
        %v1589 = vadd.f32 %v1551, %v1588
        %v1590 = vpop.f32.mrf.mxu0
        %1591 = vdwg.mxu0
        %v1596 = vunpack.c.l.b16 %v1386
        %v1597 = vunpack.c.l.b16 %v1387
        %v1598 = vunpack.c.l.b16 %v1388
        %v1599 = vunpack.c.l.b16 %v1389
        %v1600 = vpack.c.b16 %v1597, %v1596
        %v1601 = vpack.c.b16 %v1599, %v1598
        %1604 = vmatpush.bf16.msra.mxu0 0
        %1605 = vmatpush.bf16.msra.mxu0 0
        %1606 = vmatpush.bf16.msra.mxu0 0
        %1607 = vmatpush.bf16.msra.mxu0 0
        %1608 = vmatpush.bf16.msra.mxu0 0
        %1609 = vmatpush.bf16.msra.mxu0 0
        %1610 = vmatpush.bf16.msra.mxu0 %v1601
        %1611 = vmatpush.bf16.msra.mxu0 %v1600
        %1612 = vmatmul.bf16.gmra.mxu0 %v1453
        %v1613 = vpop.f32.mrf.mxu0
        %v1614 = vadd.f32 %v1552, %v1613
        %v1615 = vpop.f32.mrf.mxu0
        %1616 = vdwg.mxu0
        %v1621 = vunpack.c.l.b16 %v1390
        %v1622 = vunpack.c.l.b16 %v1391
        %v1623 = vunpack.c.l.b16 %v1392
        %v1624 = vunpack.c.l.b16 %v1393
        %v1625 = vpack.c.b16 %v1622, %v1621
        %v1626 = vpack.c.b16 %v1624, %v1623
        %1629 = vmatpush.bf16.msra.mxu0 0
        %1630 = vmatpush.bf16.msra.mxu0 0
        %1631 = vmatpush.bf16.msra.mxu0 0
        %1632 = vmatpush.bf16.msra.mxu0 0
        %1633 = vmatpush.bf16.msra.mxu0 0
        %1634 = vmatpush.bf16.msra.mxu0 0
        %1635 = vmatpush.bf16.msra.mxu0 %v1626
        %1636 = vmatpush.bf16.msra.mxu0 %v1625
        %1637 = vmatmul.bf16.gmra.mxu0 %v1453
        %v1638 = vpop.f32.mrf.mxu0
        %v1639 = vadd.f32 %v1553, %v1638
        %v1640 = vpop.f32.mrf.mxu0
        %1641 = vdwg.mxu0
        %v1646 = vunpack.c.l.b16 %v1394
        %v1647 = vunpack.c.l.b16 %v1395
        %v1648 = vunpack.c.l.b16 %v1396
        %v1649 = vunpack.c.l.b16 %v1397
        %v1650 = vpack.c.b16 %v1647, %v1646
        %v1651 = vpack.c.b16 %v1649, %v1648
        %1654 = vmatpush.bf16.msra.mxu0 0
        %1655 = vmatpush.bf16.msra.mxu0 0
        %1656 = vmatpush.bf16.msra.mxu0 0
        %1657 = vmatpush.bf16.msra.mxu0 0
        %1658 = vmatpush.bf16.msra.mxu0 0
        %1659 = vmatpush.bf16.msra.mxu0 0
        %1660 = vmatpush.bf16.msra.mxu0 %v1651
        %1661 = vmatpush.bf16.msra.mxu0 %v1650
        %1662 = vmatmul.bf16.gmra.mxu0 %v1453
        %v1663 = vpop.f32.mrf.mxu0
        %v1664 = vadd.f32 %v1554, %v1663
        %v1665 = vpop.f32.mrf.mxu0
        %1666 = vdwg.mxu0
        %v1671 = vunpack.c.l.b16 %v1398
        %v1672 = vunpack.c.l.b16 %v1399
        %v1673 = vunpack.c.l.b16 %v1400
        %v1674 = vunpack.c.l.b16 %v1401
        %v1675 = vpack.c.b16 %v1672, %v1671
        %v1676 = vpack.c.b16 %v1674, %v1673
        %1679 = vmatpush.bf16.msra.mxu0 0
        %1680 = vmatpush.bf16.msra.mxu0 0
        %1681 = vmatpush.bf16.msra.mxu0 0
        %1682 = vmatpush.bf16.msra.mxu0 0
        %1683 = vmatpush.bf16.msra.mxu0 0
        %1684 = vmatpush.bf16.msra.mxu0 0
        %1685 = vmatpush.bf16.msra.mxu0 %v1676
        %1686 = vmatpush.bf16.msra.mxu0 %v1675
        %1687 = vmatmul.bf16.gmra.mxu0 %v1453
        %v1688 = vpop.f32.mrf.mxu0
        %v1689 = vadd.f32 %v1555, %v1688
        %v1690 = vpop.f32.mrf.mxu0
        %1691 = vdwg.mxu0
        %v1696 = vunpack.c.l.b16 %v1402
        %v1697 = vunpack.c.l.b16 %v1403
        %v1698 = vunpack.c.l.b16 %v1404
        %v1699 = vunpack.c.l.b16 %v1405
        %v1700 = vpack.c.b16 %v1697, %v1696
        %v1701 = vpack.c.b16 %v1699, %v1698
        %1704 = vmatpush.bf16.msra.mxu0 0
        %1705 = vmatpush.bf16.msra.mxu0 0
        %1706 = vmatpush.bf16.msra.mxu0 0
        %1707 = vmatpush.bf16.msra.mxu0 0
        %1708 = vmatpush.bf16.msra.mxu0 0
        %1709 = vmatpush.bf16.msra.mxu0 0
        %1710 = vmatpush.bf16.msra.mxu0 %v1701
        %1711 = vmatpush.bf16.msra.mxu0 %v1700
        %1712 = vmatmul.bf16.gmra.mxu0 %v1453
        %v1713 = vpop.f32.mrf.mxu0
        %v1714 = vadd.f32 %v1556, %v1713
        %v1715 = vpop.f32.mrf.mxu0
        %1716 = vdwg.mxu0
        %v1721 = vunpack.c.l.b16 %v1406
        %v1722 = vunpack.c.l.b16 %v1407
        %v1723 = vunpack.c.l.b16 %v1408
        %v1724 = vunpack.c.l.b16 %v1409
        %v1725 = vpack.c.b16 %v1722, %v1721
        %v1726 = vpack.c.b16 %v1724, %v1723
        %1729 = vmatpush.bf16.msra.mxu0 0
        %1730 = vmatpush.bf16.msra.mxu0 0
        %1731 = vmatpush.bf16.msra.mxu0 0
        %1732 = vmatpush.bf16.msra.mxu0 0
        %1733 = vmatpush.bf16.msra.mxu0 0
        %1734 = vmatpush.bf16.msra.mxu0 0
        %1735 = vmatpush.bf16.msra.mxu0 %v1726
        %1736 = vmatpush.bf16.msra.mxu0 %v1725
        %1737 = vmatmul.bf16.gmra.mxu0 %v1453
        %v1738 = vpop.f32.mrf.mxu0
        %v1739 = vadd.f32 %v1557, %v1738
        %v1740 = vpop.f32.mrf.mxu0
        %1741 = vdwg.mxu0
        %v1746 = vunpack.c.l.b16 %v1410
        %v1747 = vunpack.c.l.b16 %v1411
        %v1748 = vunpack.c.l.b16 %v1412
        %v1749 = vunpack.c.l.b16 %v1413
        %v1750 = vpack.c.b16 %v1747, %v1746
        %v1751 = vpack.c.b16 %v1749, %v1748
        %1754 = vmatpush.bf16.msra.mxu0 0
        %1755 = vmatpush.bf16.msra.mxu0 0
        %1756 = vmatpush.bf16.msra.mxu0 0
        %1757 = vmatpush.bf16.msra.mxu0 0
        %1758 = vmatpush.bf16.msra.mxu0 0
        %1759 = vmatpush.bf16.msra.mxu0 0
        %1760 = vmatpush.bf16.msra.mxu0 %v1751
        %1761 = vmatpush.bf16.msra.mxu0 %v1750
        %1762 = vmatmul.bf16.gmra.mxu0 %v1453
        %v1763 = vpop.f32.mrf.mxu0
        %v1764 = vadd.f32 %v1558, %v1763
        %v1765 = vpop.f32.mrf.mxu0
        %1766 = vdwg.mxu0
        %v1767 = vpack.c.bf16 %v1465, %v1465
        %v1768 = vpack.c.bf16 %v1490, %v1490
        %v1769 = vpack.c.bf16 %v1515, %v1515
        %v1770 = vpack.c.bf16 %v1540, %v1540
        %v1771 = vpack.c.bf16 %v1589, %v1589
        %v1772 = vpack.c.bf16 %v1614, %v1614
        %v1773 = vpack.c.bf16 %v1639, %v1639
        %v1774 = vpack.c.bf16 %v1664, %v1664
        %v1776 = vperm.slane %v1310, 0
        %vm1778 = vcmask 64512
        %v1780 = vsel %vm1778, %v1767, 0
        %v1783 = vsel %vm1778, %v1771, 0
        %1785 = vmatpush.bf16.xpose.msra.mxu0 0
        %1786 = vmatpush.bf16.xpose.msra.mxu0 0
        %1787 = vmatpush.bf16.xpose.msra.mxu0 0
        %1788 = vmatpush.bf16.xpose.msra.mxu0 0
        %1789 = vmatpush.bf16.xpose.msra.mxu0 0
        %1790 = vmatpush.bf16.xpose.msra.mxu0 0
        %1791 = vmatpush.bf16.xpose.msra.mxu0 0
        %1792 = vmatpush.bf16.xpose.msra.mxu0 %v1783
        %1793 = vmatmul.bf16.gmra.mxu0 %v1780
        %v1794 = vpop.f32.mrf.mxu0
        %v1795 = vadd.f32 %v1776, %v1794
        %v1796 = vpop.f32.mrf.mxu0
        %1797 = vdwg.mxu0
        %v1799 = vsel %vm1778, %v1768, 0
        %v1802 = vsel %vm1778, %v1772, 0
        %1804 = vmatpush.bf16.xpose.msra.mxu0 0
        %1805 = vmatpush.bf16.xpose.msra.mxu0 0
        %1806 = vmatpush.bf16.xpose.msra.mxu0 0
        %1807 = vmatpush.bf16.xpose.msra.mxu0 0
        %1808 = vmatpush.bf16.xpose.msra.mxu0 0
        %1809 = vmatpush.bf16.xpose.msra.mxu0 0
        %1810 = vmatpush.bf16.xpose.msra.mxu0 0
        %1811 = vmatpush.bf16.xpose.msra.mxu0 %v1802
        %1812 = vmatmul.bf16.gmra.mxu0 %v1799
        %v1813 = vpop.f32.mrf.mxu0
        %v1814 = vadd.f32 %v1776, %v1813
        %v1815 = vpop.f32.mrf.mxu0
        %1816 = vdwg.mxu0
        %v1818 = vsel %vm1778, %v1769, 0
        %v1821 = vsel %vm1778, %v1773, 0
        %1823 = vmatpush.bf16.xpose.msra.mxu0 0
        %1824 = vmatpush.bf16.xpose.msra.mxu0 0
        %1825 = vmatpush.bf16.xpose.msra.mxu0 0
        %1826 = vmatpush.bf16.xpose.msra.mxu0 0
        %1827 = vmatpush.bf16.xpose.msra.mxu0 0
        %1828 = vmatpush.bf16.xpose.msra.mxu0 0
        %1829 = vmatpush.bf16.xpose.msra.mxu0 0
        %1830 = vmatpush.bf16.xpose.msra.mxu0 %v1821
        %1831 = vmatmul.bf16.gmra.mxu0 %v1818
        %v1832 = vpop.f32.mrf.mxu0
        %v1833 = vadd.f32 %v1776, %v1832
        %v1834 = vpop.f32.mrf.mxu0
        %1835 = vdwg.mxu0
        %v1837 = vsel %vm1778, %v1770, 0
        %v1840 = vsel %vm1778, %v1774, 0
        %1842 = vmatpush.bf16.xpose.msra.mxu0 0
        %1843 = vmatpush.bf16.xpose.msra.mxu0 0
        %1844 = vmatpush.bf16.xpose.msra.mxu0 0
        %1845 = vmatpush.bf16.xpose.msra.mxu0 0
        %1846 = vmatpush.bf16.xpose.msra.mxu0 0
        %1847 = vmatpush.bf16.xpose.msra.mxu0 0
        %1848 = vmatpush.bf16.xpose.msra.mxu0 0
        %1849 = vmatpush.bf16.xpose.msra.mxu0 %v1840
        %1850 = vmatmul.bf16.gmra.mxu0 %v1837
        %v1851 = vpop.f32.mrf.mxu0
        %v1852 = vadd.f32 %v1776, %v1851
        %v1853 = vpop.f32.mrf.mxu0
        %1854 = vdwg.mxu0
        %v1855 = vsel %vm1778, %v1795, -inf
        %1856 = vmax.xlane.f32.xlu0 %v1855
        %v1857 = vpop.xlane.xlu0 %1856
        %v1858 = vsel %vm1778, %v1814, -inf
        %1859 = vmax.xlane.f32.xlu0 %v1858
        %v1860 = vpop.xlane.xlu0 %1859
        %v1861 = vsel %vm1778, %v1833, -inf
        %1862 = vmax.xlane.f32.xlu0 %v1861
        %v1863 = vpop.xlane.xlu0 %1862
        %v1864 = vsel %vm1778, %v1852, -inf
        %1865 = vmax.xlane.f32.xlu0 %v1864
        %v1866 = vpop.xlane.xlu0 %1865
        %v1867 = vsub.f32 %v1795, %v1857
        %v1868 = vsub.f32 %v1814, %v1860
        %v1869 = vsub.f32 %v1833, %v1863
        %v1870 = vsub.f32 %v1852, %v1866
        %v1871 = vmul.f32 %v1867, 1.442695
        %v1872 = vpow.pop %v1871
        %v1873 = vmul.f32 %v1868, 1.442695
        %v1874 = vpow.pop %v1873
        %v1875 = vmul.f32 %v1869, 1.442695
        %v1876 = vpow.pop %v1875
        %v1877 = vmul.f32 %v1870, 1.442695
        %v1878 = vpow.pop %v1877
        %v1879 = vsel %vm1778, %v1872, 0.0
        %1880 = vadd.xlane.f32.xlu0 %v1879
        %v1881 = vpop.xlane.xlu0 %1880
        %v1882 = vsel %vm1778, %v1874, 0.0
        %1883 = vadd.xlane.f32.xlu0 %v1882
        %v1884 = vpop.xlane.xlu0 %1883
        %v1885 = vsel %vm1778, %v1876, 0.0
        %1886 = vadd.xlane.f32.xlu0 %v1885
        %v1887 = vpop.xlane.xlu0 %1886
        %v1888 = vsel %vm1778, %v1878, 0.0
        %1889 = vadd.xlane.f32.xlu0 %v1888
        %v1890 = vpop.xlane.xlu0 %1889
        %v1891 = vrcp.pop %v1881
        %v1892 = vmul.f32 %v1881, %v1891
        %v1893 = vsub.f32 1.0, %v1892
        %v1894 = vmul.f32 %v1891, %v1893
        %v1895 = vadd.f32 %v1891, %v1894
        %vm1896 = vweird.f32 %v1881
        %vm1897 = vweird.f32 %v1891
        %vm1898 = vmor %vm1896, %vm1897
        %v1899 = vsel %vm1898, %v1891, %v1895
        %v1900 = vand.u32 2147483647, %v1881
        %vm1901 = vcmp.eq.f32.partialorder %v1900, 8.507059e+37
        %v1902 = vand.u32 %v1881, 2147483648
        %v1903 = vor.u32 1.1754944e-38, %v1902
        %v1904 = vsel %vm1901, %v1903, %v1899
        %v1905 = vmul.f32 %v1872, %v1904
        %v1906 = vrcp.pop %v1884
        %v1907 = vmul.f32 %v1884, %v1906
        %v1908 = vsub.f32 1.0, %v1907
        %v1909 = vmul.f32 %v1906, %v1908
        %v1910 = vadd.f32 %v1906, %v1909
        %vm1911 = vweird.f32 %v1884
        %vm1912 = vweird.f32 %v1906
        %vm1913 = vmor %vm1911, %vm1912
        %v1914 = vsel %vm1913, %v1906, %v1910
        %v1915 = vand.u32 2147483647, %v1884
        %vm1916 = vcmp.eq.f32.partialorder %v1915, 8.507059e+37
        %v1917 = vand.u32 %v1884, 2147483648
        %v1918 = vor.u32 1.1754944e-38, %v1917
        %v1919 = vsel %vm1916, %v1918, %v1914
        %v1920 = vmul.f32 %v1874, %v1919
        %v1921 = vrcp.pop %v1887
        %v1922 = vmul.f32 %v1887, %v1921
        %v1923 = vsub.f32 1.0, %v1922
        %v1924 = vmul.f32 %v1921, %v1923
        %v1925 = vadd.f32 %v1921, %v1924
        %vm1926 = vweird.f32 %v1887
        %vm1927 = vweird.f32 %v1921
        %vm1928 = vmor %vm1926, %vm1927
        %v1929 = vsel %vm1928, %v1921, %v1925
        %v1930 = vand.u32 2147483647, %v1887
        %vm1931 = vcmp.eq.f32.partialorder %v1930, 8.507059e+37
        %v1932 = vand.u32 %v1887, 2147483648
        %v1933 = vor.u32 1.1754944e-38, %v1932
        %v1934 = vsel %vm1931, %v1933, %v1929
        %v1935 = vmul.f32 %v1876, %v1934
        %v1936 = vrcp.pop %v1890
        %v1937 = vmul.f32 %v1890, %v1936
        %v1938 = vsub.f32 1.0, %v1937
        %v1939 = vmul.f32 %v1936, %v1938
        %v1940 = vadd.f32 %v1936, %v1939
        %vm1941 = vweird.f32 %v1890
        %vm1942 = vweird.f32 %v1936
        %vm1943 = vmor %vm1941, %vm1942
        %v1944 = vsel %vm1943, %v1936, %v1940
        %v1945 = vand.u32 2147483647, %v1890
        %vm1946 = vcmp.eq.f32.partialorder %v1945, 8.507059e+37
        %v1947 = vand.u32 %v1890, 2147483648
        %v1948 = vor.u32 1.1754944e-38, %v1947
        %v1949 = vsel %vm1946, %v1948, %v1944
        %v1950 = vmul.f32 %v1878, %v1949
        %v1951 = vpack.c.bf16 %v1905, %v1905
        %v1952 = vpack.c.bf16 %v1920, %v1920
        %v1953 = vpack.c.bf16 %v1935, %v1935
        %v1954 = vpack.c.bf16 %v1950, %v1950
        %v1955 = vpack.c.bf16 %v1689, %v1689
        %v1956 = vpack.c.bf16 %v1714, %v1714
        %v1957 = vpack.c.bf16 %v1739, %v1739
        %v1958 = vpack.c.bf16 %v1764, %v1764
        %v1960 = vsel %vm1778, %v1951, 0
        %vm1962 = vcmask 1043456
        %v1964 = vsel %vm1962, %v1955, 0
        %1966 = vmatpush.bf16.msra.mxu0 0
        %1967 = vmatpush.bf16.msra.mxu0 0
        %1968 = vmatpush.bf16.msra.mxu0 0
        %1969 = vmatpush.bf16.msra.mxu0 0
        %1970 = vmatpush.bf16.msra.mxu0 0
        %1971 = vmatpush.bf16.msra.mxu0 0
        %1972 = vmatpush.bf16.msra.mxu0 0
        %1973 = vmatpush.bf16.msra.mxu0 %v1964
        %1974 = vmatmul.bf16.gmra.mxu0 %v1960
        %v1975 = vpop.f32.mrf.mxu0
        %v1976 = vadd.f32 0.0, %v1975
        %v1977 = vpop.f32.mrf.mxu0
        %1978 = vdwg.mxu0
        %v1980 = vsel %vm1778, %v1952, 0
        %v1983 = vsel %vm1962, %v1956, 0
        %1985 = vmatpush.bf16.msra.mxu0 0
        %1986 = vmatpush.bf16.msra.mxu0 0
        %1987 = vmatpush.bf16.msra.mxu0 0
        %1988 = vmatpush.bf16.msra.mxu0 0
        %1989 = vmatpush.bf16.msra.mxu0 0
        %1990 = vmatpush.bf16.msra.mxu0 0
        %1991 = vmatpush.bf16.msra.mxu0 0
        %1992 = vmatpush.bf16.msra.mxu0 %v1983
        %1993 = vmatmul.bf16.gmra.mxu0 %v1980
        %v1994 = vpop.f32.mrf.mxu0
        %v1995 = vadd.f32 0.0, %v1994
        %v1996 = vpop.f32.mrf.mxu0
        %1997 = vdwg.mxu0
        %v1999 = vsel %vm1778, %v1953, 0
        %v2002 = vsel %vm1962, %v1957, 0
        %2004 = vmatpush.bf16.msra.mxu0 0
        %2005 = vmatpush.bf16.msra.mxu0 0
        %2006 = vmatpush.bf16.msra.mxu0 0
        %2007 = vmatpush.bf16.msra.mxu0 0
        %2008 = vmatpush.bf16.msra.mxu0 0
        %2009 = vmatpush.bf16.msra.mxu0 0
        %2010 = vmatpush.bf16.msra.mxu0 0
        %2011 = vmatpush.bf16.msra.mxu0 %v2002
        %2012 = vmatmul.bf16.gmra.mxu0 %v1999
        %v2013 = vpop.f32.mrf.mxu0
        %v2014 = vadd.f32 0.0, %v2013
        %v2015 = vpop.f32.mrf.mxu0
        %2016 = vdwg.mxu0
        %v2018 = vsel %vm1778, %v1954, 0
        %v2021 = vsel %vm1962, %v1958, 0
        %2023 = vmatpush.bf16.msra.mxu0 0
        %2024 = vmatpush.bf16.msra.mxu0 0
        %2025 = vmatpush.bf16.msra.mxu0 0
        %2026 = vmatpush.bf16.msra.mxu0 0
        %2027 = vmatpush.bf16.msra.mxu0 0
        %2028 = vmatpush.bf16.msra.mxu0 0
        %2029 = vmatpush.bf16.msra.mxu0 0
        %2030 = vmatpush.bf16.msra.mxu0 %v2021
        %2031 = vmatmul.bf16.gmra.mxu0 %v2018
        %v2032 = vpop.f32.mrf.mxu0
        %v2033 = vadd.f32 0.0, %v2032
        %v2034 = vpop.f32.mrf.mxu0
        %2035 = vdwg.mxu0
        %v2036 = vpack.c.bf16 %v1976, %v1976
        %v2037 = vpack.c.bf16 %v1995, %v1995
        %v2038 = vpack.c.bf16 %v2014, %v2014
        %v2039 = vpack.c.bf16 %v2033, %v2033
        %v2041 = vsel %vm1778, %v2036, 0
        %v2044 = vsel %vm1962, %v1422, 0
        %2046 = vmatpush.bf16.msra.mxu0 0
        %2047 = vmatpush.bf16.msra.mxu0 0
        %2048 = vmatpush.bf16.msra.mxu0 0
        %2049 = vmatpush.bf16.msra.mxu0 0
        %2050 = vmatpush.bf16.msra.mxu0 0
        %2051 = vmatpush.bf16.msra.mxu0 0
        %2052 = vmatpush.bf16.msra.mxu0 0
        %2053 = vmatpush.bf16.msra.mxu0 %v2044
        %2054 = vmatmul.bf16.gmra.mxu0 %v2041
        %v2055 = vpop.f32.mrf.mxu0
        %v2056 = vadd.f32 0.0, %v2055
        %v2057 = vpop.f32.mrf.mxu0
        %2058 = vdwg.mxu0
        %v2060 = vsel %vm1778, %v2037, 0
        %v2063 = vsel %vm1962, %v1423, 0
        %2065 = vmatpush.bf16.msra.mxu0 0
        %2066 = vmatpush.bf16.msra.mxu0 0
        %2067 = vmatpush.bf16.msra.mxu0 0
        %2068 = vmatpush.bf16.msra.mxu0 0
        %2069 = vmatpush.bf16.msra.mxu0 0
        %2070 = vmatpush.bf16.msra.mxu0 0
        %2071 = vmatpush.bf16.msra.mxu0 0
        %2072 = vmatpush.bf16.msra.mxu0 %v2063
        %2073 = vmatmul.bf16.gmra.mxu0 %v2060
        %v2074 = vpop.f32.mrf.mxu0
        %v2075 = vadd.f32 0.0, %v2074
        %v2076 = vpop.f32.mrf.mxu0
        %2077 = vdwg.mxu0
        %v2079 = vsel %vm1778, %v2038, 0
        %v2082 = vsel %vm1962, %v1424, 0
        %2084 = vmatpush.bf16.msra.mxu0 0
        %2085 = vmatpush.bf16.msra.mxu0 0
        %2086 = vmatpush.bf16.msra.mxu0 0
        %2087 = vmatpush.bf16.msra.mxu0 0
        %2088 = vmatpush.bf16.msra.mxu0 0
        %2089 = vmatpush.bf16.msra.mxu0 0
        %2090 = vmatpush.bf16.msra.mxu0 0
        %2091 = vmatpush.bf16.msra.mxu0 %v2082
        %2092 = vmatmul.bf16.gmra.mxu0 %v2079
        %v2093 = vpop.f32.mrf.mxu0
        %v2094 = vadd.f32 0.0, %v2093
        %v2095 = vpop.f32.mrf.mxu0
        %2096 = vdwg.mxu0
        %v2098 = vsel %vm1778, %v2039, 0
        %v2101 = vsel %vm1962, %v1425, 0
        %2103 = vmatpush.bf16.msra.mxu0 0
        %2104 = vmatpush.bf16.msra.mxu0 0
        %2105 = vmatpush.bf16.msra.mxu0 0
        %2106 = vmatpush.bf16.msra.mxu0 0
        %2107 = vmatpush.bf16.msra.mxu0 0
        %2108 = vmatpush.bf16.msra.mxu0 0
        %2109 = vmatpush.bf16.msra.mxu0 0
        %2110 = vmatpush.bf16.msra.mxu0 %v2101
        %2111 = vmatmul.bf16.gmra.mxu0 %v2098
        %v2112 = vpop.f32.mrf.mxu0
        %v2113 = vadd.f32 0.0, %v2112
        %v2114 = vpop.f32.mrf.mxu0
        %2115 = vdwg.mxu0
        %v2116 = vsel %vm1324, %v2056, 0.0
        %v2117 = vsel %vm1324, %v2075, 0.0
        %v2118 = vadd.f32 %v2116, %v2117
        %v2119 = vsel %vm1324, %v2094, 0.0
        %v2120 = vadd.f32 %v2118, %v2119
        %v2121 = vsel %vm1324, %v2113, 0.0
        %v2122 = vadd.f32 %v2120, %v2121
        %v2124 = vperm.slane %v1426, 0
        %v2126 = vadd.f32 %v2122, %v2124
        %v2127 = vadd.f32 %v1308, %v2126
        %v2128 = vld [vmem:[%s69] sm:$0x1]
        %v2129 = vld [vmem:[%s67] sm:$0x1]
        %v2130 = vsel %vm1324, %v2127, 0.0
        %2131 = vadd.xlane.f32.xlu0 %v2130
        %v2132 = vpop.xlane.xlu0 %2131
        %v2133 = vmul.f32 %v2132, %v1334
        %v2134 = vsub.f32 %v2127, %v2133
        %v2135 = vmul.f32 %v2134, %v2134
        %v2136 = vsel %vm1324, %v2135, 0.0
        %2137 = vadd.xlane.f32.xlu0 %v2136
        %v2138 = vpop.xlane.xlu0 %2137
        %v2139 = vmul.f32 %v2138, %v1334
        %v2140 = vadd.f32 %v2139, 1e-05
        %v2141 = vrsqrt.pop %v2140
        %v2142 = vmul.f32 %v2141, %v2140
        %v2143 = vmul.f32 %v2142, %v2141
        %v2144 = vmul.f32 0.5, %v2143
        %v2145 = vsub.f32 1.5, %v2144
        %v2146 = vmul.f32 %v2141, %v2145
        %vm2147 = vweird.f32 %v2140
        %vm2148 = vweird.f32 %v2141
        %vm2149 = vmor %vm2147, %vm2148
        %v2150 = vsel %vm2149, %v2141, %v2146
        %v2151 = vmul.f32 %v2134, %v2150
        %v2153 = vperm.slane %v2128, 0
        %v2155 = vmul.f32 %v2151, %v2153
        %v2157 = vperm.slane %v2129, 0
        %v2159 = vadd.f32 %v2155, %v2157
        %v2160 = vld [vmem:[%s71] sm:$0xf]
        %v2161 = vld [vmem:[%s71 + $0x4] sm:$0xf]
        %v2162 = vld [vmem:[%s71 + $0x8] sm:$0xf]
        %v2163 = vld [vmem:[%s71 + $0xc] sm:$0xf]
        %v2164 = vld [vmem:[%s53] sm:$0x1]
        %v2165 = vld [vmem:[%s73] sm:$0xf]
        %v2166 = vld [vmem:[%s73 + $0x4] sm:$0xf]
        %v2167 = vld [vmem:[%s73 + $0x8] sm:$0xf]
        %v2168 = vld [vmem:[%s73 + $0xc] sm:$0xf]
        %v2169 = vld [vmem:[%s73 + $0x10] sm:$0xf]
        %v2170 = vld [vmem:[%s73 + $0x14] sm:$0xf]
        %v2171 = vld [vmem:[%s73 + $0x18] sm:$0xf]
        %v2172 = vld [vmem:[%s73 + $0x1c] sm:$0xf]
        %v2173 = vld [vmem:[%s55] sm:$0x1]
        %v2174 = vpack.c.bf16 %v2159, %v2159
        %v2176 = vperm.slane %v2164, 0
        %v2182 = vunpack.c.l.b16 %v2160
        %v2183 = vunpack.c.l.b16 %v2161
        %v2184 = vunpack.c.l.b16 %v2162
        %v2185 = vunpack.c.l.b16 %v2163
        %v2186 = vpack.c.b16 %v2183, %v2182
        %v2187 = vpack.c.b16 %v2185, %v2184
        %v2191 = vsel %vm1324, %v2174, 0
        %2193 = vmatpush.bf16.msra.mxu0 0
        %2194 = vmatpush.bf16.msra.mxu0 0
        %2195 = vmatpush.bf16.msra.mxu0 0
        %2196 = vmatpush.bf16.msra.mxu0 0
        %2197 = vmatpush.bf16.msra.mxu0 0
        %2198 = vmatpush.bf16.msra.mxu0 0
        %2199 = vmatpush.bf16.msra.mxu0 %v2187
        %2200 = vmatpush.bf16.msra.mxu0 %v2186
        %2201 = vmatmul.bf16.gmra.mxu0 %v2191
        %v2202 = vpop.f32.mrf.mxu0
        %v2203 = vadd.f32 %v2176, %v2202
        %v2204 = vpop.f32.mrf.mxu0
        %2205 = vdwg.mxu0
        %v2206 = vmax.f32 %v2203, 0.0
        %v2207 = vpack.c.bf16 %v2206, %v2206
        %v2209 = vperm.slane %v2173, 0
        %v2219 = vunpack.c.l.b16 %v2165
        %v2220 = vunpack.c.l.b16 %v2166
        %v2221 = vunpack.c.l.b16 %v2167
        %v2222 = vunpack.c.l.b16 %v2168
        %v2223 = vunpack.c.l.b16 %v2169
        %v2224 = vunpack.c.l.b16 %v2170
        %v2225 = vunpack.c.l.b16 %v2171
        %v2226 = vunpack.c.l.b16 %v2172
        %v2227 = vpack.c.b16 %v2220, %v2219
        %v2228 = vpack.c.b16 %v2222, %v2221
        %v2229 = vpack.c.b16 %v2224, %v2223
        %v2230 = vpack.c.b16 %v2226, %v2225
        %vm2235 = vcmask 523264
        %v2237 = vsel %vm2235, %v2207, 0
        %2239 = vmatpush.bf16.msra.mxu0 0
        %2240 = vmatpush.bf16.msra.mxu0 0
        %2241 = vmatpush.bf16.msra.mxu0 0
        %2242 = vmatpush.bf16.msra.mxu0 0
        %2243 = vmatpush.bf16.msra.mxu0 %v2230
        %2244 = vmatpush.bf16.msra.mxu0 %v2229
        %2245 = vmatpush.bf16.msra.mxu0 %v2228
        %2246 = vmatpush.bf16.msra.mxu0 %v2227
        %2247 = vmatmul.bf16.gmra.mxu0 %v2237
        %v2248 = vpop.f32.mrf.mxu0
        %v2249 = vadd.f32 %v2209, %v2248
        %v2250 = vpop.f32.mrf.mxu0
        %2251 = vdwg.mxu0
        %v2252 = vadd.f32 %v2127, %v2249
        %s2253 = scalar_lea.vmem %s65, 1
        %v2254 = vld [vmem:[%s2253] sm:$0x1]
        %s2255 = scalar_lea.vmem %s63, 1
        %v2256 = vld [vmem:[%s2255] sm:$0x1]
        %v2257 = vsel %vm1324, %v2252, 0.0
        %2258 = vadd.xlane.f32.xlu0 %v2257
        %v2259 = vpop.xlane.xlu0 %2258
        %v2260 = vmul.f32 %v2259, %v1334
        %v2261 = vsub.f32 %v2252, %v2260
        %v2262 = vmul.f32 %v2261, %v2261
        %v2263 = vsel %vm1324, %v2262, 0.0
        %2264 = vadd.xlane.f32.xlu0 %v2263
        %v2265 = vpop.xlane.xlu0 %2264
        %v2266 = vmul.f32 %v2265, %v1334
        %v2267 = vadd.f32 %v2266, 1e-05
        %v2268 = vrsqrt.pop %v2267
        %v2269 = vmul.f32 %v2268, %v2267
        %v2270 = vmul.f32 %v2269, %v2268
        %v2271 = vmul.f32 0.5, %v2270
        %v2272 = vsub.f32 1.5, %v2271
        %v2273 = vmul.f32 %v2268, %v2272
        %vm2274 = vweird.f32 %v2267
        %vm2275 = vweird.f32 %v2268
        %vm2276 = vmor %vm2274, %vm2275
        %v2277 = vsel %vm2276, %v2268, %v2273
        %v2278 = vmul.f32 %v2261, %v2277
        %v2280 = vperm.slane %v2254, 0
        %v2282 = vmul.f32 %v2278, %v2280
        %v2284 = vperm.slane %v2256, 0
        %v2286 = vadd.f32 %v2282, %v2284
        %s2287 = scalar_lea.vmem %s79, 64
        %v2288 = vld [vmem:[%s2287] sm:$0xf]
        %v2289 = vld [vmem:[%s2287 + $0x4] sm:$0xf]
        %v2290 = vld [vmem:[%s2287 + $0x8] sm:$0xf]
        %v2291 = vld [vmem:[%s2287 + $0xc] sm:$0xf]
        %v2292 = vld [vmem:[%s2287 + $0x10] sm:$0xf]
        %v2293 = vld [vmem:[%s2287 + $0x14] sm:$0xf]
        %v2294 = vld [vmem:[%s2287 + $0x18] sm:$0xf]
        %v2295 = vld [vmem:[%s2287 + $0x1c] sm:$0xf]
        %v2296 = vld [vmem:[%s2287 + $0x20] sm:$0xf]
        %v2297 = vld [vmem:[%s2287 + $0x24] sm:$0xf]
        %v2298 = vld [vmem:[%s2287 + $0x28] sm:$0xf]
        %v2299 = vld [vmem:[%s2287 + $0x2c] sm:$0xf]
        %v2300 = vld [vmem:[%s2287 + $0x30] sm:$0xf]
        %v2301 = vld [vmem:[%s2287 + $0x34] sm:$0xf]
        %v2302 = vld [vmem:[%s2287 + $0x38] sm:$0xf]
        %v2303 = vld [vmem:[%s2287 + $0x3c] sm:$0xf]
        %s2304 = scalar_lea.vmem %s61, 4
        %v2305 = vld [vmem:[%s2304] sm:$0x1]
        %v2306 = vld [vmem:[%s2304 + $0x1] sm:$0x1]
        %v2307 = vld [vmem:[%s2304 + $0x2] sm:$0x1]
        %v2308 = vld [vmem:[%s2304 + $0x3] sm:$0x1]
        %s2309 = scalar_lea.vmem %s75, 128
        %v2310 = vld [vmem:[%s2309] sm:$0xf]
        %v2311 = vld [vmem:[%s2309 + $0x4] sm:$0xf]
        %v2312 = vld [vmem:[%s2309 + $0x8] sm:$0xf]
        %v2313 = vld [vmem:[%s2309 + $0xc] sm:$0xf]
        %v2314 = vld [vmem:[%s2309 + $0x10] sm:$0xf]
        %v2315 = vld [vmem:[%s2309 + $0x14] sm:$0xf]
        %v2316 = vld [vmem:[%s2309 + $0x18] sm:$0xf]
        %v2317 = vld [vmem:[%s2309 + $0x1c] sm:$0xf]
        %v2318 = vld [vmem:[%s2309 + $0x20] sm:$0xf]
        %v2319 = vld [vmem:[%s2309 + $0x24] sm:$0xf]
        %v2320 = vld [vmem:[%s2309 + $0x28] sm:$0xf]
        %v2321 = vld [vmem:[%s2309 + $0x2c] sm:$0xf]
        %v2322 = vld [vmem:[%s2309 + $0x30] sm:$0xf]
        %v2323 = vld [vmem:[%s2309 + $0x34] sm:$0xf]
        %v2324 = vld [vmem:[%s2309 + $0x38] sm:$0xf]
        %v2325 = vld [vmem:[%s2309 + $0x3c] sm:$0xf]
        %v2326 = vld [vmem:[%s2309 + $0x40] sm:$0xf]
        %v2327 = vld [vmem:[%s2309 + $0x44] sm:$0xf]
        %v2328 = vld [vmem:[%s2309 + $0x48] sm:$0xf]
        %v2329 = vld [vmem:[%s2309 + $0x4c] sm:$0xf]
        %v2330 = vld [vmem:[%s2309 + $0x50] sm:$0xf]
        %v2331 = vld [vmem:[%s2309 + $0x54] sm:$0xf]
        %v2332 = vld [vmem:[%s2309 + $0x58] sm:$0xf]
        %v2333 = vld [vmem:[%s2309 + $0x5c] sm:$0xf]
        %v2334 = vld [vmem:[%s2309 + $0x60] sm:$0xf]
        %v2335 = vld [vmem:[%s2309 + $0x64] sm:$0xf]
        %v2336 = vld [vmem:[%s2309 + $0x68] sm:$0xf]
        %v2337 = vld [vmem:[%s2309 + $0x6c] sm:$0xf]
        %v2338 = vld [vmem:[%s2309 + $0x70] sm:$0xf]
        %v2339 = vld [vmem:[%s2309 + $0x74] sm:$0xf]
        %v2340 = vld [vmem:[%s2309 + $0x78] sm:$0xf]
        %v2341 = vld [vmem:[%s2309 + $0x7c] sm:$0xf]
        %s2342 = scalar_lea.vmem %s57, 8
        %v2343 = vld [vmem:[%s2342] sm:$0x1]
        %v2344 = vld [vmem:[%s2342 + $0x1] sm:$0x1]
        %v2345 = vld [vmem:[%s2342 + $0x2] sm:$0x1]
        %v2346 = vld [vmem:[%s2342 + $0x3] sm:$0x1]
        %v2347 = vld [vmem:[%s2342 + $0x4] sm:$0x1]
        %v2348 = vld [vmem:[%s2342 + $0x5] sm:$0x1]
        %v2349 = vld [vmem:[%s2342 + $0x6] sm:$0x1]
        %v2350 = vld [vmem:[%s2342 + $0x7] sm:$0x1]
        %s2351 = scalar_lea.vmem %s77, 16
        %v2352 = vld [vmem:[%s2351] sm:$0xf]
        %v2353 = vld [vmem:[%s2351 + $0x4] sm:$0xf]
        %v2354 = vld [vmem:[%s2351 + $0x8] sm:$0xf]
        %v2355 = vld [vmem:[%s2351 + $0xc] sm:$0xf]
        %s2356 = scalar_lea.vmem %s59, 1
        %v2357 = vld [vmem:[%s2356] sm:$0x1]
        %v2358 = vpack.c.bf16 %v2286, %v2286
        %v2363 = vperm.slane %v2305, 0
        %v2364 = vperm.slane %v2306, 0
        %v2365 = vperm.slane %v2307, 0
        %v2366 = vperm.slane %v2308, 0
        %v2375 = vunpack.c.l.b16 %v2288
        %v2376 = vunpack.c.l.b16 %v2289
        %v2377 = vunpack.c.l.b16 %v2290
        %v2378 = vunpack.c.l.b16 %v2291
        %v2379 = vpack.c.b16 %v2376, %v2375
        %v2380 = vpack.c.b16 %v2378, %v2377
        %v2384 = vsel %vm1324, %v2358, 0
        %2386 = vmatpush.bf16.msra.mxu0 0
        %2387 = vmatpush.bf16.msra.mxu0 0
        %2388 = vmatpush.bf16.msra.mxu0 0
        %2389 = vmatpush.bf16.msra.mxu0 0
        %2390 = vmatpush.bf16.msra.mxu0 0
        %2391 = vmatpush.bf16.msra.mxu0 0
        %2392 = vmatpush.bf16.msra.mxu0 %v2380
        %2393 = vmatpush.bf16.msra.mxu0 %v2379
        %2394 = vmatmul.bf16.gmra.mxu0 %v2384
        %v2395 = vpop.f32.mrf.mxu0
        %v2396 = vadd.f32 %v2363, %v2395
        %v2397 = vpop.f32.mrf.mxu0
        %2398 = vdwg.mxu0
        %v2403 = vunpack.c.l.b16 %v2292
        %v2404 = vunpack.c.l.b16 %v2293
        %v2405 = vunpack.c.l.b16 %v2294
        %v2406 = vunpack.c.l.b16 %v2295
        %v2407 = vpack.c.b16 %v2404, %v2403
        %v2408 = vpack.c.b16 %v2406, %v2405
        %2411 = vmatpush.bf16.msra.mxu0 0
        %2412 = vmatpush.bf16.msra.mxu0 0
        %2413 = vmatpush.bf16.msra.mxu0 0
        %2414 = vmatpush.bf16.msra.mxu0 0
        %2415 = vmatpush.bf16.msra.mxu0 0
        %2416 = vmatpush.bf16.msra.mxu0 0
        %2417 = vmatpush.bf16.msra.mxu0 %v2408
        %2418 = vmatpush.bf16.msra.mxu0 %v2407
        %2419 = vmatmul.bf16.gmra.mxu0 %v2384
        %v2420 = vpop.f32.mrf.mxu0
        %v2421 = vadd.f32 %v2364, %v2420
        %v2422 = vpop.f32.mrf.mxu0
        %2423 = vdwg.mxu0
        %v2428 = vunpack.c.l.b16 %v2296
        %v2429 = vunpack.c.l.b16 %v2297
        %v2430 = vunpack.c.l.b16 %v2298
        %v2431 = vunpack.c.l.b16 %v2299
        %v2432 = vpack.c.b16 %v2429, %v2428
        %v2433 = vpack.c.b16 %v2431, %v2430
        %2436 = vmatpush.bf16.msra.mxu0 0
        %2437 = vmatpush.bf16.msra.mxu0 0
        %2438 = vmatpush.bf16.msra.mxu0 0
        %2439 = vmatpush.bf16.msra.mxu0 0
        %2440 = vmatpush.bf16.msra.mxu0 0
        %2441 = vmatpush.bf16.msra.mxu0 0
        %2442 = vmatpush.bf16.msra.mxu0 %v2433
        %2443 = vmatpush.bf16.msra.mxu0 %v2432
        %2444 = vmatmul.bf16.gmra.mxu0 %v2384
        %v2445 = vpop.f32.mrf.mxu0
        %v2446 = vadd.f32 %v2365, %v2445
        %v2447 = vpop.f32.mrf.mxu0
        %2448 = vdwg.mxu0
        %v2453 = vunpack.c.l.b16 %v2300
        %v2454 = vunpack.c.l.b16 %v2301
        %v2455 = vunpack.c.l.b16 %v2302
        %v2456 = vunpack.c.l.b16 %v2303
        %v2457 = vpack.c.b16 %v2454, %v2453
        %v2458 = vpack.c.b16 %v2456, %v2455
        %2461 = vmatpush.bf16.msra.mxu0 0
        %2462 = vmatpush.bf16.msra.mxu0 0
        %2463 = vmatpush.bf16.msra.mxu0 0
        %2464 = vmatpush.bf16.msra.mxu0 0
        %2465 = vmatpush.bf16.msra.mxu0 0
        %2466 = vmatpush.bf16.msra.mxu0 0
        %2467 = vmatpush.bf16.msra.mxu0 %v2458
        %2468 = vmatpush.bf16.msra.mxu0 %v2457
        %2469 = vmatmul.bf16.gmra.mxu0 %v2384
        %v2470 = vpop.f32.mrf.mxu0
        %v2471 = vadd.f32 %v2366, %v2470
        %v2472 = vpop.f32.mrf.mxu0
        %2473 = vdwg.mxu0
        %v2482 = vperm.slane %v2343, 0
        %v2483 = vperm.slane %v2344, 0
        %v2484 = vperm.slane %v2345, 0
        %v2485 = vperm.slane %v2346, 0
        %v2486 = vperm.slane %v2347, 0
        %v2487 = vperm.slane %v2348, 0
        %v2488 = vperm.slane %v2349, 0
        %v2489 = vperm.slane %v2350, 0
        %v2502 = vunpack.c.l.b16 %v2310
        %v2503 = vunpack.c.l.b16 %v2311
        %v2504 = vunpack.c.l.b16 %v2312
        %v2505 = vunpack.c.l.b16 %v2313
        %v2506 = vpack.c.b16 %v2503, %v2502
        %v2507 = vpack.c.b16 %v2505, %v2504
        %2510 = vmatpush.bf16.msra.mxu0 0
        %2511 = vmatpush.bf16.msra.mxu0 0
        %2512 = vmatpush.bf16.msra.mxu0 0
        %2513 = vmatpush.bf16.msra.mxu0 0
        %2514 = vmatpush.bf16.msra.mxu0 0
        %2515 = vmatpush.bf16.msra.mxu0 0
        %2516 = vmatpush.bf16.msra.mxu0 %v2507
        %2517 = vmatpush.bf16.msra.mxu0 %v2506
        %2518 = vmatmul.bf16.gmra.mxu0 %v2384
        %v2519 = vpop.f32.mrf.mxu0
        %v2520 = vadd.f32 %v2482, %v2519
        %v2521 = vpop.f32.mrf.mxu0
        %2522 = vdwg.mxu0
        %v2527 = vunpack.c.l.b16 %v2314
        %v2528 = vunpack.c.l.b16 %v2315
        %v2529 = vunpack.c.l.b16 %v2316
        %v2530 = vunpack.c.l.b16 %v2317
        %v2531 = vpack.c.b16 %v2528, %v2527
        %v2532 = vpack.c.b16 %v2530, %v2529
        %2535 = vmatpush.bf16.msra.mxu0 0
        %2536 = vmatpush.bf16.msra.mxu0 0
        %2537 = vmatpush.bf16.msra.mxu0 0
        %2538 = vmatpush.bf16.msra.mxu0 0
        %2539 = vmatpush.bf16.msra.mxu0 0
        %2540 = vmatpush.bf16.msra.mxu0 0
        %2541 = vmatpush.bf16.msra.mxu0 %v2532
        %2542 = vmatpush.bf16.msra.mxu0 %v2531
        %2543 = vmatmul.bf16.gmra.mxu0 %v2384
        %v2544 = vpop.f32.mrf.mxu0
        %v2545 = vadd.f32 %v2483, %v2544
        %v2546 = vpop.f32.mrf.mxu0
        %2547 = vdwg.mxu0
        %v2552 = vunpack.c.l.b16 %v2318
        %v2553 = vunpack.c.l.b16 %v2319
        %v2554 = vunpack.c.l.b16 %v2320
        %v2555 = vunpack.c.l.b16 %v2321
        %v2556 = vpack.c.b16 %v2553, %v2552
        %v2557 = vpack.c.b16 %v2555, %v2554
        %2560 = vmatpush.bf16.msra.mxu0 0
        %2561 = vmatpush.bf16.msra.mxu0 0
        %2562 = vmatpush.bf16.msra.mxu0 0
        %2563 = vmatpush.bf16.msra.mxu0 0
        %2564 = vmatpush.bf16.msra.mxu0 0
        %2565 = vmatpush.bf16.msra.mxu0 0
        %2566 = vmatpush.bf16.msra.mxu0 %v2557
        %2567 = vmatpush.bf16.msra.mxu0 %v2556
        %2568 = vmatmul.bf16.gmra.mxu0 %v2384
        %v2569 = vpop.f32.mrf.mxu0
        %v2570 = vadd.f32 %v2484, %v2569
        %v2571 = vpop.f32.mrf.mxu0
        %2572 = vdwg.mxu0
        %v2577 = vunpack.c.l.b16 %v2322
        %v2578 = vunpack.c.l.b16 %v2323
        %v2579 = vunpack.c.l.b16 %v2324
        %v2580 = vunpack.c.l.b16 %v2325
        %v2581 = vpack.c.b16 %v2578, %v2577
        %v2582 = vpack.c.b16 %v2580, %v2579
        %2585 = vmatpush.bf16.msra.mxu0 0
        %2586 = vmatpush.bf16.msra.mxu0 0
        %2587 = vmatpush.bf16.msra.mxu0 0
        %2588 = vmatpush.bf16.msra.mxu0 0
        %2589 = vmatpush.bf16.msra.mxu0 0
        %2590 = vmatpush.bf16.msra.mxu0 0
        %2591 = vmatpush.bf16.msra.mxu0 %v2582
        %2592 = vmatpush.bf16.msra.mxu0 %v2581
        %2593 = vmatmul.bf16.gmra.mxu0 %v2384
        %v2594 = vpop.f32.mrf.mxu0
        %v2595 = vadd.f32 %v2485, %v2594
        %v2596 = vpop.f32.mrf.mxu0
        %2597 = vdwg.mxu0
        %v2602 = vunpack.c.l.b16 %v2326
        %v2603 = vunpack.c.l.b16 %v2327
        %v2604 = vunpack.c.l.b16 %v2328
        %v2605 = vunpack.c.l.b16 %v2329
        %v2606 = vpack.c.b16 %v2603, %v2602
        %v2607 = vpack.c.b16 %v2605, %v2604
        %2610 = vmatpush.bf16.msra.mxu0 0
        %2611 = vmatpush.bf16.msra.mxu0 0
        %2612 = vmatpush.bf16.msra.mxu0 0
        %2613 = vmatpush.bf16.msra.mxu0 0
        %2614 = vmatpush.bf16.msra.mxu0 0
        %2615 = vmatpush.bf16.msra.mxu0 0
        %2616 = vmatpush.bf16.msra.mxu0 %v2607
        %2617 = vmatpush.bf16.msra.mxu0 %v2606
        %2618 = vmatmul.bf16.gmra.mxu0 %v2384
        %v2619 = vpop.f32.mrf.mxu0
        %v2620 = vadd.f32 %v2486, %v2619
        %v2621 = vpop.f32.mrf.mxu0
        %2622 = vdwg.mxu0
        %v2627 = vunpack.c.l.b16 %v2330
        %v2628 = vunpack.c.l.b16 %v2331
        %v2629 = vunpack.c.l.b16 %v2332
        %v2630 = vunpack.c.l.b16 %v2333
        %v2631 = vpack.c.b16 %v2628, %v2627
        %v2632 = vpack.c.b16 %v2630, %v2629
        %2635 = vmatpush.bf16.msra.mxu0 0
        %2636 = vmatpush.bf16.msra.mxu0 0
        %2637 = vmatpush.bf16.msra.mxu0 0
        %2638 = vmatpush.bf16.msra.mxu0 0
        %2639 = vmatpush.bf16.msra.mxu0 0
        %2640 = vmatpush.bf16.msra.mxu0 0
        %2641 = vmatpush.bf16.msra.mxu0 %v2632
        %2642 = vmatpush.bf16.msra.mxu0 %v2631
        %2643 = vmatmul.bf16.gmra.mxu0 %v2384
        %v2644 = vpop.f32.mrf.mxu0
        %v2645 = vadd.f32 %v2487, %v2644
        %v2646 = vpop.f32.mrf.mxu0
        %2647 = vdwg.mxu0
        %v2652 = vunpack.c.l.b16 %v2334
        %v2653 = vunpack.c.l.b16 %v2335
        %v2654 = vunpack.c.l.b16 %v2336
        %v2655 = vunpack.c.l.b16 %v2337
        %v2656 = vpack.c.b16 %v2653, %v2652
        %v2657 = vpack.c.b16 %v2655, %v2654
        %2660 = vmatpush.bf16.msra.mxu0 0
        %2661 = vmatpush.bf16.msra.mxu0 0
        %2662 = vmatpush.bf16.msra.mxu0 0
        %2663 = vmatpush.bf16.msra.mxu0 0
        %2664 = vmatpush.bf16.msra.mxu0 0
        %2665 = vmatpush.bf16.msra.mxu0 0
        %2666 = vmatpush.bf16.msra.mxu0 %v2657
        %2667 = vmatpush.bf16.msra.mxu0 %v2656
        %2668 = vmatmul.bf16.gmra.mxu0 %v2384
        %v2669 = vpop.f32.mrf.mxu0
        %v2670 = vadd.f32 %v2488, %v2669
        %v2671 = vpop.f32.mrf.mxu0
        %2672 = vdwg.mxu0
        %v2677 = vunpack.c.l.b16 %v2338
        %v2678 = vunpack.c.l.b16 %v2339
        %v2679 = vunpack.c.l.b16 %v2340
        %v2680 = vunpack.c.l.b16 %v2341
        %v2681 = vpack.c.b16 %v2678, %v2677
        %v2682 = vpack.c.b16 %v2680, %v2679
        %2685 = vmatpush.bf16.msra.mxu0 0
        %2686 = vmatpush.bf16.msra.mxu0 0
        %2687 = vmatpush.bf16.msra.mxu0 0
        %2688 = vmatpush.bf16.msra.mxu0 0
        %2689 = vmatpush.bf16.msra.mxu0 0
        %2690 = vmatpush.bf16.msra.mxu0 0
        %2691 = vmatpush.bf16.msra.mxu0 %v2682
        %2692 = vmatpush.bf16.msra.mxu0 %v2681
        %2693 = vmatmul.bf16.gmra.mxu0 %v2384
        %v2694 = vpop.f32.mrf.mxu0
        %v2695 = vadd.f32 %v2489, %v2694
        %v2696 = vpop.f32.mrf.mxu0
        %2697 = vdwg.mxu0
        %v2698 = vpack.c.bf16 %v2396, %v2396
        %v2699 = vpack.c.bf16 %v2421, %v2421
        %v2700 = vpack.c.bf16 %v2446, %v2446
        %v2701 = vpack.c.bf16 %v2471, %v2471
        %v2702 = vpack.c.bf16 %v2520, %v2520
        %v2703 = vpack.c.bf16 %v2545, %v2545
        %v2704 = vpack.c.bf16 %v2570, %v2570
        %v2705 = vpack.c.bf16 %v2595, %v2595
        %v2707 = vsel %vm1778, %v2698, 0
        %v2710 = vsel %vm1778, %v2702, 0
        %2712 = vmatpush.bf16.xpose.msra.mxu0 0
        %2713 = vmatpush.bf16.xpose.msra.mxu0 0
        %2714 = vmatpush.bf16.xpose.msra.mxu0 0
        %2715 = vmatpush.bf16.xpose.msra.mxu0 0
        %2716 = vmatpush.bf16.xpose.msra.mxu0 0
        %2717 = vmatpush.bf16.xpose.msra.mxu0 0
        %2718 = vmatpush.bf16.xpose.msra.mxu0 0
        %2719 = vmatpush.bf16.xpose.msra.mxu0 %v2710
        %2720 = vmatmul.bf16.gmra.mxu0 %v2707
        %v2721 = vpop.f32.mrf.mxu0
        %v2722 = vadd.f32 %v1776, %v2721
        %v2723 = vpop.f32.mrf.mxu0
        %2724 = vdwg.mxu0
        %v2726 = vsel %vm1778, %v2699, 0
        %v2729 = vsel %vm1778, %v2703, 0
        %2731 = vmatpush.bf16.xpose.msra.mxu0 0
        %2732 = vmatpush.bf16.xpose.msra.mxu0 0
        %2733 = vmatpush.bf16.xpose.msra.mxu0 0
        %2734 = vmatpush.bf16.xpose.msra.mxu0 0
        %2735 = vmatpush.bf16.xpose.msra.mxu0 0
        %2736 = vmatpush.bf16.xpose.msra.mxu0 0
        %2737 = vmatpush.bf16.xpose.msra.mxu0 0
        %2738 = vmatpush.bf16.xpose.msra.mxu0 %v2729
        %2739 = vmatmul.bf16.gmra.mxu0 %v2726
        %v2740 = vpop.f32.mrf.mxu0
        %v2741 = vadd.f32 %v1776, %v2740
        %v2742 = vpop.f32.mrf.mxu0
        %2743 = vdwg.mxu0
        %v2745 = vsel %vm1778, %v2700, 0
        %v2748 = vsel %vm1778, %v2704, 0
        %2750 = vmatpush.bf16.xpose.msra.mxu0 0
        %2751 = vmatpush.bf16.xpose.msra.mxu0 0
        %2752 = vmatpush.bf16.xpose.msra.mxu0 0
        %2753 = vmatpush.bf16.xpose.msra.mxu0 0
        %2754 = vmatpush.bf16.xpose.msra.mxu0 0
        %2755 = vmatpush.bf16.xpose.msra.mxu0 0
        %2756 = vmatpush.bf16.xpose.msra.mxu0 0
        %2757 = vmatpush.bf16.xpose.msra.mxu0 %v2748
        %2758 = vmatmul.bf16.gmra.mxu0 %v2745
        %v2759 = vpop.f32.mrf.mxu0
        %v2760 = vadd.f32 %v1776, %v2759
        %v2761 = vpop.f32.mrf.mxu0
        %2762 = vdwg.mxu0
        %v2764 = vsel %vm1778, %v2701, 0
        %v2767 = vsel %vm1778, %v2705, 0
        %2769 = vmatpush.bf16.xpose.msra.mxu0 0
        %2770 = vmatpush.bf16.xpose.msra.mxu0 0
        %2771 = vmatpush.bf16.xpose.msra.mxu0 0
        %2772 = vmatpush.bf16.xpose.msra.mxu0 0
        %2773 = vmatpush.bf16.xpose.msra.mxu0 0
        %2774 = vmatpush.bf16.xpose.msra.mxu0 0
        %2775 = vmatpush.bf16.xpose.msra.mxu0 0
        %2776 = vmatpush.bf16.xpose.msra.mxu0 %v2767
        %2777 = vmatmul.bf16.gmra.mxu0 %v2764
        %v2778 = vpop.f32.mrf.mxu0
        %v2779 = vadd.f32 %v1776, %v2778
        %v2780 = vpop.f32.mrf.mxu0
        %2781 = vdwg.mxu0
        %v2782 = vsel %vm1778, %v2722, -inf
        %2783 = vmax.xlane.f32.xlu0 %v2782
        %v2784 = vpop.xlane.xlu0 %2783
        %v2785 = vsel %vm1778, %v2741, -inf
        %2786 = vmax.xlane.f32.xlu0 %v2785
        %v2787 = vpop.xlane.xlu0 %2786
        %v2788 = vsel %vm1778, %v2760, -inf
        %2789 = vmax.xlane.f32.xlu0 %v2788
        %v2790 = vpop.xlane.xlu0 %2789
        %v2791 = vsel %vm1778, %v2779, -inf
        %2792 = vmax.xlane.f32.xlu0 %v2791
        %v2793 = vpop.xlane.xlu0 %2792
        %v2794 = vsub.f32 %v2722, %v2784
        %v2795 = vsub.f32 %v2741, %v2787
        %v2796 = vsub.f32 %v2760, %v2790
        %v2797 = vsub.f32 %v2779, %v2793
        %v2798 = vmul.f32 %v2794, 1.442695
        %v2799 = vpow.pop %v2798
        %v2800 = vmul.f32 %v2795, 1.442695
        %v2801 = vpow.pop %v2800
        %v2802 = vmul.f32 %v2796, 1.442695
        %v2803 = vpow.pop %v2802
        %v2804 = vmul.f32 %v2797, 1.442695
        %v2805 = vpow.pop %v2804
        %v2806 = vsel %vm1778, %v2799, 0.0
        %2807 = vadd.xlane.f32.xlu0 %v2806
        %v2808 = vpop.xlane.xlu0 %2807
        %v2809 = vsel %vm1778, %v2801, 0.0
        %2810 = vadd.xlane.f32.xlu0 %v2809
        %v2811 = vpop.xlane.xlu0 %2810
        %v2812 = vsel %vm1778, %v2803, 0.0
        %2813 = vadd.xlane.f32.xlu0 %v2812
        %v2814 = vpop.xlane.xlu0 %2813
        %v2815 = vsel %vm1778, %v2805, 0.0
        %2816 = vadd.xlane.f32.xlu0 %v2815
        %v2817 = vpop.xlane.xlu0 %2816
        %v2818 = vrcp.pop %v2808
        %v2819 = vmul.f32 %v2808, %v2818
        %v2820 = vsub.f32 1.0, %v2819
        %v2821 = vmul.f32 %v2818, %v2820
        %v2822 = vadd.f32 %v2818, %v2821
        %vm2823 = vweird.f32 %v2808
        %vm2824 = vweird.f32 %v2818
        %vm2825 = vmor %vm2823, %vm2824
        %v2826 = vsel %vm2825, %v2818, %v2822
        %v2827 = vand.u32 2147483647, %v2808
        %vm2828 = vcmp.eq.f32.partialorder %v2827, 8.507059e+37
        %v2829 = vand.u32 %v2808, 2147483648
        %v2830 = vor.u32 1.1754944e-38, %v2829
        %v2831 = vsel %vm2828, %v2830, %v2826
        %v2832 = vmul.f32 %v2799, %v2831
        %v2833 = vrcp.pop %v2811
        %v2834 = vmul.f32 %v2811, %v2833
        %v2835 = vsub.f32 1.0, %v2834
        %v2836 = vmul.f32 %v2833, %v2835
        %v2837 = vadd.f32 %v2833, %v2836
        %vm2838 = vweird.f32 %v2811
        %vm2839 = vweird.f32 %v2833
        %vm2840 = vmor %vm2838, %vm2839
        %v2841 = vsel %vm2840, %v2833, %v2837
        %v2842 = vand.u32 2147483647, %v2811
        %vm2843 = vcmp.eq.f32.partialorder %v2842, 8.507059e+37
        %v2844 = vand.u32 %v2811, 2147483648
        %v2845 = vor.u32 1.1754944e-38, %v2844
        %v2846 = vsel %vm2843, %v2845, %v2841
        %v2847 = vmul.f32 %v2801, %v2846
        %v2848 = vrcp.pop %v2814
        %v2849 = vmul.f32 %v2814, %v2848
        %v2850 = vsub.f32 1.0, %v2849
        %v2851 = vmul.f32 %v2848, %v2850
        %v2852 = vadd.f32 %v2848, %v2851
        %vm2853 = vweird.f32 %v2814
        %vm2854 = vweird.f32 %v2848
        %vm2855 = vmor %vm2853, %vm2854
        %v2856 = vsel %vm2855, %v2848, %v2852
        %v2857 = vand.u32 2147483647, %v2814
        %vm2858 = vcmp.eq.f32.partialorder %v2857, 8.507059e+37
        %v2859 = vand.u32 %v2814, 2147483648
        %v2860 = vor.u32 1.1754944e-38, %v2859
        %v2861 = vsel %vm2858, %v2860, %v2856
        %v2862 = vmul.f32 %v2803, %v2861
        %v2863 = vrcp.pop %v2817
        %v2864 = vmul.f32 %v2817, %v2863
        %v2865 = vsub.f32 1.0, %v2864
        %v2866 = vmul.f32 %v2863, %v2865
        %v2867 = vadd.f32 %v2863, %v2866
        %vm2868 = vweird.f32 %v2817
        %vm2869 = vweird.f32 %v2863
        %vm2870 = vmor %vm2868, %vm2869
        %v2871 = vsel %vm2870, %v2863, %v2867
        %v2872 = vand.u32 2147483647, %v2817
        %vm2873 = vcmp.eq.f32.partialorder %v2872, 8.507059e+37
        %v2874 = vand.u32 %v2817, 2147483648
        %v2875 = vor.u32 1.1754944e-38, %v2874
        %v2876 = vsel %vm2873, %v2875, %v2871
        %v2877 = vmul.f32 %v2805, %v2876
        %v2878 = vpack.c.bf16 %v2832, %v2832
        %v2879 = vpack.c.bf16 %v2847, %v2847
        %v2880 = vpack.c.bf16 %v2862, %v2862
        %v2881 = vpack.c.bf16 %v2877, %v2877
        %v2882 = vpack.c.bf16 %v2620, %v2620
        %v2883 = vpack.c.bf16 %v2645, %v2645
        %v2884 = vpack.c.bf16 %v2670, %v2670
        %v2885 = vpack.c.bf16 %v2695, %v2695
        %v2887 = vsel %vm1778, %v2878, 0
        %v2890 = vsel %vm1962, %v2882, 0
        %2892 = vmatpush.bf16.msra.mxu0 0
        %2893 = vmatpush.bf16.msra.mxu0 0
        %2894 = vmatpush.bf16.msra.mxu0 0
        %2895 = vmatpush.bf16.msra.mxu0 0
        %2896 = vmatpush.bf16.msra.mxu0 0
        %2897 = vmatpush.bf16.msra.mxu0 0
        %2898 = vmatpush.bf16.msra.mxu0 0
        %2899 = vmatpush.bf16.msra.mxu0 %v2890
        %2900 = vmatmul.bf16.gmra.mxu0 %v2887
        %v2901 = vpop.f32.mrf.mxu0
        %v2902 = vadd.f32 0.0, %v2901
        %v2903 = vpop.f32.mrf.mxu0
        %2904 = vdwg.mxu0
        %v2906 = vsel %vm1778, %v2879, 0
        %v2909 = vsel %vm1962, %v2883, 0
        %2911 = vmatpush.bf16.msra.mxu0 0
        %2912 = vmatpush.bf16.msra.mxu0 0
        %2913 = vmatpush.bf16.msra.mxu0 0
        %2914 = vmatpush.bf16.msra.mxu0 0
        %2915 = vmatpush.bf16.msra.mxu0 0
        %2916 = vmatpush.bf16.msra.mxu0 0
        %2917 = vmatpush.bf16.msra.mxu0 0
        %2918 = vmatpush.bf16.msra.mxu0 %v2909
        %2919 = vmatmul.bf16.gmra.mxu0 %v2906
        %v2920 = vpop.f32.mrf.mxu0
        %v2921 = vadd.f32 0.0, %v2920
        %v2922 = vpop.f32.mrf.mxu0
        %2923 = vdwg.mxu0
        %v2925 = vsel %vm1778, %v2880, 0
        %v2928 = vsel %vm1962, %v2884, 0
        %2930 = vmatpush.bf16.msra.mxu0 0
        %2931 = vmatpush.bf16.msra.mxu0 0
        %2932 = vmatpush.bf16.msra.mxu0 0
        %2933 = vmatpush.bf16.msra.mxu0 0
        %2934 = vmatpush.bf16.msra.mxu0 0
        %2935 = vmatpush.bf16.msra.mxu0 0
        %2936 = vmatpush.bf16.msra.mxu0 0
        %2937 = vmatpush.bf16.msra.mxu0 %v2928
        %2938 = vmatmul.bf16.gmra.mxu0 %v2925
        %v2939 = vpop.f32.mrf.mxu0
        %v2940 = vadd.f32 0.0, %v2939
        %v2941 = vpop.f32.mrf.mxu0
        %2942 = vdwg.mxu0
        %v2944 = vsel %vm1778, %v2881, 0
        %v2947 = vsel %vm1962, %v2885, 0
        %2949 = vmatpush.bf16.msra.mxu0 0
        %2950 = vmatpush.bf16.msra.mxu0 0
        %2951 = vmatpush.bf16.msra.mxu0 0
        %2952 = vmatpush.bf16.msra.mxu0 0
        %2953 = vmatpush.bf16.msra.mxu0 0
        %2954 = vmatpush.bf16.msra.mxu0 0
        %2955 = vmatpush.bf16.msra.mxu0 0
        %2956 = vmatpush.bf16.msra.mxu0 %v2947
        %2957 = vmatmul.bf16.gmra.mxu0 %v2944
        %v2958 = vpop.f32.mrf.mxu0
        %v2959 = vadd.f32 0.0, %v2958
        %v2960 = vpop.f32.mrf.mxu0
        %2961 = vdwg.mxu0
        %v2962 = vpack.c.bf16 %v2902, %v2902
        %v2963 = vpack.c.bf16 %v2921, %v2921
        %v2964 = vpack.c.bf16 %v2940, %v2940
        %v2965 = vpack.c.bf16 %v2959, %v2959
        %v2967 = vsel %vm1778, %v2962, 0
        %v2970 = vsel %vm1962, %v2352, 0
        %2972 = vmatpush.bf16.msra.mxu0 0
        %2973 = vmatpush.bf16.msra.mxu0 0
        %2974 = vmatpush.bf16.msra.mxu0 0
        %2975 = vmatpush.bf16.msra.mxu0 0
        %2976 = vmatpush.bf16.msra.mxu0 0
        %2977 = vmatpush.bf16.msra.mxu0 0
        %2978 = vmatpush.bf16.msra.mxu0 0
        %2979 = vmatpush.bf16.msra.mxu0 %v2970
        %2980 = vmatmul.bf16.gmra.mxu0 %v2967
        %v2981 = vpop.f32.mrf.mxu0
        %v2982 = vadd.f32 0.0, %v2981
        %v2983 = vpop.f32.mrf.mxu0
        %2984 = vdwg.mxu0
        %v2986 = vsel %vm1778, %v2963, 0
        %v2989 = vsel %vm1962, %v2353, 0
        %2991 = vmatpush.bf16.msra.mxu0 0
        %2992 = vmatpush.bf16.msra.mxu0 0
        %2993 = vmatpush.bf16.msra.mxu0 0
        %2994 = vmatpush.bf16.msra.mxu0 0
        %2995 = vmatpush.bf16.msra.mxu0 0
        %2996 = vmatpush.bf16.msra.mxu0 0
        %2997 = vmatpush.bf16.msra.mxu0 0
        %2998 = vmatpush.bf16.msra.mxu0 %v2989
        %2999 = vmatmul.bf16.gmra.mxu0 %v2986
        %v3000 = vpop.f32.mrf.mxu0
        %v3001 = vadd.f32 0.0, %v3000
        %v3002 = vpop.f32.mrf.mxu0
        %3003 = vdwg.mxu0
        %v3005 = vsel %vm1778, %v2964, 0
        %v3008 = vsel %vm1962, %v2354, 0
        %3010 = vmatpush.bf16.msra.mxu0 0
        %3011 = vmatpush.bf16.msra.mxu0 0
        %3012 = vmatpush.bf16.msra.mxu0 0
        %3013 = vmatpush.bf16.msra.mxu0 0
        %3014 = vmatpush.bf16.msra.mxu0 0
        %3015 = vmatpush.bf16.msra.mxu0 0
        %3016 = vmatpush.bf16.msra.mxu0 0
        %3017 = vmatpush.bf16.msra.mxu0 %v3008
        %3018 = vmatmul.bf16.gmra.mxu0 %v3005
        %v3019 = vpop.f32.mrf.mxu0
        %v3020 = vadd.f32 0.0, %v3019
        %v3021 = vpop.f32.mrf.mxu0
        %3022 = vdwg.mxu0
        %v3024 = vsel %vm1778, %v2965, 0
        %v3027 = vsel %vm1962, %v2355, 0
        %3029 = vmatpush.bf16.msra.mxu0 0
        %3030 = vmatpush.bf16.msra.mxu0 0
        %3031 = vmatpush.bf16.msra.mxu0 0
        %3032 = vmatpush.bf16.msra.mxu0 0
        %3033 = vmatpush.bf16.msra.mxu0 0
        %3034 = vmatpush.bf16.msra.mxu0 0
        %3035 = vmatpush.bf16.msra.mxu0 0
        %3036 = vmatpush.bf16.msra.mxu0 %v3027
        %3037 = vmatmul.bf16.gmra.mxu0 %v3024
        %v3038 = vpop.f32.mrf.mxu0
        %v3039 = vadd.f32 0.0, %v3038
        %v3040 = vpop.f32.mrf.mxu0
        %3041 = vdwg.mxu0
        %v3042 = vsel %vm1324, %v2982, 0.0
        %v3043 = vsel %vm1324, %v3001, 0.0
        %v3044 = vadd.f32 %v3042, %v3043
        %v3045 = vsel %vm1324, %v3020, 0.0
        %v3046 = vadd.f32 %v3044, %v3045
        %v3047 = vsel %vm1324, %v3039, 0.0
        %v3048 = vadd.f32 %v3046, %v3047
        %v3050 = vperm.slane %v2357, 0
        %v3052 = vadd.f32 %v3048, %v3050
        %v3053 = vadd.f32 %v2252, %v3052
        %s3054 = scalar_lea.vmem %s69, 1
        %v3055 = vld [vmem:[%s3054] sm:$0x1]
        %s3056 = scalar_lea.vmem %s67, 1
        %v3057 = vld [vmem:[%s3056] sm:$0x1]
        %v3058 = vsel %vm1324, %v3053, 0.0
        %3059 = vadd.xlane.f32.xlu0 %v3058
        %v3060 = vpop.xlane.xlu0 %3059
        %v3061 = vmul.f32 %v3060, %v1334
        %v3062 = vsub.f32 %v3053, %v3061
        %v3063 = vmul.f32 %v3062, %v3062
        %v3064 = vsel %vm1324, %v3063, 0.0
        %3065 = vadd.xlane.f32.xlu0 %v3064
        %v3066 = vpop.xlane.xlu0 %3065
        %v3067 = vmul.f32 %v3066, %v1334
        %v3068 = vadd.f32 %v3067, 1e-05
        %v3069 = vrsqrt.pop %v3068
        %v3070 = vmul.f32 %v3069, %v3068
        %v3071 = vmul.f32 %v3070, %v3069
        %v3072 = vmul.f32 0.5, %v3071
        %v3073 = vsub.f32 1.5, %v3072
        %v3074 = vmul.f32 %v3069, %v3073
        %vm3075 = vweird.f32 %v3068
        %vm3076 = vweird.f32 %v3069
        %vm3077 = vmor %vm3075, %vm3076
        %v3078 = vsel %vm3077, %v3069, %v3074
        %v3079 = vmul.f32 %v3062, %v3078
        %v3081 = vperm.slane %v3055, 0
        %v3083 = vmul.f32 %v3079, %v3081
        %v3085 = vperm.slane %v3057, 0
        %v3087 = vadd.f32 %v3083, %v3085
        %s3088 = scalar_lea.vmem %s71, 16
        %v3089 = vld [vmem:[%s3088] sm:$0xf]
        %v3090 = vld [vmem:[%s3088 + $0x4] sm:$0xf]
        %v3091 = vld [vmem:[%s3088 + $0x8] sm:$0xf]
        %v3092 = vld [vmem:[%s3088 + $0xc] sm:$0xf]
        %s3093 = scalar_lea.vmem %s53, 1
        %v3094 = vld [vmem:[%s3093] sm:$0x1]
        %s3095 = scalar_lea.vmem %s73, 32
        %v3096 = vld [vmem:[%s3095] sm:$0xf]
        %v3097 = vld [vmem:[%s3095 + $0x4] sm:$0xf]
        %v3098 = vld [vmem:[%s3095 + $0x8] sm:$0xf]
        %v3099 = vld [vmem:[%s3095 + $0xc] sm:$0xf]
        %v3100 = vld [vmem:[%s3095 + $0x10] sm:$0xf]
        %v3101 = vld [vmem:[%s3095 + $0x14] sm:$0xf]
        %v3102 = vld [vmem:[%s3095 + $0x18] sm:$0xf]
        %v3103 = vld [vmem:[%s3095 + $0x1c] sm:$0xf]
        %s3104 = scalar_lea.vmem %s55, 1
        %v3105 = vld [vmem:[%s3104] sm:$0x1]
        %v3106 = vpack.c.bf16 %v3087, %v3087
        %v3108 = vperm.slane %v3094, 0
        %v3114 = vunpack.c.l.b16 %v3089
        %v3115 = vunpack.c.l.b16 %v3090
        %v3116 = vunpack.c.l.b16 %v3091
        %v3117 = vunpack.c.l.b16 %v3092
        %v3118 = vpack.c.b16 %v3115, %v3114
        %v3119 = vpack.c.b16 %v3117, %v3116
        %v3123 = vsel %vm1324, %v3106, 0
        %3125 = vmatpush.bf16.msra.mxu0 0
        %3126 = vmatpush.bf16.msra.mxu0 0
        %3127 = vmatpush.bf16.msra.mxu0 0
        %3128 = vmatpush.bf16.msra.mxu0 0
        %3129 = vmatpush.bf16.msra.mxu0 0
        %3130 = vmatpush.bf16.msra.mxu0 0
        %3131 = vmatpush.bf16.msra.mxu0 %v3119
        %3132 = vmatpush.bf16.msra.mxu0 %v3118
        %3133 = vmatmul.bf16.gmra.mxu0 %v3123
        %v3134 = vpop.f32.mrf.mxu0
        %v3135 = vadd.f32 %v3108, %v3134
        %v3136 = vpop.f32.mrf.mxu0
        %3137 = vdwg.mxu0
        %v3138 = vmax.f32 %v3135, 0.0
        %v3139 = vpack.c.bf16 %v3138, %v3138
        %v3141 = vperm.slane %v3105, 0
        %v3151 = vunpack.c.l.b16 %v3096
        %v3152 = vunpack.c.l.b16 %v3097
        %v3153 = vunpack.c.l.b16 %v3098
        %v3154 = vunpack.c.l.b16 %v3099
        %v3155 = vunpack.c.l.b16 %v3100
        %v3156 = vunpack.c.l.b16 %v3101
        %v3157 = vunpack.c.l.b16 %v3102
        %v3158 = vunpack.c.l.b16 %v3103
        %v3159 = vpack.c.b16 %v3152, %v3151
        %v3160 = vpack.c.b16 %v3154, %v3153
        %v3161 = vpack.c.b16 %v3156, %v3155
        %v3162 = vpack.c.b16 %v3158, %v3157
        %v3168 = vsel %vm2235, %v3139, 0
        %3170 = vmatpush.bf16.msra.mxu0 0
        %3171 = vmatpush.bf16.msra.mxu0 0
        %3172 = vmatpush.bf16.msra.mxu0 0
        %3173 = vmatpush.bf16.msra.mxu0 0
        %3174 = vmatpush.bf16.msra.mxu0 %v3162
        %3175 = vmatpush.bf16.msra.mxu0 %v3161
        %3176 = vmatpush.bf16.msra.mxu0 %v3160
        %3177 = vmatpush.bf16.msra.mxu0 %v3159
        %3178 = vmatmul.bf16.gmra.mxu0 %v3168
        %v3179 = vpop.f32.mrf.mxu0
        %v3180 = vadd.f32 %v3141, %v3179
        %v3181 = vpop.f32.mrf.mxu0
        %3182 = vdwg.mxu0
        %v3183 = vadd.f32 %v3053, %v3180
        %v3184 = vld [vmem:[%s27] sm:$0x1]
        %v3185 = vld [vmem:[%s25] sm:$0x1]
        %v3186 = vsel %vm1324, %v1309, 0.0
        %3187 = vadd.xlane.f32.xlu0 %v3186
        %v3188 = vpop.xlane.xlu0 %3187
        %v3189 = vmul.f32 %v3188, %v1334
        %v3190 = vsub.f32 %v1309, %v3189
        %v3191 = vmul.f32 %v3190, %v3190
        %v3192 = vsel %vm1324, %v3191, 0.0
        %3193 = vadd.xlane.f32.xlu0 %v3192
        %v3194 = vpop.xlane.xlu0 %3193
        %v3195 = vmul.f32 %v3194, %v1334
        %v3196 = vadd.f32 %v3195, 1e-05
        %v3197 = vrsqrt.pop %v3196
        %v3198 = vmul.f32 %v3197, %v3196
        %v3199 = vmul.f32 %v3198, %v3197
        %v3200 = vmul.f32 0.5, %v3199
        %v3201 = vsub.f32 1.5, %v3200
        %v3202 = vmul.f32 %v3197, %v3201
        %vm3203 = vweird.f32 %v3196
        %vm3204 = vweird.f32 %v3197
        %vm3205 = vmor %vm3203, %vm3204
        %v3206 = vsel %vm3205, %v3197, %v3202
        %v3207 = vmul.f32 %v3190, %v3206
        %v3209 = vperm.slane %v3184, 0
        %v3211 = vmul.f32 %v3207, %v3209
        %v3213 = vperm.slane %v3185, 0
        %v3215 = vadd.f32 %v3211, %v3213
        %v3216 = vld [vmem:[%s47] sm:$0xf]
        %v3217 = vld [vmem:[%s47 + $0x4] sm:$0xf]
        %v3218 = vld [vmem:[%s47 + $0x8] sm:$0xf]
        %v3219 = vld [vmem:[%s47 + $0xc] sm:$0xf]
        %v3220 = vld [vmem:[%s47 + $0x10] sm:$0xf]
        %v3221 = vld [vmem:[%s47 + $0x14] sm:$0xf]
        %v3222 = vld [vmem:[%s47 + $0x18] sm:$0xf]
        %v3223 = vld [vmem:[%s47 + $0x1c] sm:$0xf]
        %v3224 = vld [vmem:[%s47 + $0x20] sm:$0xf]
        %v3225 = vld [vmem:[%s47 + $0x24] sm:$0xf]
        %v3226 = vld [vmem:[%s47 + $0x28] sm:$0xf]
        %v3227 = vld [vmem:[%s47 + $0x2c] sm:$0xf]
        %v3228 = vld [vmem:[%s47 + $0x30] sm:$0xf]
        %v3229 = vld [vmem:[%s47 + $0x34] sm:$0xf]
        %v3230 = vld [vmem:[%s47 + $0x38] sm:$0xf]
        %v3231 = vld [vmem:[%s47 + $0x3c] sm:$0xf]
        %v3232 = vld [vmem:[%s41] sm:$0x1]
        %v3233 = vld [vmem:[%s41 + $0x1] sm:$0x1]
        %v3234 = vld [vmem:[%s41 + $0x2] sm:$0x1]
        %v3235 = vld [vmem:[%s41 + $0x3] sm:$0x1]
        %v3236 = vld [vmem:[%s43] sm:$0xf]
        %v3237 = vld [vmem:[%s43 + $0x4] sm:$0xf]
        %v3238 = vld [vmem:[%s43 + $0x8] sm:$0xf]
        %v3239 = vld [vmem:[%s43 + $0xc] sm:$0xf]
        %v3240 = vld [vmem:[%s43 + $0x10] sm:$0xf]
        %v3241 = vld [vmem:[%s43 + $0x14] sm:$0xf]
        %v3242 = vld [vmem:[%s43 + $0x18] sm:$0xf]
        %v3243 = vld [vmem:[%s43 + $0x1c] sm:$0xf]
        %v3244 = vld [vmem:[%s43 + $0x20] sm:$0xf]
        %v3245 = vld [vmem:[%s43 + $0x24] sm:$0xf]
        %v3246 = vld [vmem:[%s43 + $0x28] sm:$0xf]
        %v3247 = vld [vmem:[%s43 + $0x2c] sm:$0xf]
        %v3248 = vld [vmem:[%s43 + $0x30] sm:$0xf]
        %v3249 = vld [vmem:[%s43 + $0x34] sm:$0xf]
        %v3250 = vld [vmem:[%s43 + $0x38] sm:$0xf]
        %v3251 = vld [vmem:[%s43 + $0x3c] sm:$0xf]
        %v3252 = vld [vmem:[%s43 + $0x40] sm:$0xf]
        %v3253 = vld [vmem:[%s43 + $0x44] sm:$0xf]
        %v3254 = vld [vmem:[%s43 + $0x48] sm:$0xf]
        %v3255 = vld [vmem:[%s43 + $0x4c] sm:$0xf]
        %v3256 = vld [vmem:[%s43 + $0x50] sm:$0xf]
        %v3257 = vld [vmem:[%s43 + $0x54] sm:$0xf]
        %v3258 = vld [vmem:[%s43 + $0x58] sm:$0xf]
        %v3259 = vld [vmem:[%s43 + $0x5c] sm:$0xf]
        %v3260 = vld [vmem:[%s43 + $0x60] sm:$0xf]
        %v3261 = vld [vmem:[%s43 + $0x64] sm:$0xf]
        %v3262 = vld [vmem:[%s43 + $0x68] sm:$0xf]
        %v3263 = vld [vmem:[%s43 + $0x6c] sm:$0xf]
        %v3264 = vld [vmem:[%s43 + $0x70] sm:$0xf]
        %v3265 = vld [vmem:[%s43 + $0x74] sm:$0xf]
        %v3266 = vld [vmem:[%s43 + $0x78] sm:$0xf]
        %v3267 = vld [vmem:[%s43 + $0x7c] sm:$0xf]
        %v3268 = vld [vmem:[%s37] sm:$0x1]
        %v3269 = vld [vmem:[%s37 + $0x1] sm:$0x1]
        %v3270 = vld [vmem:[%s37 + $0x2] sm:$0x1]
        %v3271 = vld [vmem:[%s37 + $0x3] sm:$0x1]
        %v3272 = vld [vmem:[%s37 + $0x4] sm:$0x1]
        %v3273 = vld [vmem:[%s37 + $0x5] sm:$0x1]
        %v3274 = vld [vmem:[%s37 + $0x6] sm:$0x1]
        %v3275 = vld [vmem:[%s37 + $0x7] sm:$0x1]
        %v3276 = vld [vmem:[%s45] sm:$0xf]
        %v3277 = vld [vmem:[%s45 + $0x4] sm:$0xf]
        %v3278 = vld [vmem:[%s45 + $0x8] sm:$0xf]
        %v3279 = vld [vmem:[%s45 + $0xc] sm:$0xf]
        %v3280 = vld [vmem:[%s39] sm:$0x1]
        %v3281 = vpack.c.bf16 %v3215, %v3215
        %v3286 = vperm.slane %v3232, 0
        %v3287 = vperm.slane %v3233, 0
        %v3288 = vperm.slane %v3234, 0
        %v3289 = vperm.slane %v3235, 0
        %v3298 = vunpack.c.l.b16 %v3216
        %v3299 = vunpack.c.l.b16 %v3217
        %v3300 = vunpack.c.l.b16 %v3218
        %v3301 = vunpack.c.l.b16 %v3219
        %v3302 = vpack.c.b16 %v3299, %v3298
        %v3303 = vpack.c.b16 %v3301, %v3300
        %v3307 = vsel %vm1324, %v3281, 0
        %3309 = vmatpush.bf16.msra.mxu0 0
        %3310 = vmatpush.bf16.msra.mxu0 0
        %3311 = vmatpush.bf16.msra.mxu0 0
        %3312 = vmatpush.bf16.msra.mxu0 0
        %3313 = vmatpush.bf16.msra.mxu0 0
        %3314 = vmatpush.bf16.msra.mxu0 0
        %3315 = vmatpush.bf16.msra.mxu0 %v3303
        %3316 = vmatpush.bf16.msra.mxu0 %v3302
        %3317 = vmatmul.bf16.gmra.mxu0 %v3307
        %v3318 = vpop.f32.mrf.mxu0
        %v3319 = vadd.f32 %v3286, %v3318
        %v3320 = vpop.f32.mrf.mxu0
        %3321 = vdwg.mxu0
        %v3326 = vunpack.c.l.b16 %v3220
        %v3327 = vunpack.c.l.b16 %v3221
        %v3328 = vunpack.c.l.b16 %v3222
        %v3329 = vunpack.c.l.b16 %v3223
        %v3330 = vpack.c.b16 %v3327, %v3326
        %v3331 = vpack.c.b16 %v3329, %v3328
        %3334 = vmatpush.bf16.msra.mxu0 0
        %3335 = vmatpush.bf16.msra.mxu0 0
        %3336 = vmatpush.bf16.msra.mxu0 0
        %3337 = vmatpush.bf16.msra.mxu0 0
        %3338 = vmatpush.bf16.msra.mxu0 0
        %3339 = vmatpush.bf16.msra.mxu0 0
        %3340 = vmatpush.bf16.msra.mxu0 %v3331
        %3341 = vmatpush.bf16.msra.mxu0 %v3330
        %3342 = vmatmul.bf16.gmra.mxu0 %v3307
        %v3343 = vpop.f32.mrf.mxu0
        %v3344 = vadd.f32 %v3287, %v3343
        %v3345 = vpop.f32.mrf.mxu0
        %3346 = vdwg.mxu0
        %v3351 = vunpack.c.l.b16 %v3224
        %v3352 = vunpack.c.l.b16 %v3225
        %v3353 = vunpack.c.l.b16 %v3226
        %v3354 = vunpack.c.l.b16 %v3227
        %v3355 = vpack.c.b16 %v3352, %v3351
        %v3356 = vpack.c.b16 %v3354, %v3353
        %3359 = vmatpush.bf16.msra.mxu0 0
        %3360 = vmatpush.bf16.msra.mxu0 0
        %3361 = vmatpush.bf16.msra.mxu0 0
        %3362 = vmatpush.bf16.msra.mxu0 0
        %3363 = vmatpush.bf16.msra.mxu0 0
        %3364 = vmatpush.bf16.msra.mxu0 0
        %3365 = vmatpush.bf16.msra.mxu0 %v3356
        %3366 = vmatpush.bf16.msra.mxu0 %v3355
        %3367 = vmatmul.bf16.gmra.mxu0 %v3307
        %v3368 = vpop.f32.mrf.mxu0
        %v3369 = vadd.f32 %v3288, %v3368
        %v3370 = vpop.f32.mrf.mxu0
        %3371 = vdwg.mxu0
        %v3376 = vunpack.c.l.b16 %v3228
        %v3377 = vunpack.c.l.b16 %v3229
        %v3378 = vunpack.c.l.b16 %v3230
        %v3379 = vunpack.c.l.b16 %v3231
        %v3380 = vpack.c.b16 %v3377, %v3376
        %v3381 = vpack.c.b16 %v3379, %v3378
        %3384 = vmatpush.bf16.msra.mxu0 0
        %3385 = vmatpush.bf16.msra.mxu0 0
        %3386 = vmatpush.bf16.msra.mxu0 0
        %3387 = vmatpush.bf16.msra.mxu0 0
        %3388 = vmatpush.bf16.msra.mxu0 0
        %3389 = vmatpush.bf16.msra.mxu0 0
        %3390 = vmatpush.bf16.msra.mxu0 %v3381
        %3391 = vmatpush.bf16.msra.mxu0 %v3380
        %3392 = vmatmul.bf16.gmra.mxu0 %v3307
        %v3393 = vpop.f32.mrf.mxu0
        %v3394 = vadd.f32 %v3289, %v3393
        %v3395 = vpop.f32.mrf.mxu0
        %3396 = vdwg.mxu0
        %v3405 = vperm.slane %v3268, 0
        %v3406 = vperm.slane %v3269, 0
        %v3407 = vperm.slane %v3270, 0
        %v3408 = vperm.slane %v3271, 0
        %v3409 = vperm.slane %v3272, 0
        %v3410 = vperm.slane %v3273, 0
        %v3411 = vperm.slane %v3274, 0
        %v3412 = vperm.slane %v3275, 0
        %v3425 = vunpack.c.l.b16 %v3236
        %v3426 = vunpack.c.l.b16 %v3237
        %v3427 = vunpack.c.l.b16 %v3238
        %v3428 = vunpack.c.l.b16 %v3239
        %v3429 = vpack.c.b16 %v3426, %v3425
        %v3430 = vpack.c.b16 %v3428, %v3427
        %3433 = vmatpush.bf16.msra.mxu0 0
        %3434 = vmatpush.bf16.msra.mxu0 0
        %3435 = vmatpush.bf16.msra.mxu0 0
        %3436 = vmatpush.bf16.msra.mxu0 0
        %3437 = vmatpush.bf16.msra.mxu0 0
        %3438 = vmatpush.bf16.msra.mxu0 0
        %3439 = vmatpush.bf16.msra.mxu0 %v3430
        %3440 = vmatpush.bf16.msra.mxu0 %v3429
        %3441 = vmatmul.bf16.gmra.mxu0 %v3307
        %v3442 = vpop.f32.mrf.mxu0
        %v3443 = vadd.f32 %v3405, %v3442
        %v3444 = vpop.f32.mrf.mxu0
        %3445 = vdwg.mxu0
        %v3450 = vunpack.c.l.b16 %v3240
        %v3451 = vunpack.c.l.b16 %v3241
        %v3452 = vunpack.c.l.b16 %v3242
        %v3453 = vunpack.c.l.b16 %v3243
        %v3454 = vpack.c.b16 %v3451, %v3450
        %v3455 = vpack.c.b16 %v3453, %v3452
        %3458 = vmatpush.bf16.msra.mxu0 0
        %3459 = vmatpush.bf16.msra.mxu0 0
        %3460 = vmatpush.bf16.msra.mxu0 0
        %3461 = vmatpush.bf16.msra.mxu0 0
        %3462 = vmatpush.bf16.msra.mxu0 0
        %3463 = vmatpush.bf16.msra.mxu0 0
        %3464 = vmatpush.bf16.msra.mxu0 %v3455
        %3465 = vmatpush.bf16.msra.mxu0 %v3454
        %3466 = vmatmul.bf16.gmra.mxu0 %v3307
        %v3467 = vpop.f32.mrf.mxu0
        %v3468 = vadd.f32 %v3406, %v3467
        %v3469 = vpop.f32.mrf.mxu0
        %3470 = vdwg.mxu0
        %v3475 = vunpack.c.l.b16 %v3244
        %v3476 = vunpack.c.l.b16 %v3245
        %v3477 = vunpack.c.l.b16 %v3246
        %v3478 = vunpack.c.l.b16 %v3247
        %v3479 = vpack.c.b16 %v3476, %v3475
        %v3480 = vpack.c.b16 %v3478, %v3477
        %3483 = vmatpush.bf16.msra.mxu0 0
        %3484 = vmatpush.bf16.msra.mxu0 0
        %3485 = vmatpush.bf16.msra.mxu0 0
        %3486 = vmatpush.bf16.msra.mxu0 0
        %3487 = vmatpush.bf16.msra.mxu0 0
        %3488 = vmatpush.bf16.msra.mxu0 0
        %3489 = vmatpush.bf16.msra.mxu0 %v3480
        %3490 = vmatpush.bf16.msra.mxu0 %v3479
        %3491 = vmatmul.bf16.gmra.mxu0 %v3307
        %v3492 = vpop.f32.mrf.mxu0
        %v3493 = vadd.f32 %v3407, %v3492
        %v3494 = vpop.f32.mrf.mxu0
        %3495 = vdwg.mxu0
        %v3500 = vunpack.c.l.b16 %v3248
        %v3501 = vunpack.c.l.b16 %v3249
        %v3502 = vunpack.c.l.b16 %v3250
        %v3503 = vunpack.c.l.b16 %v3251
        %v3504 = vpack.c.b16 %v3501, %v3500
        %v3505 = vpack.c.b16 %v3503, %v3502
        %3508 = vmatpush.bf16.msra.mxu0 0
        %3509 = vmatpush.bf16.msra.mxu0 0
        %3510 = vmatpush.bf16.msra.mxu0 0
        %3511 = vmatpush.bf16.msra.mxu0 0
        %3512 = vmatpush.bf16.msra.mxu0 0
        %3513 = vmatpush.bf16.msra.mxu0 0
        %3514 = vmatpush.bf16.msra.mxu0 %v3505
        %3515 = vmatpush.bf16.msra.mxu0 %v3504
        %3516 = vmatmul.bf16.gmra.mxu0 %v3307
        %v3517 = vpop.f32.mrf.mxu0
        %v3518 = vadd.f32 %v3408, %v3517
        %v3519 = vpop.f32.mrf.mxu0
        %3520 = vdwg.mxu0
        %v3525 = vunpack.c.l.b16 %v3252
        %v3526 = vunpack.c.l.b16 %v3253
        %v3527 = vunpack.c.l.b16 %v3254
        %v3528 = vunpack.c.l.b16 %v3255
        %v3529 = vpack.c.b16 %v3526, %v3525
        %v3530 = vpack.c.b16 %v3528, %v3527
        %3533 = vmatpush.bf16.msra.mxu0 0
        %3534 = vmatpush.bf16.msra.mxu0 0
        %3535 = vmatpush.bf16.msra.mxu0 0
        %3536 = vmatpush.bf16.msra.mxu0 0
        %3537 = vmatpush.bf16.msra.mxu0 0
        %3538 = vmatpush.bf16.msra.mxu0 0
        %3539 = vmatpush.bf16.msra.mxu0 %v3530
        %3540 = vmatpush.bf16.msra.mxu0 %v3529
        %3541 = vmatmul.bf16.gmra.mxu0 %v3307
        %v3542 = vpop.f32.mrf.mxu0
        %v3543 = vadd.f32 %v3409, %v3542
        %v3544 = vpop.f32.mrf.mxu0
        %3545 = vdwg.mxu0
        %v3550 = vunpack.c.l.b16 %v3256
        %v3551 = vunpack.c.l.b16 %v3257
        %v3552 = vunpack.c.l.b16 %v3258
        %v3553 = vunpack.c.l.b16 %v3259
        %v3554 = vpack.c.b16 %v3551, %v3550
        %v3555 = vpack.c.b16 %v3553, %v3552
        %3558 = vmatpush.bf16.msra.mxu0 0
        %3559 = vmatpush.bf16.msra.mxu0 0
        %3560 = vmatpush.bf16.msra.mxu0 0
        %3561 = vmatpush.bf16.msra.mxu0 0
        %3562 = vmatpush.bf16.msra.mxu0 0
        %3563 = vmatpush.bf16.msra.mxu0 0
        %3564 = vmatpush.bf16.msra.mxu0 %v3555
        %3565 = vmatpush.bf16.msra.mxu0 %v3554
        %3566 = vmatmul.bf16.gmra.mxu0 %v3307
        %v3567 = vpop.f32.mrf.mxu0
        %v3568 = vadd.f32 %v3410, %v3567
        %v3569 = vpop.f32.mrf.mxu0
        %3570 = vdwg.mxu0
        %v3575 = vunpack.c.l.b16 %v3260
        %v3576 = vunpack.c.l.b16 %v3261
        %v3577 = vunpack.c.l.b16 %v3262
        %v3578 = vunpack.c.l.b16 %v3263
        %v3579 = vpack.c.b16 %v3576, %v3575
        %v3580 = vpack.c.b16 %v3578, %v3577
        %3583 = vmatpush.bf16.msra.mxu0 0
        %3584 = vmatpush.bf16.msra.mxu0 0
        %3585 = vmatpush.bf16.msra.mxu0 0
        %3586 = vmatpush.bf16.msra.mxu0 0
        %3587 = vmatpush.bf16.msra.mxu0 0
        %3588 = vmatpush.bf16.msra.mxu0 0
        %3589 = vmatpush.bf16.msra.mxu0 %v3580
        %3590 = vmatpush.bf16.msra.mxu0 %v3579
        %3591 = vmatmul.bf16.gmra.mxu0 %v3307
        %v3592 = vpop.f32.mrf.mxu0
        %v3593 = vadd.f32 %v3411, %v3592
        %v3594 = vpop.f32.mrf.mxu0
        %3595 = vdwg.mxu0
        %v3600 = vunpack.c.l.b16 %v3264
        %v3601 = vunpack.c.l.b16 %v3265
        %v3602 = vunpack.c.l.b16 %v3266
        %v3603 = vunpack.c.l.b16 %v3267
        %v3604 = vpack.c.b16 %v3601, %v3600
        %v3605 = vpack.c.b16 %v3603, %v3602
        %3608 = vmatpush.bf16.msra.mxu0 0
        %3609 = vmatpush.bf16.msra.mxu0 0
        %3610 = vmatpush.bf16.msra.mxu0 0
        %3611 = vmatpush.bf16.msra.mxu0 0
        %3612 = vmatpush.bf16.msra.mxu0 0
        %3613 = vmatpush.bf16.msra.mxu0 0
        %3614 = vmatpush.bf16.msra.mxu0 %v3605
        %3615 = vmatpush.bf16.msra.mxu0 %v3604
        %3616 = vmatmul.bf16.gmra.mxu0 %v3307
        %v3617 = vpop.f32.mrf.mxu0
        %v3618 = vadd.f32 %v3412, %v3617
        %v3619 = vpop.f32.mrf.mxu0
        %3620 = vdwg.mxu0
        %v3621 = vpack.c.bf16 %v3319, %v3319
        %v3622 = vpack.c.bf16 %v3344, %v3344
        %v3623 = vpack.c.bf16 %v3369, %v3369
        %v3624 = vpack.c.bf16 %v3394, %v3394
        %v3625 = vpack.c.bf16 %v3443, %v3443
        %v3626 = vpack.c.bf16 %v3468, %v3468
        %v3627 = vpack.c.bf16 %v3493, %v3493
        %v3628 = vpack.c.bf16 %v3518, %v3518
        %v3630 = vsel %vm1778, %v3621, 0
        %v3633 = vsel %vm1778, %v3625, 0
        %3635 = vmatpush.bf16.xpose.msra.mxu0 0
        %3636 = vmatpush.bf16.xpose.msra.mxu0 0
        %3637 = vmatpush.bf16.xpose.msra.mxu0 0
        %3638 = vmatpush.bf16.xpose.msra.mxu0 0
        %3639 = vmatpush.bf16.xpose.msra.mxu0 0
        %3640 = vmatpush.bf16.xpose.msra.mxu0 0
        %3641 = vmatpush.bf16.xpose.msra.mxu0 0
        %3642 = vmatpush.bf16.xpose.msra.mxu0 %v3633
        %3643 = vmatmul.bf16.gmra.mxu0 %v3630
        %v3644 = vpop.f32.mrf.mxu0
        %v3645 = vadd.f32 %v1321, %v3644
        %v3646 = vpop.f32.mrf.mxu0
        %3647 = vdwg.mxu0
        %v3649 = vsel %vm1778, %v3622, 0
        %v3652 = vsel %vm1778, %v3626, 0
        %3654 = vmatpush.bf16.xpose.msra.mxu0 0
        %3655 = vmatpush.bf16.xpose.msra.mxu0 0
        %3656 = vmatpush.bf16.xpose.msra.mxu0 0
        %3657 = vmatpush.bf16.xpose.msra.mxu0 0
        %3658 = vmatpush.bf16.xpose.msra.mxu0 0
        %3659 = vmatpush.bf16.xpose.msra.mxu0 0
        %3660 = vmatpush.bf16.xpose.msra.mxu0 0
        %3661 = vmatpush.bf16.xpose.msra.mxu0 %v3652
        %3662 = vmatmul.bf16.gmra.mxu0 %v3649
        %v3663 = vpop.f32.mrf.mxu0
        %v3664 = vadd.f32 %v1321, %v3663
        %v3665 = vpop.f32.mrf.mxu0
        %3666 = vdwg.mxu0
        %v3668 = vsel %vm1778, %v3623, 0
        %v3671 = vsel %vm1778, %v3627, 0
        %3673 = vmatpush.bf16.xpose.msra.mxu0 0
        %3674 = vmatpush.bf16.xpose.msra.mxu0 0
        %3675 = vmatpush.bf16.xpose.msra.mxu0 0
        %3676 = vmatpush.bf16.xpose.msra.mxu0 0
        %3677 = vmatpush.bf16.xpose.msra.mxu0 0
        %3678 = vmatpush.bf16.xpose.msra.mxu0 0
        %3679 = vmatpush.bf16.xpose.msra.mxu0 0
        %3680 = vmatpush.bf16.xpose.msra.mxu0 %v3671
        %3681 = vmatmul.bf16.gmra.mxu0 %v3668
        %v3682 = vpop.f32.mrf.mxu0
        %v3683 = vadd.f32 %v1321, %v3682
        %v3684 = vpop.f32.mrf.mxu0
        %3685 = vdwg.mxu0
        %v3687 = vsel %vm1778, %v3624, 0
        %v3690 = vsel %vm1778, %v3628, 0
        %3692 = vmatpush.bf16.xpose.msra.mxu0 0
        %3693 = vmatpush.bf16.xpose.msra.mxu0 0
        %3694 = vmatpush.bf16.xpose.msra.mxu0 0
        %3695 = vmatpush.bf16.xpose.msra.mxu0 0
        %3696 = vmatpush.bf16.xpose.msra.mxu0 0
        %3697 = vmatpush.bf16.xpose.msra.mxu0 0
        %3698 = vmatpush.bf16.xpose.msra.mxu0 0
        %3699 = vmatpush.bf16.xpose.msra.mxu0 %v3690
        %3700 = vmatmul.bf16.gmra.mxu0 %v3687
        %v3701 = vpop.f32.mrf.mxu0
        %v3702 = vadd.f32 %v1321, %v3701
        %v3703 = vpop.f32.mrf.mxu0
        %3704 = vdwg.mxu0
        %v3705 = vsel %vm1778, %v3645, -inf
        %3706 = vmax.xlane.f32.xlu0 %v3705
        %v3707 = vpop.xlane.xlu0 %3706
        %v3708 = vsel %vm1778, %v3664, -inf
        %3709 = vmax.xlane.f32.xlu0 %v3708
        %v3710 = vpop.xlane.xlu0 %3709
        %v3711 = vsel %vm1778, %v3683, -inf
        %3712 = vmax.xlane.f32.xlu0 %v3711
        %v3713 = vpop.xlane.xlu0 %3712
        %v3714 = vsel %vm1778, %v3702, -inf
        %3715 = vmax.xlane.f32.xlu0 %v3714
        %v3716 = vpop.xlane.xlu0 %3715
        %v3717 = vsub.f32 %v3645, %v3707
        %v3718 = vsub.f32 %v3664, %v3710
        %v3719 = vsub.f32 %v3683, %v3713
        %v3720 = vsub.f32 %v3702, %v3716
        %v3721 = vmul.f32 %v3717, 1.442695
        %v3722 = vpow.pop %v3721
        %v3723 = vmul.f32 %v3718, 1.442695
        %v3724 = vpow.pop %v3723
        %v3725 = vmul.f32 %v3719, 1.442695
        %v3726 = vpow.pop %v3725
        %v3727 = vmul.f32 %v3720, 1.442695
        %v3728 = vpow.pop %v3727
        %v3729 = vsel %vm1778, %v3722, 0.0
        %3730 = vadd.xlane.f32.xlu0 %v3729
        %v3731 = vpop.xlane.xlu0 %3730
        %v3732 = vsel %vm1778, %v3724, 0.0
        %3733 = vadd.xlane.f32.xlu0 %v3732
        %v3734 = vpop.xlane.xlu0 %3733
        %v3735 = vsel %vm1778, %v3726, 0.0
        %3736 = vadd.xlane.f32.xlu0 %v3735
        %v3737 = vpop.xlane.xlu0 %3736
        %v3738 = vsel %vm1778, %v3728, 0.0
        %3739 = vadd.xlane.f32.xlu0 %v3738
        %v3740 = vpop.xlane.xlu0 %3739
        %v3741 = vrcp.pop %v3731
        %v3742 = vmul.f32 %v3731, %v3741
        %v3743 = vsub.f32 1.0, %v3742
        %v3744 = vmul.f32 %v3741, %v3743
        %v3745 = vadd.f32 %v3741, %v3744
        %vm3746 = vweird.f32 %v3731
        %vm3747 = vweird.f32 %v3741
        %vm3748 = vmor %vm3746, %vm3747
        %v3749 = vsel %vm3748, %v3741, %v3745
        %v3750 = vand.u32 2147483647, %v3731
        %vm3751 = vcmp.eq.f32.partialorder %v3750, 8.507059e+37
        %v3752 = vand.u32 %v3731, 2147483648
        %v3753 = vor.u32 1.1754944e-38, %v3752
        %v3754 = vsel %vm3751, %v3753, %v3749
        %v3755 = vmul.f32 %v3722, %v3754
        %v3756 = vrcp.pop %v3734
        %v3757 = vmul.f32 %v3734, %v3756
        %v3758 = vsub.f32 1.0, %v3757
        %v3759 = vmul.f32 %v3756, %v3758
        %v3760 = vadd.f32 %v3756, %v3759
        %vm3761 = vweird.f32 %v3734
        %vm3762 = vweird.f32 %v3756
        %vm3763 = vmor %vm3761, %vm3762
        %v3764 = vsel %vm3763, %v3756, %v3760
        %v3765 = vand.u32 2147483647, %v3734
        %vm3766 = vcmp.eq.f32.partialorder %v3765, 8.507059e+37
        %v3767 = vand.u32 %v3734, 2147483648
        %v3768 = vor.u32 1.1754944e-38, %v3767
        %v3769 = vsel %vm3766, %v3768, %v3764
        %v3770 = vmul.f32 %v3724, %v3769
        %v3771 = vrcp.pop %v3737
        %v3772 = vmul.f32 %v3737, %v3771
        %v3773 = vsub.f32 1.0, %v3772
        %v3774 = vmul.f32 %v3771, %v3773
        %v3775 = vadd.f32 %v3771, %v3774
        %vm3776 = vweird.f32 %v3737
        %vm3777 = vweird.f32 %v3771
        %vm3778 = vmor %vm3776, %vm3777
        %v3779 = vsel %vm3778, %v3771, %v3775
        %v3780 = vand.u32 2147483647, %v3737
        %vm3781 = vcmp.eq.f32.partialorder %v3780, 8.507059e+37
        %v3782 = vand.u32 %v3737, 2147483648
        %v3783 = vor.u32 1.1754944e-38, %v3782
        %v3784 = vsel %vm3781, %v3783, %v3779
        %v3785 = vmul.f32 %v3726, %v3784
        %v3786 = vrcp.pop %v3740
        %v3787 = vmul.f32 %v3740, %v3786
        %v3788 = vsub.f32 1.0, %v3787
        %v3789 = vmul.f32 %v3786, %v3788
        %v3790 = vadd.f32 %v3786, %v3789
        %vm3791 = vweird.f32 %v3740
        %vm3792 = vweird.f32 %v3786
        %vm3793 = vmor %vm3791, %vm3792
        %v3794 = vsel %vm3793, %v3786, %v3790
        %v3795 = vand.u32 2147483647, %v3740
        %vm3796 = vcmp.eq.f32.partialorder %v3795, 8.507059e+37
        %v3797 = vand.u32 %v3740, 2147483648
        %v3798 = vor.u32 1.1754944e-38, %v3797
        %v3799 = vsel %vm3796, %v3798, %v3794
        %v3800 = vmul.f32 %v3728, %v3799
        %v3801 = vpack.c.bf16 %v3755, %v3755
        %v3802 = vpack.c.bf16 %v3770, %v3770
        %v3803 = vpack.c.bf16 %v3785, %v3785
        %v3804 = vpack.c.bf16 %v3800, %v3800
        %v3805 = vpack.c.bf16 %v3543, %v3543
        %v3806 = vpack.c.bf16 %v3568, %v3568
        %v3807 = vpack.c.bf16 %v3593, %v3593
        %v3808 = vpack.c.bf16 %v3618, %v3618
        %v3810 = vsel %vm1778, %v3801, 0
        %v3813 = vsel %vm1962, %v3805, 0
        %3815 = vmatpush.bf16.msra.mxu0 0
        %3816 = vmatpush.bf16.msra.mxu0 0
        %3817 = vmatpush.bf16.msra.mxu0 0
        %3818 = vmatpush.bf16.msra.mxu0 0
        %3819 = vmatpush.bf16.msra.mxu0 0
        %3820 = vmatpush.bf16.msra.mxu0 0
        %3821 = vmatpush.bf16.msra.mxu0 0
        %3822 = vmatpush.bf16.msra.mxu0 %v3813
        %3823 = vmatmul.bf16.gmra.mxu0 %v3810
        %v3824 = vpop.f32.mrf.mxu0
        %v3825 = vadd.f32 0.0, %v3824
        %v3826 = vpop.f32.mrf.mxu0
        %3827 = vdwg.mxu0
        %v3829 = vsel %vm1778, %v3802, 0
        %v3832 = vsel %vm1962, %v3806, 0
        %3834 = vmatpush.bf16.msra.mxu0 0
        %3835 = vmatpush.bf16.msra.mxu0 0
        %3836 = vmatpush.bf16.msra.mxu0 0
        %3837 = vmatpush.bf16.msra.mxu0 0
        %3838 = vmatpush.bf16.msra.mxu0 0
        %3839 = vmatpush.bf16.msra.mxu0 0
        %3840 = vmatpush.bf16.msra.mxu0 0
        %3841 = vmatpush.bf16.msra.mxu0 %v3832
        %3842 = vmatmul.bf16.gmra.mxu0 %v3829
        %v3843 = vpop.f32.mrf.mxu0
        %v3844 = vadd.f32 0.0, %v3843
        %v3845 = vpop.f32.mrf.mxu0
        %3846 = vdwg.mxu0
        %v3848 = vsel %vm1778, %v3803, 0
        %v3851 = vsel %vm1962, %v3807, 0
        %3853 = vmatpush.bf16.msra.mxu0 0
        %3854 = vmatpush.bf16.msra.mxu0 0
        %3855 = vmatpush.bf16.msra.mxu0 0
        %3856 = vmatpush.bf16.msra.mxu0 0
        %3857 = vmatpush.bf16.msra.mxu0 0
        %3858 = vmatpush.bf16.msra.mxu0 0
        %3859 = vmatpush.bf16.msra.mxu0 0
        %3860 = vmatpush.bf16.msra.mxu0 %v3851
        %3861 = vmatmul.bf16.gmra.mxu0 %v3848
        %v3862 = vpop.f32.mrf.mxu0
        %v3863 = vadd.f32 0.0, %v3862
        %v3864 = vpop.f32.mrf.mxu0
        %3865 = vdwg.mxu0
        %v3867 = vsel %vm1778, %v3804, 0
        %v3870 = vsel %vm1962, %v3808, 0
        %3872 = vmatpush.bf16.msra.mxu0 0
        %3873 = vmatpush.bf16.msra.mxu0 0
        %3874 = vmatpush.bf16.msra.mxu0 0
        %3875 = vmatpush.bf16.msra.mxu0 0
        %3876 = vmatpush.bf16.msra.mxu0 0
        %3877 = vmatpush.bf16.msra.mxu0 0
        %3878 = vmatpush.bf16.msra.mxu0 0
        %3879 = vmatpush.bf16.msra.mxu0 %v3870
        %3880 = vmatmul.bf16.gmra.mxu0 %v3867
        %v3881 = vpop.f32.mrf.mxu0
        %v3882 = vadd.f32 0.0, %v3881
        %v3883 = vpop.f32.mrf.mxu0
        %3884 = vdwg.mxu0
        %v3885 = vpack.c.bf16 %v3825, %v3825
        %v3886 = vpack.c.bf16 %v3844, %v3844
        %v3887 = vpack.c.bf16 %v3863, %v3863
        %v3888 = vpack.c.bf16 %v3882, %v3882
        %v3890 = vsel %vm1778, %v3885, 0
        %v3893 = vsel %vm1962, %v3276, 0
        %3895 = vmatpush.bf16.msra.mxu0 0
        %3896 = vmatpush.bf16.msra.mxu0 0
        %3897 = vmatpush.bf16.msra.mxu0 0
        %3898 = vmatpush.bf16.msra.mxu0 0
        %3899 = vmatpush.bf16.msra.mxu0 0
        %3900 = vmatpush.bf16.msra.mxu0 0
        %3901 = vmatpush.bf16.msra.mxu0 0
        %3902 = vmatpush.bf16.msra.mxu0 %v3893
        %3903 = vmatmul.bf16.gmra.mxu0 %v3890
        %v3904 = vpop.f32.mrf.mxu0
        %v3905 = vadd.f32 0.0, %v3904
        %v3906 = vpop.f32.mrf.mxu0
        %3907 = vdwg.mxu0
        %v3909 = vsel %vm1778, %v3886, 0
        %v3912 = vsel %vm1962, %v3277, 0
        %3914 = vmatpush.bf16.msra.mxu0 0
        %3915 = vmatpush.bf16.msra.mxu0 0
        %3916 = vmatpush.bf16.msra.mxu0 0
        %3917 = vmatpush.bf16.msra.mxu0 0
        %3918 = vmatpush.bf16.msra.mxu0 0
        %3919 = vmatpush.bf16.msra.mxu0 0
        %3920 = vmatpush.bf16.msra.mxu0 0
        %3921 = vmatpush.bf16.msra.mxu0 %v3912
        %3922 = vmatmul.bf16.gmra.mxu0 %v3909
        %v3923 = vpop.f32.mrf.mxu0
        %v3924 = vadd.f32 0.0, %v3923
        %v3925 = vpop.f32.mrf.mxu0
        %3926 = vdwg.mxu0
        %v3928 = vsel %vm1778, %v3887, 0
        %v3931 = vsel %vm1962, %v3278, 0
        %3933 = vmatpush.bf16.msra.mxu0 0
        %3934 = vmatpush.bf16.msra.mxu0 0
        %3935 = vmatpush.bf16.msra.mxu0 0
        %3936 = vmatpush.bf16.msra.mxu0 0
        %3937 = vmatpush.bf16.msra.mxu0 0
        %3938 = vmatpush.bf16.msra.mxu0 0
        %3939 = vmatpush.bf16.msra.mxu0 0
        %3940 = vmatpush.bf16.msra.mxu0 %v3931
        %3941 = vmatmul.bf16.gmra.mxu0 %v3928
        %v3942 = vpop.f32.mrf.mxu0
        %v3943 = vadd.f32 0.0, %v3942
        %v3944 = vpop.f32.mrf.mxu0
        %3945 = vdwg.mxu0
        %v3947 = vsel %vm1778, %v3888, 0
        %v3950 = vsel %vm1962, %v3279, 0
        %3952 = vmatpush.bf16.msra.mxu0 0
        %3953 = vmatpush.bf16.msra.mxu0 0
        %3954 = vmatpush.bf16.msra.mxu0 0
        %3955 = vmatpush.bf16.msra.mxu0 0
        %3956 = vmatpush.bf16.msra.mxu0 0
        %3957 = vmatpush.bf16.msra.mxu0 0
        %3958 = vmatpush.bf16.msra.mxu0 0
        %3959 = vmatpush.bf16.msra.mxu0 %v3950
        %3960 = vmatmul.bf16.gmra.mxu0 %v3947
        %v3961 = vpop.f32.mrf.mxu0
        %v3962 = vadd.f32 0.0, %v3961
        %v3963 = vpop.f32.mrf.mxu0
        %3964 = vdwg.mxu0
        %v3965 = vsel %vm1324, %v3905, 0.0
        %v3966 = vsel %vm1324, %v3924, 0.0
        %v3967 = vadd.f32 %v3965, %v3966
        %v3968 = vsel %vm1324, %v3943, 0.0
        %v3969 = vadd.f32 %v3967, %v3968
        %v3970 = vsel %vm1324, %v3962, 0.0
        %v3971 = vadd.f32 %v3969, %v3970
        %v3973 = vperm.slane %v3280, 0
        %v3975 = vadd.f32 %v3971, %v3973
        %v3976 = vadd.f32 %v1309, %v3975
        %v3977 = vld [vmem:[%s31] sm:$0x1]
        %v3978 = vld [vmem:[%s29] sm:$0x1]
        %v3979 = vsel %vm1324, %v3976, 0.0
        %3980 = vadd.xlane.f32.xlu0 %v3979
        %v3981 = vpop.xlane.xlu0 %3980
        %v3982 = vmul.f32 %v3981, %v1334
        %v3983 = vsub.f32 %v3976, %v3982
        %v3984 = vmul.f32 %v3983, %v3983
        %v3985 = vsel %vm1324, %v3984, 0.0
        %3986 = vadd.xlane.f32.xlu0 %v3985
        %v3987 = vpop.xlane.xlu0 %3986
        %v3988 = vmul.f32 %v3987, %v1334
        %v3989 = vadd.f32 %v3988, 1e-05
        %v3990 = vrsqrt.pop %v3989
        %v3991 = vmul.f32 %v3990, %v3989
        %v3992 = vmul.f32 %v3991, %v3990
        %v3993 = vmul.f32 0.5, %v3992
        %v3994 = vsub.f32 1.5, %v3993
        %v3995 = vmul.f32 %v3990, %v3994
        %vm3996 = vweird.f32 %v3989
        %vm3997 = vweird.f32 %v3990
        %vm3998 = vmor %vm3996, %vm3997
        %v3999 = vsel %vm3998, %v3990, %v3995
        %v4000 = vmul.f32 %v3983, %v3999
        %v4002 = vperm.slane %v3977, 0
        %v4004 = vmul.f32 %v4000, %v4002
        %v4006 = vperm.slane %v3978, 0
        %v4008 = vadd.f32 %v4004, %v4006
        %v4009 = vld [vmem:[%s23] sm:$0xf]
        %v4010 = vld [vmem:[%s23 + $0x4] sm:$0xf]
        %v4011 = vld [vmem:[%s23 + $0x8] sm:$0xf]
        %v4012 = vld [vmem:[%s23 + $0xc] sm:$0xf]
        %v4013 = vld [vmem:[%s23 + $0x10] sm:$0xf]
        %v4014 = vld [vmem:[%s23 + $0x14] sm:$0xf]
        %v4015 = vld [vmem:[%s23 + $0x18] sm:$0xf]
        %v4016 = vld [vmem:[%s23 + $0x1c] sm:$0xf]
        %v4017 = vld [vmem:[%s23 + $0x20] sm:$0xf]
        %v4018 = vld [vmem:[%s23 + $0x24] sm:$0xf]
        %v4019 = vld [vmem:[%s23 + $0x28] sm:$0xf]
        %v4020 = vld [vmem:[%s23 + $0x2c] sm:$0xf]
        %v4021 = vld [vmem:[%s23 + $0x30] sm:$0xf]
        %v4022 = vld [vmem:[%s23 + $0x34] sm:$0xf]
        %v4023 = vld [vmem:[%s23 + $0x38] sm:$0xf]
        %v4024 = vld [vmem:[%s23 + $0x3c] sm:$0xf]
        %v4025 = vld [vmem:[%s17] sm:$0x1]
        %v4026 = vld [vmem:[%s17 + $0x1] sm:$0x1]
        %v4027 = vld [vmem:[%s17 + $0x2] sm:$0x1]
        %v4028 = vld [vmem:[%s17 + $0x3] sm:$0x1]
        %v4029 = vld [vmem:[%s19] sm:$0xf]
        %v4030 = vld [vmem:[%s19 + $0x4] sm:$0xf]
        %v4031 = vld [vmem:[%s19 + $0x8] sm:$0xf]
        %v4032 = vld [vmem:[%s19 + $0xc] sm:$0xf]
        %v4033 = vld [vmem:[%s19 + $0x10] sm:$0xf]
        %v4034 = vld [vmem:[%s19 + $0x14] sm:$0xf]
        %v4035 = vld [vmem:[%s19 + $0x18] sm:$0xf]
        %v4036 = vld [vmem:[%s19 + $0x1c] sm:$0xf]
        %v4037 = vld [vmem:[%s19 + $0x20] sm:$0xf]
        %v4038 = vld [vmem:[%s19 + $0x24] sm:$0xf]
        %v4039 = vld [vmem:[%s19 + $0x28] sm:$0xf]
        %v4040 = vld [vmem:[%s19 + $0x2c] sm:$0xf]
        %v4041 = vld [vmem:[%s19 + $0x30] sm:$0xf]
        %v4042 = vld [vmem:[%s19 + $0x34] sm:$0xf]
        %v4043 = vld [vmem:[%s19 + $0x38] sm:$0xf]
        %v4044 = vld [vmem:[%s19 + $0x3c] sm:$0xf]
        %v4045 = vld [vmem:[%s19 + $0x40] sm:$0xf]
        %v4046 = vld [vmem:[%s19 + $0x44] sm:$0xf]
        %v4047 = vld [vmem:[%s19 + $0x48] sm:$0xf]
        %v4048 = vld [vmem:[%s19 + $0x4c] sm:$0xf]
        %v4049 = vld [vmem:[%s19 + $0x50] sm:$0xf]
        %v4050 = vld [vmem:[%s19 + $0x54] sm:$0xf]
        %v4051 = vld [vmem:[%s19 + $0x58] sm:$0xf]
        %v4052 = vld [vmem:[%s19 + $0x5c] sm:$0xf]
        %v4053 = vld [vmem:[%s19 + $0x60] sm:$0xf]
        %v4054 = vld [vmem:[%s19 + $0x64] sm:$0xf]
        %v4055 = vld [vmem:[%s19 + $0x68] sm:$0xf]
        %v4056 = vld [vmem:[%s19 + $0x6c] sm:$0xf]
        %v4057 = vld [vmem:[%s19 + $0x70] sm:$0xf]
        %v4058 = vld [vmem:[%s19 + $0x74] sm:$0xf]
        %v4059 = vld [vmem:[%s19 + $0x78] sm:$0xf]
        %v4060 = vld [vmem:[%s19 + $0x7c] sm:$0xf]
        %v4061 = vld [vmem:[%s13] sm:$0x1]
        %v4062 = vld [vmem:[%s13 + $0x1] sm:$0x1]
        %v4063 = vld [vmem:[%s13 + $0x2] sm:$0x1]
        %v4064 = vld [vmem:[%s13 + $0x3] sm:$0x1]
        %v4065 = vld [vmem:[%s13 + $0x4] sm:$0x1]
        %v4066 = vld [vmem:[%s13 + $0x5] sm:$0x1]
        %v4067 = vld [vmem:[%s13 + $0x6] sm:$0x1]
        %v4068 = vld [vmem:[%s13 + $0x7] sm:$0x1]
        %v4069 = vld [vmem:[%s21] sm:$0xf]
        %v4070 = vld [vmem:[%s21 + $0x4] sm:$0xf]
        %v4071 = vld [vmem:[%s21 + $0x8] sm:$0xf]
        %v4072 = vld [vmem:[%s21 + $0xc] sm:$0xf]
        %v4073 = vld [vmem:[%s15] sm:$0x1]
        %v4074 = vpack.c.bf16 %v4008, %v4008
        %v4075 = vpack.c.bf16 %v3183, %v3183
        %v4080 = vperm.slane %v4025, 0
        %v4081 = vperm.slane %v4026, 0
        %v4082 = vperm.slane %v4027, 0
        %v4083 = vperm.slane %v4028, 0
        %v4092 = vunpack.c.l.b16 %v4009
        %v4093 = vunpack.c.l.b16 %v4010
        %v4094 = vunpack.c.l.b16 %v4011
        %v4095 = vunpack.c.l.b16 %v4012
        %v4096 = vpack.c.b16 %v4093, %v4092
        %v4097 = vpack.c.b16 %v4095, %v4094
        %v4101 = vsel %vm1324, %v4074, 0
        %4103 = vmatpush.bf16.msra.mxu0 0
        %4104 = vmatpush.bf16.msra.mxu0 0
        %4105 = vmatpush.bf16.msra.mxu0 0
        %4106 = vmatpush.bf16.msra.mxu0 0
        %4107 = vmatpush.bf16.msra.mxu0 0
        %4108 = vmatpush.bf16.msra.mxu0 0
        %4109 = vmatpush.bf16.msra.mxu0 %v4097
        %4110 = vmatpush.bf16.msra.mxu0 %v4096
        %4111 = vmatmul.bf16.gmra.mxu0 %v4101
        %v4112 = vpop.f32.mrf.mxu0
        %v4113 = vadd.f32 %v4080, %v4112
        %v4114 = vpop.f32.mrf.mxu0
        %4115 = vdwg.mxu0
        %v4120 = vunpack.c.l.b16 %v4013
        %v4121 = vunpack.c.l.b16 %v4014
        %v4122 = vunpack.c.l.b16 %v4015
        %v4123 = vunpack.c.l.b16 %v4016
        %v4124 = vpack.c.b16 %v4121, %v4120
        %v4125 = vpack.c.b16 %v4123, %v4122
        %4128 = vmatpush.bf16.msra.mxu0 0
        %4129 = vmatpush.bf16.msra.mxu0 0
        %4130 = vmatpush.bf16.msra.mxu0 0
        %4131 = vmatpush.bf16.msra.mxu0 0
        %4132 = vmatpush.bf16.msra.mxu0 0
        %4133 = vmatpush.bf16.msra.mxu0 0
        %4134 = vmatpush.bf16.msra.mxu0 %v4125
        %4135 = vmatpush.bf16.msra.mxu0 %v4124
        %4136 = vmatmul.bf16.gmra.mxu0 %v4101
        %v4137 = vpop.f32.mrf.mxu0
        %v4138 = vadd.f32 %v4081, %v4137
        %v4139 = vpop.f32.mrf.mxu0
        %4140 = vdwg.mxu0
        %v4145 = vunpack.c.l.b16 %v4017
        %v4146 = vunpack.c.l.b16 %v4018
        %v4147 = vunpack.c.l.b16 %v4019
        %v4148 = vunpack.c.l.b16 %v4020
        %v4149 = vpack.c.b16 %v4146, %v4145
        %v4150 = vpack.c.b16 %v4148, %v4147
        %4153 = vmatpush.bf16.msra.mxu0 0
        %4154 = vmatpush.bf16.msra.mxu0 0
        %4155 = vmatpush.bf16.msra.mxu0 0
        %4156 = vmatpush.bf16.msra.mxu0 0
        %4157 = vmatpush.bf16.msra.mxu0 0
        %4158 = vmatpush.bf16.msra.mxu0 0
        %4159 = vmatpush.bf16.msra.mxu0 %v4150
        %4160 = vmatpush.bf16.msra.mxu0 %v4149
        %4161 = vmatmul.bf16.gmra.mxu0 %v4101
        %v4162 = vpop.f32.mrf.mxu0
        %v4163 = vadd.f32 %v4082, %v4162
        %v4164 = vpop.f32.mrf.mxu0
        %4165 = vdwg.mxu0
        %v4170 = vunpack.c.l.b16 %v4021
        %v4171 = vunpack.c.l.b16 %v4022
        %v4172 = vunpack.c.l.b16 %v4023
        %v4173 = vunpack.c.l.b16 %v4024
        %v4174 = vpack.c.b16 %v4171, %v4170
        %v4175 = vpack.c.b16 %v4173, %v4172
        %4178 = vmatpush.bf16.msra.mxu0 0
        %4179 = vmatpush.bf16.msra.mxu0 0
        %4180 = vmatpush.bf16.msra.mxu0 0
        %4181 = vmatpush.bf16.msra.mxu0 0
        %4182 = vmatpush.bf16.msra.mxu0 0
        %4183 = vmatpush.bf16.msra.mxu0 0
        %4184 = vmatpush.bf16.msra.mxu0 %v4175
        %4185 = vmatpush.bf16.msra.mxu0 %v4174
        %4186 = vmatmul.bf16.gmra.mxu0 %v4101
        %v4187 = vpop.f32.mrf.mxu0
        %v4188 = vadd.f32 %v4083, %v4187
        %v4189 = vpop.f32.mrf.mxu0
        %4190 = vdwg.mxu0
        %v4199 = vperm.slane %v4061, 0
        %v4200 = vperm.slane %v4062, 0
        %v4201 = vperm.slane %v4063, 0
        %v4202 = vperm.slane %v4064, 0
        %v4203 = vperm.slane %v4065, 0
        %v4204 = vperm.slane %v4066, 0
        %v4205 = vperm.slane %v4067, 0
        %v4206 = vperm.slane %v4068, 0
        %v4219 = vunpack.c.l.b16 %v4029
        %v4220 = vunpack.c.l.b16 %v4030
        %v4221 = vunpack.c.l.b16 %v4031
        %v4222 = vunpack.c.l.b16 %v4032
        %v4223 = vpack.c.b16 %v4220, %v4219
        %v4224 = vpack.c.b16 %v4222, %v4221
        %v4228 = vsel %vm1324, %v4075, 0
        %4230 = vmatpush.bf16.msra.mxu0 0
        %4231 = vmatpush.bf16.msra.mxu0 0
        %4232 = vmatpush.bf16.msra.mxu0 0
        %4233 = vmatpush.bf16.msra.mxu0 0
        %4234 = vmatpush.bf16.msra.mxu0 0
        %4235 = vmatpush.bf16.msra.mxu0 0
        %4236 = vmatpush.bf16.msra.mxu0 %v4224
        %4237 = vmatpush.bf16.msra.mxu0 %v4223
        %4238 = vmatmul.bf16.gmra.mxu0 %v4228
        %v4239 = vpop.f32.mrf.mxu0
        %v4240 = vadd.f32 %v4199, %v4239
        %v4241 = vpop.f32.mrf.mxu0
        %4242 = vdwg.mxu0
        %v4247 = vunpack.c.l.b16 %v4033
        %v4248 = vunpack.c.l.b16 %v4034
        %v4249 = vunpack.c.l.b16 %v4035
        %v4250 = vunpack.c.l.b16 %v4036
        %v4251 = vpack.c.b16 %v4248, %v4247
        %v4252 = vpack.c.b16 %v4250, %v4249
        %4255 = vmatpush.bf16.msra.mxu0 0
        %4256 = vmatpush.bf16.msra.mxu0 0
        %4257 = vmatpush.bf16.msra.mxu0 0
        %4258 = vmatpush.bf16.msra.mxu0 0
        %4259 = vmatpush.bf16.msra.mxu0 0
        %4260 = vmatpush.bf16.msra.mxu0 0
        %4261 = vmatpush.bf16.msra.mxu0 %v4252
        %4262 = vmatpush.bf16.msra.mxu0 %v4251
        %4263 = vmatmul.bf16.gmra.mxu0 %v4228
        %v4264 = vpop.f32.mrf.mxu0
        %v4265 = vadd.f32 %v4200, %v4264
        %v4266 = vpop.f32.mrf.mxu0
        %4267 = vdwg.mxu0
        %v4272 = vunpack.c.l.b16 %v4037
        %v4273 = vunpack.c.l.b16 %v4038
        %v4274 = vunpack.c.l.b16 %v4039
        %v4275 = vunpack.c.l.b16 %v4040
        %v4276 = vpack.c.b16 %v4273, %v4272
        %v4277 = vpack.c.b16 %v4275, %v4274
        %4280 = vmatpush.bf16.msra.mxu0 0
        %4281 = vmatpush.bf16.msra.mxu0 0
        %4282 = vmatpush.bf16.msra.mxu0 0
        %4283 = vmatpush.bf16.msra.mxu0 0
        %4284 = vmatpush.bf16.msra.mxu0 0
        %4285 = vmatpush.bf16.msra.mxu0 0
        %4286 = vmatpush.bf16.msra.mxu0 %v4277
        %4287 = vmatpush.bf16.msra.mxu0 %v4276
        %4288 = vmatmul.bf16.gmra.mxu0 %v4228
        %v4289 = vpop.f32.mrf.mxu0
        %v4290 = vadd.f32 %v4201, %v4289
        %v4291 = vpop.f32.mrf.mxu0
        %4292 = vdwg.mxu0
        %v4297 = vunpack.c.l.b16 %v4041
        %v4298 = vunpack.c.l.b16 %v4042
        %v4299 = vunpack.c.l.b16 %v4043
        %v4300 = vunpack.c.l.b16 %v4044
        %v4301 = vpack.c.b16 %v4298, %v4297
        %v4302 = vpack.c.b16 %v4300, %v4299
        %4305 = vmatpush.bf16.msra.mxu0 0
        %4306 = vmatpush.bf16.msra.mxu0 0
        %4307 = vmatpush.bf16.msra.mxu0 0
        %4308 = vmatpush.bf16.msra.mxu0 0
        %4309 = vmatpush.bf16.msra.mxu0 0
        %4310 = vmatpush.bf16.msra.mxu0 0
        %4311 = vmatpush.bf16.msra.mxu0 %v4302
        %4312 = vmatpush.bf16.msra.mxu0 %v4301
        %4313 = vmatmul.bf16.gmra.mxu0 %v4228
        %v4314 = vpop.f32.mrf.mxu0
        %v4315 = vadd.f32 %v4202, %v4314
        %v4316 = vpop.f32.mrf.mxu0
        %4317 = vdwg.mxu0
        %v4322 = vunpack.c.l.b16 %v4045
        %v4323 = vunpack.c.l.b16 %v4046
        %v4324 = vunpack.c.l.b16 %v4047
        %v4325 = vunpack.c.l.b16 %v4048
        %v4326 = vpack.c.b16 %v4323, %v4322
        %v4327 = vpack.c.b16 %v4325, %v4324
        %4330 = vmatpush.bf16.msra.mxu0 0
        %4331 = vmatpush.bf16.msra.mxu0 0
        %4332 = vmatpush.bf16.msra.mxu0 0
        %4333 = vmatpush.bf16.msra.mxu0 0
        %4334 = vmatpush.bf16.msra.mxu0 0
        %4335 = vmatpush.bf16.msra.mxu0 0
        %4336 = vmatpush.bf16.msra.mxu0 %v4327
        %4337 = vmatpush.bf16.msra.mxu0 %v4326
        %4338 = vmatmul.bf16.gmra.mxu0 %v4228
        %v4339 = vpop.f32.mrf.mxu0
        %v4340 = vadd.f32 %v4203, %v4339
        %v4341 = vpop.f32.mrf.mxu0
        %4342 = vdwg.mxu0
        %v4347 = vunpack.c.l.b16 %v4049
        %v4348 = vunpack.c.l.b16 %v4050
        %v4349 = vunpack.c.l.b16 %v4051
        %v4350 = vunpack.c.l.b16 %v4052
        %v4351 = vpack.c.b16 %v4348, %v4347
        %v4352 = vpack.c.b16 %v4350, %v4349
        %4355 = vmatpush.bf16.msra.mxu0 0
        %4356 = vmatpush.bf16.msra.mxu0 0
        %4357 = vmatpush.bf16.msra.mxu0 0
        %4358 = vmatpush.bf16.msra.mxu0 0
        %4359 = vmatpush.bf16.msra.mxu0 0
        %4360 = vmatpush.bf16.msra.mxu0 0
        %4361 = vmatpush.bf16.msra.mxu0 %v4352
        %4362 = vmatpush.bf16.msra.mxu0 %v4351
        %4363 = vmatmul.bf16.gmra.mxu0 %v4228
        %v4364 = vpop.f32.mrf.mxu0
        %v4365 = vadd.f32 %v4204, %v4364
        %v4366 = vpop.f32.mrf.mxu0
        %4367 = vdwg.mxu0
        %v4372 = vunpack.c.l.b16 %v4053
        %v4373 = vunpack.c.l.b16 %v4054
        %v4374 = vunpack.c.l.b16 %v4055
        %v4375 = vunpack.c.l.b16 %v4056
        %v4376 = vpack.c.b16 %v4373, %v4372
        %v4377 = vpack.c.b16 %v4375, %v4374
        %4380 = vmatpush.bf16.msra.mxu0 0
        %4381 = vmatpush.bf16.msra.mxu0 0
        %4382 = vmatpush.bf16.msra.mxu0 0
        %4383 = vmatpush.bf16.msra.mxu0 0
        %4384 = vmatpush.bf16.msra.mxu0 0
        %4385 = vmatpush.bf16.msra.mxu0 0
        %4386 = vmatpush.bf16.msra.mxu0 %v4377
        %4387 = vmatpush.bf16.msra.mxu0 %v4376
        %4388 = vmatmul.bf16.gmra.mxu0 %v4228
        %v4389 = vpop.f32.mrf.mxu0
        %v4390 = vadd.f32 %v4205, %v4389
        %v4391 = vpop.f32.mrf.mxu0
        %4392 = vdwg.mxu0
        %v4397 = vunpack.c.l.b16 %v4057
        %v4398 = vunpack.c.l.b16 %v4058
        %v4399 = vunpack.c.l.b16 %v4059
        %v4400 = vunpack.c.l.b16 %v4060
        %v4401 = vpack.c.b16 %v4398, %v4397
        %v4402 = vpack.c.b16 %v4400, %v4399
        %4405 = vmatpush.bf16.msra.mxu0 0
        %4406 = vmatpush.bf16.msra.mxu0 0
        %4407 = vmatpush.bf16.msra.mxu0 0
        %4408 = vmatpush.bf16.msra.mxu0 0
        %4409 = vmatpush.bf16.msra.mxu0 0
        %4410 = vmatpush.bf16.msra.mxu0 0
        %4411 = vmatpush.bf16.msra.mxu0 %v4402
        %4412 = vmatpush.bf16.msra.mxu0 %v4401
        %4413 = vmatmul.bf16.gmra.mxu0 %v4228
        %v4414 = vpop.f32.mrf.mxu0
        %v4415 = vadd.f32 %v4206, %v4414
        %v4416 = vpop.f32.mrf.mxu0
        %4417 = vdwg.mxu0
        %v4418 = vpack.c.bf16 %v4113, %v4113
        %v4419 = vpack.c.bf16 %v4138, %v4138
        %v4420 = vpack.c.bf16 %v4163, %v4163
        %v4421 = vpack.c.bf16 %v4188, %v4188
        %v4422 = vpack.c.bf16 %v4240, %v4240
        %v4423 = vpack.c.bf16 %v4265, %v4265
        %v4424 = vpack.c.bf16 %v4290, %v4290
        %v4425 = vpack.c.bf16 %v4315, %v4315
        %v4427 = vsel %vm1778, %v4418, 0
        %v4430 = vsel %vm1778, %v4422, 0
        %4432 = vmatpush.bf16.xpose.msra.mxu0 0
        %4433 = vmatpush.bf16.xpose.msra.mxu0 0
        %4434 = vmatpush.bf16.xpose.msra.mxu0 0
        %4435 = vmatpush.bf16.xpose.msra.mxu0 0
        %4436 = vmatpush.bf16.xpose.msra.mxu0 0
        %4437 = vmatpush.bf16.xpose.msra.mxu0 0
        %4438 = vmatpush.bf16.xpose.msra.mxu0 0
        %4439 = vmatpush.bf16.xpose.msra.mxu0 %v4430
        %4440 = vmatmul.bf16.gmra.mxu0 %v4427
        %v4441 = vpop.f32.mrf.mxu0
        %v4442 = vadd.f32 %v1776, %v4441
        %v4443 = vpop.f32.mrf.mxu0
        %4444 = vdwg.mxu0
        %v4446 = vsel %vm1778, %v4419, 0
        %v4449 = vsel %vm1778, %v4423, 0
        %4451 = vmatpush.bf16.xpose.msra.mxu0 0
        %4452 = vmatpush.bf16.xpose.msra.mxu0 0
        %4453 = vmatpush.bf16.xpose.msra.mxu0 0
        %4454 = vmatpush.bf16.xpose.msra.mxu0 0
        %4455 = vmatpush.bf16.xpose.msra.mxu0 0
        %4456 = vmatpush.bf16.xpose.msra.mxu0 0
        %4457 = vmatpush.bf16.xpose.msra.mxu0 0
        %4458 = vmatpush.bf16.xpose.msra.mxu0 %v4449
        %4459 = vmatmul.bf16.gmra.mxu0 %v4446
        %v4460 = vpop.f32.mrf.mxu0
        %v4461 = vadd.f32 %v1776, %v4460
        %v4462 = vpop.f32.mrf.mxu0
        %4463 = vdwg.mxu0
        %v4465 = vsel %vm1778, %v4420, 0
        %v4468 = vsel %vm1778, %v4424, 0
        %4470 = vmatpush.bf16.xpose.msra.mxu0 0
        %4471 = vmatpush.bf16.xpose.msra.mxu0 0
        %4472 = vmatpush.bf16.xpose.msra.mxu0 0
        %4473 = vmatpush.bf16.xpose.msra.mxu0 0
        %4474 = vmatpush.bf16.xpose.msra.mxu0 0
        %4475 = vmatpush.bf16.xpose.msra.mxu0 0
        %4476 = vmatpush.bf16.xpose.msra.mxu0 0
        %4477 = vmatpush.bf16.xpose.msra.mxu0 %v4468
        %4478 = vmatmul.bf16.gmra.mxu0 %v4465
        %v4479 = vpop.f32.mrf.mxu0
        %v4480 = vadd.f32 %v1776, %v4479
        %v4481 = vpop.f32.mrf.mxu0
        %4482 = vdwg.mxu0
        %v4484 = vsel %vm1778, %v4421, 0
        %v4487 = vsel %vm1778, %v4425, 0
        %4489 = vmatpush.bf16.xpose.msra.mxu0 0
        %4490 = vmatpush.bf16.xpose.msra.mxu0 0
        %4491 = vmatpush.bf16.xpose.msra.mxu0 0
        %4492 = vmatpush.bf16.xpose.msra.mxu0 0
        %4493 = vmatpush.bf16.xpose.msra.mxu0 0
        %4494 = vmatpush.bf16.xpose.msra.mxu0 0
        %4495 = vmatpush.bf16.xpose.msra.mxu0 0
        %4496 = vmatpush.bf16.xpose.msra.mxu0 %v4487
        %4497 = vmatmul.bf16.gmra.mxu0 %v4484
        %v4498 = vpop.f32.mrf.mxu0
        %v4499 = vadd.f32 %v1776, %v4498
        %v4500 = vpop.f32.mrf.mxu0
        %4501 = vdwg.mxu0
        %v4502 = vsel %vm1778, %v4442, -inf
        %4503 = vmax.xlane.f32.xlu0 %v4502
        %v4504 = vpop.xlane.xlu0 %4503
        %v4505 = vsel %vm1778, %v4461, -inf
        %4506 = vmax.xlane.f32.xlu0 %v4505
        %v4507 = vpop.xlane.xlu0 %4506
        %v4508 = vsel %vm1778, %v4480, -inf
        %4509 = vmax.xlane.f32.xlu0 %v4508
        %v4510 = vpop.xlane.xlu0 %4509
        %v4511 = vsel %vm1778, %v4499, -inf
        %4512 = vmax.xlane.f32.xlu0 %v4511
        %v4513 = vpop.xlane.xlu0 %4512
        %v4514 = vsub.f32 %v4442, %v4504
        %v4515 = vsub.f32 %v4461, %v4507
        %v4516 = vsub.f32 %v4480, %v4510
        %v4517 = vsub.f32 %v4499, %v4513
        %v4518 = vmul.f32 %v4514, 1.442695
        %v4519 = vpow.pop %v4518
        %v4520 = vmul.f32 %v4515, 1.442695
        %v4521 = vpow.pop %v4520
        %v4522 = vmul.f32 %v4516, 1.442695
        %v4523 = vpow.pop %v4522
        %v4524 = vmul.f32 %v4517, 1.442695
        %v4525 = vpow.pop %v4524
        %v4526 = vsel %vm1778, %v4519, 0.0
        %4527 = vadd.xlane.f32.xlu0 %v4526
        %v4528 = vpop.xlane.xlu0 %4527
        %v4529 = vsel %vm1778, %v4521, 0.0
        %4530 = vadd.xlane.f32.xlu0 %v4529
        %v4531 = vpop.xlane.xlu0 %4530
        %v4532 = vsel %vm1778, %v4523, 0.0
        %4533 = vadd.xlane.f32.xlu0 %v4532
        %v4534 = vpop.xlane.xlu0 %4533
        %v4535 = vsel %vm1778, %v4525, 0.0
        %4536 = vadd.xlane.f32.xlu0 %v4535
        %v4537 = vpop.xlane.xlu0 %4536
        %v4538 = vrcp.pop %v4528
        %v4539 = vmul.f32 %v4528, %v4538
        %v4540 = vsub.f32 1.0, %v4539
        %v4541 = vmul.f32 %v4538, %v4540
        %v4542 = vadd.f32 %v4538, %v4541
        %vm4543 = vweird.f32 %v4528
        %vm4544 = vweird.f32 %v4538
        %vm4545 = vmor %vm4543, %vm4544
        %v4546 = vsel %vm4545, %v4538, %v4542
        %v4547 = vand.u32 2147483647, %v4528
        %vm4548 = vcmp.eq.f32.partialorder %v4547, 8.507059e+37
        %v4549 = vand.u32 %v4528, 2147483648
        %v4550 = vor.u32 1.1754944e-38, %v4549
        %v4551 = vsel %vm4548, %v4550, %v4546
        %v4552 = vmul.f32 %v4519, %v4551
        %v4553 = vrcp.pop %v4531
        %v4554 = vmul.f32 %v4531, %v4553
        %v4555 = vsub.f32 1.0, %v4554
        %v4556 = vmul.f32 %v4553, %v4555
        %v4557 = vadd.f32 %v4553, %v4556
        %vm4558 = vweird.f32 %v4531
        %vm4559 = vweird.f32 %v4553
        %vm4560 = vmor %vm4558, %vm4559
        %v4561 = vsel %vm4560, %v4553, %v4557
        %v4562 = vand.u32 2147483647, %v4531
        %vm4563 = vcmp.eq.f32.partialorder %v4562, 8.507059e+37
        %v4564 = vand.u32 %v4531, 2147483648
        %v4565 = vor.u32 1.1754944e-38, %v4564
        %v4566 = vsel %vm4563, %v4565, %v4561
        %v4567 = vmul.f32 %v4521, %v4566
        %v4568 = vrcp.pop %v4534
        %v4569 = vmul.f32 %v4534, %v4568
        %v4570 = vsub.f32 1.0, %v4569
        %v4571 = vmul.f32 %v4568, %v4570
        %v4572 = vadd.f32 %v4568, %v4571
        %vm4573 = vweird.f32 %v4534
        %vm4574 = vweird.f32 %v4568
        %vm4575 = vmor %vm4573, %vm4574
        %v4576 = vsel %vm4575, %v4568, %v4572
        %v4577 = vand.u32 2147483647, %v4534
        %vm4578 = vcmp.eq.f32.partialorder %v4577, 8.507059e+37
        %v4579 = vand.u32 %v4534, 2147483648
        %v4580 = vor.u32 1.1754944e-38, %v4579
        %v4581 = vsel %vm4578, %v4580, %v4576
        %v4582 = vmul.f32 %v4523, %v4581
        %v4583 = vrcp.pop %v4537
        %v4584 = vmul.f32 %v4537, %v4583
        %v4585 = vsub.f32 1.0, %v4584
        %v4586 = vmul.f32 %v4583, %v4585
        %v4587 = vadd.f32 %v4583, %v4586
        %vm4588 = vweird.f32 %v4537
        %vm4589 = vweird.f32 %v4583
        %vm4590 = vmor %vm4588, %vm4589
        %v4591 = vsel %vm4590, %v4583, %v4587
        %v4592 = vand.u32 2147483647, %v4537
        %vm4593 = vcmp.eq.f32.partialorder %v4592, 8.507059e+37
        %v4594 = vand.u32 %v4537, 2147483648
        %v4595 = vor.u32 1.1754944e-38, %v4594
        %v4596 = vsel %vm4593, %v4595, %v4591
        %v4597 = vmul.f32 %v4525, %v4596
        %v4598 = vpack.c.bf16 %v4552, %v4552
        %v4599 = vpack.c.bf16 %v4567, %v4567
        %v4600 = vpack.c.bf16 %v4582, %v4582
        %v4601 = vpack.c.bf16 %v4597, %v4597
        %v4602 = vpack.c.bf16 %v4340, %v4340
        %v4603 = vpack.c.bf16 %v4365, %v4365
        %v4604 = vpack.c.bf16 %v4390, %v4390
        %v4605 = vpack.c.bf16 %v4415, %v4415
        %v4607 = vsel %vm1778, %v4598, 0
        %v4610 = vsel %vm1962, %v4602, 0
        %4612 = vmatpush.bf16.msra.mxu0 0
        %4613 = vmatpush.bf16.msra.mxu0 0
        %4614 = vmatpush.bf16.msra.mxu0 0
        %4615 = vmatpush.bf16.msra.mxu0 0
        %4616 = vmatpush.bf16.msra.mxu0 0
        %4617 = vmatpush.bf16.msra.mxu0 0
        %4618 = vmatpush.bf16.msra.mxu0 0
        %4619 = vmatpush.bf16.msra.mxu0 %v4610
        %4620 = vmatmul.bf16.gmra.mxu0 %v4607
        %v4621 = vpop.f32.mrf.mxu0
        %v4622 = vadd.f32 0.0, %v4621
        %v4623 = vpop.f32.mrf.mxu0
        %4624 = vdwg.mxu0
        %v4626 = vsel %vm1778, %v4599, 0
        %v4629 = vsel %vm1962, %v4603, 0
        %4631 = vmatpush.bf16.msra.mxu0 0
        %4632 = vmatpush.bf16.msra.mxu0 0
        %4633 = vmatpush.bf16.msra.mxu0 0
        %4634 = vmatpush.bf16.msra.mxu0 0
        %4635 = vmatpush.bf16.msra.mxu0 0
        %4636 = vmatpush.bf16.msra.mxu0 0
        %4637 = vmatpush.bf16.msra.mxu0 0
        %4638 = vmatpush.bf16.msra.mxu0 %v4629
        %4639 = vmatmul.bf16.gmra.mxu0 %v4626
        %v4640 = vpop.f32.mrf.mxu0
        %v4641 = vadd.f32 0.0, %v4640
        %v4642 = vpop.f32.mrf.mxu0
        %4643 = vdwg.mxu0
        %v4645 = vsel %vm1778, %v4600, 0
        %v4648 = vsel %vm1962, %v4604, 0
        %4650 = vmatpush.bf16.msra.mxu0 0
        %4651 = vmatpush.bf16.msra.mxu0 0
        %4652 = vmatpush.bf16.msra.mxu0 0
        %4653 = vmatpush.bf16.msra.mxu0 0
        %4654 = vmatpush.bf16.msra.mxu0 0
        %4655 = vmatpush.bf16.msra.mxu0 0
        %4656 = vmatpush.bf16.msra.mxu0 0
        %4657 = vmatpush.bf16.msra.mxu0 %v4648
        %4658 = vmatmul.bf16.gmra.mxu0 %v4645
        %v4659 = vpop.f32.mrf.mxu0
        %v4660 = vadd.f32 0.0, %v4659
        %v4661 = vpop.f32.mrf.mxu0
        %4662 = vdwg.mxu0
        %v4664 = vsel %vm1778, %v4601, 0
        %v4667 = vsel %vm1962, %v4605, 0
        %4669 = vmatpush.bf16.msra.mxu0 0
        %4670 = vmatpush.bf16.msra.mxu0 0
        %4671 = vmatpush.bf16.msra.mxu0 0
        %4672 = vmatpush.bf16.msra.mxu0 0
        %4673 = vmatpush.bf16.msra.mxu0 0
        %4674 = vmatpush.bf16.msra.mxu0 0
        %4675 = vmatpush.bf16.msra.mxu0 0
        %4676 = vmatpush.bf16.msra.mxu0 %v4667
        %4677 = vmatmul.bf16.gmra.mxu0 %v4664
        %v4678 = vpop.f32.mrf.mxu0
        %v4679 = vadd.f32 0.0, %v4678
        %v4680 = vpop.f32.mrf.mxu0
        %4681 = vdwg.mxu0
        %v4682 = vpack.c.bf16 %v4622, %v4622
        %v4683 = vpack.c.bf16 %v4641, %v4641
        %v4684 = vpack.c.bf16 %v4660, %v4660
        %v4685 = vpack.c.bf16 %v4679, %v4679
        %v4687 = vsel %vm1778, %v4682, 0
        %v4690 = vsel %vm1962, %v4069, 0
        %4692 = vmatpush.bf16.msra.mxu0 0
        %4693 = vmatpush.bf16.msra.mxu0 0
        %4694 = vmatpush.bf16.msra.mxu0 0
        %4695 = vmatpush.bf16.msra.mxu0 0
        %4696 = vmatpush.bf16.msra.mxu0 0
        %4697 = vmatpush.bf16.msra.mxu0 0
        %4698 = vmatpush.bf16.msra.mxu0 0
        %4699 = vmatpush.bf16.msra.mxu0 %v4690
        %4700 = vmatmul.bf16.gmra.mxu0 %v4687
        %v4701 = vpop.f32.mrf.mxu0
        %v4702 = vadd.f32 0.0, %v4701
        %v4703 = vpop.f32.mrf.mxu0
        %4704 = vdwg.mxu0
        %v4706 = vsel %vm1778, %v4683, 0
        %v4709 = vsel %vm1962, %v4070, 0
        %4711 = vmatpush.bf16.msra.mxu0 0
        %4712 = vmatpush.bf16.msra.mxu0 0
        %4713 = vmatpush.bf16.msra.mxu0 0
        %4714 = vmatpush.bf16.msra.mxu0 0
        %4715 = vmatpush.bf16.msra.mxu0 0
        %4716 = vmatpush.bf16.msra.mxu0 0
        %4717 = vmatpush.bf16.msra.mxu0 0
        %4718 = vmatpush.bf16.msra.mxu0 %v4709
        %4719 = vmatmul.bf16.gmra.mxu0 %v4706
        %v4720 = vpop.f32.mrf.mxu0
        %v4721 = vadd.f32 0.0, %v4720
        %v4722 = vpop.f32.mrf.mxu0
        %4723 = vdwg.mxu0
        %v4725 = vsel %vm1778, %v4684, 0
        %v4728 = vsel %vm1962, %v4071, 0
        %4730 = vmatpush.bf16.msra.mxu0 0
        %4731 = vmatpush.bf16.msra.mxu0 0
        %4732 = vmatpush.bf16.msra.mxu0 0
        %4733 = vmatpush.bf16.msra.mxu0 0
        %4734 = vmatpush.bf16.msra.mxu0 0
        %4735 = vmatpush.bf16.msra.mxu0 0
        %4736 = vmatpush.bf16.msra.mxu0 0
        %4737 = vmatpush.bf16.msra.mxu0 %v4728
        %4738 = vmatmul.bf16.gmra.mxu0 %v4725
        %v4739 = vpop.f32.mrf.mxu0
        %v4740 = vadd.f32 0.0, %v4739
        %v4741 = vpop.f32.mrf.mxu0
        %4742 = vdwg.mxu0
        %v4744 = vsel %vm1778, %v4685, 0
        %v4747 = vsel %vm1962, %v4072, 0
        %4749 = vmatpush.bf16.msra.mxu0 0
        %4750 = vmatpush.bf16.msra.mxu0 0
        %4751 = vmatpush.bf16.msra.mxu0 0
        %4752 = vmatpush.bf16.msra.mxu0 0
        %4753 = vmatpush.bf16.msra.mxu0 0
        %4754 = vmatpush.bf16.msra.mxu0 0
        %4755 = vmatpush.bf16.msra.mxu0 0
        %4756 = vmatpush.bf16.msra.mxu0 %v4747
        %4757 = vmatmul.bf16.gmra.mxu0 %v4744
        %v4758 = vpop.f32.mrf.mxu0
        %v4759 = vadd.f32 0.0, %v4758
        %v4760 = vpop.f32.mrf.mxu0
        %4761 = vdwg.mxu0
        %v4762 = vsel %vm1324, %v4702, 0.0
        %v4763 = vsel %vm1324, %v4721, 0.0
        %v4764 = vadd.f32 %v4762, %v4763
        %v4765 = vsel %vm1324, %v4740, 0.0
        %v4766 = vadd.f32 %v4764, %v4765
        %v4767 = vsel %vm1324, %v4759, 0.0
        %v4768 = vadd.f32 %v4766, %v4767
        %v4770 = vperm.slane %v4073, 0
        %v4772 = vadd.f32 %v4768, %v4770
        %v4773 = vadd.f32 %v3976, %v4772
        %v4774 = vld [vmem:[%s35] sm:$0x1]
        %v4775 = vld [vmem:[%s33] sm:$0x1]
        %v4776 = vsel %vm1324, %v4773, 0.0
        %4777 = vadd.xlane.f32.xlu0 %v4776
        %v4778 = vpop.xlane.xlu0 %4777
        %v4779 = vmul.f32 %v4778, %v1334
        %v4780 = vsub.f32 %v4773, %v4779
        %v4781 = vmul.f32 %v4780, %v4780
        %v4782 = vsel %vm1324, %v4781, 0.0
        %4783 = vadd.xlane.f32.xlu0 %v4782
        %v4784 = vpop.xlane.xlu0 %4783
        %v4785 = vmul.f32 %v4784, %v1334
        %v4786 = vadd.f32 %v4785, 1e-05
        %v4787 = vrsqrt.pop %v4786
        %v4788 = vmul.f32 %v4787, %v4786
        %v4789 = vmul.f32 %v4788, %v4787
        %v4790 = vmul.f32 0.5, %v4789
        %v4791 = vsub.f32 1.5, %v4790
        %v4792 = vmul.f32 %v4787, %v4791
        %vm4793 = vweird.f32 %v4786
        %vm4794 = vweird.f32 %v4787
        %vm4795 = vmor %vm4793, %vm4794
        %v4796 = vsel %vm4795, %v4787, %v4792
        %v4797 = vmul.f32 %v4780, %v4796
        %v4799 = vperm.slane %v4774, 0
        %v4801 = vmul.f32 %v4797, %v4799
        %v4803 = vperm.slane %v4775, 0
        %v4805 = vadd.f32 %v4801, %v4803
        %v4806 = vld [vmem:[%s49] sm:$0xf]
        %v4807 = vld [vmem:[%s49 + $0x4] sm:$0xf]
        %v4808 = vld [vmem:[%s49 + $0x8] sm:$0xf]
        %v4809 = vld [vmem:[%s49 + $0xc] sm:$0xf]
        %v4810 = vld [vmem:[%s9] sm:$0x1]
        %v4811 = vld [vmem:[%s51] sm:$0xf]
        %v4812 = vld [vmem:[%s51 + $0x4] sm:$0xf]
        %v4813 = vld [vmem:[%s51 + $0x8] sm:$0xf]
        %v4814 = vld [vmem:[%s51 + $0xc] sm:$0xf]
        %v4815 = vld [vmem:[%s51 + $0x10] sm:$0xf]
        %v4816 = vld [vmem:[%s51 + $0x14] sm:$0xf]
        %v4817 = vld [vmem:[%s51 + $0x18] sm:$0xf]
        %v4818 = vld [vmem:[%s51 + $0x1c] sm:$0xf]
        %v4819 = vld [vmem:[%s11] sm:$0x1]
        %v4820 = vpack.c.bf16 %v4805, %v4805
        %v4822 = vperm.slane %v4810, 0
        %v4828 = vunpack.c.l.b16 %v4806
        %v4829 = vunpack.c.l.b16 %v4807
        %v4830 = vunpack.c.l.b16 %v4808
        %v4831 = vunpack.c.l.b16 %v4809
        %v4832 = vpack.c.b16 %v4829, %v4828
        %v4833 = vpack.c.b16 %v4831, %v4830
        %v4837 = vsel %vm1324, %v4820, 0
        %4839 = vmatpush.bf16.msra.mxu0 0
        %4840 = vmatpush.bf16.msra.mxu0 0
        %4841 = vmatpush.bf16.msra.mxu0 0
        %4842 = vmatpush.bf16.msra.mxu0 0
        %4843 = vmatpush.bf16.msra.mxu0 0
        %4844 = vmatpush.bf16.msra.mxu0 0
        %4845 = vmatpush.bf16.msra.mxu0 %v4833
        %4846 = vmatpush.bf16.msra.mxu0 %v4832
        %4847 = vmatmul.bf16.gmra.mxu0 %v4837
        %v4848 = vpop.f32.mrf.mxu0
        %v4849 = vadd.f32 %v4822, %v4848
        %v4850 = vpop.f32.mrf.mxu0
        %4851 = vdwg.mxu0
        %v4852 = vmax.f32 %v4849, 0.0
        %v4853 = vpack.c.bf16 %v4852, %v4852
        %v4855 = vperm.slane %v4819, 0
        %v4865 = vunpack.c.l.b16 %v4811
        %v4866 = vunpack.c.l.b16 %v4812
        %v4867 = vunpack.c.l.b16 %v4813
        %v4868 = vunpack.c.l.b16 %v4814
        %v4869 = vunpack.c.l.b16 %v4815
        %v4870 = vunpack.c.l.b16 %v4816
        %v4871 = vunpack.c.l.b16 %v4817
        %v4872 = vunpack.c.l.b16 %v4818
        %v4873 = vpack.c.b16 %v4866, %v4865
        %v4874 = vpack.c.b16 %v4868, %v4867
        %v4875 = vpack.c.b16 %v4870, %v4869
        %v4876 = vpack.c.b16 %v4872, %v4871
        %v4882 = vsel %vm2235, %v4853, 0
        %4884 = vmatpush.bf16.msra.mxu0 0
        %4885 = vmatpush.bf16.msra.mxu0 0
        %4886 = vmatpush.bf16.msra.mxu0 0
        %4887 = vmatpush.bf16.msra.mxu0 0
        %4888 = vmatpush.bf16.msra.mxu0 %v4876
        %4889 = vmatpush.bf16.msra.mxu0 %v4875
        %4890 = vmatpush.bf16.msra.mxu0 %v4874
        %4891 = vmatpush.bf16.msra.mxu0 %v4873
        %4892 = vmatmul.bf16.gmra.mxu0 %v4882
        %v4893 = vpop.f32.mrf.mxu0
        %v4894 = vadd.f32 %v4855, %v4893
        %v4895 = vpop.f32.mrf.mxu0
        %4896 = vdwg.mxu0
        %v4897 = vadd.f32 %v4773, %v4894
        %s4898 = scalar_lea.vmem %s27, 1
        %v4899 = vld [vmem:[%s4898] sm:$0x1]
        %s4900 = scalar_lea.vmem %s25, 1
        %v4901 = vld [vmem:[%s4900] sm:$0x1]
        %v4902 = vsel %vm1324, %v4897, 0.0
        %4903 = vadd.xlane.f32.xlu0 %v4902
        %v4904 = vpop.xlane.xlu0 %4903
        %v4905 = vmul.f32 %v4904, %v1334
        %v4906 = vsub.f32 %v4897, %v4905
        %v4907 = vmul.f32 %v4906, %v4906
        %v4908 = vsel %vm1324, %v4907, 0.0
        %4909 = vadd.xlane.f32.xlu0 %v4908
        %v4910 = vpop.xlane.xlu0 %4909
        %v4911 = vmul.f32 %v4910, %v1334
        %v4912 = vadd.f32 %v4911, 1e-05
        %v4913 = vrsqrt.pop %v4912
        %v4914 = vmul.f32 %v4913, %v4912
        %v4915 = vmul.f32 %v4914, %v4913
        %v4916 = vmul.f32 0.5, %v4915
        %v4917 = vsub.f32 1.5, %v4916
        %v4918 = vmul.f32 %v4913, %v4917
        %vm4919 = vweird.f32 %v4912
        %vm4920 = vweird.f32 %v4913
        %vm4921 = vmor %vm4919, %vm4920
        %v4922 = vsel %vm4921, %v4913, %v4918
        %v4923 = vmul.f32 %v4906, %v4922
        %v4925 = vperm.slane %v4899, 0
        %v4927 = vmul.f32 %v4923, %v4925
        %v4929 = vperm.slane %v4901, 0
        %v4931 = vadd.f32 %v4927, %v4929
        %s4932 = scalar_lea.vmem %s47, 64
        %v4933 = vld [vmem:[%s4932] sm:$0xf]
        %v4934 = vld [vmem:[%s4932 + $0x4] sm:$0xf]
        %v4935 = vld [vmem:[%s4932 + $0x8] sm:$0xf]
        %v4936 = vld [vmem:[%s4932 + $0xc] sm:$0xf]
        %v4937 = vld [vmem:[%s4932 + $0x10] sm:$0xf]
        %v4938 = vld [vmem:[%s4932 + $0x14] sm:$0xf]
        %v4939 = vld [vmem:[%s4932 + $0x18] sm:$0xf]
        %v4940 = vld [vmem:[%s4932 + $0x1c] sm:$0xf]
        %v4941 = vld [vmem:[%s4932 + $0x20] sm:$0xf]
        %v4942 = vld [vmem:[%s4932 + $0x24] sm:$0xf]
        %v4943 = vld [vmem:[%s4932 + $0x28] sm:$0xf]
        %v4944 = vld [vmem:[%s4932 + $0x2c] sm:$0xf]
        %v4945 = vld [vmem:[%s4932 + $0x30] sm:$0xf]
        %v4946 = vld [vmem:[%s4932 + $0x34] sm:$0xf]
        %v4947 = vld [vmem:[%s4932 + $0x38] sm:$0xf]
        %v4948 = vld [vmem:[%s4932 + $0x3c] sm:$0xf]
        %s4949 = scalar_lea.vmem %s41, 4
        %v4950 = vld [vmem:[%s4949] sm:$0x1]
        %v4951 = vld [vmem:[%s4949 + $0x1] sm:$0x1]
        %v4952 = vld [vmem:[%s4949 + $0x2] sm:$0x1]
        %v4953 = vld [vmem:[%s4949 + $0x3] sm:$0x1]
        %s4954 = scalar_lea.vmem %s43, 128
        %v4955 = vld [vmem:[%s4954] sm:$0xf]
        %v4956 = vld [vmem:[%s4954 + $0x4] sm:$0xf]
        %v4957 = vld [vmem:[%s4954 + $0x8] sm:$0xf]
        %v4958 = vld [vmem:[%s4954 + $0xc] sm:$0xf]
        %v4959 = vld [vmem:[%s4954 + $0x10] sm:$0xf]
        %v4960 = vld [vmem:[%s4954 + $0x14] sm:$0xf]
        %v4961 = vld [vmem:[%s4954 + $0x18] sm:$0xf]
        %v4962 = vld [vmem:[%s4954 + $0x1c] sm:$0xf]
        %v4963 = vld [vmem:[%s4954 + $0x20] sm:$0xf]
        %v4964 = vld [vmem:[%s4954 + $0x24] sm:$0xf]
        %v4965 = vld [vmem:[%s4954 + $0x28] sm:$0xf]
        %v4966 = vld [vmem:[%s4954 + $0x2c] sm:$0xf]
        %v4967 = vld [vmem:[%s4954 + $0x30] sm:$0xf]
        %v4968 = vld [vmem:[%s4954 + $0x34] sm:$0xf]
        %v4969 = vld [vmem:[%s4954 + $0x38] sm:$0xf]
        %v4970 = vld [vmem:[%s4954 + $0x3c] sm:$0xf]
        %v4971 = vld [vmem:[%s4954 + $0x40] sm:$0xf]
        %v4972 = vld [vmem:[%s4954 + $0x44] sm:$0xf]
        %v4973 = vld [vmem:[%s4954 + $0x48] sm:$0xf]
        %v4974 = vld [vmem:[%s4954 + $0x4c] sm:$0xf]
        %v4975 = vld [vmem:[%s4954 + $0x50] sm:$0xf]
        %v4976 = vld [vmem:[%s4954 + $0x54] sm:$0xf]
        %v4977 = vld [vmem:[%s4954 + $0x58] sm:$0xf]
        %v4978 = vld [vmem:[%s4954 + $0x5c] sm:$0xf]
        %v4979 = vld [vmem:[%s4954 + $0x60] sm:$0xf]
        %v4980 = vld [vmem:[%s4954 + $0x64] sm:$0xf]
        %v4981 = vld [vmem:[%s4954 + $0x68] sm:$0xf]
        %v4982 = vld [vmem:[%s4954 + $0x6c] sm:$0xf]
        %v4983 = vld [vmem:[%s4954 + $0x70] sm:$0xf]
        %v4984 = vld [vmem:[%s4954 + $0x74] sm:$0xf]
        %v4985 = vld [vmem:[%s4954 + $0x78] sm:$0xf]
        %v4986 = vld [vmem:[%s4954 + $0x7c] sm:$0xf]
        %s4987 = scalar_lea.vmem %s37, 8
        %v4988 = vld [vmem:[%s4987] sm:$0x1]
        %v4989 = vld [vmem:[%s4987 + $0x1] sm:$0x1]
        %v4990 = vld [vmem:[%s4987 + $0x2] sm:$0x1]
        %v4991 = vld [vmem:[%s4987 + $0x3] sm:$0x1]
        %v4992 = vld [vmem:[%s4987 + $0x4] sm:$0x1]
        %v4993 = vld [vmem:[%s4987 + $0x5] sm:$0x1]
        %v4994 = vld [vmem:[%s4987 + $0x6] sm:$0x1]
        %v4995 = vld [vmem:[%s4987 + $0x7] sm:$0x1]
        %s4996 = scalar_lea.vmem %s45, 16
        %v4997 = vld [vmem:[%s4996] sm:$0xf]
        %v4998 = vld [vmem:[%s4996 + $0x4] sm:$0xf]
        %v4999 = vld [vmem:[%s4996 + $0x8] sm:$0xf]
        %v5000 = vld [vmem:[%s4996 + $0xc] sm:$0xf]
        %s5001 = scalar_lea.vmem %s39, 1
        %v5002 = vld [vmem:[%s5001] sm:$0x1]
        %v5003 = vpack.c.bf16 %v4931, %v4931
        %v5008 = vperm.slane %v4950, 0
        %v5009 = vperm.slane %v4951, 0
        %v5010 = vperm.slane %v4952, 0
        %v5011 = vperm.slane %v4953, 0
        %v5020 = vunpack.c.l.b16 %v4933
        %v5021 = vunpack.c.l.b16 %v4934
        %v5022 = vunpack.c.l.b16 %v4935
        %v5023 = vunpack.c.l.b16 %v4936
        %v5024 = vpack.c.b16 %v5021, %v5020
        %v5025 = vpack.c.b16 %v5023, %v5022
        %v5029 = vsel %vm1324, %v5003, 0
        %5031 = vmatpush.bf16.msra.mxu0 0
        %5032 = vmatpush.bf16.msra.mxu0 0
        %5033 = vmatpush.bf16.msra.mxu0 0
        %5034 = vmatpush.bf16.msra.mxu0 0
        %5035 = vmatpush.bf16.msra.mxu0 0
        %5036 = vmatpush.bf16.msra.mxu0 0
        %5037 = vmatpush.bf16.msra.mxu0 %v5025
        %5038 = vmatpush.bf16.msra.mxu0 %v5024
        %5039 = vmatmul.bf16.gmra.mxu0 %v5029
        %v5040 = vpop.f32.mrf.mxu0
        %v5041 = vadd.f32 %v5008, %v5040
        %v5042 = vpop.f32.mrf.mxu0
        %5043 = vdwg.mxu0
        %v5048 = vunpack.c.l.b16 %v4937
        %v5049 = vunpack.c.l.b16 %v4938
        %v5050 = vunpack.c.l.b16 %v4939
        %v5051 = vunpack.c.l.b16 %v4940
        %v5052 = vpack.c.b16 %v5049, %v5048
        %v5053 = vpack.c.b16 %v5051, %v5050
        %5056 = vmatpush.bf16.msra.mxu0 0
        %5057 = vmatpush.bf16.msra.mxu0 0
        %5058 = vmatpush.bf16.msra.mxu0 0
        %5059 = vmatpush.bf16.msra.mxu0 0
        %5060 = vmatpush.bf16.msra.mxu0 0
        %5061 = vmatpush.bf16.msra.mxu0 0
        %5062 = vmatpush.bf16.msra.mxu0 %v5053
        %5063 = vmatpush.bf16.msra.mxu0 %v5052
        %5064 = vmatmul.bf16.gmra.mxu0 %v5029
        %v5065 = vpop.f32.mrf.mxu0
        %v5066 = vadd.f32 %v5009, %v5065
        %v5067 = vpop.f32.mrf.mxu0
        %5068 = vdwg.mxu0
        %v5073 = vunpack.c.l.b16 %v4941
        %v5074 = vunpack.c.l.b16 %v4942
        %v5075 = vunpack.c.l.b16 %v4943
        %v5076 = vunpack.c.l.b16 %v4944
        %v5077 = vpack.c.b16 %v5074, %v5073
        %v5078 = vpack.c.b16 %v5076, %v5075
        %5081 = vmatpush.bf16.msra.mxu0 0
        %5082 = vmatpush.bf16.msra.mxu0 0
        %5083 = vmatpush.bf16.msra.mxu0 0
        %5084 = vmatpush.bf16.msra.mxu0 0
        %5085 = vmatpush.bf16.msra.mxu0 0
        %5086 = vmatpush.bf16.msra.mxu0 0
        %5087 = vmatpush.bf16.msra.mxu0 %v5078
        %5088 = vmatpush.bf16.msra.mxu0 %v5077
        %5089 = vmatmul.bf16.gmra.mxu0 %v5029
        %v5090 = vpop.f32.mrf.mxu0
        %v5091 = vadd.f32 %v5010, %v5090
        %v5092 = vpop.f32.mrf.mxu0
        %5093 = vdwg.mxu0
        %v5098 = vunpack.c.l.b16 %v4945
        %v5099 = vunpack.c.l.b16 %v4946
        %v5100 = vunpack.c.l.b16 %v4947
        %v5101 = vunpack.c.l.b16 %v4948
        %v5102 = vpack.c.b16 %v5099, %v5098
        %v5103 = vpack.c.b16 %v5101, %v5100
        %5106 = vmatpush.bf16.msra.mxu0 0
        %5107 = vmatpush.bf16.msra.mxu0 0
        %5108 = vmatpush.bf16.msra.mxu0 0
        %5109 = vmatpush.bf16.msra.mxu0 0
        %5110 = vmatpush.bf16.msra.mxu0 0
        %5111 = vmatpush.bf16.msra.mxu0 0
        %5112 = vmatpush.bf16.msra.mxu0 %v5103
        %5113 = vmatpush.bf16.msra.mxu0 %v5102
        %5114 = vmatmul.bf16.gmra.mxu0 %v5029
        %v5115 = vpop.f32.mrf.mxu0
        %v5116 = vadd.f32 %v5011, %v5115
        %v5117 = vpop.f32.mrf.mxu0
        %5118 = vdwg.mxu0
        %v5127 = vperm.slane %v4988, 0
        %v5128 = vperm.slane %v4989, 0
        %v5129 = vperm.slane %v4990, 0
        %v5130 = vperm.slane %v4991, 0
        %v5131 = vperm.slane %v4992, 0
        %v5132 = vperm.slane %v4993, 0
        %v5133 = vperm.slane %v4994, 0
        %v5134 = vperm.slane %v4995, 0
        %v5147 = vunpack.c.l.b16 %v4955
        %v5148 = vunpack.c.l.b16 %v4956
        %v5149 = vunpack.c.l.b16 %v4957
        %v5150 = vunpack.c.l.b16 %v4958
        %v5151 = vpack.c.b16 %v5148, %v5147
        %v5152 = vpack.c.b16 %v5150, %v5149
        %5155 = vmatpush.bf16.msra.mxu0 0
        %5156 = vmatpush.bf16.msra.mxu0 0
        %5157 = vmatpush.bf16.msra.mxu0 0
        %5158 = vmatpush.bf16.msra.mxu0 0
        %5159 = vmatpush.bf16.msra.mxu0 0
        %5160 = vmatpush.bf16.msra.mxu0 0
        %5161 = vmatpush.bf16.msra.mxu0 %v5152
        %5162 = vmatpush.bf16.msra.mxu0 %v5151
        %5163 = vmatmul.bf16.gmra.mxu0 %v5029
        %v5164 = vpop.f32.mrf.mxu0
        %v5165 = vadd.f32 %v5127, %v5164
        %v5166 = vpop.f32.mrf.mxu0
        %5167 = vdwg.mxu0
        %v5172 = vunpack.c.l.b16 %v4959
        %v5173 = vunpack.c.l.b16 %v4960
        %v5174 = vunpack.c.l.b16 %v4961
        %v5175 = vunpack.c.l.b16 %v4962
        %v5176 = vpack.c.b16 %v5173, %v5172
        %v5177 = vpack.c.b16 %v5175, %v5174
        %5180 = vmatpush.bf16.msra.mxu0 0
        %5181 = vmatpush.bf16.msra.mxu0 0
        %5182 = vmatpush.bf16.msra.mxu0 0
        %5183 = vmatpush.bf16.msra.mxu0 0
        %5184 = vmatpush.bf16.msra.mxu0 0
        %5185 = vmatpush.bf16.msra.mxu0 0
        %5186 = vmatpush.bf16.msra.mxu0 %v5177
        %5187 = vmatpush.bf16.msra.mxu0 %v5176
        %5188 = vmatmul.bf16.gmra.mxu0 %v5029
        %v5189 = vpop.f32.mrf.mxu0
        %v5190 = vadd.f32 %v5128, %v5189
        %v5191 = vpop.f32.mrf.mxu0
        %5192 = vdwg.mxu0
        %v5197 = vunpack.c.l.b16 %v4963
        %v5198 = vunpack.c.l.b16 %v4964
        %v5199 = vunpack.c.l.b16 %v4965
        %v5200 = vunpack.c.l.b16 %v4966
        %v5201 = vpack.c.b16 %v5198, %v5197
        %v5202 = vpack.c.b16 %v5200, %v5199
        %5205 = vmatpush.bf16.msra.mxu0 0
        %5206 = vmatpush.bf16.msra.mxu0 0
        %5207 = vmatpush.bf16.msra.mxu0 0
        %5208 = vmatpush.bf16.msra.mxu0 0
        %5209 = vmatpush.bf16.msra.mxu0 0
        %5210 = vmatpush.bf16.msra.mxu0 0
        %5211 = vmatpush.bf16.msra.mxu0 %v5202
        %5212 = vmatpush.bf16.msra.mxu0 %v5201
        %5213 = vmatmul.bf16.gmra.mxu0 %v5029
        %v5214 = vpop.f32.mrf.mxu0
        %v5215 = vadd.f32 %v5129, %v5214
        %v5216 = vpop.f32.mrf.mxu0
        %5217 = vdwg.mxu0
        %v5222 = vunpack.c.l.b16 %v4967
        %v5223 = vunpack.c.l.b16 %v4968
        %v5224 = vunpack.c.l.b16 %v4969
        %v5225 = vunpack.c.l.b16 %v4970
        %v5226 = vpack.c.b16 %v5223, %v5222
        %v5227 = vpack.c.b16 %v5225, %v5224
        %5230 = vmatpush.bf16.msra.mxu0 0
        %5231 = vmatpush.bf16.msra.mxu0 0
        %5232 = vmatpush.bf16.msra.mxu0 0
        %5233 = vmatpush.bf16.msra.mxu0 0
        %5234 = vmatpush.bf16.msra.mxu0 0
        %5235 = vmatpush.bf16.msra.mxu0 0
        %5236 = vmatpush.bf16.msra.mxu0 %v5227
        %5237 = vmatpush.bf16.msra.mxu0 %v5226
        %5238 = vmatmul.bf16.gmra.mxu0 %v5029
        %v5239 = vpop.f32.mrf.mxu0
        %v5240 = vadd.f32 %v5130, %v5239
        %v5241 = vpop.f32.mrf.mxu0
        %5242 = vdwg.mxu0
        %v5247 = vunpack.c.l.b16 %v4971
        %v5248 = vunpack.c.l.b16 %v4972
        %v5249 = vunpack.c.l.b16 %v4973
        %v5250 = vunpack.c.l.b16 %v4974
        %v5251 = vpack.c.b16 %v5248, %v5247
        %v5252 = vpack.c.b16 %v5250, %v5249
        %5255 = vmatpush.bf16.msra.mxu0 0
        %5256 = vmatpush.bf16.msra.mxu0 0
        %5257 = vmatpush.bf16.msra.mxu0 0
        %5258 = vmatpush.bf16.msra.mxu0 0
        %5259 = vmatpush.bf16.msra.mxu0 0
        %5260 = vmatpush.bf16.msra.mxu0 0
        %5261 = vmatpush.bf16.msra.mxu0 %v5252
        %5262 = vmatpush.bf16.msra.mxu0 %v5251
        %5263 = vmatmul.bf16.gmra.mxu0 %v5029
        %v5264 = vpop.f32.mrf.mxu0
        %v5265 = vadd.f32 %v5131, %v5264
        %v5266 = vpop.f32.mrf.mxu0
        %5267 = vdwg.mxu0
        %v5272 = vunpack.c.l.b16 %v4975
        %v5273 = vunpack.c.l.b16 %v4976
        %v5274 = vunpack.c.l.b16 %v4977
        %v5275 = vunpack.c.l.b16 %v4978
        %v5276 = vpack.c.b16 %v5273, %v5272
        %v5277 = vpack.c.b16 %v5275, %v5274
        %5280 = vmatpush.bf16.msra.mxu0 0
        %5281 = vmatpush.bf16.msra.mxu0 0
        %5282 = vmatpush.bf16.msra.mxu0 0
        %5283 = vmatpush.bf16.msra.mxu0 0
        %5284 = vmatpush.bf16.msra.mxu0 0
        %5285 = vmatpush.bf16.msra.mxu0 0
        %5286 = vmatpush.bf16.msra.mxu0 %v5277
        %5287 = vmatpush.bf16.msra.mxu0 %v5276
        %5288 = vmatmul.bf16.gmra.mxu0 %v5029
        %v5289 = vpop.f32.mrf.mxu0
        %v5290 = vadd.f32 %v5132, %v5289
        %v5291 = vpop.f32.mrf.mxu0
        %5292 = vdwg.mxu0
        %v5297 = vunpack.c.l.b16 %v4979
        %v5298 = vunpack.c.l.b16 %v4980
        %v5299 = vunpack.c.l.b16 %v4981
        %v5300 = vunpack.c.l.b16 %v4982
        %v5301 = vpack.c.b16 %v5298, %v5297
        %v5302 = vpack.c.b16 %v5300, %v5299
        %5305 = vmatpush.bf16.msra.mxu0 0
        %5306 = vmatpush.bf16.msra.mxu0 0
        %5307 = vmatpush.bf16.msra.mxu0 0
        %5308 = vmatpush.bf16.msra.mxu0 0
        %5309 = vmatpush.bf16.msra.mxu0 0
        %5310 = vmatpush.bf16.msra.mxu0 0
        %5311 = vmatpush.bf16.msra.mxu0 %v5302
        %5312 = vmatpush.bf16.msra.mxu0 %v5301
        %5313 = vmatmul.bf16.gmra.mxu0 %v5029
        %v5314 = vpop.f32.mrf.mxu0
        %v5315 = vadd.f32 %v5133, %v5314
        %v5316 = vpop.f32.mrf.mxu0
        %5317 = vdwg.mxu0
        %v5322 = vunpack.c.l.b16 %v4983
        %v5323 = vunpack.c.l.b16 %v4984
        %v5324 = vunpack.c.l.b16 %v4985
        %v5325 = vunpack.c.l.b16 %v4986
        %v5326 = vpack.c.b16 %v5323, %v5322
        %v5327 = vpack.c.b16 %v5325, %v5324
        %5330 = vmatpush.bf16.msra.mxu0 0
        %5331 = vmatpush.bf16.msra.mxu0 0
        %5332 = vmatpush.bf16.msra.mxu0 0
        %5333 = vmatpush.bf16.msra.mxu0 0
        %5334 = vmatpush.bf16.msra.mxu0 0
        %5335 = vmatpush.bf16.msra.mxu0 0
        %5336 = vmatpush.bf16.msra.mxu0 %v5327
        %5337 = vmatpush.bf16.msra.mxu0 %v5326
        %5338 = vmatmul.bf16.gmra.mxu0 %v5029
        %v5339 = vpop.f32.mrf.mxu0
        %v5340 = vadd.f32 %v5134, %v5339
        %v5341 = vpop.f32.mrf.mxu0
        %5342 = vdwg.mxu0
        %v5343 = vpack.c.bf16 %v5041, %v5041
        %v5344 = vpack.c.bf16 %v5066, %v5066
        %v5345 = vpack.c.bf16 %v5091, %v5091
        %v5346 = vpack.c.bf16 %v5116, %v5116
        %v5347 = vpack.c.bf16 %v5165, %v5165
        %v5348 = vpack.c.bf16 %v5190, %v5190
        %v5349 = vpack.c.bf16 %v5215, %v5215
        %v5350 = vpack.c.bf16 %v5240, %v5240
        %v5352 = vsel %vm1778, %v5343, 0
        %v5355 = vsel %vm1778, %v5347, 0
        %5357 = vmatpush.bf16.xpose.msra.mxu0 0
        %5358 = vmatpush.bf16.xpose.msra.mxu0 0
        %5359 = vmatpush.bf16.xpose.msra.mxu0 0
        %5360 = vmatpush.bf16.xpose.msra.mxu0 0
        %5361 = vmatpush.bf16.xpose.msra.mxu0 0
        %5362 = vmatpush.bf16.xpose.msra.mxu0 0
        %5363 = vmatpush.bf16.xpose.msra.mxu0 0
        %5364 = vmatpush.bf16.xpose.msra.mxu0 %v5355
        %5365 = vmatmul.bf16.gmra.mxu0 %v5352
        %v5366 = vpop.f32.mrf.mxu0
        %v5367 = vadd.f32 %v1321, %v5366
        %v5368 = vpop.f32.mrf.mxu0
        %5369 = vdwg.mxu0
        %v5371 = vsel %vm1778, %v5344, 0
        %v5374 = vsel %vm1778, %v5348, 0
        %5376 = vmatpush.bf16.xpose.msra.mxu0 0
        %5377 = vmatpush.bf16.xpose.msra.mxu0 0
        %5378 = vmatpush.bf16.xpose.msra.mxu0 0
        %5379 = vmatpush.bf16.xpose.msra.mxu0 0
        %5380 = vmatpush.bf16.xpose.msra.mxu0 0
        %5381 = vmatpush.bf16.xpose.msra.mxu0 0
        %5382 = vmatpush.bf16.xpose.msra.mxu0 0
        %5383 = vmatpush.bf16.xpose.msra.mxu0 %v5374
        %5384 = vmatmul.bf16.gmra.mxu0 %v5371
        %v5385 = vpop.f32.mrf.mxu0
        %v5386 = vadd.f32 %v1321, %v5385
        %v5387 = vpop.f32.mrf.mxu0
        %5388 = vdwg.mxu0
        %v5390 = vsel %vm1778, %v5345, 0
        %v5393 = vsel %vm1778, %v5349, 0
        %5395 = vmatpush.bf16.xpose.msra.mxu0 0
        %5396 = vmatpush.bf16.xpose.msra.mxu0 0
        %5397 = vmatpush.bf16.xpose.msra.mxu0 0
        %5398 = vmatpush.bf16.xpose.msra.mxu0 0
        %5399 = vmatpush.bf16.xpose.msra.mxu0 0
        %5400 = vmatpush.bf16.xpose.msra.mxu0 0
        %5401 = vmatpush.bf16.xpose.msra.mxu0 0
        %5402 = vmatpush.bf16.xpose.msra.mxu0 %v5393
        %5403 = vmatmul.bf16.gmra.mxu0 %v5390
        %v5404 = vpop.f32.mrf.mxu0
        %v5405 = vadd.f32 %v1321, %v5404
        %v5406 = vpop.f32.mrf.mxu0
        %5407 = vdwg.mxu0
        %v5409 = vsel %vm1778, %v5346, 0
        %v5412 = vsel %vm1778, %v5350, 0
        %5414 = vmatpush.bf16.xpose.msra.mxu0 0
        %5415 = vmatpush.bf16.xpose.msra.mxu0 0
        %5416 = vmatpush.bf16.xpose.msra.mxu0 0
        %5417 = vmatpush.bf16.xpose.msra.mxu0 0
        %5418 = vmatpush.bf16.xpose.msra.mxu0 0
        %5419 = vmatpush.bf16.xpose.msra.mxu0 0
        %5420 = vmatpush.bf16.xpose.msra.mxu0 0
        %5421 = vmatpush.bf16.xpose.msra.mxu0 %v5412
        %5422 = vmatmul.bf16.gmra.mxu0 %v5409
        %v5423 = vpop.f32.mrf.mxu0
        %v5424 = vadd.f32 %v1321, %v5423
        %v5425 = vpop.f32.mrf.mxu0
        %5426 = vdwg.mxu0
        %v5427 = vsel %vm1778, %v5367, -inf
        %5428 = vmax.xlane.f32.xlu0 %v5427
        %v5429 = vpop.xlane.xlu0 %5428
        %v5430 = vsel %vm1778, %v5386, -inf
        %5431 = vmax.xlane.f32.xlu0 %v5430
        %v5432 = vpop.xlane.xlu0 %5431
        %v5433 = vsel %vm1778, %v5405, -inf
        %5434 = vmax.xlane.f32.xlu0 %v5433
        %v5435 = vpop.xlane.xlu0 %5434
        %v5436 = vsel %vm1778, %v5424, -inf
        %5437 = vmax.xlane.f32.xlu0 %v5436
        %v5438 = vpop.xlane.xlu0 %5437
        %v5439 = vsub.f32 %v5367, %v5429
        %v5440 = vsub.f32 %v5386, %v5432
        %v5441 = vsub.f32 %v5405, %v5435
        %v5442 = vsub.f32 %v5424, %v5438
        %v5443 = vmul.f32 %v5439, 1.442695
        %v5444 = vpow.pop %v5443
        %v5445 = vmul.f32 %v5440, 1.442695
        %v5446 = vpow.pop %v5445
        %v5447 = vmul.f32 %v5441, 1.442695
        %v5448 = vpow.pop %v5447
        %v5449 = vmul.f32 %v5442, 1.442695
        %v5450 = vpow.pop %v5449
        %v5451 = vsel %vm1778, %v5444, 0.0
        %5452 = vadd.xlane.f32.xlu0 %v5451
        %v5453 = vpop.xlane.xlu0 %5452
        %v5454 = vsel %vm1778, %v5446, 0.0
        %5455 = vadd.xlane.f32.xlu0 %v5454
        %v5456 = vpop.xlane.xlu0 %5455
        %v5457 = vsel %vm1778, %v5448, 0.0
        %5458 = vadd.xlane.f32.xlu0 %v5457
        %v5459 = vpop.xlane.xlu0 %5458
        %v5460 = vsel %vm1778, %v5450, 0.0
        %5461 = vadd.xlane.f32.xlu0 %v5460
        %v5462 = vpop.xlane.xlu0 %5461
        %v5463 = vrcp.pop %v5453
        %v5464 = vmul.f32 %v5453, %v5463
        %v5465 = vsub.f32 1.0, %v5464
        %v5466 = vmul.f32 %v5463, %v5465
        %v5467 = vadd.f32 %v5463, %v5466
        %vm5468 = vweird.f32 %v5453
        %vm5469 = vweird.f32 %v5463
        %vm5470 = vmor %vm5468, %vm5469
        %v5471 = vsel %vm5470, %v5463, %v5467
        %v5472 = vand.u32 2147483647, %v5453
        %vm5473 = vcmp.eq.f32.partialorder %v5472, 8.507059e+37
        %v5474 = vand.u32 %v5453, 2147483648
        %v5475 = vor.u32 1.1754944e-38, %v5474
        %v5476 = vsel %vm5473, %v5475, %v5471
        %v5477 = vmul.f32 %v5444, %v5476
        %v5478 = vrcp.pop %v5456
        %v5479 = vmul.f32 %v5456, %v5478
        %v5480 = vsub.f32 1.0, %v5479
        %v5481 = vmul.f32 %v5478, %v5480
        %v5482 = vadd.f32 %v5478, %v5481
        %vm5483 = vweird.f32 %v5456
        %vm5484 = vweird.f32 %v5478
        %vm5485 = vmor %vm5483, %vm5484
        %v5486 = vsel %vm5485, %v5478, %v5482
        %v5487 = vand.u32 2147483647, %v5456
        %vm5488 = vcmp.eq.f32.partialorder %v5487, 8.507059e+37
        %v5489 = vand.u32 %v5456, 2147483648
        %v5490 = vor.u32 1.1754944e-38, %v5489
        %v5491 = vsel %vm5488, %v5490, %v5486
        %v5492 = vmul.f32 %v5446, %v5491
        %v5493 = vrcp.pop %v5459
        %v5494 = vmul.f32 %v5459, %v5493
        %v5495 = vsub.f32 1.0, %v5494
        %v5496 = vmul.f32 %v5493, %v5495
        %v5497 = vadd.f32 %v5493, %v5496
        %vm5498 = vweird.f32 %v5459
        %vm5499 = vweird.f32 %v5493
        %vm5500 = vmor %vm5498, %vm5499
        %v5501 = vsel %vm5500, %v5493, %v5497
        %v5502 = vand.u32 2147483647, %v5459
        %vm5503 = vcmp.eq.f32.partialorder %v5502, 8.507059e+37
        %v5504 = vand.u32 %v5459, 2147483648
        %v5505 = vor.u32 1.1754944e-38, %v5504
        %v5506 = vsel %vm5503, %v5505, %v5501
        %v5507 = vmul.f32 %v5448, %v5506
        %v5508 = vrcp.pop %v5462
        %v5509 = vmul.f32 %v5462, %v5508
        %v5510 = vsub.f32 1.0, %v5509
        %v5511 = vmul.f32 %v5508, %v5510
        %v5512 = vadd.f32 %v5508, %v5511
        %vm5513 = vweird.f32 %v5462
        %vm5514 = vweird.f32 %v5508
        %vm5515 = vmor %vm5513, %vm5514
        %v5516 = vsel %vm5515, %v5508, %v5512
        %v5517 = vand.u32 2147483647, %v5462
        %vm5518 = vcmp.eq.f32.partialorder %v5517, 8.507059e+37
        %v5519 = vand.u32 %v5462, 2147483648
        %v5520 = vor.u32 1.1754944e-38, %v5519
        %v5521 = vsel %vm5518, %v5520, %v5516
        %v5522 = vmul.f32 %v5450, %v5521
        %v5523 = vpack.c.bf16 %v5477, %v5477
        %v5524 = vpack.c.bf16 %v5492, %v5492
        %v5525 = vpack.c.bf16 %v5507, %v5507
        %v5526 = vpack.c.bf16 %v5522, %v5522
        %v5527 = vpack.c.bf16 %v5265, %v5265
        %v5528 = vpack.c.bf16 %v5290, %v5290
        %v5529 = vpack.c.bf16 %v5315, %v5315
        %v5530 = vpack.c.bf16 %v5340, %v5340
        %v5532 = vsel %vm1778, %v5523, 0
        %v5535 = vsel %vm1962, %v5527, 0
        %5537 = vmatpush.bf16.msra.mxu0 0
        %5538 = vmatpush.bf16.msra.mxu0 0
        %5539 = vmatpush.bf16.msra.mxu0 0
        %5540 = vmatpush.bf16.msra.mxu0 0
        %5541 = vmatpush.bf16.msra.mxu0 0
        %5542 = vmatpush.bf16.msra.mxu0 0
        %5543 = vmatpush.bf16.msra.mxu0 0
        %5544 = vmatpush.bf16.msra.mxu0 %v5535
        %5545 = vmatmul.bf16.gmra.mxu0 %v5532
        %v5546 = vpop.f32.mrf.mxu0
        %v5547 = vadd.f32 0.0, %v5546
        %v5548 = vpop.f32.mrf.mxu0
        %5549 = vdwg.mxu0
        %v5551 = vsel %vm1778, %v5524, 0
        %v5554 = vsel %vm1962, %v5528, 0
        %5556 = vmatpush.bf16.msra.mxu0 0
        %5557 = vmatpush.bf16.msra.mxu0 0
        %5558 = vmatpush.bf16.msra.mxu0 0
        %5559 = vmatpush.bf16.msra.mxu0 0
        %5560 = vmatpush.bf16.msra.mxu0 0
        %5561 = vmatpush.bf16.msra.mxu0 0
        %5562 = vmatpush.bf16.msra.mxu0 0
        %5563 = vmatpush.bf16.msra.mxu0 %v5554
        %5564 = vmatmul.bf16.gmra.mxu0 %v5551
        %v5565 = vpop.f32.mrf.mxu0
        %v5566 = vadd.f32 0.0, %v5565
        %v5567 = vpop.f32.mrf.mxu0
        %5568 = vdwg.mxu0
        %v5570 = vsel %vm1778, %v5525, 0
        %v5573 = vsel %vm1962, %v5529, 0
        %5575 = vmatpush.bf16.msra.mxu0 0
        %5576 = vmatpush.bf16.msra.mxu0 0
        %5577 = vmatpush.bf16.msra.mxu0 0
        %5578 = vmatpush.bf16.msra.mxu0 0
        %5579 = vmatpush.bf16.msra.mxu0 0
        %5580 = vmatpush.bf16.msra.mxu0 0
        %5581 = vmatpush.bf16.msra.mxu0 0
        %5582 = vmatpush.bf16.msra.mxu0 %v5573
        %5583 = vmatmul.bf16.gmra.mxu0 %v5570
        %v5584 = vpop.f32.mrf.mxu0
        %v5585 = vadd.f32 0.0, %v5584
        %v5586 = vpop.f32.mrf.mxu0
        %5587 = vdwg.mxu0
        %v5589 = vsel %vm1778, %v5526, 0
        %v5592 = vsel %vm1962, %v5530, 0
        %5594 = vmatpush.bf16.msra.mxu0 0
        %5595 = vmatpush.bf16.msra.mxu0 0
        %5596 = vmatpush.bf16.msra.mxu0 0
        %5597 = vmatpush.bf16.msra.mxu0 0
        %5598 = vmatpush.bf16.msra.mxu0 0
        %5599 = vmatpush.bf16.msra.mxu0 0
        %5600 = vmatpush.bf16.msra.mxu0 0
        %5601 = vmatpush.bf16.msra.mxu0 %v5592
        %5602 = vmatmul.bf16.gmra.mxu0 %v5589
        %v5603 = vpop.f32.mrf.mxu0
        %v5604 = vadd.f32 0.0, %v5603
        %v5605 = vpop.f32.mrf.mxu0
        %5606 = vdwg.mxu0
        %v5607 = vpack.c.bf16 %v5547, %v5547
        %v5608 = vpack.c.bf16 %v5566, %v5566
        %v5609 = vpack.c.bf16 %v5585, %v5585
        %v5610 = vpack.c.bf16 %v5604, %v5604
        %v5612 = vsel %vm1778, %v5607, 0
        %v5615 = vsel %vm1962, %v4997, 0
        %5617 = vmatpush.bf16.msra.mxu0 0
        %5618 = vmatpush.bf16.msra.mxu0 0
        %5619 = vmatpush.bf16.msra.mxu0 0
        %5620 = vmatpush.bf16.msra.mxu0 0
        %5621 = vmatpush.bf16.msra.mxu0 0
        %5622 = vmatpush.bf16.msra.mxu0 0
        %5623 = vmatpush.bf16.msra.mxu0 0
        %5624 = vmatpush.bf16.msra.mxu0 %v5615
        %5625 = vmatmul.bf16.gmra.mxu0 %v5612
        %v5626 = vpop.f32.mrf.mxu0
        %v5627 = vadd.f32 0.0, %v5626
        %v5628 = vpop.f32.mrf.mxu0
        %5629 = vdwg.mxu0
        %v5631 = vsel %vm1778, %v5608, 0
        %v5634 = vsel %vm1962, %v4998, 0
        %5636 = vmatpush.bf16.msra.mxu0 0
        %5637 = vmatpush.bf16.msra.mxu0 0
        %5638 = vmatpush.bf16.msra.mxu0 0
        %5639 = vmatpush.bf16.msra.mxu0 0
        %5640 = vmatpush.bf16.msra.mxu0 0
        %5641 = vmatpush.bf16.msra.mxu0 0
        %5642 = vmatpush.bf16.msra.mxu0 0
        %5643 = vmatpush.bf16.msra.mxu0 %v5634
        %5644 = vmatmul.bf16.gmra.mxu0 %v5631
        %v5645 = vpop.f32.mrf.mxu0
        %v5646 = vadd.f32 0.0, %v5645
        %v5647 = vpop.f32.mrf.mxu0
        %5648 = vdwg.mxu0
        %v5650 = vsel %vm1778, %v5609, 0
        %v5653 = vsel %vm1962, %v4999, 0
        %5655 = vmatpush.bf16.msra.mxu0 0
        %5656 = vmatpush.bf16.msra.mxu0 0
        %5657 = vmatpush.bf16.msra.mxu0 0
        %5658 = vmatpush.bf16.msra.mxu0 0
        %5659 = vmatpush.bf16.msra.mxu0 0
        %5660 = vmatpush.bf16.msra.mxu0 0
        %5661 = vmatpush.bf16.msra.mxu0 0
        %5662 = vmatpush.bf16.msra.mxu0 %v5653
        %5663 = vmatmul.bf16.gmra.mxu0 %v5650
        %v5664 = vpop.f32.mrf.mxu0
        %v5665 = vadd.f32 0.0, %v5664
        %v5666 = vpop.f32.mrf.mxu0
        %5667 = vdwg.mxu0
        %v5669 = vsel %vm1778, %v5610, 0
        %v5672 = vsel %vm1962, %v5000, 0
        %5674 = vmatpush.bf16.msra.mxu0 0
        %5675 = vmatpush.bf16.msra.mxu0 0
        %5676 = vmatpush.bf16.msra.mxu0 0
        %5677 = vmatpush.bf16.msra.mxu0 0
        %5678 = vmatpush.bf16.msra.mxu0 0
        %5679 = vmatpush.bf16.msra.mxu0 0
        %5680 = vmatpush.bf16.msra.mxu0 0
        %5681 = vmatpush.bf16.msra.mxu0 %v5672
        %5682 = vmatmul.bf16.gmra.mxu0 %v5669
        %v5683 = vpop.f32.mrf.mxu0
        %v5684 = vadd.f32 0.0, %v5683
        %v5685 = vpop.f32.mrf.mxu0
        %5686 = vdwg.mxu0
        %v5687 = vsel %vm1324, %v5627, 0.0
        %v5688 = vsel %vm1324, %v5646, 0.0
        %v5689 = vadd.f32 %v5687, %v5688
        %v5690 = vsel %vm1324, %v5665, 0.0
        %v5691 = vadd.f32 %v5689, %v5690
        %v5692 = vsel %vm1324, %v5684, 0.0
        %v5693 = vadd.f32 %v5691, %v5692
        %v5695 = vperm.slane %v5002, 0
        %v5697 = vadd.f32 %v5693, %v5695
        %v5698 = vadd.f32 %v4897, %v5697
        %s5699 = scalar_lea.vmem %s31, 1
        %v5700 = vld [vmem:[%s5699] sm:$0x1]
        %s5701 = scalar_lea.vmem %s29, 1
        %v5702 = vld [vmem:[%s5701] sm:$0x1]
        %v5703 = vsel %vm1324, %v5698, 0.0
        %5704 = vadd.xlane.f32.xlu0 %v5703
        %v5705 = vpop.xlane.xlu0 %5704
        %v5706 = vmul.f32 %v5705, %v1334
        %v5707 = vsub.f32 %v5698, %v5706
        %v5708 = vmul.f32 %v5707, %v5707
        %v5709 = vsel %vm1324, %v5708, 0.0
        %5710 = vadd.xlane.f32.xlu0 %v5709
        %v5711 = vpop.xlane.xlu0 %5710
        %v5712 = vmul.f32 %v5711, %v1334
        %v5713 = vadd.f32 %v5712, 1e-05
        %v5714 = vrsqrt.pop %v5713
        %v5715 = vmul.f32 %v5714, %v5713
        %v5716 = vmul.f32 %v5715, %v5714
        %v5717 = vmul.f32 0.5, %v5716
        %v5718 = vsub.f32 1.5, %v5717
        %v5719 = vmul.f32 %v5714, %v5718
        %vm5720 = vweird.f32 %v5713
        %vm5721 = vweird.f32 %v5714
        %vm5722 = vmor %vm5720, %vm5721
        %v5723 = vsel %vm5722, %v5714, %v5719
        %v5724 = vmul.f32 %v5707, %v5723
        %v5726 = vperm.slane %v5700, 0
        %v5728 = vmul.f32 %v5724, %v5726
        %v5730 = vperm.slane %v5702, 0
        %v5732 = vadd.f32 %v5728, %v5730
        %s5733 = scalar_lea.vmem %s23, 64
        %v5734 = vld [vmem:[%s5733] sm:$0xf]
        %v5735 = vld [vmem:[%s5733 + $0x4] sm:$0xf]
        %v5736 = vld [vmem:[%s5733 + $0x8] sm:$0xf]
        %v5737 = vld [vmem:[%s5733 + $0xc] sm:$0xf]
        %v5738 = vld [vmem:[%s5733 + $0x10] sm:$0xf]
        %v5739 = vld [vmem:[%s5733 + $0x14] sm:$0xf]
        %v5740 = vld [vmem:[%s5733 + $0x18] sm:$0xf]
        %v5741 = vld [vmem:[%s5733 + $0x1c] sm:$0xf]
        %v5742 = vld [vmem:[%s5733 + $0x20] sm:$0xf]
        %v5743 = vld [vmem:[%s5733 + $0x24] sm:$0xf]
        %v5744 = vld [vmem:[%s5733 + $0x28] sm:$0xf]
        %v5745 = vld [vmem:[%s5733 + $0x2c] sm:$0xf]
        %v5746 = vld [vmem:[%s5733 + $0x30] sm:$0xf]
        %v5747 = vld [vmem:[%s5733 + $0x34] sm:$0xf]
        %v5748 = vld [vmem:[%s5733 + $0x38] sm:$0xf]
        %v5749 = vld [vmem:[%s5733 + $0x3c] sm:$0xf]
        %s5750 = scalar_lea.vmem %s17, 4
        %v5751 = vld [vmem:[%s5750] sm:$0x1]
        %v5752 = vld [vmem:[%s5750 + $0x1] sm:$0x1]
        %v5753 = vld [vmem:[%s5750 + $0x2] sm:$0x1]
        %v5754 = vld [vmem:[%s5750 + $0x3] sm:$0x1]
        %s5755 = scalar_lea.vmem %s19, 128
        %v5756 = vld [vmem:[%s5755] sm:$0xf]
        %v5757 = vld [vmem:[%s5755 + $0x4] sm:$0xf]
        %v5758 = vld [vmem:[%s5755 + $0x8] sm:$0xf]
        %v5759 = vld [vmem:[%s5755 + $0xc] sm:$0xf]
        %v5760 = vld [vmem:[%s5755 + $0x10] sm:$0xf]
        %v5761 = vld [vmem:[%s5755 + $0x14] sm:$0xf]
        %v5762 = vld [vmem:[%s5755 + $0x18] sm:$0xf]
        %v5763 = vld [vmem:[%s5755 + $0x1c] sm:$0xf]
        %v5764 = vld [vmem:[%s5755 + $0x20] sm:$0xf]
        %v5765 = vld [vmem:[%s5755 + $0x24] sm:$0xf]
        %v5766 = vld [vmem:[%s5755 + $0x28] sm:$0xf]
        %v5767 = vld [vmem:[%s5755 + $0x2c] sm:$0xf]
        %v5768 = vld [vmem:[%s5755 + $0x30] sm:$0xf]
        %v5769 = vld [vmem:[%s5755 + $0x34] sm:$0xf]
        %v5770 = vld [vmem:[%s5755 + $0x38] sm:$0xf]
        %v5771 = vld [vmem:[%s5755 + $0x3c] sm:$0xf]
        %v5772 = vld [vmem:[%s5755 + $0x40] sm:$0xf]
        %v5773 = vld [vmem:[%s5755 + $0x44] sm:$0xf]
        %v5774 = vld [vmem:[%s5755 + $0x48] sm:$0xf]
        %v5775 = vld [vmem:[%s5755 + $0x4c] sm:$0xf]
        %v5776 = vld [vmem:[%s5755 + $0x50] sm:$0xf]
        %v5777 = vld [vmem:[%s5755 + $0x54] sm:$0xf]
        %v5778 = vld [vmem:[%s5755 + $0x58] sm:$0xf]
        %v5779 = vld [vmem:[%s5755 + $0x5c] sm:$0xf]
        %v5780 = vld [vmem:[%s5755 + $0x60] sm:$0xf]
        %v5781 = vld [vmem:[%s5755 + $0x64] sm:$0xf]
        %v5782 = vld [vmem:[%s5755 + $0x68] sm:$0xf]
        %v5783 = vld [vmem:[%s5755 + $0x6c] sm:$0xf]
        %v5784 = vld [vmem:[%s5755 + $0x70] sm:$0xf]
        %v5785 = vld [vmem:[%s5755 + $0x74] sm:$0xf]
        %v5786 = vld [vmem:[%s5755 + $0x78] sm:$0xf]
        %v5787 = vld [vmem:[%s5755 + $0x7c] sm:$0xf]
        %s5788 = scalar_lea.vmem %s13, 8
        %v5789 = vld [vmem:[%s5788] sm:$0x1]
        %v5790 = vld [vmem:[%s5788 + $0x1] sm:$0x1]
        %v5791 = vld [vmem:[%s5788 + $0x2] sm:$0x1]
        %v5792 = vld [vmem:[%s5788 + $0x3] sm:$0x1]
        %v5793 = vld [vmem:[%s5788 + $0x4] sm:$0x1]
        %v5794 = vld [vmem:[%s5788 + $0x5] sm:$0x1]
        %v5795 = vld [vmem:[%s5788 + $0x6] sm:$0x1]
        %v5796 = vld [vmem:[%s5788 + $0x7] sm:$0x1]
        %s5797 = scalar_lea.vmem %s21, 16
        %v5798 = vld [vmem:[%s5797] sm:$0xf]
        %v5799 = vld [vmem:[%s5797 + $0x4] sm:$0xf]
        %v5800 = vld [vmem:[%s5797 + $0x8] sm:$0xf]
        %v5801 = vld [vmem:[%s5797 + $0xc] sm:$0xf]
        %s5802 = scalar_lea.vmem %s15, 1
        %v5803 = vld [vmem:[%s5802] sm:$0x1]
        %v5804 = vpack.c.bf16 %v5732, %v5732
        %v5809 = vperm.slane %v5751, 0
        %v5810 = vperm.slane %v5752, 0
        %v5811 = vperm.slane %v5753, 0
        %v5812 = vperm.slane %v5754, 0
        %v5821 = vunpack.c.l.b16 %v5734
        %v5822 = vunpack.c.l.b16 %v5735
        %v5823 = vunpack.c.l.b16 %v5736
        %v5824 = vunpack.c.l.b16 %v5737
        %v5825 = vpack.c.b16 %v5822, %v5821
        %v5826 = vpack.c.b16 %v5824, %v5823
        %v5830 = vsel %vm1324, %v5804, 0
        %5832 = vmatpush.bf16.msra.mxu0 0
        %5833 = vmatpush.bf16.msra.mxu0 0
        %5834 = vmatpush.bf16.msra.mxu0 0
        %5835 = vmatpush.bf16.msra.mxu0 0
        %5836 = vmatpush.bf16.msra.mxu0 0
        %5837 = vmatpush.bf16.msra.mxu0 0
        %5838 = vmatpush.bf16.msra.mxu0 %v5826
        %5839 = vmatpush.bf16.msra.mxu0 %v5825
        %5840 = vmatmul.bf16.gmra.mxu0 %v5830
        %v5841 = vpop.f32.mrf.mxu0
        %v5842 = vadd.f32 %v5809, %v5841
        %v5843 = vpop.f32.mrf.mxu0
        %5844 = vdwg.mxu0
        %v5849 = vunpack.c.l.b16 %v5738
        %v5850 = vunpack.c.l.b16 %v5739
        %v5851 = vunpack.c.l.b16 %v5740
        %v5852 = vunpack.c.l.b16 %v5741
        %v5853 = vpack.c.b16 %v5850, %v5849
        %v5854 = vpack.c.b16 %v5852, %v5851
        %5857 = vmatpush.bf16.msra.mxu0 0
        %5858 = vmatpush.bf16.msra.mxu0 0
        %5859 = vmatpush.bf16.msra.mxu0 0
        %5860 = vmatpush.bf16.msra.mxu0 0
        %5861 = vmatpush.bf16.msra.mxu0 0
        %5862 = vmatpush.bf16.msra.mxu0 0
        %5863 = vmatpush.bf16.msra.mxu0 %v5854
        %5864 = vmatpush.bf16.msra.mxu0 %v5853
        %5865 = vmatmul.bf16.gmra.mxu0 %v5830
        %v5866 = vpop.f32.mrf.mxu0
        %v5867 = vadd.f32 %v5810, %v5866
        %v5868 = vpop.f32.mrf.mxu0
        %5869 = vdwg.mxu0
        %v5874 = vunpack.c.l.b16 %v5742
        %v5875 = vunpack.c.l.b16 %v5743
        %v5876 = vunpack.c.l.b16 %v5744
        %v5877 = vunpack.c.l.b16 %v5745
        %v5878 = vpack.c.b16 %v5875, %v5874
        %v5879 = vpack.c.b16 %v5877, %v5876
        %5882 = vmatpush.bf16.msra.mxu0 0
        %5883 = vmatpush.bf16.msra.mxu0 0
        %5884 = vmatpush.bf16.msra.mxu0 0
        %5885 = vmatpush.bf16.msra.mxu0 0
        %5886 = vmatpush.bf16.msra.mxu0 0
        %5887 = vmatpush.bf16.msra.mxu0 0
        %5888 = vmatpush.bf16.msra.mxu0 %v5879
        %5889 = vmatpush.bf16.msra.mxu0 %v5878
        %5890 = vmatmul.bf16.gmra.mxu0 %v5830
        %v5891 = vpop.f32.mrf.mxu0
        %v5892 = vadd.f32 %v5811, %v5891
        %v5893 = vpop.f32.mrf.mxu0
        %5894 = vdwg.mxu0
        %v5899 = vunpack.c.l.b16 %v5746
        %v5900 = vunpack.c.l.b16 %v5747
        %v5901 = vunpack.c.l.b16 %v5748
        %v5902 = vunpack.c.l.b16 %v5749
        %v5903 = vpack.c.b16 %v5900, %v5899
        %v5904 = vpack.c.b16 %v5902, %v5901
        %5907 = vmatpush.bf16.msra.mxu0 0
        %5908 = vmatpush.bf16.msra.mxu0 0
        %5909 = vmatpush.bf16.msra.mxu0 0
        %5910 = vmatpush.bf16.msra.mxu0 0
        %5911 = vmatpush.bf16.msra.mxu0 0
        %5912 = vmatpush.bf16.msra.mxu0 0
        %5913 = vmatpush.bf16.msra.mxu0 %v5904
        %5914 = vmatpush.bf16.msra.mxu0 %v5903
        %5915 = vmatmul.bf16.gmra.mxu0 %v5830
        %v5916 = vpop.f32.mrf.mxu0
        %v5917 = vadd.f32 %v5812, %v5916
        %v5918 = vpop.f32.mrf.mxu0
        %5919 = vdwg.mxu0
        %v5928 = vperm.slane %v5789, 0
        %v5929 = vperm.slane %v5790, 0
        %v5930 = vperm.slane %v5791, 0
        %v5931 = vperm.slane %v5792, 0
        %v5932 = vperm.slane %v5793, 0
        %v5933 = vperm.slane %v5794, 0
        %v5934 = vperm.slane %v5795, 0
        %v5935 = vperm.slane %v5796, 0
        %v5948 = vunpack.c.l.b16 %v5756
        %v5949 = vunpack.c.l.b16 %v5757
        %v5950 = vunpack.c.l.b16 %v5758
        %v5951 = vunpack.c.l.b16 %v5759
        %v5952 = vpack.c.b16 %v5949, %v5948
        %v5953 = vpack.c.b16 %v5951, %v5950
        %5956 = vmatpush.bf16.msra.mxu0 0
        %5957 = vmatpush.bf16.msra.mxu0 0
        %5958 = vmatpush.bf16.msra.mxu0 0
        %5959 = vmatpush.bf16.msra.mxu0 0
        %5960 = vmatpush.bf16.msra.mxu0 0
        %5961 = vmatpush.bf16.msra.mxu0 0
        %5962 = vmatpush.bf16.msra.mxu0 %v5953
        %5963 = vmatpush.bf16.msra.mxu0 %v5952
        %5964 = vmatmul.bf16.gmra.mxu0 %v4228
        %v5965 = vpop.f32.mrf.mxu0
        %v5966 = vadd.f32 %v5928, %v5965
        %v5967 = vpop.f32.mrf.mxu0
        %5968 = vdwg.mxu0
        %v5973 = vunpack.c.l.b16 %v5760
        %v5974 = vunpack.c.l.b16 %v5761
        %v5975 = vunpack.c.l.b16 %v5762
        %v5976 = vunpack.c.l.b16 %v5763
        %v5977 = vpack.c.b16 %v5974, %v5973
        %v5978 = vpack.c.b16 %v5976, %v5975
        %5981 = vmatpush.bf16.msra.mxu0 0
        %5982 = vmatpush.bf16.msra.mxu0 0
        %5983 = vmatpush.bf16.msra.mxu0 0
        %5984 = vmatpush.bf16.msra.mxu0 0
        %5985 = vmatpush.bf16.msra.mxu0 0
        %5986 = vmatpush.bf16.msra.mxu0 0
        %5987 = vmatpush.bf16.msra.mxu0 %v5978
        %5988 = vmatpush.bf16.msra.mxu0 %v5977
        %5989 = vmatmul.bf16.gmra.mxu0 %v4228
        %v5990 = vpop.f32.mrf.mxu0
        %v5991 = vadd.f32 %v5929, %v5990
        %v5992 = vpop.f32.mrf.mxu0
        %5993 = vdwg.mxu0
        %v5998 = vunpack.c.l.b16 %v5764
        %v5999 = vunpack.c.l.b16 %v5765
        %v6000 = vunpack.c.l.b16 %v5766
        %v6001 = vunpack.c.l.b16 %v5767
        %v6002 = vpack.c.b16 %v5999, %v5998
        %v6003 = vpack.c.b16 %v6001, %v6000
        %6006 = vmatpush.bf16.msra.mxu0 0
        %6007 = vmatpush.bf16.msra.mxu0 0
        %6008 = vmatpush.bf16.msra.mxu0 0
        %6009 = vmatpush.bf16.msra.mxu0 0
        %6010 = vmatpush.bf16.msra.mxu0 0
        %6011 = vmatpush.bf16.msra.mxu0 0
        %6012 = vmatpush.bf16.msra.mxu0 %v6003
        %6013 = vmatpush.bf16.msra.mxu0 %v6002
        %6014 = vmatmul.bf16.gmra.mxu0 %v4228
        %v6015 = vpop.f32.mrf.mxu0
        %v6016 = vadd.f32 %v5930, %v6015
        %v6017 = vpop.f32.mrf.mxu0
        %6018 = vdwg.mxu0
        %v6023 = vunpack.c.l.b16 %v5768
        %v6024 = vunpack.c.l.b16 %v5769
        %v6025 = vunpack.c.l.b16 %v5770
        %v6026 = vunpack.c.l.b16 %v5771
        %v6027 = vpack.c.b16 %v6024, %v6023
        %v6028 = vpack.c.b16 %v6026, %v6025
        %6031 = vmatpush.bf16.msra.mxu0 0
        %6032 = vmatpush.bf16.msra.mxu0 0
        %6033 = vmatpush.bf16.msra.mxu0 0
        %6034 = vmatpush.bf16.msra.mxu0 0
        %6035 = vmatpush.bf16.msra.mxu0 0
        %6036 = vmatpush.bf16.msra.mxu0 0
        %6037 = vmatpush.bf16.msra.mxu0 %v6028
        %6038 = vmatpush.bf16.msra.mxu0 %v6027
        %6039 = vmatmul.bf16.gmra.mxu0 %v4228
        %v6040 = vpop.f32.mrf.mxu0
        %v6041 = vadd.f32 %v5931, %v6040
        %v6042 = vpop.f32.mrf.mxu0
        %6043 = vdwg.mxu0
        %v6048 = vunpack.c.l.b16 %v5772
        %v6049 = vunpack.c.l.b16 %v5773
        %v6050 = vunpack.c.l.b16 %v5774
        %v6051 = vunpack.c.l.b16 %v5775
        %v6052 = vpack.c.b16 %v6049, %v6048
        %v6053 = vpack.c.b16 %v6051, %v6050
        %6056 = vmatpush.bf16.msra.mxu0 0
        %6057 = vmatpush.bf16.msra.mxu0 0
        %6058 = vmatpush.bf16.msra.mxu0 0
        %6059 = vmatpush.bf16.msra.mxu0 0
        %6060 = vmatpush.bf16.msra.mxu0 0
        %6061 = vmatpush.bf16.msra.mxu0 0
        %6062 = vmatpush.bf16.msra.mxu0 %v6053
        %6063 = vmatpush.bf16.msra.mxu0 %v6052
        %6064 = vmatmul.bf16.gmra.mxu0 %v4228
        %v6065 = vpop.f32.mrf.mxu0
        %v6066 = vadd.f32 %v5932, %v6065
        %v6067 = vpop.f32.mrf.mxu0
        %6068 = vdwg.mxu0
        %v6073 = vunpack.c.l.b16 %v5776
        %v6074 = vunpack.c.l.b16 %v5777
        %v6075 = vunpack.c.l.b16 %v5778
        %v6076 = vunpack.c.l.b16 %v5779
        %v6077 = vpack.c.b16 %v6074, %v6073
        %v6078 = vpack.c.b16 %v6076, %v6075
        %6081 = vmatpush.bf16.msra.mxu0 0
        %6082 = vmatpush.bf16.msra.mxu0 0
        %6083 = vmatpush.bf16.msra.mxu0 0
        %6084 = vmatpush.bf16.msra.mxu0 0
        %6085 = vmatpush.bf16.msra.mxu0 0
        %6086 = vmatpush.bf16.msra.mxu0 0
        %6087 = vmatpush.bf16.msra.mxu0 %v6078
        %6088 = vmatpush.bf16.msra.mxu0 %v6077
        %6089 = vmatmul.bf16.gmra.mxu0 %v4228
        %v6090 = vpop.f32.mrf.mxu0
        %v6091 = vadd.f32 %v5933, %v6090
        %v6092 = vpop.f32.mrf.mxu0
        %6093 = vdwg.mxu0
        %v6098 = vunpack.c.l.b16 %v5780
        %v6099 = vunpack.c.l.b16 %v5781
        %v6100 = vunpack.c.l.b16 %v5782
        %v6101 = vunpack.c.l.b16 %v5783
        %v6102 = vpack.c.b16 %v6099, %v6098
        %v6103 = vpack.c.b16 %v6101, %v6100
        %6106 = vmatpush.bf16.msra.mxu0 0
        %6107 = vmatpush.bf16.msra.mxu0 0
        %6108 = vmatpush.bf16.msra.mxu0 0
        %6109 = vmatpush.bf16.msra.mxu0 0
        %6110 = vmatpush.bf16.msra.mxu0 0
        %6111 = vmatpush.bf16.msra.mxu0 0
        %6112 = vmatpush.bf16.msra.mxu0 %v6103
        %6113 = vmatpush.bf16.msra.mxu0 %v6102
        %6114 = vmatmul.bf16.gmra.mxu0 %v4228
        %v6115 = vpop.f32.mrf.mxu0
        %v6116 = vadd.f32 %v5934, %v6115
        %v6117 = vpop.f32.mrf.mxu0
        %6118 = vdwg.mxu0
        %v6123 = vunpack.c.l.b16 %v5784
        %v6124 = vunpack.c.l.b16 %v5785
        %v6125 = vunpack.c.l.b16 %v5786
        %v6126 = vunpack.c.l.b16 %v5787
        %v6127 = vpack.c.b16 %v6124, %v6123
        %v6128 = vpack.c.b16 %v6126, %v6125
        %6131 = vmatpush.bf16.msra.mxu0 0
        %6132 = vmatpush.bf16.msra.mxu0 0
        %6133 = vmatpush.bf16.msra.mxu0 0
        %6134 = vmatpush.bf16.msra.mxu0 0
        %6135 = vmatpush.bf16.msra.mxu0 0
        %6136 = vmatpush.bf16.msra.mxu0 0
        %6137 = vmatpush.bf16.msra.mxu0 %v6128
        %6138 = vmatpush.bf16.msra.mxu0 %v6127
        %6139 = vmatmul.bf16.gmra.mxu0 %v4228
        %v6140 = vpop.f32.mrf.mxu0
        %v6141 = vadd.f32 %v5935, %v6140
        %v6142 = vpop.f32.mrf.mxu0
        %6143 = vdwg.mxu0
        %v6144 = vpack.c.bf16 %v5842, %v5842
        %v6145 = vpack.c.bf16 %v5867, %v5867
        %v6146 = vpack.c.bf16 %v5892, %v5892
        %v6147 = vpack.c.bf16 %v5917, %v5917
        %v6148 = vpack.c.bf16 %v5966, %v5966
        %v6149 = vpack.c.bf16 %v5991, %v5991
        %v6150 = vpack.c.bf16 %v6016, %v6016
        %v6151 = vpack.c.bf16 %v6041, %v6041
        %v6153 = vsel %vm1778, %v6144, 0
        %v6156 = vsel %vm1778, %v6148, 0
        %6158 = vmatpush.bf16.xpose.msra.mxu0 0
        %6159 = vmatpush.bf16.xpose.msra.mxu0 0
        %6160 = vmatpush.bf16.xpose.msra.mxu0 0
        %6161 = vmatpush.bf16.xpose.msra.mxu0 0
        %6162 = vmatpush.bf16.xpose.msra.mxu0 0
        %6163 = vmatpush.bf16.xpose.msra.mxu0 0
        %6164 = vmatpush.bf16.xpose.msra.mxu0 0
        %6165 = vmatpush.bf16.xpose.msra.mxu0 %v6156
        %6166 = vmatmul.bf16.gmra.mxu0 %v6153
        %v6167 = vpop.f32.mrf.mxu0
        %v6168 = vadd.f32 %v1776, %v6167
        %v6169 = vpop.f32.mrf.mxu0
        %6170 = vdwg.mxu0
        %v6172 = vsel %vm1778, %v6145, 0
        %v6175 = vsel %vm1778, %v6149, 0
        %6177 = vmatpush.bf16.xpose.msra.mxu0 0
        %6178 = vmatpush.bf16.xpose.msra.mxu0 0
        %6179 = vmatpush.bf16.xpose.msra.mxu0 0
        %6180 = vmatpush.bf16.xpose.msra.mxu0 0
        %6181 = vmatpush.bf16.xpose.msra.mxu0 0
        %6182 = vmatpush.bf16.xpose.msra.mxu0 0
        %6183 = vmatpush.bf16.xpose.msra.mxu0 0
        %6184 = vmatpush.bf16.xpose.msra.mxu0 %v6175
        %6185 = vmatmul.bf16.gmra.mxu0 %v6172
        %v6186 = vpop.f32.mrf.mxu0
        %v6187 = vadd.f32 %v1776, %v6186
        %v6188 = vpop.f32.mrf.mxu0
        %6189 = vdwg.mxu0
        %v6191 = vsel %vm1778, %v6146, 0
        %v6194 = vsel %vm1778, %v6150, 0
        %6196 = vmatpush.bf16.xpose.msra.mxu0 0
        %6197 = vmatpush.bf16.xpose.msra.mxu0 0
        %6198 = vmatpush.bf16.xpose.msra.mxu0 0
        %6199 = vmatpush.bf16.xpose.msra.mxu0 0
        %6200 = vmatpush.bf16.xpose.msra.mxu0 0
        %6201 = vmatpush.bf16.xpose.msra.mxu0 0
        %6202 = vmatpush.bf16.xpose.msra.mxu0 0
        %6203 = vmatpush.bf16.xpose.msra.mxu0 %v6194
        %6204 = vmatmul.bf16.gmra.mxu0 %v6191
        %v6205 = vpop.f32.mrf.mxu0
        %v6206 = vadd.f32 %v1776, %v6205
        %v6207 = vpop.f32.mrf.mxu0
        %6208 = vdwg.mxu0
        %v6210 = vsel %vm1778, %v6147, 0
        %v6213 = vsel %vm1778, %v6151, 0
        %6215 = vmatpush.bf16.xpose.msra.mxu0 0
        %6216 = vmatpush.bf16.xpose.msra.mxu0 0
        %6217 = vmatpush.bf16.xpose.msra.mxu0 0
        %6218 = vmatpush.bf16.xpose.msra.mxu0 0
        %6219 = vmatpush.bf16.xpose.msra.mxu0 0
        %6220 = vmatpush.bf16.xpose.msra.mxu0 0
        %6221 = vmatpush.bf16.xpose.msra.mxu0 0
        %6222 = vmatpush.bf16.xpose.msra.mxu0 %v6213
        %6223 = vmatmul.bf16.gmra.mxu0 %v6210
        %v6224 = vpop.f32.mrf.mxu0
        %v6225 = vadd.f32 %v1776, %v6224
        %v6226 = vpop.f32.mrf.mxu0
        %6227 = vdwg.mxu0
        %v6228 = vsel %vm1778, %v6168, -inf
        %6229 = vmax.xlane.f32.xlu0 %v6228
        %v6230 = vpop.xlane.xlu0 %6229
        %v6231 = vsel %vm1778, %v6187, -inf
        %6232 = vmax.xlane.f32.xlu0 %v6231
        %v6233 = vpop.xlane.xlu0 %6232
        %v6234 = vsel %vm1778, %v6206, -inf
        %6235 = vmax.xlane.f32.xlu0 %v6234
        %v6236 = vpop.xlane.xlu0 %6235
        %v6237 = vsel %vm1778, %v6225, -inf
        %6238 = vmax.xlane.f32.xlu0 %v6237
        %v6239 = vpop.xlane.xlu0 %6238
        %v6240 = vsub.f32 %v6168, %v6230
        %v6241 = vsub.f32 %v6187, %v6233
        %v6242 = vsub.f32 %v6206, %v6236
        %v6243 = vsub.f32 %v6225, %v6239
        %v6244 = vmul.f32 %v6240, 1.442695
        %v6245 = vpow.pop %v6244
        %v6246 = vmul.f32 %v6241, 1.442695
        %v6247 = vpow.pop %v6246
        %v6248 = vmul.f32 %v6242, 1.442695
        %v6249 = vpow.pop %v6248
        %v6250 = vmul.f32 %v6243, 1.442695
        %v6251 = vpow.pop %v6250
        %v6252 = vsel %vm1778, %v6245, 0.0
        %6253 = vadd.xlane.f32.xlu0 %v6252
        %v6254 = vpop.xlane.xlu0 %6253
        %v6255 = vsel %vm1778, %v6247, 0.0
        %6256 = vadd.xlane.f32.xlu0 %v6255
        %v6257 = vpop.xlane.xlu0 %6256
        %v6258 = vsel %vm1778, %v6249, 0.0
        %6259 = vadd.xlane.f32.xlu0 %v6258
        %v6260 = vpop.xlane.xlu0 %6259
        %v6261 = vsel %vm1778, %v6251, 0.0
        %6262 = vadd.xlane.f32.xlu0 %v6261
        %v6263 = vpop.xlane.xlu0 %6262
        %v6264 = vrcp.pop %v6254
        %v6265 = vmul.f32 %v6254, %v6264
        %v6266 = vsub.f32 1.0, %v6265
        %v6267 = vmul.f32 %v6264, %v6266
        %v6268 = vadd.f32 %v6264, %v6267
        %vm6269 = vweird.f32 %v6254
        %vm6270 = vweird.f32 %v6264
        %vm6271 = vmor %vm6269, %vm6270
        %v6272 = vsel %vm6271, %v6264, %v6268
        %v6273 = vand.u32 2147483647, %v6254
        %vm6274 = vcmp.eq.f32.partialorder %v6273, 8.507059e+37
        %v6275 = vand.u32 %v6254, 2147483648
        %v6276 = vor.u32 1.1754944e-38, %v6275
        %v6277 = vsel %vm6274, %v6276, %v6272
        %v6278 = vmul.f32 %v6245, %v6277
        %v6279 = vrcp.pop %v6257
        %v6280 = vmul.f32 %v6257, %v6279
        %v6281 = vsub.f32 1.0, %v6280
        %v6282 = vmul.f32 %v6279, %v6281
        %v6283 = vadd.f32 %v6279, %v6282
        %vm6284 = vweird.f32 %v6257
        %vm6285 = vweird.f32 %v6279
        %vm6286 = vmor %vm6284, %vm6285
        %v6287 = vsel %vm6286, %v6279, %v6283
        %v6288 = vand.u32 2147483647, %v6257
        %vm6289 = vcmp.eq.f32.partialorder %v6288, 8.507059e+37
        %v6290 = vand.u32 %v6257, 2147483648
        %v6291 = vor.u32 1.1754944e-38, %v6290
        %v6292 = vsel %vm6289, %v6291, %v6287
        %v6293 = vmul.f32 %v6247, %v6292
        %v6294 = vrcp.pop %v6260
        %v6295 = vmul.f32 %v6260, %v6294
        %v6296 = vsub.f32 1.0, %v6295
        %v6297 = vmul.f32 %v6294, %v6296
        %v6298 = vadd.f32 %v6294, %v6297
        %vm6299 = vweird.f32 %v6260
        %vm6300 = vweird.f32 %v6294
        %vm6301 = vmor %vm6299, %vm6300
        %v6302 = vsel %vm6301, %v6294, %v6298
        %v6303 = vand.u32 2147483647, %v6260
        %vm6304 = vcmp.eq.f32.partialorder %v6303, 8.507059e+37
        %v6305 = vand.u32 %v6260, 2147483648
        %v6306 = vor.u32 1.1754944e-38, %v6305
        %v6307 = vsel %vm6304, %v6306, %v6302
        %v6308 = vmul.f32 %v6249, %v6307
        %v6309 = vrcp.pop %v6263
        %v6310 = vmul.f32 %v6263, %v6309
        %v6311 = vsub.f32 1.0, %v6310
        %v6312 = vmul.f32 %v6309, %v6311
        %v6313 = vadd.f32 %v6309, %v6312
        %vm6314 = vweird.f32 %v6263
        %vm6315 = vweird.f32 %v6309
        %vm6316 = vmor %vm6314, %vm6315
        %v6317 = vsel %vm6316, %v6309, %v6313
        %v6318 = vand.u32 2147483647, %v6263
        %vm6319 = vcmp.eq.f32.partialorder %v6318, 8.507059e+37
        %v6320 = vand.u32 %v6263, 2147483648
        %v6321 = vor.u32 1.1754944e-38, %v6320
        %v6322 = vsel %vm6319, %v6321, %v6317
        %v6323 = vmul.f32 %v6251, %v6322
        %v6324 = vpack.c.bf16 %v6278, %v6278
        %v6325 = vpack.c.bf16 %v6293, %v6293
        %v6326 = vpack.c.bf16 %v6308, %v6308
        %v6327 = vpack.c.bf16 %v6323, %v6323
        %v6328 = vpack.c.bf16 %v6066, %v6066
        %v6329 = vpack.c.bf16 %v6091, %v6091
        %v6330 = vpack.c.bf16 %v6116, %v6116
        %v6331 = vpack.c.bf16 %v6141, %v6141
        %v6333 = vsel %vm1778, %v6324, 0
        %v6336 = vsel %vm1962, %v6328, 0
        %6338 = vmatpush.bf16.msra.mxu0 0
        %6339 = vmatpush.bf16.msra.mxu0 0
        %6340 = vmatpush.bf16.msra.mxu0 0
        %6341 = vmatpush.bf16.msra.mxu0 0
        %6342 = vmatpush.bf16.msra.mxu0 0
        %6343 = vmatpush.bf16.msra.mxu0 0
        %6344 = vmatpush.bf16.msra.mxu0 0
        %6345 = vmatpush.bf16.msra.mxu0 %v6336
        %6346 = vmatmul.bf16.gmra.mxu0 %v6333
        %v6347 = vpop.f32.mrf.mxu0
        %v6348 = vadd.f32 0.0, %v6347
        %v6349 = vpop.f32.mrf.mxu0
        %6350 = vdwg.mxu0
        %v6352 = vsel %vm1778, %v6325, 0
        %v6355 = vsel %vm1962, %v6329, 0
        %6357 = vmatpush.bf16.msra.mxu0 0
        %6358 = vmatpush.bf16.msra.mxu0 0
        %6359 = vmatpush.bf16.msra.mxu0 0
        %6360 = vmatpush.bf16.msra.mxu0 0
        %6361 = vmatpush.bf16.msra.mxu0 0
        %6362 = vmatpush.bf16.msra.mxu0 0
        %6363 = vmatpush.bf16.msra.mxu0 0
        %6364 = vmatpush.bf16.msra.mxu0 %v6355
        %6365 = vmatmul.bf16.gmra.mxu0 %v6352
        %v6366 = vpop.f32.mrf.mxu0
        %v6367 = vadd.f32 0.0, %v6366
        %v6368 = vpop.f32.mrf.mxu0
        %6369 = vdwg.mxu0
        %v6371 = vsel %vm1778, %v6326, 0
        %v6374 = vsel %vm1962, %v6330, 0
        %6376 = vmatpush.bf16.msra.mxu0 0
        %6377 = vmatpush.bf16.msra.mxu0 0
        %6378 = vmatpush.bf16.msra.mxu0 0
        %6379 = vmatpush.bf16.msra.mxu0 0
        %6380 = vmatpush.bf16.msra.mxu0 0
        %6381 = vmatpush.bf16.msra.mxu0 0
        %6382 = vmatpush.bf16.msra.mxu0 0
        %6383 = vmatpush.bf16.msra.mxu0 %v6374
        %6384 = vmatmul.bf16.gmra.mxu0 %v6371
        %v6385 = vpop.f32.mrf.mxu0
        %v6386 = vadd.f32 0.0, %v6385
        %v6387 = vpop.f32.mrf.mxu0
        %6388 = vdwg.mxu0
        %v6390 = vsel %vm1778, %v6327, 0
        %v6393 = vsel %vm1962, %v6331, 0
        %6395 = vmatpush.bf16.msra.mxu0 0
        %6396 = vmatpush.bf16.msra.mxu0 0
        %6397 = vmatpush.bf16.msra.mxu0 0
        %6398 = vmatpush.bf16.msra.mxu0 0
        %6399 = vmatpush.bf16.msra.mxu0 0
        %6400 = vmatpush.bf16.msra.mxu0 0
        %6401 = vmatpush.bf16.msra.mxu0 0
        %6402 = vmatpush.bf16.msra.mxu0 %v6393
        %6403 = vmatmul.bf16.gmra.mxu0 %v6390
        %v6404 = vpop.f32.mrf.mxu0
        %v6405 = vadd.f32 0.0, %v6404
        %v6406 = vpop.f32.mrf.mxu0
        %6407 = vdwg.mxu0
        %v6408 = vpack.c.bf16 %v6348, %v6348
        %v6409 = vpack.c.bf16 %v6367, %v6367
        %v6410 = vpack.c.bf16 %v6386, %v6386
        %v6411 = vpack.c.bf16 %v6405, %v6405
        %v6413 = vsel %vm1778, %v6408, 0
        %v6416 = vsel %vm1962, %v5798, 0
        %6418 = vmatpush.bf16.msra.mxu0 0
        %6419 = vmatpush.bf16.msra.mxu0 0
        %6420 = vmatpush.bf16.msra.mxu0 0
        %6421 = vmatpush.bf16.msra.mxu0 0
        %6422 = vmatpush.bf16.msra.mxu0 0
        %6423 = vmatpush.bf16.msra.mxu0 0
        %6424 = vmatpush.bf16.msra.mxu0 0
        %6425 = vmatpush.bf16.msra.mxu0 %v6416
        %6426 = vmatmul.bf16.gmra.mxu0 %v6413
        %v6427 = vpop.f32.mrf.mxu0
        %v6428 = vadd.f32 0.0, %v6427
        %v6429 = vpop.f32.mrf.mxu0
        %6430 = vdwg.mxu0
        %v6432 = vsel %vm1778, %v6409, 0
        %v6435 = vsel %vm1962, %v5799, 0
        %6437 = vmatpush.bf16.msra.mxu0 0
        %6438 = vmatpush.bf16.msra.mxu0 0
        %6439 = vmatpush.bf16.msra.mxu0 0
        %6440 = vmatpush.bf16.msra.mxu0 0
        %6441 = vmatpush.bf16.msra.mxu0 0
        %6442 = vmatpush.bf16.msra.mxu0 0
        %6443 = vmatpush.bf16.msra.mxu0 0
        %6444 = vmatpush.bf16.msra.mxu0 %v6435
        %6445 = vmatmul.bf16.gmra.mxu0 %v6432
        %v6446 = vpop.f32.mrf.mxu0
        %v6447 = vadd.f32 0.0, %v6446
        %v6448 = vpop.f32.mrf.mxu0
        %6449 = vdwg.mxu0
        %v6451 = vsel %vm1778, %v6410, 0
        %v6454 = vsel %vm1962, %v5800, 0
        %6456 = vmatpush.bf16.msra.mxu0 0
        %6457 = vmatpush.bf16.msra.mxu0 0
        %6458 = vmatpush.bf16.msra.mxu0 0
        %6459 = vmatpush.bf16.msra.mxu0 0
        %6460 = vmatpush.bf16.msra.mxu0 0
        %6461 = vmatpush.bf16.msra.mxu0 0
        %6462 = vmatpush.bf16.msra.mxu0 0
        %6463 = vmatpush.bf16.msra.mxu0 %v6454
        %6464 = vmatmul.bf16.gmra.mxu0 %v6451
        %v6465 = vpop.f32.mrf.mxu0
        %v6466 = vadd.f32 0.0, %v6465
        %v6467 = vpop.f32.mrf.mxu0
        %6468 = vdwg.mxu0
        %v6470 = vsel %vm1778, %v6411, 0
        %v6473 = vsel %vm1962, %v5801, 0
        %6475 = vmatpush.bf16.msra.mxu0 0
        %6476 = vmatpush.bf16.msra.mxu0 0
        %6477 = vmatpush.bf16.msra.mxu0 0
        %6478 = vmatpush.bf16.msra.mxu0 0
        %6479 = vmatpush.bf16.msra.mxu0 0
        %6480 = vmatpush.bf16.msra.mxu0 0
        %6481 = vmatpush.bf16.msra.mxu0 0
        %6482 = vmatpush.bf16.msra.mxu0 %v6473
        %6483 = vmatmul.bf16.gmra.mxu0 %v6470
        %v6484 = vpop.f32.mrf.mxu0
        %v6485 = vadd.f32 0.0, %v6484
        %v6486 = vpop.f32.mrf.mxu0
        %6487 = vdwg.mxu0
        %v6488 = vsel %vm1324, %v6428, 0.0
        %v6489 = vsel %vm1324, %v6447, 0.0
        %v6490 = vadd.f32 %v6488, %v6489
        %v6491 = vsel %vm1324, %v6466, 0.0
        %v6492 = vadd.f32 %v6490, %v6491
        %v6493 = vsel %vm1324, %v6485, 0.0
        %v6494 = vadd.f32 %v6492, %v6493
        %v6496 = vperm.slane %v5803, 0
        %v6498 = vadd.f32 %v6494, %v6496
        %v6499 = vadd.f32 %v5698, %v6498
        %s6500 = scalar_lea.vmem %s35, 1
        %v6501 = vld [vmem:[%s6500] sm:$0x1]
        %s6502 = scalar_lea.vmem %s33, 1
        %v6503 = vld [vmem:[%s6502] sm:$0x1]
        %v6504 = vsel %vm1324, %v6499, 0.0
        %6505 = vadd.xlane.f32.xlu0 %v6504
        %v6506 = vpop.xlane.xlu0 %6505
        %v6507 = vmul.f32 %v6506, %v1334
        %v6508 = vsub.f32 %v6499, %v6507
        %v6509 = vmul.f32 %v6508, %v6508
        %v6510 = vsel %vm1324, %v6509, 0.0
        %6511 = vadd.xlane.f32.xlu0 %v6510
        %v6512 = vpop.xlane.xlu0 %6511
        %v6513 = vmul.f32 %v6512, %v1334
        %v6514 = vadd.f32 %v6513, 1e-05
        %v6515 = vrsqrt.pop %v6514
        %v6516 = vmul.f32 %v6515, %v6514
        %v6517 = vmul.f32 %v6516, %v6515
        %v6518 = vmul.f32 0.5, %v6517
        %v6519 = vsub.f32 1.5, %v6518
        %v6520 = vmul.f32 %v6515, %v6519
        %vm6521 = vweird.f32 %v6514
        %vm6522 = vweird.f32 %v6515
        %vm6523 = vmor %vm6521, %vm6522
        %v6524 = vsel %vm6523, %v6515, %v6520
        %v6525 = vmul.f32 %v6508, %v6524
        %v6527 = vperm.slane %v6501, 0
        %v6529 = vmul.f32 %v6525, %v6527
        %v6531 = vperm.slane %v6503, 0
        %v6533 = vadd.f32 %v6529, %v6531
        %s6534 = scalar_lea.vmem %s49, 16
        %v6535 = vld [vmem:[%s6534] sm:$0xf]
        %v6536 = vld [vmem:[%s6534 + $0x4] sm:$0xf]
        %v6537 = vld [vmem:[%s6534 + $0x8] sm:$0xf]
        %v6538 = vld [vmem:[%s6534 + $0xc] sm:$0xf]
        %s6539 = scalar_lea.vmem %s9, 1
        %v6540 = vld [vmem:[%s6539] sm:$0x1]
        %s6541 = scalar_lea.vmem %s51, 32
        %v6542 = vld [vmem:[%s6541] sm:$0xf]
        %v6543 = vld [vmem:[%s6541 + $0x4] sm:$0xf]
        %v6544 = vld [vmem:[%s6541 + $0x8] sm:$0xf]
        %v6545 = vld [vmem:[%s6541 + $0xc] sm:$0xf]
        %v6546 = vld [vmem:[%s6541 + $0x10] sm:$0xf]
        %v6547 = vld [vmem:[%s6541 + $0x14] sm:$0xf]
        %v6548 = vld [vmem:[%s6541 + $0x18] sm:$0xf]
        %v6549 = vld [vmem:[%s6541 + $0x1c] sm:$0xf]
        %s6550 = scalar_lea.vmem %s11, 1
        %v6551 = vld [vmem:[%s6550] sm:$0x1]
        %v6552 = vpack.c.bf16 %v6533, %v6533
        %v6554 = vperm.slane %v6540, 0
        %v6560 = vunpack.c.l.b16 %v6535
        %v6561 = vunpack.c.l.b16 %v6536
        %v6562 = vunpack.c.l.b16 %v6537
        %v6563 = vunpack.c.l.b16 %v6538
        %v6564 = vpack.c.b16 %v6561, %v6560
        %v6565 = vpack.c.b16 %v6563, %v6562
        %v6569 = vsel %vm1324, %v6552, 0
        %6571 = vmatpush.bf16.msra.mxu0 0
        %6572 = vmatpush.bf16.msra.mxu0 0
        %6573 = vmatpush.bf16.msra.mxu0 0
        %6574 = vmatpush.bf16.msra.mxu0 0
        %6575 = vmatpush.bf16.msra.mxu0 0
        %6576 = vmatpush.bf16.msra.mxu0 0
        %6577 = vmatpush.bf16.msra.mxu0 %v6565
        %6578 = vmatpush.bf16.msra.mxu0 %v6564
        %6579 = vmatmul.bf16.gmra.mxu0 %v6569
        %v6580 = vpop.f32.mrf.mxu0
        %v6581 = vadd.f32 %v6554, %v6580
        %v6582 = vpop.f32.mrf.mxu0
        %6583 = vdwg.mxu0
        %v6584 = vmax.f32 %v6581, 0.0
        %v6585 = vpack.c.bf16 %v6584, %v6584
        %v6587 = vperm.slane %v6551, 0
        %v6597 = vunpack.c.l.b16 %v6542
        %v6598 = vunpack.c.l.b16 %v6543
        %v6599 = vunpack.c.l.b16 %v6544
        %v6600 = vunpack.c.l.b16 %v6545
        %v6601 = vunpack.c.l.b16 %v6546
        %v6602 = vunpack.c.l.b16 %v6547
        %v6603 = vunpack.c.l.b16 %v6548
        %v6604 = vunpack.c.l.b16 %v6549
        %v6605 = vpack.c.b16 %v6598, %v6597
        %v6606 = vpack.c.b16 %v6600, %v6599
        %v6607 = vpack.c.b16 %v6602, %v6601
        %v6608 = vpack.c.b16 %v6604, %v6603
        %v6614 = vsel %vm2235, %v6585, 0
        %6616 = vmatpush.bf16.msra.mxu0 0
        %6617 = vmatpush.bf16.msra.mxu0 0
        %6618 = vmatpush.bf16.msra.mxu0 0
        %6619 = vmatpush.bf16.msra.mxu0 0
        %6620 = vmatpush.bf16.msra.mxu0 %v6608
        %6621 = vmatpush.bf16.msra.mxu0 %v6607
        %6622 = vmatpush.bf16.msra.mxu0 %v6606
        %6623 = vmatpush.bf16.msra.mxu0 %v6605
        %6624 = vmatmul.bf16.gmra.mxu0 %v6614
        %v6625 = vpop.f32.mrf.mxu0
        %v6626 = vadd.f32 %v6587, %v6625
        %v6627 = vpop.f32.mrf.mxu0
        %6628 = vdwg.mxu0
        %v6629 = vadd.f32 %v6499, %v6626
        %v6630 = vpack.c.bf16 %v6629, %v6629
        %v6631 = vld [vmem:[%s83] sm:$0xf]
        %v6632 = vld [vmem:[%s83 + $0x4] sm:$0xf]
        %v6633 = vld [vmem:[%s83 + $0x8] sm:$0xf]
        %v6634 = vld [vmem:[%s83 + $0xc] sm:$0xf]
        %v6635 = vld [vmem:[%s81] sm:$0x1]
        %v6637 = vperm.slane %v6635, 0
        %v6643 = vunpack.c.l.b16 %v6631
        %v6644 = vunpack.c.l.b16 %v6632
        %v6645 = vunpack.c.l.b16 %v6633
        %v6646 = vunpack.c.l.b16 %v6634
        %v6647 = vpack.c.b16 %v6644, %v6643
        %v6648 = vpack.c.b16 %v6646, %v6645
        %v6652 = vsel %vm1324, %v6630, 0
        %6654 = vmatpush.bf16.msra.mxu0 0
        %6655 = vmatpush.bf16.msra.mxu0 0
        %6656 = vmatpush.bf16.msra.mxu0 0
        %6657 = vmatpush.bf16.msra.mxu0 0
        %6658 = vmatpush.bf16.msra.mxu0 0
        %6659 = vmatpush.bf16.msra.mxu0 0
        %6660 = vmatpush.bf16.msra.mxu0 %v6648
        %6661 = vmatpush.bf16.msra.mxu0 %v6647
        %6662 = vmatmul.bf16.gmra.mxu0 %v6652
        %v6663 = vpop.f32.mrf.mxu0
        %v6664 = vadd.f32 %v6637, %v6663
        %v6665 = vpop.f32.mrf.mxu0
        %6666 = vdwg.mxu0
        %6667 = vmax.xlane.f32.xlu0 %v6664
        %v6668 = vpop.xlane.xlu0 %6667
        %v6669 = vsub.f32 %v6664, %v6668
        %v6670 = vmul.f32 %v6669, 1.442695
        %v6671 = vpow.pop %v6670
        %6672 = vadd.xlane.f32.xlu0 %v6671
        %v6673 = vpop.xlane.xlu0 %6672
        %v6674 = vlog2.pop %v6673
        %v6675 = vmul.f32 %v6674, 0.6931472
        %v6676 = vsub.f32 %v6669, %v6675
        %6677 = vst [vmem:[%s1292] sm:$0xff] %v6676
        %s6678 = sand.u32 %s1009, 1
        %s6679 = scalar_lea.sflag [#allocation3], %s6678
        %s6680 = sand.u32 %s1009, 1
        %s6681 = smul.addr %s6680, 8
        %s6682 = scalar_lea.vmem [#allocation2], %s6681
        // Predicated region
        $region189: #{transformer_forward.1} parent=187 // pred_check
          %p6683 = pneg %p1019
        $region190: #{transformer_forward.1} parent=187 // pred_check_branch
          %6685 = sbr.rel (%p6683) target = $region192
        $region191: #{transformer_forward.1} parent=187 // pred_region
          %6687 = vsyncadd %s6679, 0
          %s6688 = smul.addr %s99, 8
          %s6689 = scalar_lea.hbm %s85, %s6688
          %s6691 = sshll.u32 %s6682, 4
          %s6692 = int_to_ptr.vmem [resolvable:$true] %s6691
          %s6693 = sshll.u32 %s6689, 4
          %s6694 = int_to_ptr.hbm [resolvable:$true] %s6693
          %6696 = dma.vmem_to_hbm [thread:$0]  %s6692, 128, %s6694, %s6679
        $region192: #{transformer_forward.1} parent=187 // pred_fallthru
          _
      $region188: #{transformer_forward.1} parent=5 // pred_fallthru
        _
      %p6697 = scmp.le.s32.totalorder 2, %s94
      // Predicated region
      $region193: #{transformer_forward.1} parent=5 // pred_check
        %p6698 = pneg %p6697
      $region194: #{transformer_forward.1} parent=5 // pred_check_branch
        %6700 = sbr.rel (%p6698) target = $region196
      $region195: #{transformer_forward.1} parent=5 // pred_region
        %s6701 = ssub.s32 %s94, 2
        // Predicated region
        $region197: #{transformer_forward.1} parent=195 // pred_check
          %p6702 = pneg %p1025
        $region198: #{transformer_forward.1} parent=195 // pred_check_branch
          %6704 = sbr.rel (%p6702) target = $region200
        $region199: #{transformer_forward.1} parent=195 // pred_region
          %s6705 = sand.u32 %s1010, 1
          %s6706 = scalar_lea.sflag [#allocation3], %s6705
          %s6707 = sand.u32 %s1010, 1
          %s6708 = smul.addr %s6707, 8
          %s6709 = scalar_lea.vmem [#allocation2], %s6708
          %6711 = dma.done %s6706, 128
        $region200: #{transformer_forward.1} parent=195 // pred_fallthru
          _
      $region196: #{transformer_forward.1} parent=5 // pred_fallthru
        _
    $region6: #{transformer_forward.1} parent=1 // loop_footer
      %s98 = sadd.s32 1, %s94
    $region7: #{transformer_forward.1} parent=1 // loop_footer_branch
      %93 = sbr.rel target = $region3
    $region8: #{transformer_forward.1} parent=1 // loop_exit
      _
    %6712 = vsyncpa [#allocation3], 1
    %s6713 = scalar_lea.sflag [#allocation3], 1
    %6714 = vsyncpa %s6713, 1

</llo_original>
